<compile_context>
chip_gen: v5e
topology: v5e:2x2
jax: 0.10.0
libtpu: 0.0.40
codegen_flags: <defaults>
</compile_context>

<pallas_src>
import random

import jax
import jax.numpy as jnp
from jax import lax
from jax.experimental import pallas as pl
from jax.experimental.pallas import tpu as pltpu

# ----------------------------- hyper-params ---------------------------------
B = 2          # batch
S = 8          # src length
T = 6          # trg length (incl. SOS row)
E = 32         # embedding dim
H = 32         # hidden dim
V_SRC = 16     # src vocab
V_TRG = 16     # trg vocab (decoder.output_dim)


def _vmem():
    return pl.BlockSpec(memory_space=pltpu.MemorySpace.VMEM)


# --------------------------- shared GRU update -------------------------------
def _gru_update(h, xr, xz, xn, whh_ref, b_ref, bhn_ref):
    """PyTorch nn.GRUCell update given the input-side gate pre-activations.

    Weights are stacked along a leading gate axis (no 32-lane slicing of a
    (B, 3H) tile).  b_ref[0] = b_ir + b_hr, b_ref[1] = b_iz + b_hz,
    b_ref[2] = b_in; bhn_ref = b_hn (kept separate: r multiplies W_hn h + b_hn).
    """
    hr = jnp.dot(h, whh_ref[0], preferred_element_type=jnp.float32)
    hz = jnp.dot(h, whh_ref[1], preferred_element_type=jnp.float32)
    hn = jnp.dot(h, whh_ref[2], preferred_element_type=jnp.float32)
    r = jax.nn.sigmoid(xr + hr + b_ref[0])
    z = jax.nn.sigmoid(xz + hz + b_ref[1])
    n = jnp.tanh(xn + b_ref[2] + r * (hn + bhn_ref[...]))
    return (1.0 - z) * n + z * h


# ----------------------- fused encoder kernel (1 launch) ---------------------
def encoder_kernel(emb_ref, wih_ref, whh_ref, b_ref, bhn_ref, wae_ref, ba_ref,
                   enc_ref, eproj_ref, hfin_ref):
    s_len, b_sz, _ = emb_ref.shape
    h_dim = whh_ref.shape[-1]
    wae = wae_ref[...]                       # (H, H)  — loaded once
    ba = ba_ref[...]                         # (1, H)

    h = jnp.zeros((b_sz, h_dim), jnp.float32)
    for s in range(s_len):                   # static unroll, S is small
        x = emb_ref[s]                       # (B, E)
        xr = jnp.dot(x, wih_ref[0], preferred_element_type=jnp.float32)
        xz = jnp.dot(x, wih_ref[1], preferred_element_type=jnp.float32)
        xn = jnp.dot(x, wih_ref[2], preferred_element_type=jnp.float32)
        h = _gru_update(h, xr, xz, xn, whh_ref, b_ref, bhn_ref)
        enc_ref[s] = h                                                     # (B, H)
        # decoder-invariant attention projection, hoisted out of decode loop
        # (attention bias ba folded in here as well).
        eproj_ref[s] = jnp.dot(h, wae, preferred_element_type=jnp.float32) + ba
    hfin_ref[...] = h


def run_encoder(emb_src, wih, whh, b, bhn, wae, ba):
    return pl.pallas_call(
        encoder_kernel,
        out_shape=(jax.ShapeDtypeStruct((S, B, H), jnp.float32),   # enc (time-major)
                   jax.ShapeDtypeStruct((S, B, H), jnp.float32),   # enc @ Wa_e + ba
                   jax.ShapeDtypeStruct((B, H), jnp.float32)),     # final hidden
        in_specs=[_vmem()] * 7,
        out_specs=(_vmem(), _vmem(), _vmem()),
    )(emb_src, wih, whh, b, bhn, wae, ba)


# ----------------------- fused decoder kernel (1 launch) ---------------------
def decoder_kernel(h0_ref, enc_ref, eproj_ref, wah_ref, v_ref, demb_ref,
                   wihe_ref, wihc_ref, whh_ref, b_ref, bhn_ref,
                   fcwh_ref, fcwc_ref, fcwe_ref, fcb_ref,
                   trg_ref, tf_ref,
                   logits_ref, att_ref):
    b_sz, _, _ = enc_ref.shape
    v_trg = fcb_ref.shape[-1]
    n_steps = logits_ref.shape[0]

    # Everything below stays VMEM-resident across all decode steps.
    enc = enc_ref[...]                       # (B, S, H)
    eproj = eproj_ref[...]                   # (B, S, H)  (includes attention bias)
    wah = wah_ref[...]                       # (H, H)
    v_att = v_ref[...]                       # (1, H)
    demb = demb_ref[...]                     # (V, E)
    fcwh = fcwh_ref[...]                     # (H, V)
    fcwc = fcwc_ref[...]                     # (H, V)
    fcwe = fcwe_ref[...]                     # (E, V)
    fcb = fcb_ref[...]                       # (1, V)

    iota_i = lax.broadcasted_iota(jnp.int32, (b_sz, v_trg), 1)
    iota_f = iota_i.astype(jnp.float32)

    h = h0_ref[...]                          # (B, H)
    tok = trg_ref[0]                         # (B, 1) int32 — SOS tokens

    for i in range(n_steps):                 # static unroll, T-1 is small
        # ---- embedding gather as one-hot matmul (MXU) ----
        onehot = (tok == iota_i).astype(jnp.float32)                       # (B, V)
        emb = jnp.dot(onehot, demb, preferred_element_type=jnp.float32)    # (B, E)

        # ---- additive attention over precomputed encoder projection ----
        h_part = jnp.dot(h, wah, preferred_element_type=jnp.float32)       # (B, H)
        energy = jnp.tanh(h_part[:, None, :] + eproj)                       # (B, S, H)
        score = jnp.sum(energy * v_att[None, :, :], axis=-1)                # (B, S)
        score = score - jnp.max(score, axis=-1, keepdims=True)
        p = jnp.exp(score)
        a = p * pl.reciprocal(jnp.sum(p, axis=-1, keepdims=True), approx=False)
        ctx = jnp.sum(a[:, :, None] * enc, axis=1)                          # (B, H)

        # ---- GRU cell on [emb ; ctx] (concat avoided via split weights) ----
        xr = (jnp.dot(emb, wihe_ref[0], preferred_element_type=jnp.float32)
              + jnp.dot(ctx, wihc_ref[0], preferred_element_type=jnp.float32))
        xz = (jnp.dot(emb, wihe_ref[1], preferred_element_type=jnp.float32)
              + jnp.dot(ctx, wihc_ref[1], preferred_element_type=jnp.float32))
        xn = (jnp.dot(emb, wihe_ref[2], preferred_element_type=jnp.float32)
              + jnp.dot(ctx, wihc_ref[2], preferred_element_type=jnp.float32))
        h = _gru_update(h, xr, xz, xn, whh_ref, b_ref, bhn_ref)

        # ---- output projection on [h ; ctx ; emb] (split weights) ----
        logits = (jnp.dot(h, fcwh, preferred_element_type=jnp.float32)
                  + jnp.dot(ctx, fcwc, preferred_element_type=jnp.float32)
                  + jnp.dot(emb, fcwe, preferred_element_type=jnp.float32)
                  + fcb)                                                    # (B, V)
        logits_ref[i] = logits
        att_ref[i] = a

        # ---- greedy top1 (first argmax, matches torch .max(1)[1]) ----
        maxv = jnp.max(logits, axis=-1, keepdims=True)
        cand = jnp.where(logits == maxv, iota_f, float(v_trg))
        top1 = jnp.min(cand, axis=-1, keepdims=True).astype(jnp.int32)      # (B, 1)

        # ---- teacher forcing select (mask precomputed on host) ----
        tf = tf_ref[i]                                                      # (1, 1)
        tok = jnp.where(tf > 0, trg_ref[i + 1], top1)


def run_decoder(h0, enc, eproj, wah, v, demb, wihe, wihc, whh, b, bhn,
                fcwh, fcwc, fcwe, fcb, trg_col, tf_mask):
    return pl.pallas_call(
        decoder_kernel,
        out_shape=(jax.ShapeDtypeStruct((T - 1, B, V_TRG), jnp.float32),
                   jax.ShapeDtypeStruct((T - 1, B, S), jnp.float32)),
        in_specs=[_vmem()] * 17,
        out_specs=(_vmem(), _vmem()),
    )(h0, enc, eproj, wah, v, demb, wihe, wihc, whh, b, bhn,
      fcwh, fcwc, fcwe, fcb, trg_col, tf_mask)


# --------------------------- parameter init ----------------------------------
def init_params(key):
    ks = jax.random.split(key, 16)
    sc = 0.1
    return {
        # encoder (GRU weights stacked along a leading [r, z, n] gate axis)
        "enc_emb": jax.random.normal(ks[0], (V_SRC, E), jnp.float32) * sc,
        "enc_wih": jax.random.normal(ks[1], (3, E, H), jnp.float32) * sc,
        "enc_whh": jax.random.normal(ks[2], (3, H, H), jnp.float32) * sc,
        "enc_bih": jax.random.normal(ks[3], (3, 1, H), jnp.float32) * sc,
        "enc_bhh": jax.random.normal(ks[4], (3, 1, H), jnp.float32) * sc,
        # attention
        "wa_h": jax.random.normal(ks[5], (H, H), jnp.float32) * sc,
        "wa_e": jax.random.normal(ks[6], (H, H), jnp.float32) * sc,
        "ba":   jax.random.normal(ks[7], (1, H), jnp.float32) * sc,
        "v":    jax.random.normal(ks[8], (1, H), jnp.float32) * sc,
        # decoder
        "dec_emb": jax.random.normal(ks[9], (V_TRG, E), jnp.float32) * sc,
        "dec_wih": jax.random.normal(ks[10], (3, E + H, H), jnp.float32) * sc,
        "dec_whh": jax.random.normal(ks[11], (3, H, H), jnp.float32) * sc,
        "dec_bih": jax.random.normal(ks[12], (3, 1, H), jnp.float32) * sc,
        "dec_bhh": jax.random.normal(ks[13], (3, 1, H), jnp.float32) * sc,
        "fc_w": jax.random.normal(ks[14], (2 * H + E, V_TRG), jnp.float32) * sc,
        "fc_b": jax.random.normal(ks[15], (1, V_TRG), jnp.float32) * sc,
    }


# ----------------------------- Seq2Seq forward -------------------------------
@jax.jit
def seq2seq_forward(params, src, trg, tf_mask):
    """src: (S, B) int32, trg: (T, B) int32 (row 0 = SOS),
    tf_mask: (T-1, 1, 1) int32 teacher-forcing decisions (precomputed on host).

    Returns (outputs, att_weights): outputs (T, B, V_TRG) with row 0 zeros,
    att_weights (B, T-1, S) — matching the PyTorch module.
    """
    batch = src.shape[1]

    # ----- fold GRU r/z biases once; keep b_hn separate (GRUCell semantics) --
    enc_b = jnp.stack([params["enc_bih"][0] + params["enc_bhh"][0],
                       params["enc_bih"][1] + params["enc_bhh"][1],
                       params["enc_bih"][2]], axis=0)
    enc_bhn = params["enc_bhh"][2]
    dec_b = jnp.stack([params["dec_bih"][0] + params["dec_bhh"][0],
                       params["dec_bih"][1] + params["dec_bhh"][1],
                       params["dec_bih"][2]], axis=0)
    dec_bhn = params["dec_bhh"][2]
    # split concat-style weights so the kernel does pure matmul-adds
    wihe = params["dec_wih"][:, :E, :]      # multiplies emb
    wihc = params["dec_wih"][:, E:, :]      # multiplies ctx
    fcwh = params["fc_w"][:H, :]
    fcwc = params["fc_w"][H:2 * H, :]
    fcwe = params["fc_w"][2 * H:, :]

    # ----- encoder: token gather in XLA, GRU time loop fused in one kernel ---
    emb_src = jnp.take(params["enc_emb"], src, axis=0)          # (S, B, E)
    enc_sbh, eproj_sbh, h0 = run_encoder(
        emb_src, params["enc_wih"], params["enc_whh"],
        enc_b, enc_bhn, params["wa_e"], params["ba"])
    enc = jnp.transpose(enc_sbh, (1, 0, 2))                     # (B, S, H)
    eproj = jnp.transpose(eproj_sbh, (1, 0, 2))                 # (B, S, H)

    # ----- decoder: the whole target time loop fused in one kernel -----------
    trg_col = trg.astype(jnp.int32)[:, :, None]                 # (T, B, 1)
    logits_all, att_all = run_decoder(
        h0, enc, eproj, params["wa_h"], params["v"], params["dec_emb"],
        wihe, wihc, params["dec_whh"], dec_b, dec_bhn,
        fcwh, fcwc, fcwe, params["fc_b"], trg_col, tf_mask)

    outputs = jnp.concatenate(
        [jnp.zeros((1, batch, V_TRG), jnp.float32), logits_all], axis=0)  # (T,B,V)
    att_weights = jnp.transpose(att_all, (1, 0, 2))                        # (B,T-1,S)
    return outputs, att_weights


# ----------------------------------- main ------------------------------------
if __name__ == "__main__":
    random.seed(0)                 # deterministic teacher forcing
    key = jax.random.PRNGKey(0)
    kp, ks_, kt = jax.random.split(key, 3)

    params = init_params(kp)
    src = jax.random.randint(ks_, (S, B), 0, V_SRC, dtype=jnp.int32)
    # row 0 of trg is the SOS token (index 0), like the np.concatenate snippet
    trg_body = jax.random.randint(kt, (T - 1, B), 1, V_TRG, dtype=jnp.int32)
    trg = jnp.concatenate([jnp.zeros((1, B), jnp.int32), trg_body], axis=0)

    # Precompute per-step teacher-forcing decisions on the host so the whole
    # forward is jittable and the coin flips are not baked into the trace.
    teacher_forcing_ratio = 0.5
    tf_mask = jnp.asarray(
        [1 if random.random() < teacher_forcing_ratio else 0
         for _ in range(T - 1)], dtype=jnp.int32).reshape(T - 1, 1, 1)

    outputs, att_weights = seq2seq_forward(params, src, trg, tf_mask)
    jax.block_until_ready(outputs)
    jax.block_until_ready(att_weights)

    assert outputs.shape == (T, B, V_TRG)
    assert att_weights.shape == (B, T - 1, S)
    assert bool(jnp.all(outputs[0] == 0.0))                         # row 0 untouched
    assert bool(jnp.allclose(att_weights.sum(-1), 1.0, atol=1e-5))  # softmax rows

    print("KERNEL_OK")
</pallas_src>

<mosaic_0001>
module attributes {stable_mosaic.version = 11 : i64} {
  func.func @encoder_kernel(%arg0: memref<8x2x32xf32, #tpu.memory_space<vmem>>, %arg1: memref<3x32x32xf32, #tpu.memory_space<vmem>>, %arg2: memref<3x32x32xf32, #tpu.memory_space<vmem>>, %arg3: memref<3x1x32xf32, #tpu.memory_space<vmem>>, %arg4: memref<1x32xf32, #tpu.memory_space<vmem>>, %arg5: memref<32x32xf32, #tpu.memory_space<vmem>>, %arg6: memref<1x32xf32, #tpu.memory_space<vmem>>, %arg7: memref<8x2x32xf32, #tpu.memory_space<vmem>>, %arg8: memref<8x2x32xf32, #tpu.memory_space<vmem>>, %arg9: memref<2x32xf32, #tpu.memory_space<vmem>>) attributes {dimension_semantics = [], scalar_prefetch = 0 : i64, scratch_operands = 0 : i64, tpu.core_type = #tpu.core_type<tc>} {
    %c0 = arith.constant 0 : index
    %c0_0 = arith.constant 0 : index
    %0 = vector.load %arg5[%c0, %c0_0] : memref<32x32xf32, #tpu.memory_space<vmem>>, vector<32x32xf32>
    %c0_1 = arith.constant 0 : index
    %c0_2 = arith.constant 0 : index
    %1 = vector.load %arg6[%c0_1, %c0_2] : memref<1x32xf32, #tpu.memory_space<vmem>>, vector<1x32xf32>
    %cst = arith.constant 0.000000e+00 : f32
    %2 = vector.broadcast %cst : f32 to vector<2x32xf32>
    %c0_3 = arith.constant 0 : index
    %c0_4 = arith.constant 0 : index
    %c0_5 = arith.constant 0 : index
    %3 = vector.load %arg0[%c0_3, %c0_4, %c0_5] : memref<8x2x32xf32, #tpu.memory_space<vmem>>, vector<1x2x32xf32>
    %4 = vector.shape_cast %3 : vector<1x2x32xf32> to vector<2x32xf32>
    %c0_6 = arith.constant 0 : index
    %c0_7 = arith.constant 0 : index
    %c0_8 = arith.constant 0 : index
    %5 = vector.load %arg1[%c0_6, %c0_7, %c0_8] : memref<3x32x32xf32, #tpu.memory_space<vmem>>, vector<1x32x32xf32>
    %6 = vector.shape_cast %5 : vector<1x32x32xf32> to vector<32x32xf32>
    %cst_9 = arith.constant dense<0.000000e+00> : vector<2x32xf32>
    %7 = tpu.matmul %4, %6, %cst_9 {dimension_numbers = #tpu.dot_dimension_numbers<[1], [0], [0], [1], [0, 0, 1, 1], [], []>} : vector<2x32xf32>, vector<32x32xf32>, vector<2x32xf32> -> vector<2x32xf32>
    %c1 = arith.constant 1 : index
    %c0_10 = arith.constant 0 : index
    %c0_11 = arith.constant 0 : index
    %8 = vector.load %arg1[%c1, %c0_10, %c0_11] : memref<3x32x32xf32, #tpu.memory_space<vmem>>, vector<1x32x32xf32>
    %9 = vector.shape_cast %8 : vector<1x32x32xf32> to vector<32x32xf32>
    %cst_12 = arith.constant dense<0.000000e+00> : vector<2x32xf32>
    %10 = tpu.matmul %4, %9, %cst_12 {dimension_numbers = #tpu.dot_dimension_numbers<[1], [0], [0], [1], [0, 0, 1, 1], [], []>} : vector<2x32xf32>, vector<32x32xf32>, vector<2x32xf32> -> vector<2x32xf32>
    %c2 = arith.constant 2 : index
    %c0_13 = arith.constant 0 : index
    %c0_14 = arith.constant 0 : index
    %11 = vector.load %arg1[%c2, %c0_13, %c0_14] : memref<3x32x32xf32, #tpu.memory_space<vmem>>, vector<1x32x32xf32>
    %12 = vector.shape_cast %11 : vector<1x32x32xf32> to vector<32x32xf32>
    %cst_15 = arith.constant dense<0.000000e+00> : vector<2x32xf32>
    %13 = tpu.matmul %4, %12, %cst_15 {dimension_numbers = #tpu.dot_dimension_numbers<[1], [0], [0], [1], [0, 0, 1, 1], [], []>} : vector<2x32xf32>, vector<32x32xf32>, vector<2x32xf32> -> vector<2x32xf32>
    %c0_16 = arith.constant 0 : index
    %c0_17 = arith.constant 0 : index
    %c0_18 = arith.constant 0 : index
    %14 = vector.load %arg2[%c0_16, %c0_17, %c0_18] : memref<3x32x32xf32, #tpu.memory_space<vmem>>, vector<1x32x32xf32>
    %15 = vector.shape_cast %14 : vector<1x32x32xf32> to vector<32x32xf32>
    %cst_19 = arith.constant dense<0.000000e+00> : vector<2x32xf32>
    %16 = tpu.matmul %2, %15, %cst_19 {dimension_numbers = #tpu.dot_dimension_numbers<[1], [0], [0], [1], [0, 0, 1, 1], [], []>} : vector<2x32xf32>, vector<32x32xf32>, vector<2x32xf32> -> vector<2x32xf32>
    %c1_20 = arith.constant 1 : index
    %c0_21 = arith.constant 0 : index
    %c0_22 = arith.constant 0 : index
    %17 = vector.load %arg2[%c1_20, %c0_21, %c0_22] : memref<3x32x32xf32, #tpu.memory_space<vmem>>, vector<1x32x32xf32>
    %18 = vector.shape_cast %17 : vector<1x32x32xf32> to vector<32x32xf32>
    %cst_23 = arith.constant dense<0.000000e+00> : vector<2x32xf32>
    %19 = tpu.matmul %2, %18, %cst_23 {dimension_numbers = #tpu.dot_dimension_numbers<[1], [0], [0], [1], [0, 0, 1, 1], [], []>} : vector<2x32xf32>, vector<32x32xf32>, vector<2x32xf32> -> vector<2x32xf32>
    %c2_24 = arith.constant 2 : index
    %c0_25 = arith.constant 0 : index
    %c0_26 = arith.constant 0 : index
    %20 = vector.load %arg2[%c2_24, %c0_25, %c0_26] : memref<3x32x32xf32, #tpu.memory_space<vmem>>, vector<1x32x32xf32>
    %21 = vector.shape_cast %20 : vector<1x32x32xf32> to vector<32x32xf32>
    %cst_27 = arith.constant dense<0.000000e+00> : vector<2x32xf32>
    %22 = tpu.matmul %2, %21, %cst_27 {dimension_numbers = #tpu.dot_dimension_numbers<[1], [0], [0], [1], [0, 0, 1, 1], [], []>} : vector<2x32xf32>, vector<32x32xf32>, vector<2x32xf32> -> vector<2x32xf32>
    %23 = arith.addf %7, %16 : vector<2x32xf32>
    %c0_28 = arith.constant 0 : index
    %c0_29 = arith.constant 0 : index
    %c0_30 = arith.constant 0 : index
    %24 = vector.load %arg3[%c0_28, %c0_29, %c0_30] : memref<3x1x32xf32, #tpu.memory_space<vmem>>, vector<1x1x32xf32>
    %25 = vector.shape_cast %24 : vector<1x1x32xf32> to vector<1x32xf32>
    %26 = vector.broadcast %25 : vector<1x32xf32> to vector<2x32xf32>
    %27 = arith.addf %23, %26 : vector<2x32xf32>
    %28 = arith.negf %27 : vector<2x32xf32>
    %29 = math.exp %28 : vector<2x32xf32>
    %cst_31 = arith.constant 1.000000e+00 : f32
    %30 = vector.broadcast %cst_31 : f32 to vector<2x32xf32>
    %31 = arith.addf %30, %29 : vector<2x32xf32>
    %32 = arith.divf %30, %31 : vector<2x32xf32>
    %33 = arith.addf %10, %19 : vector<2x32xf32>
    %c1_32 = arith.constant 1 : index
    %c0_33 = arith.constant 0 : index
    %c0_34 = arith.constant 0 : index
    %34 = vector.load %arg3[%c1_32, %c0_33, %c0_34] : memref<3x1x32xf32, #tpu.memory_space<vmem>>, vector<1x1x32xf32>
    %35 = vector.shape_cast %34 : vector<1x1x32xf32> to vector<1x32xf32>
    %36 = vector.broadcast %35 : vector<1x32xf32> to vector<2x32xf32>
    %37 = arith.addf %33, %36 : vector<2x32xf32>
    %38 = arith.negf %37 : vector<2x32xf32>
    %39 = math.exp %38 : vector<2x32xf32>
    %cst_35 = arith.constant 1.000000e+00 : f32
    %40 = vector.broadcast %cst_35 : f32 to vector<2x32xf32>
    %41 = arith.addf %40, %39 : vector<2x32xf32>
    %42 = arith.divf %40, %41 : vector<2x32xf32>
    %c2_36 = arith.constant 2 : index
    %c0_37 = arith.constant 0 : index
    %c0_38 = arith.constant 0 : index
    %43 = vector.load %arg3[%c2_36, %c0_37, %c0_38] : memref<3x1x32xf32, #tpu.memory_space<vmem>>, vector<1x1x32xf32>
    %44 = vector.shape_cast %43 : vector<1x1x32xf32> to vector<1x32xf32>
    %45 = vector.broadcast %44 : vector<1x32xf32> to vector<2x32xf32>
    %46 = arith.addf %13, %45 : vector<2x32xf32>
    %c0_39 = arith.constant 0 : index
    %c0_40 = arith.constant 0 : index
    %47 = vector.load %arg4[%c0_39, %c0_40] : memref<1x32xf32, #tpu.memory_space<vmem>>, vector<1x32xf32>
    %48 = vector.broadcast %47 : vector<1x32xf32> to vector<2x32xf32>
    %49 = arith.addf %22, %48 : vector<2x32xf32>
    %50 = arith.mulf %32, %49 : vector<2x32xf32>
    %51 = arith.addf %46, %50 : vector<2x32xf32>
    %52 = math.tanh %51 : vector<2x32xf32>
    %cst_41 = arith.constant 1.000000e+00 : f32
    %53 = vector.broadcast %cst_41 : f32 to vector<2x32xf32>
    %54 = arith.subf %53, %42 : vector<2x32xf32>
    %55 = arith.mulf %54, %52 : vector<2x32xf32>
    %56 = arith.mulf %42, %2 : vector<2x32xf32>
    %57 = arith.addf %55, %56 : vector<2x32xf32>
    %c0_42 = arith.constant 0 : index
    %c0_43 = arith.constant 0 : index
    %c0_44 = arith.constant 0 : index
    %58 = vector.load %arg7[%c0_42, %c0_43, %c0_44] : memref<8x2x32xf32, #tpu.memory_space<vmem>>, vector<1x2x32xf32>
    %59 = vector.shape_cast %58 : vector<1x2x32xf32> to vector<2x32xf32>
    %60 = vector.shape_cast %57 : vector<2x32xf32> to vector<1x2x32xf32>
    tpu.vector_store %arg7[%c0_42, %c0_43, %c0_44], %60 {strides = array<i32>} : memref<8x2x32xf32, #tpu.memory_space<vmem>>, vector<1x2x32xf32>,
    %cst_45 = arith.constant dense<0.000000e+00> : vector<2x32xf32>
    %61 = tpu.matmul %57, %0, %cst_45 {dimension_numbers = #tpu.dot_dimension_numbers<[1], [0], [0], [1], [0, 0, 1, 1], [], []>} : vector<2x32xf32>, vector<32x32xf32>, vector<2x32xf32> -> vector<2x32xf32>
    %62 = vector.broadcast %1 : vector<1x32xf32> to vector<2x32xf32>
    %63 = arith.addf %61, %62 : vector<2x32xf32>
    %c0_46 = arith.constant 0 : index
    %c0_47 = arith.constant 0 : index
    %c0_48 = arith.constant 0 : index
    %64 = vector.load %arg8[%c0_46, %c0_47, %c0_48] : memref<8x2x32xf32, #tpu.memory_space<vmem>>, vector<1x2x32xf32>
    %65 = vector.shape_cast %64 : vector<1x2x32xf32> to vector<2x32xf32>
    %66 = vector.shape_cast %63 : vector<2x32xf32> to vector<1x2x32xf32>
    tpu.vector_store %arg8[%c0_46, %c0_47, %c0_48], %66 {strides = array<i32>} : memref<8x2x32xf32, #tpu.memory_space<vmem>>, vector<1x2x32xf32>,
    %c1_49 = arith.constant 1 : index
    %c0_50 = arith.constant 0 : index
    %c0_51 = arith.constant 0 : index
    %67 = vector.load %arg0[%c1_49, %c0_50, %c0_51] : memref<8x2x32xf32, #tpu.memory_space<vmem>>, vector<1x2x32xf32>
    %68 = vector.shape_cast %67 : vector<1x2x32xf32> to vector<2x32xf32>
    %c0_52 = arith.constant 0 : index
    %c0_53 = arith.constant 0 : index
    %c0_54 = arith.constant 0 : index
    %69 = vector.load %arg1[%c0_52, %c0_53, %c0_54] : memref<3x32x32xf32, #tpu.memory_space<vmem>>, vector<1x32x32xf32>
    %70 = vector.shape_cast %69 : vector<1x32x32xf32> to vector<32x32xf32>
    %cst_55 = arith.constant dense<0.000000e+00> : vector<2x32xf32>
    %71 = tpu.matmul %68, %70, %cst_55 {dimension_numbers = #tpu.dot_dimension_numbers<[1], [0], [0], [1], [0, 0, 1, 1], [], []>} : vector<2x32xf32>, vector<32x32xf32>, vector<2x32xf32> -> vector<2x32xf32>
    %c1_56 = arith.constant 1 : index
    %c0_57 = arith.constant 0 : index
    %c0_58 = arith.constant 0 : index
    %72 = vector.load %arg1[%c1_56, %c0_57, %c0_58] : memref<3x32x32xf32, #tpu.memory_space<vmem>>, vector<1x32x32xf32>
    %73 = vector.shape_cast %72 : vector<1x32x32xf32> to vector<32x32xf32>
    %cst_59 = arith.constant dense<0.000000e+00> : vector<2x32xf32>
    %74 = tpu.matmul %68, %73, %cst_59 {dimension_numbers = #tpu.dot_dimension_numbers<[1], [0], [0], [1], [0, 0, 1, 1], [], []>} : vector<2x32xf32>, vector<32x32xf32>, vector<2x32xf32> -> vector<2x32xf32>
    %c2_60 = arith.constant 2 : index
    %c0_61 = arith.constant 0 : index
    %c0_62 = arith.constant 0 : index
    %75 = vector.load %arg1[%c2_60, %c0_61, %c0_62] : memref<3x32x32xf32, #tpu.memory_space<vmem>>, vector<1x32x32xf32>
    %76 = vector.shape_cast %75 : vector<1x32x32xf32> to vector<32x32xf32>
    %cst_63 = arith.constant dense<0.000000e+00> : vector<2x32xf32>
    %77 = tpu.matmul %68, %76, %cst_63 {dimension_numbers = #tpu.dot_dimension_numbers<[1], [0], [0], [1], [0, 0, 1, 1], [], []>} : vector<2x32xf32>, vector<32x32xf32>, vector<2x32xf32> -> vector<2x32xf32>
    %c0_64 = arith.constant 0 : index
    %c0_65 = arith.constant 0 : index
    %c0_66 = arith.constant 0 : index
    %78 = vector.load %arg2[%c0_64, %c0_65, %c0_66] : memref<3x32x32xf32, #tpu.memory_space<vmem>>, vector<1x32x32xf32>
    %79 = vector.shape_cast %78 : vector<1x32x32xf32> to vector<32x32xf32>
    %cst_67 = arith.constant dense<0.000000e+00> : vector<2x32xf32>
    %80 = tpu.matmul %57, %79, %cst_67 {dimension_numbers = #tpu.dot_dimension_numbers<[1], [0], [0], [1], [0, 0, 1, 1], [], []>} : vector<2x32xf32>, vector<32x32xf32>, vector<2x32xf32> -> vector<2x32xf32>
    %c1_68 = arith.constant 1 : index
    %c0_69 = arith.constant 0 : index
    %c0_70 = arith.constant 0 : index
    %81 = vector.load %arg2[%c1_68, %c0_69, %c0_70] : memref<3x32x32xf32, #tpu.memory_space<vmem>>, vector<1x32x32xf32>
    %82 = vector.shape_cast %81 : vector<1x32x32xf32> to vector<32x32xf32>
    %cst_71 = arith.constant dense<0.000000e+00> : vector<2x32xf32>
    %83 = tpu.matmul %57, %82, %cst_71 {dimension_numbers = #tpu.dot_dimension_numbers<[1], [0], [0], [1], [0, 0, 1, 1], [], []>} : vector<2x32xf32>, vector<32x32xf32>, vector<2x32xf32> -> vector<2x32xf32>
    %c2_72 = arith.constant 2 : index
    %c0_73 = arith.constant 0 : index
    %c0_74 = arith.constant 0 : index
    %84 = vector.load %arg2[%c2_72, %c0_73, %c0_74] : memref<3x32x32xf32, #tpu.memory_space<vmem>>, vector<1x32x32xf32>
    %85 = vector.shape_cast %84 : vector<1x32x32xf32> to vector<32x32xf32>
    %cst_75 = arith.constant dense<0.000000e+00> : vector<2x32xf32>
    %86 = tpu.matmul %57, %85, %cst_75 {dimension_numbers = #tpu.dot_dimension_numbers<[1], [0], [0], [1], [0, 0, 1, 1], [], []>} : vector<2x32xf32>, vector<32x32xf32>, vector<2x32xf32> -> vector<2x32xf32>
    %87 = arith.addf %71, %80 : vector<2x32xf32>
    %c0_76 = arith.constant 0 : index
    %c0_77 = arith.constant 0 : index
    %c0_78 = arith.constant 0 : index
    %88 = vector.load %arg3[%c0_76, %c0_77, %c0_78] : memref<3x1x32xf32, #tpu.memory_space<vmem>>, vector<1x1x32xf32>
    %89 = vector.shape_cast %88 : vector<1x1x32xf32> to vector<1x32xf32>
    %90 = vector.broadcast %89 : vector<1x32xf32> to vector<2x32xf32>
    %91 = arith.addf %87, %90 : vector<2x32xf32>
    %92 = arith.negf %91 : vector<2x32xf32>
    %93 = math.exp %92 : vector<2x32xf32>
    %cst_79 = arith.constant 1.000000e+00 : f32
    %94 = vector.broadcast %cst_79 : f32 to vector<2x32xf32>
    %95 = arith.addf %94, %93 : vector<2x32xf32>
    %96 = arith.divf %94, %95 : vector<2x32xf32>
    %97 = arith.addf %74, %83 : vector<2x32xf32>
    %c1_80 = arith.constant 1 : index
    %c0_81 = arith.constant 0 : index
    %c0_82 = arith.constant 0 : index
    %98 = vector.load %arg3[%c1_80, %c0_81, %c0_82] : memref<3x1x32xf32, #tpu.memory_space<vmem>>, vector<1x1x32xf32>
    %99 = vector.shape_cast %98 : vector<1x1x32xf32> to vector<1x32xf32>
    %100 = vector.broadcast %99 : vector<1x32xf32> to vector<2x32xf32>
    %101 = arith.addf %97, %100 : vector<2x32xf32>
    %102 = arith.negf %101 : vector<2x32xf32>
    %103 = math.exp %102 : vector<2x32xf32>
    %cst_83 = arith.constant 1.000000e+00 : f32
    %104 = vector.broadcast %cst_83 : f32 to vector<2x32xf32>
    %105 = arith.addf %104, %103 : vector<2x32xf32>
    %106 = arith.divf %104, %105 : vector<2x32xf32>
    %c2_84 = arith.constant 2 : index
    %c0_85 = arith.constant 0 : index
    %c0_86 = arith.constant 0 : index
    %107 = vector.load %arg3[%c2_84, %c0_85, %c0_86] : memref<3x1x32xf32, #tpu.memory_space<vmem>>, vector<1x1x32xf32>
    %108 = vector.shape_cast %107 : vector<1x1x32xf32> to vector<1x32xf32>
    %109 = vector.broadcast %108 : vector<1x32xf32> to vector<2x32xf32>
    %110 = arith.addf %77, %109 : vector<2x32xf32>
    %c0_87 = arith.constant 0 : index
    %c0_88 = arith.constant 0 : index
    %111 = vector.load %arg4[%c0_87, %c0_88] : memref<1x32xf32, #tpu.memory_space<vmem>>, vector<1x32xf32>
    %112 = vector.broadcast %111 : vector<1x32xf32> to vector<2x32xf32>
    %113 = arith.addf %86, %112 : vector<2x32xf32>
    %114 = arith.mulf %96, %113 : vector<2x32xf32>
    %115 = arith.addf %110, %114 : vector<2x32xf32>
    %116 = math.tanh %115 : vector<2x32xf32>
    %cst_89 = arith.constant 1.000000e+00 : f32
    %117 = vector.broadcast %cst_89 : f32 to vector<2x32xf32>
    %118 = arith.subf %117, %106 : vector<2x32xf32>
    %119 = arith.mulf %118, %116 : vector<2x32xf32>
    %120 = arith.mulf %106, %57 : vector<2x32xf32>
    %121 = arith.addf %119, %120 : vector<2x32xf32>
    %c1_90 = arith.constant 1 : index
    %c0_91 = arith.constant 0 : index
    %c0_92 = arith.constant 0 : index
    %122 = vector.load %arg7[%c1_90, %c0_91, %c0_92] : memref<8x2x32xf32, #tpu.memory_space<vmem>>, vector<1x2x32xf32>
    %123 = vector.shape_cast %122 : vector<1x2x32xf32> to vector<2x32xf32>
    %124 = vector.shape_cast %121 : vector<2x32xf32> to vector<1x2x32xf32>
    tpu.vector_store %arg7[%c1_90, %c0_91, %c0_92], %124 {strides = array<i32>} : memref<8x2x32xf32, #tpu.memory_space<vmem>>, vector<1x2x32xf32>,
    %cst_93 = arith.constant dense<0.000000e+00> : vector<2x32xf32>
    %125 = tpu.matmul %121, %0, %cst_93 {dimension_numbers = #tpu.dot_dimension_numbers<[1], [0], [0], [1], [0, 0, 1, 1], [], []>} : vector<2x32xf32>, vector<32x32xf32>, vector<2x32xf32> -> vector<2x32xf32>
    %126 = vector.broadcast %1 : vector<1x32xf32> to vector<2x32xf32>
    %127 = arith.addf %125, %126 : vector<2x32xf32>
    %c1_94 = arith.constant 1 : index
    %c0_95 = arith.constant 0 : index
    %c0_96 = arith.constant 0 : index
    %128 = vector.load %arg8[%c1_94, %c0_95, %c0_96] : memref<8x2x32xf32, #tpu.memory_space<vmem>>, vector<1x2x32xf32>
    %129 = vector.shape_cast %128 : vector<1x2x32xf32> to vector<2x32xf32>
    %130 = vector.shape_cast %127 : vector<2x32xf32> to vector<1x2x32xf32>
    tpu.vector_store %arg8[%c1_94, %c0_95, %c0_96], %130 {strides = array<i32>} : memref<8x2x32xf32, #tpu.memory_space<vmem>>, vector<1x2x32xf32>,
    %c2_97 = arith.constant 2 : index
    %c0_98 = arith.constant 0 : index
    %c0_99 = arith.constant 0 : index
    %131 = vector.load %arg0[%c2_97, %c0_98, %c0_99] : memref<8x2x32xf32, #tpu.memory_space<vmem>>, vector<1x2x32xf32>
    %132 = vector.shape_cast %131 : vector<1x2x32xf32> to vector<2x32xf32>
    %c0_100 = arith.constant 0 : index
    %c0_101 = arith.constant 0 : index
    %c0_102 = arith.constant 0 : index
    %133 = vector.load %arg1[%c0_100, %c0_101, %c0_102] : memref<3x32x32xf32, #tpu.memory_space<vmem>>, vector<1x32x32xf32>
    %134 = vector.shape_cast %133 : vector<1x32x32xf32> to vector<32x32xf32>
    %cst_103 = arith.constant dense<0.000000e+00> : vector<2x32xf32>
    %135 = tpu.matmul %132, %134, %cst_103 {dimension_numbers = #tpu.dot_dimension_numbers<[1], [0], [0], [1], [0, 0, 1, 1], [], []>} : vector<2x32xf32>, vector<32x32xf32>, vector<2x32xf32> -> vector<2x32xf32>
    %c1_104 = arith.constant 1 : index
    %c0_105 = arith.constant 0 : index
    %c0_106 = arith.constant 0 : index
    %136 = vector.load %arg1[%c1_104, %c0_105, %c0_106] : memref<3x32x32xf32, #tpu.memory_space<vmem>>, vector<1x32x32xf32>
    %137 = vector.shape_cast %136 : vector<1x32x32xf32> to vector<32x32xf32>
    %cst_107 = arith.constant dense<0.000000e+00> : vector<2x32xf32>
    %138 = tpu.matmul %132, %137, %cst_107 {dimension_numbers = #tpu.dot_dimension_numbers<[1], [0], [0], [1], [0, 0, 1, 1], [], []>} : vector<2x32xf32>, vector<32x32xf32>, vector<2x32xf32> -> vector<2x32xf32>
    %c2_108 = arith.constant 2 : index
    %c0_109 = arith.constant 0 : index
    %c0_110 = arith.constant 0 : index
    %139 = vector.load %arg1[%c2_108, %c0_109, %c0_110] : memref<3x32x32xf32, #tpu.memory_space<vmem>>, vector<1x32x32xf32>
    %140 = vector.shape_cast %139 : vector<1x32x32xf32> to vector<32x32xf32>
    %cst_111 = arith.constant dense<0.000000e+00> : vector<2x32xf32>
    %141 = tpu.matmul %132, %140, %cst_111 {dimension_numbers = #tpu.dot_dimension_numbers<[1], [0], [0], [1], [0, 0, 1, 1], [], []>} : vector<2x32xf32>, vector<32x32xf32>, vector<2x32xf32> -> vector<2x32xf32>
    %c0_112 = arith.constant 0 : index
    %c0_113 = arith.constant 0 : index
    %c0_114 = arith.constant 0 : index
    %142 = vector.load %arg2[%c0_112, %c0_113, %c0_114] : memref<3x32x32xf32, #tpu.memory_space<vmem>>, vector<1x32x32xf32>
    %143 = vector.shape_cast %142 : vector<1x32x32xf32> to vector<32x32xf32>
    %cst_115 = arith.constant dense<0.000000e+00> : vector<2x32xf32>
    %144 = tpu.matmul %121, %143, %cst_115 {dimension_numbers = #tpu.dot_dimension_numbers<[1], [0], [0], [1], [0, 0, 1, 1], [], []>} : vector<2x32xf32>, vector<32x32xf32>, vector<2x32xf32> -> vector<2x32xf32>
    %c1_116 = arith.constant 1 : index
    %c0_117 = arith.constant 0 : index
    %c0_118 = arith.constant 0 : index
    %145 = vector.load %arg2[%c1_116, %c0_117, %c0_118] : memref<3x32x32xf32, #tpu.memory_space<vmem>>, vector<1x32x32xf32>
    %146 = vector.shape_cast %145 : vector<1x32x32xf32> to vector<32x32xf32>
    %cst_119 = arith.constant dense<0.000000e+00> : vector<2x32xf32>
    %147 = tpu.matmul %121, %146, %cst_119 {dimension_numbers = #tpu.dot_dimension_numbers<[1], [0], [0], [1], [0, 0, 1, 1], [], []>} : vector<2x32xf32>, vector<32x32xf32>, vector<2x32xf32> -> vector<2x32xf32>
    %c2_120 = arith.constant 2 : index
    %c0_121 = arith.constant 0 : index
    %c0_122 = arith.constant 0 : index
    %148 = vector.load %arg2[%c2_120, %c0_121, %c0_122] : memref<3x32x32xf32, #tpu.memory_space<vmem>>, vector<1x32x32xf32>
    %149 = vector.shape_cast %148 : vector<1x32x32xf32> to vector<32x32xf32>
    %cst_123 = arith.constant dense<0.000000e+00> : vector<2x32xf32>
    %150 = tpu.matmul %121, %149, %cst_123 {dimension_numbers = #tpu.dot_dimension_numbers<[1], [0], [0], [1], [0, 0, 1, 1], [], []>} : vector<2x32xf32>, vector<32x32xf32>, vector<2x32xf32> -> vector<2x32xf32>
    %151 = arith.addf %135, %144 : vector<2x32xf32>
    %c0_124 = arith.constant 0 : index
    %c0_125 = arith.constant 0 : index
    %c0_126 = arith.constant 0 : index
    %152 = vector.load %arg3[%c0_124, %c0_125, %c0_126] : memref<3x1x32xf32, #tpu.memory_space<vmem>>, vector<1x1x32xf32>
    %153 = vector.shape_cast %152 : vector<1x1x32xf32> to vector<1x32xf32>
    %154 = vector.broadcast %153 : vector<1x32xf32> to vector<2x32xf32>
    %155 = arith.addf %151, %154 : vector<2x32xf32>
    %156 = arith.negf %155 : vector<2x32xf32>
    %157 = math.exp %156 : vector<2x32xf32>
    %cst_127 = arith.constant 1.000000e+00 : f32
    %158 = vector.broadcast %cst_127 : f32 to vector<2x32xf32>
    %159 = arith.addf %158, %157 : vector<2x32xf32>
    %160 = arith.divf %158, %159 : vector<2x32xf32>
    %161 = arith.addf %138, %147 : vector<2x32xf32>
    %c1_128 = arith.constant 1 : index
    %c0_129 = arith.constant 0 : index
    %c0_130 = arith.constant 0 : index
    %162 = vector.load %arg3[%c1_128, %c0_129, %c0_130] : memref<3x1x32xf32, #tpu.memory_space<vmem>>, vector<1x1x32xf32>
    %163 = vector.shape_cast %162 : vector<1x1x32xf32> to vector<1x32xf32>
    %164 = vector.broadcast %163 : vector<1x32xf32> to vector<2x32xf32>
    %165 = arith.addf %161, %164 : vector<2x32xf32>
    %166 = arith.negf %165 : vector<2x32xf32>
    %167 = math.exp %166 : vector<2x32xf32>
    %cst_131 = arith.constant 1.000000e+00 : f32
    %168 = vector.broadcast %cst_131 : f32 to vector<2x32xf32>
    %169 = arith.addf %168, %167 : vector<2x32xf32>
    %170 = arith.divf %168, %169 : vector<2x32xf32>
    %c2_132 = arith.constant 2 : index
    %c0_133 = arith.constant 0 : index
    %c0_134 = arith.constant 0 : index
    %171 = vector.load %arg3[%c2_132, %c0_133, %c0_134] : memref<3x1x32xf32, #tpu.memory_space<vmem>>, vector<1x1x32xf32>
    %172 = vector.shape_cast %171 : vector<1x1x32xf32> to vector<1x32xf32>
    %173 = vector.broadcast %172 : vector<1x32xf32> to vector<2x32xf32>
    %174 = arith.addf %141, %173 : vector<2x32xf32>
    %c0_135 = arith.constant 0 : index
    %c0_136 = arith.constant 0 : index
    %175 = vector.load %arg4[%c0_135, %c0_136] : memref<1x32xf32, #tpu.memory_space<vmem>>, vector<1x32xf32>
    %176 = vector.broadcast %175 : vector<1x32xf32> to vector<2x32xf32>
    %177 = arith.addf %150, %176 : vector<2x32xf32>
    %178 = arith.mulf %160, %177 : vector<2x32xf32>
    %179 = arith.addf %174, %178 : vector<2x32xf32>
    %180 = math.tanh %179 : vector<2x32xf32>
    %cst_137 = arith.constant 1.000000e+00 : f32
    %181 = vector.broadcast %cst_137 : f32 to vector<2x32xf32>
    %182 = arith.subf %181, %170 : vector<2x32xf32>
    %183 = arith.mulf %182, %180 : vector<2x32xf32>
    %184 = arith.mulf %170, %121 : vector<2x32xf32>
    %185 = arith.addf %183, %184 : vector<2x32xf32>
    %c2_138 = arith.constant 2 : index
    %c0_139 = arith.constant 0 : index
    %c0_140 = arith.constant 0 : index
    %186 = vector.load %arg7[%c2_138, %c0_139, %c0_140] : memref<8x2x32xf32, #tpu.memory_space<vmem>>, vector<1x2x32xf32>
    %187 = vector.shape_cast %186 : vector<1x2x32xf32> to vector<2x32xf32>
    %188 = vector.shape_cast %185 : vector<2x32xf32> to vector<1x2x32xf32>
    tpu.vector_store %arg7[%c2_138, %c0_139, %c0_140], %188 {strides = array<i32>} : memref<8x2x32xf32, #tpu.memory_space<vmem>>, vector<1x2x32xf32>,
    %cst_141 = arith.constant dense<0.000000e+00> : vector<2x32xf32>
    %189 = tpu.matmul %185, %0, %cst_141 {dimension_numbers = #tpu.dot_dimension_numbers<[1], [0], [0], [1], [0, 0, 1, 1], [], []>} : vector<2x32xf32>, vector<32x32xf32>, vector<2x32xf32> -> vector<2x32xf32>
    %190 = vector.broadcast %1 : vector<1x32xf32> to vector<2x32xf32>
    %191 = arith.addf %189, %190 : vector<2x32xf32>
    %c2_142 = arith.constant 2 : index
    %c0_143 = arith.constant 0 : index
    %c0_144 = arith.constant 0 : index
    %192 = vector.load %arg8[%c2_142, %c0_143, %c0_144] : memref<8x2x32xf32, #tpu.memory_space<vmem>>, vector<1x2x32xf32>
    %193 = vector.shape_cast %192 : vector<1x2x32xf32> to vector<2x32xf32>
    %194 = vector.shape_cast %191 : vector<2x32xf32> to vector<1x2x32xf32>
    tpu.vector_store %arg8[%c2_142, %c0_143, %c0_144], %194 {strides = array<i32>} : memref<8x2x32xf32, #tpu.memory_space<vmem>>, vector<1x2x32xf32>,
    %c3 = arith.constant 3 : index
    %c0_145 = arith.constant 0 : index
    %c0_146 = arith.constant 0 : index
    %195 = vector.load %arg0[%c3, %c0_145, %c0_146] : memref<8x2x32xf32, #tpu.memory_space<vmem>>, vector<1x2x32xf32>
    %196 = vector.shape_cast %195 : vector<1x2x32xf32> to vector<2x32xf32>
    %c0_147 = arith.constant 0 : index
    %c0_148 = arith.constant 0 : index
    %c0_149 = arith.constant 0 : index
    %197 = vector.load %arg1[%c0_147, %c0_148, %c0_149] : memref<3x32x32xf32, #tpu.memory_space<vmem>>, vector<1x32x32xf32>
    %198 = vector.shape_cast %197 : vector<1x32x32xf32> to vector<32x32xf32>
    %cst_150 = arith.constant dense<0.000000e+00> : vector<2x32xf32>
    %199 = tpu.matmul %196, %198, %cst_150 {dimension_numbers = #tpu.dot_dimension_numbers<[1], [0], [0], [1], [0, 0, 1, 1], [], []>} : vector<2x32xf32>, vector<32x32xf32>, vector<2x32xf32> -> vector<2x32xf32>
    %c1_151 = arith.constant 1 : index
    %c0_152 = arith.constant 0 : index
    %c0_153 = arith.constant 0 : index
    %200 = vector.load %arg1[%c1_151, %c0_152, %c0_153] : memref<3x32x32xf32, #tpu.memory_space<vmem>>, vector<1x32x32xf32>
    %201 = vector.shape_cast %200 : vector<1x32x32xf32> to vector<32x32xf32>
    %cst_154 = arith.constant dense<0.000000e+00> : vector<2x32xf32>
    %202 = tpu.matmul %196, %201, %cst_154 {dimension_numbers = #tpu.dot_dimension_numbers<[1], [0], [0], [1], [0, 0, 1, 1], [], []>} : vector<2x32xf32>, vector<32x32xf32>, vector<2x32xf32> -> vector<2x32xf32>
    %c2_155 = arith.constant 2 : index
    %c0_156 = arith.constant 0 : index
    %c0_157 = arith.constant 0 : index
    %203 = vector.load %arg1[%c2_155, %c0_156, %c0_157] : memref<3x32x32xf32, #tpu.memory_space<vmem>>, vector<1x32x32xf32>
    %204 = vector.shape_cast %203 : vector<1x32x32xf32> to vector<32x32xf32>
    %cst_158 = arith.constant dense<0.000000e+00> : vector<2x32xf32>
    %205 = tpu.matmul %196, %204, %cst_158 {dimension_numbers = #tpu.dot_dimension_numbers<[1], [0], [0], [1], [0, 0, 1, 1], [], []>} : vector<2x32xf32>, vector<32x32xf32>, vector<2x32xf32> -> vector<2x32xf32>
    %c0_159 = arith.constant 0 : index
    %c0_160 = arith.constant 0 : index
    %c0_161 = arith.constant 0 : index
    %206 = vector.load %arg2[%c0_159, %c0_160, %c0_161] : memref<3x32x32xf32, #tpu.memory_space<vmem>>, vector<1x32x32xf32>
    %207 = vector.shape_cast %206 : vector<1x32x32xf32> to vector<32x32xf32>
    %cst_162 = arith.constant dense<0.000000e+00> : vector<2x32xf32>
    %208 = tpu.matmul %185, %207, %cst_162 {dimension_numbers = #tpu.dot_dimension_numbers<[1], [0], [0], [1], [0, 0, 1, 1], [], []>} : vector<2x32xf32>, vector<32x32xf32>, vector<2x32xf32> -> vector<2x32xf32>
    %c1_163 = arith.constant 1 : index
    %c0_164 = arith.constant 0 : index
    %c0_165 = arith.constant 0 : index
    %209 = vector.load %arg2[%c1_163, %c0_164, %c0_165] : memref<3x32x32xf32, #tpu.memory_space<vmem>>, vector<1x32x32xf32>
    %210 = vector.shape_cast %209 : vector<1x32x32xf32> to vector<32x32xf32>
    %cst_166 = arith.constant dense<0.000000e+00> : vector<2x32xf32>
    %211 = tpu.matmul %185, %210, %cst_166 {dimension_numbers = #tpu.dot_dimension_numbers<[1], [0], [0], [1], [0, 0, 1, 1], [], []>} : vector<2x32xf32>, vector<32x32xf32>, vector<2x32xf32> -> vector<2x32xf32>
    %c2_167 = arith.constant 2 : index
    %c0_168 = arith.constant 0 : index
    %c0_169 = arith.constant 0 : index
    %212 = vector.load %arg2[%c2_167, %c0_168, %c0_169] : memref<3x32x32xf32, #tpu.memory_space<vmem>>, vector<1x32x32xf32>
    %213 = vector.shape_cast %212 : vector<1x32x32xf32> to vector<32x32xf32>
    %cst_170 = arith.constant dense<0.000000e+00> : vector<2x32xf32>
    %214 = tpu.matmul %185, %213, %cst_170 {dimension_numbers = #tpu.dot_dimension_numbers<[1], [0], [0], [1], [0, 0, 1, 1], [], []>} : vector<2x32xf32>, vector<32x32xf32>, vector<2x32xf32> -> vector<2x32xf32>
    %215 = arith.addf %199, %208 : vector<2x32xf32>
    %c0_171 = arith.constant 0 : index
    %c0_172 = arith.constant 0 : index
    %c0_173 = arith.constant 0 : index
    %216 = vector.load %arg3[%c0_171, %c0_172, %c0_173] : memref<3x1x32xf32, #tpu.memory_space<vmem>>, vector<1x1x32xf32>
    %217 = vector.shape_cast %216 : vector<1x1x32xf32> to vector<1x32xf32>
    %218 = vector.broadcast %217 : vector<1x32xf32> to vector<2x32xf32>
    %219 = arith.addf %215, %218 : vector<2x32xf32>
    %220 = arith.negf %219 : vector<2x32xf32>
    %221 = math.exp %220 : vector<2x32xf32>
    %cst_174 = arith.constant 1.000000e+00 : f32
    %222 = vector.broadcast %cst_174 : f32 to vector<2x32xf32>
    %223 = arith.addf %222, %221 : vector<2x32xf32>
    %224 = arith.divf %222, %223 : vector<2x32xf32>
    %225 = arith.addf %202, %211 : vector<2x32xf32>
    %c1_175 = arith.constant 1 : index
    %c0_176 = arith.constant 0 : index
    %c0_177 = arith.constant 0 : index
    %226 = vector.load %arg3[%c1_175, %c0_176, %c0_177] : memref<3x1x32xf32, #tpu.memory_space<vmem>>, vector<1x1x32xf32>
    %227 = vector.shape_cast %226 : vector<1x1x32xf32> to vector<1x32xf32>
    %228 = vector.broadcast %227 : vector<1x32xf32> to vector<2x32xf32>
    %229 = arith.addf %225, %228 : vector<2x32xf32>
    %230 = arith.negf %229 : vector<2x32xf32>
    %231 = math.exp %230 : vector<2x32xf32>
    %cst_178 = arith.constant 1.000000e+00 : f32
    %232 = vector.broadcast %cst_178 : f32 to vector<2x32xf32>
    %233 = arith.addf %232, %231 : vector<2x32xf32>
    %234 = arith.divf %232, %233 : vector<2x32xf32>
    %c2_179 = arith.constant 2 : index
    %c0_180 = arith.constant 0 : index
    %c0_181 = arith.constant 0 : index
    %235 = vector.load %arg3[%c2_179, %c0_180, %c0_181] : memref<3x1x32xf32, #tpu.memory_space<vmem>>, vector<1x1x32xf32>
    %236 = vector.shape_cast %235 : vector<1x1x32xf32> to vector<1x32xf32>
    %237 = vector.broadcast %236 : vector<1x32xf32> to vector<2x32xf32>
    %238 = arith.addf %205, %237 : vector<2x32xf32>
    %c0_182 = arith.constant 0 : index
    %c0_183 = arith.constant 0 : index
    %239 = vector.load %arg4[%c0_182, %c0_183] : memref<1x32xf32, #tpu.memory_space<vmem>>, vector<1x32xf32>
    %240 = vector.broadcast %239 : vector<1x32xf32> to vector<2x32xf32>
    %241 = arith.addf %214, %240 : vector<2x32xf32>
    %242 = arith.mulf %224, %241 : vector<2x32xf32>
    %243 = arith.addf %238, %242 : vector<2x32xf32>
    %244 = math.tanh %243 : vector<2x32xf32>
    %cst_184 = arith.constant 1.000000e+00 : f32
    %245 = vector.broadcast %cst_184 : f32 to vector<2x32xf32>
    %246 = arith.subf %245, %234 : vector<2x32xf32>
    %247 = arith.mulf %246, %244 : vector<2x32xf32>
    %248 = arith.mulf %234, %185 : vector<2x32xf32>
    %249 = arith.addf %247, %248 : vector<2x32xf32>
    %c3_185 = arith.constant 3 : index
    %c0_186 = arith.constant 0 : index
    %c0_187 = arith.constant 0 : index
    %250 = vector.load %arg7[%c3_185, %c0_186, %c0_187] : memref<8x2x32xf32, #tpu.memory_space<vmem>>, vector<1x2x32xf32>
    %251 = vector.shape_cast %250 : vector<1x2x32xf32> to vector<2x32xf32>
    %252 = vector.shape_cast %249 : vector<2x32xf32> to vector<1x2x32xf32>
    tpu.vector_store %arg7[%c3_185, %c0_186, %c0_187], %252 {strides = array<i32>} : memref<8x2x32xf32, #tpu.memory_space<vmem>>, vector<1x2x32xf32>,
    %cst_188 = arith.constant dense<0.000000e+00> : vector<2x32xf32>
    %253 = tpu.matmul %249, %0, %cst_188 {dimension_numbers = #tpu.dot_dimension_numbers<[1], [0], [0], [1], [0, 0, 1, 1], [], []>} : vector<2x32xf32>, vector<32x32xf32>, vector<2x32xf32> -> vector<2x32xf32>
    %254 = vector.broadcast %1 : vector<1x32xf32> to vector<2x32xf32>
    %255 = arith.addf %253, %254 : vector<2x32xf32>
    %c3_189 = arith.constant 3 : index
    %c0_190 = arith.constant 0 : index
    %c0_191 = arith.constant 0 : index
    %256 = vector.load %arg8[%c3_189, %c0_190, %c0_191] : memref<8x2x32xf32, #tpu.memory_space<vmem>>, vector<1x2x32xf32>
    %257 = vector.shape_cast %256 : vector<1x2x32xf32> to vector<2x32xf32>
    %258 = vector.shape_cast %255 : vector<2x32xf32> to vector<1x2x32xf32>
    tpu.vector_store %arg8[%c3_189, %c0_190, %c0_191], %258 {strides = array<i32>} : memref<8x2x32xf32, #tpu.memory_space<vmem>>, vector<1x2x32xf32>,
    %c4 = arith.constant 4 : index
    %c0_192 = arith.constant 0 : index
    %c0_193 = arith.constant 0 : index
    %259 = vector.load %arg0[%c4, %c0_192, %c0_193] : memref<8x2x32xf32, #tpu.memory_space<vmem>>, vector<1x2x32xf32>
    %260 = vector.shape_cast %259 : vector<1x2x32xf32> to vector<2x32xf32>
    %c0_194 = arith.constant 0 : index
    %c0_195 = arith.constant 0 : index
    %c0_196 = arith.constant 0 : index
    %261 = vector.load %arg1[%c0_194, %c0_195, %c0_196] : memref<3x32x32xf32, #tpu.memory_space<vmem>>, vector<1x32x32xf32>
    %262 = vector.shape_cast %261 : vector<1x32x32xf32> to vector<32x32xf32>
    %cst_197 = arith.constant dense<0.000000e+00> : vector<2x32xf32>
    %263 = tpu.matmul %260, %262, %cst_197 {dimension_numbers = #tpu.dot_dimension_numbers<[1], [0], [0], [1], [0, 0, 1, 1], [], []>} : vector<2x32xf32>, vector<32x32xf32>, vector<2x32xf32> -> vector<2x32xf32>
    %c1_198 = arith.constant 1 : index
    %c0_199 = arith.constant 0 : index
    %c0_200 = arith.constant 0 : index
    %264 = vector.load %arg1[%c1_198, %c0_199, %c0_200] : memref<3x32x32xf32, #tpu.memory_space<vmem>>, vector<1x32x32xf32>
    %265 = vector.shape_cast %264 : vector<1x32x32xf32> to vector<32x32xf32>
    %cst_201 = arith.constant dense<0.000000e+00> : vector<2x32xf32>
    %266 = tpu.matmul %260, %265, %cst_201 {dimension_numbers = #tpu.dot_dimension_numbers<[1], [0], [0], [1], [0, 0, 1, 1], [], []>} : vector<2x32xf32>, vector<32x32xf32>, vector<2x32xf32> -> vector<2x32xf32>
    %c2_202 = arith.constant 2 : index
    %c0_203 = arith.constant 0 : index
    %c0_204 = arith.constant 0 : index
    %267 = vector.load %arg1[%c2_202, %c0_203, %c0_204] : memref<3x32x32xf32, #tpu.memory_space<vmem>>, vector<1x32x32xf32>
    %268 = vector.shape_cast %267 : vector<1x32x32xf32> to vector<32x32xf32>
    %cst_205 = arith.constant dense<0.000000e+00> : vector<2x32xf32>
    %269 = tpu.matmul %260, %268, %cst_205 {dimension_numbers = #tpu.dot_dimension_numbers<[1], [0], [0], [1], [0, 0, 1, 1], [], []>} : vector<2x32xf32>, vector<32x32xf32>, vector<2x32xf32> -> vector<2x32xf32>
    %c0_206 = arith.constant 0 : index
    %c0_207 = arith.constant 0 : index
    %c0_208 = arith.constant 0 : index
    %270 = vector.load %arg2[%c0_206, %c0_207, %c0_208] : memref<3x32x32xf32, #tpu.memory_space<vmem>>, vector<1x32x32xf32>
    %271 = vector.shape_cast %270 : vector<1x32x32xf32> to vector<32x32xf32>
    %cst_209 = arith.constant dense<0.000000e+00> : vector<2x32xf32>
    %272 = tpu.matmul %249, %271, %cst_209 {dimension_numbers = #tpu.dot_dimension_numbers<[1], [0], [0], [1], [0, 0, 1, 1], [], []>} : vector<2x32xf32>, vector<32x32xf32>, vector<2x32xf32> -> vector<2x32xf32>
    %c1_210 = arith.constant 1 : index
    %c0_211 = arith.constant 0 : index
    %c0_212 = arith.constant 0 : index
    %273 = vector.load %arg2[%c1_210, %c0_211, %c0_212] : memref<3x32x32xf32, #tpu.memory_space<vmem>>, vector<1x32x32xf32>
    %274 = vector.shape_cast %273 : vector<1x32x32xf32> to vector<32x32xf32>
    %cst_213 = arith.constant dense<0.000000e+00> : vector<2x32xf32>
    %275 = tpu.matmul %249, %274, %cst_213 {dimension_numbers = #tpu.dot_dimension_numbers<[1], [0], [0], [1], [0, 0, 1, 1], [], []>} : vector<2x32xf32>, vector<32x32xf32>, vector<2x32xf32> -> vector<2x32xf32>
    %c2_214 = arith.constant 2 : index
    %c0_215 = arith.constant 0 : index
    %c0_216 = arith.constant 0 : index
    %276 = vector.load %arg2[%c2_214, %c0_215, %c0_216] : memref<3x32x32xf32, #tpu.memory_space<vmem>>, vector<1x32x32xf32>
    %277 = vector.shape_cast %276 : vector<1x32x32xf32> to vector<32x32xf32>
    %cst_217 = arith.constant dense<0.000000e+00> : vector<2x32xf32>
    %278 = tpu.matmul %249, %277, %cst_217 {dimension_numbers = #tpu.dot_dimension_numbers<[1], [0], [0], [1], [0, 0, 1, 1], [], []>} : vector<2x32xf32>, vector<32x32xf32>, vector<2x32xf32> -> vector<2x32xf32>
    %279 = arith.addf %263, %272 : vector<2x32xf32>
    %c0_218 = arith.constant 0 : index
    %c0_219 = arith.constant 0 : index
    %c0_220 = arith.constant 0 : index
    %280 = vector.load %arg3[%c0_218, %c0_219, %c0_220] : memref<3x1x32xf32, #tpu.memory_space<vmem>>, vector<1x1x32xf32>
    %281 = vector.shape_cast %280 : vector<1x1x32xf32> to vector<1x32xf32>
    %282 = vector.broadcast %281 : vector<1x32xf32> to vector<2x32xf32>
    %283 = arith.addf %279, %282 : vector<2x32xf32>
    %284 = arith.negf %283 : vector<2x32xf32>
    %285 = math.exp %284 : vector<2x32xf32>
    %cst_221 = arith.constant 1.000000e+00 : f32
    %286 = vector.broadcast %cst_221 : f32 to vector<2x32xf32>
    %287 = arith.addf %286, %285 : vector<2x32xf32>
    %288 = arith.divf %286, %287 : vector<2x32xf32>
    %289 = arith.addf %266, %275 : vector<2x32xf32>
    %c1_222 = arith.constant 1 : index
    %c0_223 = arith.constant 0 : index
    %c0_224 = arith.constant 0 : index
    %290 = vector.load %arg3[%c1_222, %c0_223, %c0_224] : memref<3x1x32xf32, #tpu.memory_space<vmem>>, vector<1x1x32xf32>
    %291 = vector.shape_cast %290 : vector<1x1x32xf32> to vector<1x32xf32>
    %292 = vector.broadcast %291 : vector<1x32xf32> to vector<2x32xf32>
    %293 = arith.addf %289, %292 : vector<2x32xf32>
    %294 = arith.negf %293 : vector<2x32xf32>
    %295 = math.exp %294 : vector<2x32xf32>
    %cst_225 = arith.constant 1.000000e+00 : f32
    %296 = vector.broadcast %cst_225 : f32 to vector<2x32xf32>
    %297 = arith.addf %296, %295 : vector<2x32xf32>
    %298 = arith.divf %296, %297 : vector<2x32xf32>
    %c2_226 = arith.constant 2 : index
    %c0_227 = arith.constant 0 : index
    %c0_228 = arith.constant 0 : index
    %299 = vector.load %arg3[%c2_226, %c0_227, %c0_228] : memref<3x1x32xf32, #tpu.memory_space<vmem>>, vector<1x1x32xf32>
    %300 = vector.shape_cast %299 : vector<1x1x32xf32> to vector<1x32xf32>
    %301 = vector.broadcast %300 : vector<1x32xf32> to vector<2x32xf32>
    %302 = arith.addf %269, %301 : vector<2x32xf32>
    %c0_229 = arith.constant 0 : index
    %c0_230 = arith.constant 0 : index
    %303 = vector.load %arg4[%c0_229, %c0_230] : memref<1x32xf32, #tpu.memory_space<vmem>>, vector<1x32xf32>
    %304 = vector.broadcast %303 : vector<1x32xf32> to vector<2x32xf32>
    %305 = arith.addf %278, %304 : vector<2x32xf32>
    %306 = arith.mulf %288, %305 : vector<2x32xf32>
    %307 = arith.addf %302, %306 : vector<2x32xf32>
    %308 = math.tanh %307 : vector<2x32xf32>
    %cst_231 = arith.constant 1.000000e+00 : f32
    %309 = vector.broadcast %cst_231 : f32 to vector<2x32xf32>
    %310 = arith.subf %309, %298 : vector<2x32xf32>
    %311 = arith.mulf %310, %308 : vector<2x32xf32>
    %312 = arith.mulf %298, %249 : vector<2x32xf32>
    %313 = arith.addf %311, %312 : vector<2x32xf32>
    %c4_232 = arith.constant 4 : index
    %c0_233 = arith.constant 0 : index
    %c0_234 = arith.constant 0 : index
    %314 = vector.load %arg7[%c4_232, %c0_233, %c0_234] : memref<8x2x32xf32, #tpu.memory_space<vmem>>, vector<1x2x32xf32>
    %315 = vector.shape_cast %314 : vector<1x2x32xf32> to vector<2x32xf32>
    %316 = vector.shape_cast %313 : vector<2x32xf32> to vector<1x2x32xf32>
    tpu.vector_store %arg7[%c4_232, %c0_233, %c0_234], %316 {strides = array<i32>} : memref<8x2x32xf32, #tpu.memory_space<vmem>>, vector<1x2x32xf32>,
    %cst_235 = arith.constant dense<0.000000e+00> : vector<2x32xf32>
    %317 = tpu.matmul %313, %0, %cst_235 {dimension_numbers = #tpu.dot_dimension_numbers<[1], [0], [0], [1], [0, 0, 1, 1], [], []>} : vector<2x32xf32>, vector<32x32xf32>, vector<2x32xf32> -> vector<2x32xf32>
    %318 = vector.broadcast %1 : vector<1x32xf32> to vector<2x32xf32>
    %319 = arith.addf %317, %318 : vector<2x32xf32>
    %c4_236 = arith.constant 4 : index
    %c0_237 = arith.constant 0 : index
    %c0_238 = arith.constant 0 : index
    %320 = vector.load %arg8[%c4_236, %c0_237, %c0_238] : memref<8x2x32xf32, #tpu.memory_space<vmem>>, vector<1x2x32xf32>
    %321 = vector.shape_cast %320 : vector<1x2x32xf32> to vector<2x32xf32>
    %322 = vector.shape_cast %319 : vector<2x32xf32> to vector<1x2x32xf32>
    tpu.vector_store %arg8[%c4_236, %c0_237, %c0_238], %322 {strides = array<i32>} : memref<8x2x32xf32, #tpu.memory_space<vmem>>, vector<1x2x32xf32>,
    %c5 = arith.constant 5 : index
    %c0_239 = arith.constant 0 : index
    %c0_240 = arith.constant 0 : index
    %323 = vector.load %arg0[%c5, %c0_239, %c0_240] : memref<8x2x32xf32, #tpu.memory_space<vmem>>, vector<1x2x32xf32>
    %324 = vector.shape_cast %323 : vector<1x2x32xf32> to vector<2x32xf32>
    %c0_241 = arith.constant 0 : index
    %c0_242 = arith.constant 0 : index
    %c0_243 = arith.constant 0 : index
    %325 = vector.load %arg1[%c0_241, %c0_242, %c0_243] : memref<3x32x32xf32, #tpu.memory_space<vmem>>, vector<1x32x32xf32>
    %326 = vector.shape_cast %325 : vector<1x32x32xf32> to vector<32x32xf32>
    %cst_244 = arith.constant dense<0.000000e+00> : vector<2x32xf32>
    %327 = tpu.matmul %324, %326, %cst_244 {dimension_numbers = #tpu.dot_dimension_numbers<[1], [0], [0], [1], [0, 0, 1, 1], [], []>} : vector<2x32xf32>, vector<32x32xf32>, vector<2x32xf32> -> vector<2x32xf32>
    %c1_245 = arith.constant 1 : index
    %c0_246 = arith.constant 0 : index
    %c0_247 = arith.constant 0 : index
    %328 = vector.load %arg1[%c1_245, %c0_246, %c0_247] : memref<3x32x32xf32, #tpu.memory_space<vmem>>, vector<1x32x32xf32>
    %329 = vector.shape_cast %328 : vector<1x32x32xf32> to vector<32x32xf32>
    %cst_248 = arith.constant dense<0.000000e+00> : vector<2x32xf32>
    %330 = tpu.matmul %324, %329, %cst_248 {dimension_numbers = #tpu.dot_dimension_numbers<[1], [0], [0], [1], [0, 0, 1, 1], [], []>} : vector<2x32xf32>, vector<32x32xf32>, vector<2x32xf32> -> vector<2x32xf32>
    %c2_249 = arith.constant 2 : index
    %c0_250 = arith.constant 0 : index
    %c0_251 = arith.constant 0 : index
    %331 = vector.load %arg1[%c2_249, %c0_250, %c0_251] : memref<3x32x32xf32, #tpu.memory_space<vmem>>, vector<1x32x32xf32>
    %332 = vector.shape_cast %331 : vector<1x32x32xf32> to vector<32x32xf32>
    %cst_252 = arith.constant dense<0.000000e+00> : vector<2x32xf32>
    %333 = tpu.matmul %324, %332, %cst_252 {dimension_numbers = #tpu.dot_dimension_numbers<[1], [0], [0], [1], [0, 0, 1, 1], [], []>} : vector<2x32xf32>, vector<32x32xf32>, vector<2x32xf32> -> vector<2x32xf32>
    %c0_253 = arith.constant 0 : index
    %c0_254 = arith.constant 0 : index
    %c0_255 = arith.constant 0 : index
    %334 = vector.load %arg2[%c0_253, %c0_254, %c0_255] : memref<3x32x32xf32, #tpu.memory_space<vmem>>, vector<1x32x32xf32>
    %335 = vector.shape_cast %334 : vector<1x32x32xf32> to vector<32x32xf32>
    %cst_256 = arith.constant dense<0.000000e+00> : vector<2x32xf32>
    %336 = tpu.matmul %313, %335, %cst_256 {dimension_numbers = #tpu.dot_dimension_numbers<[1], [0], [0], [1], [0, 0, 1, 1], [], []>} : vector<2x32xf32>, vector<32x32xf32>, vector<2x32xf32> -> vector<2x32xf32>
    %c1_257 = arith.constant 1 : index
    %c0_258 = arith.constant 0 : index
    %c0_259 = arith.constant 0 : index
    %337 = vector.load %arg2[%c1_257, %c0_258, %c0_259] : memref<3x32x32xf32, #tpu.memory_space<vmem>>, vector<1x32x32xf32>
    %338 = vector.shape_cast %337 : vector<1x32x32xf32> to vector<32x32xf32>
    %cst_260 = arith.constant dense<0.000000e+00> : vector<2x32xf32>
    %339 = tpu.matmul %313, %338, %cst_260 {dimension_numbers = #tpu.dot_dimension_numbers<[1], [0], [0], [1], [0, 0, 1, 1], [], []>} : vector<2x32xf32>, vector<32x32xf32>, vector<2x32xf32> -> vector<2x32xf32>
    %c2_261 = arith.constant 2 : index
    %c0_262 = arith.constant 0 : index
    %c0_263 = arith.constant 0 : index
    %340 = vector.load %arg2[%c2_261, %c0_262, %c0_263] : memref<3x32x32xf32, #tpu.memory_space<vmem>>, vector<1x32x32xf32>
    %341 = vector.shape_cast %340 : vector<1x32x32xf32> to vector<32x32xf32>
    %cst_264 = arith.constant dense<0.000000e+00> : vector<2x32xf32>
    %342 = tpu.matmul %313, %341, %cst_264 {dimension_numbers = #tpu.dot_dimension_numbers<[1], [0], [0], [1], [0, 0, 1, 1], [], []>} : vector<2x32xf32>, vector<32x32xf32>, vector<2x32xf32> -> vector<2x32xf32>
    %343 = arith.addf %327, %336 : vector<2x32xf32>
    %c0_265 = arith.constant 0 : index
    %c0_266 = arith.constant 0 : index
    %c0_267 = arith.constant 0 : index
    %344 = vector.load %arg3[%c0_265, %c0_266, %c0_267] : memref<3x1x32xf32, #tpu.memory_space<vmem>>, vector<1x1x32xf32>
    %345 = vector.shape_cast %344 : vector<1x1x32xf32> to vector<1x32xf32>
    %346 = vector.broadcast %345 : vector<1x32xf32> to vector<2x32xf32>
    %347 = arith.addf %343, %346 : vector<2x32xf32>
    %348 = arith.negf %347 : vector<2x32xf32>
    %349 = math.exp %348 : vector<2x32xf32>
    %cst_268 = arith.constant 1.000000e+00 : f32
    %350 = vector.broadcast %cst_268 : f32 to vector<2x32xf32>
    %351 = arith.addf %350, %349 : vector<2x32xf32>
    %352 = arith.divf %350, %351 : vector<2x32xf32>
    %353 = arith.addf %330, %339 : vector<2x32xf32>
    %c1_269 = arith.constant 1 : index
    %c0_270 = arith.constant 0 : index
    %c0_271 = arith.constant 0 : index
    %354 = vector.load %arg3[%c1_269, %c0_270, %c0_271] : memref<3x1x32xf32, #tpu.memory_space<vmem>>, vector<1x1x32xf32>
    %355 = vector.shape_cast %354 : vector<1x1x32xf32> to vector<1x32xf32>
    %356 = vector.broadcast %355 : vector<1x32xf32> to vector<2x32xf32>
    %357 = arith.addf %353, %356 : vector<2x32xf32>
    %358 = arith.negf %357 : vector<2x32xf32>
    %359 = math.exp %358 : vector<2x32xf32>
    %cst_272 = arith.constant 1.000000e+00 : f32
    %360 = vector.broadcast %cst_272 : f32 to vector<2x32xf32>
    %361 = arith.addf %360, %359 : vector<2x32xf32>
    %362 = arith.divf %360, %361 : vector<2x32xf32>
    %c2_273 = arith.constant 2 : index
    %c0_274 = arith.constant 0 : index
    %c0_275 = arith.constant 0 : index
    %363 = vector.load %arg3[%c2_273, %c0_274, %c0_275] : memref<3x1x32xf32, #tpu.memory_space<vmem>>, vector<1x1x32xf32>
    %364 = vector.shape_cast %363 : vector<1x1x32xf32> to vector<1x32xf32>
    %365 = vector.broadcast %364 : vector<1x32xf32> to vector<2x32xf32>
    %366 = arith.addf %333, %365 : vector<2x32xf32>
    %c0_276 = arith.constant 0 : index
    %c0_277 = arith.constant 0 : index
    %367 = vector.load %arg4[%c0_276, %c0_277] : memref<1x32xf32, #tpu.memory_space<vmem>>, vector<1x32xf32>
    %368 = vector.broadcast %367 : vector<1x32xf32> to vector<2x32xf32>
    %369 = arith.addf %342, %368 : vector<2x32xf32>
    %370 = arith.mulf %352, %369 : vector<2x32xf32>
    %371 = arith.addf %366, %370 : vector<2x32xf32>
    %372 = math.tanh %371 : vector<2x32xf32>
    %cst_278 = arith.constant 1.000000e+00 : f32
    %373 = vector.broadcast %cst_278 : f32 to vector<2x32xf32>
    %374 = arith.subf %373, %362 : vector<2x32xf32>
    %375 = arith.mulf %374, %372 : vector<2x32xf32>
    %376 = arith.mulf %362, %313 : vector<2x32xf32>
    %377 = arith.addf %375, %376 : vector<2x32xf32>
    %c5_279 = arith.constant 5 : index
    %c0_280 = arith.constant 0 : index
    %c0_281 = arith.constant 0 : index
    %378 = vector.load %arg7[%c5_279, %c0_280, %c0_281] : memref<8x2x32xf32, #tpu.memory_space<vmem>>, vector<1x2x32xf32>
    %379 = vector.shape_cast %378 : vector<1x2x32xf32> to vector<2x32xf32>
    %380 = vector.shape_cast %377 : vector<2x32xf32> to vector<1x2x32xf32>
    tpu.vector_store %arg7[%c5_279, %c0_280, %c0_281], %380 {strides = array<i32>} : memref<8x2x32xf32, #tpu.memory_space<vmem>>, vector<1x2x32xf32>,
    %cst_282 = arith.constant dense<0.000000e+00> : vector<2x32xf32>
    %381 = tpu.matmul %377, %0, %cst_282 {dimension_numbers = #tpu.dot_dimension_numbers<[1], [0], [0], [1], [0, 0, 1, 1], [], []>} : vector<2x32xf32>, vector<32x32xf32>, vector<2x32xf32> -> vector<2x32xf32>
    %382 = vector.broadcast %1 : vector<1x32xf32> to vector<2x32xf32>
    %383 = arith.addf %381, %382 : vector<2x32xf32>
    %c5_283 = arith.constant 5 : index
    %c0_284 = arith.constant 0 : index
    %c0_285 = arith.constant 0 : index
    %384 = vector.load %arg8[%c5_283, %c0_284, %c0_285] : memref<8x2x32xf32, #tpu.memory_space<vmem>>, vector<1x2x32xf32>
    %385 = vector.shape_cast %384 : vector<1x2x32xf32> to vector<2x32xf32>
    %386 = vector.shape_cast %383 : vector<2x32xf32> to vector<1x2x32xf32>
    tpu.vector_store %arg8[%c5_283, %c0_284, %c0_285], %386 {strides = array<i32>} : memref<8x2x32xf32, #tpu.memory_space<vmem>>, vector<1x2x32xf32>,
    %c6 = arith.constant 6 : index
    %c0_286 = arith.constant 0 : index
    %c0_287 = arith.constant 0 : index
    %387 = vector.load %arg0[%c6, %c0_286, %c0_287] : memref<8x2x32xf32, #tpu.memory_space<vmem>>, vector<1x2x32xf32>
    %388 = vector.shape_cast %387 : vector<1x2x32xf32> to vector<2x32xf32>
    %c0_288 = arith.constant 0 : index
    %c0_289 = arith.constant 0 : index
    %c0_290 = arith.constant 0 : index
    %389 = vector.load %arg1[%c0_288, %c0_289, %c0_290] : memref<3x32x32xf32, #tpu.memory_space<vmem>>, vector<1x32x32xf32>
    %390 = vector.shape_cast %389 : vector<1x32x32xf32> to vector<32x32xf32>
    %cst_291 = arith.constant dense<0.000000e+00> : vector<2x32xf32>
    %391 = tpu.matmul %388, %390, %cst_291 {dimension_numbers = #tpu.dot_dimension_numbers<[1], [0], [0], [1], [0, 0, 1, 1], [], []>} : vector<2x32xf32>, vector<32x32xf32>, vector<2x32xf32> -> vector<2x32xf32>
    %c1_292 = arith.constant 1 : index
    %c0_293 = arith.constant 0 : index
    %c0_294 = arith.constant 0 : index
    %392 = vector.load %arg1[%c1_292, %c0_293, %c0_294] : memref<3x32x32xf32, #tpu.memory_space<vmem>>, vector<1x32x32xf32>
    %393 = vector.shape_cast %392 : vector<1x32x32xf32> to vector<32x32xf32>
    %cst_295 = arith.constant dense<0.000000e+00> : vector<2x32xf32>
    %394 = tpu.matmul %388, %393, %cst_295 {dimension_numbers = #tpu.dot_dimension_numbers<[1], [0], [0], [1], [0, 0, 1, 1], [], []>} : vector<2x32xf32>, vector<32x32xf32>, vector<2x32xf32> -> vector<2x32xf32>
    %c2_296 = arith.constant 2 : index
    %c0_297 = arith.constant 0 : index
    %c0_298 = arith.constant 0 : index
    %395 = vector.load %arg1[%c2_296, %c0_297, %c0_298] : memref<3x32x32xf32, #tpu.memory_space<vmem>>, vector<1x32x32xf32>
    %396 = vector.shape_cast %395 : vector<1x32x32xf32> to vector<32x32xf32>
    %cst_299 = arith.constant dense<0.000000e+00> : vector<2x32xf32>
    %397 = tpu.matmul %388, %396, %cst_299 {dimension_numbers = #tpu.dot_dimension_numbers<[1], [0], [0], [1], [0, 0, 1, 1], [], []>} : vector<2x32xf32>, vector<32x32xf32>, vector<2x32xf32> -> vector<2x32xf32>
    %c0_300 = arith.constant 0 : index
    %c0_301 = arith.constant 0 : index
    %c0_302 = arith.constant 0 : index
    %398 = vector.load %arg2[%c0_300, %c0_301, %c0_302] : memref<3x32x32xf32, #tpu.memory_space<vmem>>, vector<1x32x32xf32>
    %399 = vector.shape_cast %398 : vector<1x32x32xf32> to vector<32x32xf32>
    %cst_303 = arith.constant dense<0.000000e+00> : vector<2x32xf32>
    %400 = tpu.matmul %377, %399, %cst_303 {dimension_numbers = #tpu.dot_dimension_numbers<[1], [0], [0], [1], [0, 0, 1, 1], [], []>} : vector<2x32xf32>, vector<32x32xf32>, vector<2x32xf32> -> vector<2x32xf32>
    %c1_304 = arith.constant 1 : index
    %c0_305 = arith.constant 0 : index
    %c0_306 = arith.constant 0 : index
    %401 = vector.load %arg2[%c1_304, %c0_305, %c0_306] : memref<3x32x32xf32, #tpu.memory_space<vmem>>, vector<1x32x32xf32>
    %402 = vector.shape_cast %401 : vector<1x32x32xf32> to vector<32x32xf32>
    %cst_307 = arith.constant dense<0.000000e+00> : vector<2x32xf32>
    %403 = tpu.matmul %377, %402, %cst_307 {dimension_numbers = #tpu.dot_dimension_numbers<[1], [0], [0], [1], [0, 0, 1, 1], [], []>} : vector<2x32xf32>, vector<32x32xf32>, vector<2x32xf32> -> vector<2x32xf32>
    %c2_308 = arith.constant 2 : index
    %c0_309 = arith.constant 0 : index
    %c0_310 = arith.constant 0 : index
    %404 = vector.load %arg2[%c2_308, %c0_309, %c0_310] : memref<3x32x32xf32, #tpu.memory_space<vmem>>, vector<1x32x32xf32>
    %405 = vector.shape_cast %404 : vector<1x32x32xf32> to vector<32x32xf32>
    %cst_311 = arith.constant dense<0.000000e+00> : vector<2x32xf32>
    %406 = tpu.matmul %377, %405, %cst_311 {dimension_numbers = #tpu.dot_dimension_numbers<[1], [0], [0], [1], [0, 0, 1, 1], [], []>} : vector<2x32xf32>, vector<32x32xf32>, vector<2x32xf32> -> vector<2x32xf32>
    %407 = arith.addf %391, %400 : vector<2x32xf32>
    %c0_312 = arith.constant 0 : index
    %c0_313 = arith.constant 0 : index
    %c0_314 = arith.constant 0 : index
    %408 = vector.load %arg3[%c0_312, %c0_313, %c0_314] : memref<3x1x32xf32, #tpu.memory_space<vmem>>, vector<1x1x32xf32>
    %409 = vector.shape_cast %408 : vector<1x1x32xf32> to vector<1x32xf32>
    %410 = vector.broadcast %409 : vector<1x32xf32> to vector<2x32xf32>
    %411 = arith.addf %407, %410 : vector<2x32xf32>
    %412 = arith.negf %411 : vector<2x32xf32>
    %413 = math.exp %412 : vector<2x32xf32>
    %cst_315 = arith.constant 1.000000e+00 : f32
    %414 = vector.broadcast %cst_315 : f32 to vector<2x32xf32>
    %415 = arith.addf %414, %413 : vector<2x32xf32>
    %416 = arith.divf %414, %415 : vector<2x32xf32>
    %417 = arith.addf %394, %403 : vector<2x32xf32>
    %c1_316 = arith.constant 1 : index
    %c0_317 = arith.constant 0 : index
    %c0_318 = arith.constant 0 : index
    %418 = vector.load %arg3[%c1_316, %c0_317, %c0_318] : memref<3x1x32xf32, #tpu.memory_space<vmem>>, vector<1x1x32xf32>
    %419 = vector.shape_cast %418 : vector<1x1x32xf32> to vector<1x32xf32>
    %420 = vector.broadcast %419 : vector<1x32xf32> to vector<2x32xf32>
    %421 = arith.addf %417, %420 : vector<2x32xf32>
    %422 = arith.negf %421 : vector<2x32xf32>
    %423 = math.exp %422 : vector<2x32xf32>
    %cst_319 = arith.constant 1.000000e+00 : f32
    %424 = vector.broadcast %cst_319 : f32 to vector<2x32xf32>
    %425 = arith.addf %424, %423 : vector<2x32xf32>
    %426 = arith.divf %424, %425 : vector<2x32xf32>
    %c2_320 = arith.constant 2 : index
    %c0_321 = arith.constant 0 : index
    %c0_322 = arith.constant 0 : index
    %427 = vector.load %arg3[%c2_320, %c0_321, %c0_322] : memref<3x1x32xf32, #tpu.memory_space<vmem>>, vector<1x1x32xf32>
    %428 = vector.shape_cast %427 : vector<1x1x32xf32> to vector<1x32xf32>
    %429 = vector.broadcast %428 : vector<1x32xf32> to vector<2x32xf32>
    %430 = arith.addf %397, %429 : vector<2x32xf32>
    %c0_323 = arith.constant 0 : index
    %c0_324 = arith.constant 0 : index
    %431 = vector.load %arg4[%c0_323, %c0_324] : memref<1x32xf32, #tpu.memory_space<vmem>>, vector<1x32xf32>
    %432 = vector.broadcast %431 : vector<1x32xf32> to vector<2x32xf32>
    %433 = arith.addf %406, %432 : vector<2x32xf32>
    %434 = arith.mulf %416, %433 : vector<2x32xf32>
    %435 = arith.addf %430, %434 : vector<2x32xf32>
    %436 = math.tanh %435 : vector<2x32xf32>
    %cst_325 = arith.constant 1.000000e+00 : f32
    %437 = vector.broadcast %cst_325 : f32 to vector<2x32xf32>
    %438 = arith.subf %437, %426 : vector<2x32xf32>
    %439 = arith.mulf %438, %436 : vector<2x32xf32>
    %440 = arith.mulf %426, %377 : vector<2x32xf32>
    %441 = arith.addf %439, %440 : vector<2x32xf32>
    %c6_326 = arith.constant 6 : index
    %c0_327 = arith.constant 0 : index
    %c0_328 = arith.constant 0 : index
    %442 = vector.load %arg7[%c6_326, %c0_327, %c0_328] : memref<8x2x32xf32, #tpu.memory_space<vmem>>, vector<1x2x32xf32>
    %443 = vector.shape_cast %442 : vector<1x2x32xf32> to vector<2x32xf32>
    %444 = vector.shape_cast %441 : vector<2x32xf32> to vector<1x2x32xf32>
    tpu.vector_store %arg7[%c6_326, %c0_327, %c0_328], %444 {strides = array<i32>} : memref<8x2x32xf32, #tpu.memory_space<vmem>>, vector<1x2x32xf32>,
    %cst_329 = arith.constant dense<0.000000e+00> : vector<2x32xf32>
    %445 = tpu.matmul %441, %0, %cst_329 {dimension_numbers = #tpu.dot_dimension_numbers<[1], [0], [0], [1], [0, 0, 1, 1], [], []>} : vector<2x32xf32>, vector<32x32xf32>, vector<2x32xf32> -> vector<2x32xf32>
    %446 = vector.broadcast %1 : vector<1x32xf32> to vector<2x32xf32>
    %447 = arith.addf %445, %446 : vector<2x32xf32>
    %c6_330 = arith.constant 6 : index
    %c0_331 = arith.constant 0 : index
    %c0_332 = arith.constant 0 : index
    %448 = vector.load %arg8[%c6_330, %c0_331, %c0_332] : memref<8x2x32xf32, #tpu.memory_space<vmem>>, vector<1x2x32xf32>
    %449 = vector.shape_cast %448 : vector<1x2x32xf32> to vector<2x32xf32>
    %450 = vector.shape_cast %447 : vector<2x32xf32> to vector<1x2x32xf32>
    tpu.vector_store %arg8[%c6_330, %c0_331, %c0_332], %450 {strides = array<i32>} : memref<8x2x32xf32, #tpu.memory_space<vmem>>, vector<1x2x32xf32>,
    %c7 = arith.constant 7 : index
    %c0_333 = arith.constant 0 : index
    %c0_334 = arith.constant 0 : index
    %451 = vector.load %arg0[%c7, %c0_333, %c0_334] : memref<8x2x32xf32, #tpu.memory_space<vmem>>, vector<1x2x32xf32>
    %452 = vector.shape_cast %451 : vector<1x2x32xf32> to vector<2x32xf32>
    %c0_335 = arith.constant 0 : index
    %c0_336 = arith.constant 0 : index
    %c0_337 = arith.constant 0 : index
    %453 = vector.load %arg1[%c0_335, %c0_336, %c0_337] : memref<3x32x32xf32, #tpu.memory_space<vmem>>, vector<1x32x32xf32>
    %454 = vector.shape_cast %453 : vector<1x32x32xf32> to vector<32x32xf32>
    %cst_338 = arith.constant dense<0.000000e+00> : vector<2x32xf32>
    %455 = tpu.matmul %452, %454, %cst_338 {dimension_numbers = #tpu.dot_dimension_numbers<[1], [0], [0], [1], [0, 0, 1, 1], [], []>} : vector<2x32xf32>, vector<32x32xf32>, vector<2x32xf32> -> vector<2x32xf32>
    %c1_339 = arith.constant 1 : index
    %c0_340 = arith.constant 0 : index
    %c0_341 = arith.constant 0 : index
    %456 = vector.load %arg1[%c1_339, %c0_340, %c0_341] : memref<3x32x32xf32, #tpu.memory_space<vmem>>, vector<1x32x32xf32>
    %457 = vector.shape_cast %456 : vector<1x32x32xf32> to vector<32x32xf32>
    %cst_342 = arith.constant dense<0.000000e+00> : vector<2x32xf32>
    %458 = tpu.matmul %452, %457, %cst_342 {dimension_numbers = #tpu.dot_dimension_numbers<[1], [0], [0], [1], [0, 0, 1, 1], [], []>} : vector<2x32xf32>, vector<32x32xf32>, vector<2x32xf32> -> vector<2x32xf32>
    %c2_343 = arith.constant 2 : index
    %c0_344 = arith.constant 0 : index
    %c0_345 = arith.constant 0 : index
    %459 = vector.load %arg1[%c2_343, %c0_344, %c0_345] : memref<3x32x32xf32, #tpu.memory_space<vmem>>, vector<1x32x32xf32>
    %460 = vector.shape_cast %459 : vector<1x32x32xf32> to vector<32x32xf32>
    %cst_346 = arith.constant dense<0.000000e+00> : vector<2x32xf32>
    %461 = tpu.matmul %452, %460, %cst_346 {dimension_numbers = #tpu.dot_dimension_numbers<[1], [0], [0], [1], [0, 0, 1, 1], [], []>} : vector<2x32xf32>, vector<32x32xf32>, vector<2x32xf32> -> vector<2x32xf32>
    %c0_347 = arith.constant 0 : index
    %c0_348 = arith.constant 0 : index
    %c0_349 = arith.constant 0 : index
    %462 = vector.load %arg2[%c0_347, %c0_348, %c0_349] : memref<3x32x32xf32, #tpu.memory_space<vmem>>, vector<1x32x32xf32>
    %463 = vector.shape_cast %462 : vector<1x32x32xf32> to vector<32x32xf32>
    %cst_350 = arith.constant dense<0.000000e+00> : vector<2x32xf32>
    %464 = tpu.matmul %441, %463, %cst_350 {dimension_numbers = #tpu.dot_dimension_numbers<[1], [0], [0], [1], [0, 0, 1, 1], [], []>} : vector<2x32xf32>, vector<32x32xf32>, vector<2x32xf32> -> vector<2x32xf32>
    %c1_351 = arith.constant 1 : index
    %c0_352 = arith.constant 0 : index
    %c0_353 = arith.constant 0 : index
    %465 = vector.load %arg2[%c1_351, %c0_352, %c0_353] : memref<3x32x32xf32, #tpu.memory_space<vmem>>, vector<1x32x32xf32>
    %466 = vector.shape_cast %465 : vector<1x32x32xf32> to vector<32x32xf32>
    %cst_354 = arith.constant dense<0.000000e+00> : vector<2x32xf32>
    %467 = tpu.matmul %441, %466, %cst_354 {dimension_numbers = #tpu.dot_dimension_numbers<[1], [0], [0], [1], [0, 0, 1, 1], [], []>} : vector<2x32xf32>, vector<32x32xf32>, vector<2x32xf32> -> vector<2x32xf32>
    %c2_355 = arith.constant 2 : index
    %c0_356 = arith.constant 0 : index
    %c0_357 = arith.constant 0 : index
    %468 = vector.load %arg2[%c2_355, %c0_356, %c0_357] : memref<3x32x32xf32, #tpu.memory_space<vmem>>, vector<1x32x32xf32>
    %469 = vector.shape_cast %468 : vector<1x32x32xf32> to vector<32x32xf32>
    %cst_358 = arith.constant dense<0.000000e+00> : vector<2x32xf32>
    %470 = tpu.matmul %441, %469, %cst_358 {dimension_numbers = #tpu.dot_dimension_numbers<[1], [0], [0], [1], [0, 0, 1, 1], [], []>} : vector<2x32xf32>, vector<32x32xf32>, vector<2x32xf32> -> vector<2x32xf32>
    %471 = arith.addf %455, %464 : vector<2x32xf32>
    %c0_359 = arith.constant 0 : index
    %c0_360 = arith.constant 0 : index
    %c0_361 = arith.constant 0 : index
    %472 = vector.load %arg3[%c0_359, %c0_360, %c0_361] : memref<3x1x32xf32, #tpu.memory_space<vmem>>, vector<1x1x32xf32>
    %473 = vector.shape_cast %472 : vector<1x1x32xf32> to vector<1x32xf32>
    %474 = vector.broadcast %473 : vector<1x32xf32> to vector<2x32xf32>
    %475 = arith.addf %471, %474 : vector<2x32xf32>
    %476 = arith.negf %475 : vector<2x32xf32>
    %477 = math.exp %476 : vector<2x32xf32>
    %cst_362 = arith.constant 1.000000e+00 : f32
    %478 = vector.broadcast %cst_362 : f32 to vector<2x32xf32>
    %479 = arith.addf %478, %477 : vector<2x32xf32>
    %480 = arith.divf %478, %479 : vector<2x32xf32>
    %481 = arith.addf %458, %467 : vector<2x32xf32>
    %c1_363 = arith.constant 1 : index
    %c0_364 = arith.constant 0 : index
    %c0_365 = arith.constant 0 : index
    %482 = vector.load %arg3[%c1_363, %c0_364, %c0_365] : memref<3x1x32xf32, #tpu.memory_space<vmem>>, vector<1x1x32xf32>
    %483 = vector.shape_cast %482 : vector<1x1x32xf32> to vector<1x32xf32>
    %484 = vector.broadcast %483 : vector<1x32xf32> to vector<2x32xf32>
    %485 = arith.addf %481, %484 : vector<2x32xf32>
    %486 = arith.negf %485 : vector<2x32xf32>
    %487 = math.exp %486 : vector<2x32xf32>
    %cst_366 = arith.constant 1.000000e+00 : f32
    %488 = vector.broadcast %cst_366 : f32 to vector<2x32xf32>
    %489 = arith.addf %488, %487 : vector<2x32xf32>
    %490 = arith.divf %488, %489 : vector<2x32xf32>
    %c2_367 = arith.constant 2 : index
    %c0_368 = arith.constant 0 : index
    %c0_369 = arith.constant 0 : index
    %491 = vector.load %arg3[%c2_367, %c0_368, %c0_369] : memref<3x1x32xf32, #tpu.memory_space<vmem>>, vector<1x1x32xf32>
    %492 = vector.shape_cast %491 : vector<1x1x32xf32> to vector<1x32xf32>
    %493 = vector.broadcast %492 : vector<1x32xf32> to vector<2x32xf32>
    %494 = arith.addf %461, %493 : vector<2x32xf32>
    %c0_370 = arith.constant 0 : index
    %c0_371 = arith.constant 0 : index
    %495 = vector.load %arg4[%c0_370, %c0_371] : memref<1x32xf32, #tpu.memory_space<vmem>>, vector<1x32xf32>
    %496 = vector.broadcast %495 : vector<1x32xf32> to vector<2x32xf32>
    %497 = arith.addf %470, %496 : vector<2x32xf32>
    %498 = arith.mulf %480, %497 : vector<2x32xf32>
    %499 = arith.addf %494, %498 : vector<2x32xf32>
    %500 = math.tanh %499 : vector<2x32xf32>
    %cst_372 = arith.constant 1.000000e+00 : f32
    %501 = vector.broadcast %cst_372 : f32 to vector<2x32xf32>
    %502 = arith.subf %501, %490 : vector<2x32xf32>
    %503 = arith.mulf %502, %500 : vector<2x32xf32>
    %504 = arith.mulf %490, %441 : vector<2x32xf32>
    %505 = arith.addf %503, %504 : vector<2x32xf32>
    %c7_373 = arith.constant 7 : index
    %c0_374 = arith.constant 0 : index
    %c0_375 = arith.constant 0 : index
    %506 = vector.load %arg7[%c7_373, %c0_374, %c0_375] : memref<8x2x32xf32, #tpu.memory_space<vmem>>, vector<1x2x32xf32>
    %507 = vector.shape_cast %506 : vector<1x2x32xf32> to vector<2x32xf32>
    %508 = vector.shape_cast %505 : vector<2x32xf32> to vector<1x2x32xf32>
    tpu.vector_store %arg7[%c7_373, %c0_374, %c0_375], %508 {strides = array<i32>} : memref<8x2x32xf32, #tpu.memory_space<vmem>>, vector<1x2x32xf32>,
    %cst_376 = arith.constant dense<0.000000e+00> : vector<2x32xf32>
    %509 = tpu.matmul %505, %0, %cst_376 {dimension_numbers = #tpu.dot_dimension_numbers<[1], [0], [0], [1], [0, 0, 1, 1], [], []>} : vector<2x32xf32>, vector<32x32xf32>, vector<2x32xf32> -> vector<2x32xf32>
    %510 = vector.broadcast %1 : vector<1x32xf32> to vector<2x32xf32>
    %511 = arith.addf %509, %510 : vector<2x32xf32>
    %c7_377 = arith.constant 7 : index
    %c0_378 = arith.constant 0 : index
    %c0_379 = arith.constant 0 : index
    %512 = vector.load %arg8[%c7_377, %c0_378, %c0_379] : memref<8x2x32xf32, #tpu.memory_space<vmem>>, vector<1x2x32xf32>
    %513 = vector.shape_cast %512 : vector<1x2x32xf32> to vector<2x32xf32>
    %514 = vector.shape_cast %511 : vector<2x32xf32> to vector<1x2x32xf32>
    tpu.vector_store %arg8[%c7_377, %c0_378, %c0_379], %514 {strides = array<i32>} : memref<8x2x32xf32, #tpu.memory_space<vmem>>, vector<1x2x32xf32>,
    %c0_380 = arith.constant 0 : index
    %c0_381 = arith.constant 0 : index
    %515 = vector.load %arg9[%c0_380, %c0_381] : memref<2x32xf32, #tpu.memory_space<vmem>>, vector<2x32xf32>
    tpu.vector_store %arg9[%c0_380, %c0_381], %505 {strides = array<i32>} : memref<2x32xf32, #tpu.memory_space<vmem>>, vector<2x32xf32>,
    return
  }
}

module attributes {stable_mosaic.version = 11 : i64} {
  func.func @decoder_kernel(%arg0: memref<2x32xf32, #tpu.memory_space<vmem>>, %arg1: memref<2x8x32xf32, #tpu.memory_space<vmem>>, %arg2: memref<2x8x32xf32, #tpu.memory_space<vmem>>, %arg3: memref<32x32xf32, #tpu.memory_space<vmem>>, %arg4: memref<1x32xf32, #tpu.memory_space<vmem>>, %arg5: memref<16x32xf32, #tpu.memory_space<vmem>>, %arg6: memref<3x32x32xf32, #tpu.memory_space<vmem>>, %arg7: memref<3x32x32xf32, #tpu.memory_space<vmem>>, %arg8: memref<3x32x32xf32, #tpu.memory_space<vmem>>, %arg9: memref<3x1x32xf32, #tpu.memory_space<vmem>>, %arg10: memref<1x32xf32, #tpu.memory_space<vmem>>, %arg11: memref<32x16xf32, #tpu.memory_space<vmem>>, %arg12: memref<32x16xf32, #tpu.memory_space<vmem>>, %arg13: memref<32x16xf32, #tpu.memory_space<vmem>>, %arg14: memref<1x16xf32, #tpu.memory_space<vmem>>, %arg15: memref<6x2x1xi32, #tpu.memory_space<vmem>>, %arg16: memref<5x1x1xi32, #tpu.memory_space<vmem>>, %arg17: memref<5x2x16xf32, #tpu.memory_space<vmem>>, %arg18: memref<5x2x8xf32, #tpu.memory_space<vmem>>) attributes {dimension_semantics = [], scalar_prefetch = 0 : i64, scratch_operands = 0 : i64, tpu.core_type = #tpu.core_type<tc>} {
    %c0 = arith.constant 0 : index
    %c0_0 = arith.constant 0 : index
    %c0_1 = arith.constant 0 : index
    %0 = vector.load %arg1[%c0, %c0_0, %c0_1] : memref<2x8x32xf32, #tpu.memory_space<vmem>>, vector<2x8x32xf32>
    %c0_2 = arith.constant 0 : index
    %c0_3 = arith.constant 0 : index
    %c0_4 = arith.constant 0 : index
    %1 = vector.load %arg2[%c0_2, %c0_3, %c0_4] : memref<2x8x32xf32, #tpu.memory_space<vmem>>, vector<2x8x32xf32>
    %c0_5 = arith.constant 0 : index
    %c0_6 = arith.constant 0 : index
    %2 = vector.load %arg3[%c0_5, %c0_6] : memref<32x32xf32, #tpu.memory_space<vmem>>, vector<32x32xf32>
    %c0_7 = arith.constant 0 : index
    %c0_8 = arith.constant 0 : index
    %3 = vector.load %arg4[%c0_7, %c0_8] : memref<1x32xf32, #tpu.memory_space<vmem>>, vector<1x32xf32>
    %c0_9 = arith.constant 0 : index
    %c0_10 = arith.constant 0 : index
    %4 = vector.load %arg5[%c0_9, %c0_10] : memref<16x32xf32, #tpu.memory_space<vmem>>, vector<16x32xf32>
    %c0_11 = arith.constant 0 : index
    %c0_12 = arith.constant 0 : index
    %5 = vector.load %arg11[%c0_11, %c0_12] : memref<32x16xf32, #tpu.memory_space<vmem>>, vector<32x16xf32>
    %c0_13 = arith.constant 0 : index
    %c0_14 = arith.constant 0 : index
    %6 = vector.load %arg12[%c0_13, %c0_14] : memref<32x16xf32, #tpu.memory_space<vmem>>, vector<32x16xf32>
    %c0_15 = arith.constant 0 : index
    %c0_16 = arith.constant 0 : index
    %7 = vector.load %arg13[%c0_15, %c0_16] : memref<32x16xf32, #tpu.memory_space<vmem>>, vector<32x16xf32>
    %c0_17 = arith.constant 0 : index
    %c0_18 = arith.constant 0 : index
    %8 = vector.load %arg14[%c0_17, %c0_18] : memref<1x16xf32, #tpu.memory_space<vmem>>, vector<1x16xf32>
    %9 = tpu.iota {dimensions = array<i32: 1>} : vector<2x16xi32>
    %10 = arith.sitofp %9 : vector<2x16xi32> to vector<2x16xf32>
    %c0_19 = arith.constant 0 : index
    %c0_20 = arith.constant 0 : index
    %11 = vector.load %arg0[%c0_19, %c0_20] : memref<2x32xf32, #tpu.memory_space<vmem>>, vector<2x32xf32>
    %c0_21 = arith.constant 0 : index
    %c0_22 = arith.constant 0 : index
    %c0_23 = arith.constant 0 : index
    %12 = vector.load %arg15[%c0_21, %c0_22, %c0_23] : memref<6x2x1xi32, #tpu.memory_space<vmem>>, vector<1x2x1xi32>
    %13 = vector.shape_cast %12 : vector<1x2x1xi32> to vector<2x1xi32>
    %14 = vector.broadcast %13 : vector<2x1xi32> to vector<2x16xi32>
    %15 = arith.cmpi eq, %14, %9 : vector<2x16xi32>
    %16 = arith.extui %15 : vector<2x16xi1> to vector<2x16xi32>
    %17 = arith.sitofp %16 : vector<2x16xi32> to vector<2x16xf32>
    %cst = arith.constant dense<0.000000e+00> : vector<2x32xf32>
    %18 = tpu.matmul %17, %4, %cst {dimension_numbers = #tpu.dot_dimension_numbers<[1], [0], [0], [1], [0, 0, 1, 1], [], []>} : vector<2x16xf32>, vector<16x32xf32>, vector<2x32xf32> -> vector<2x32xf32>
    %cst_24 = arith.constant dense<0.000000e+00> : vector<2x32xf32>
    %19 = tpu.matmul %11, %2, %cst_24 {dimension_numbers = #tpu.dot_dimension_numbers<[1], [0], [0], [1], [0, 0, 1, 1], [], []>} : vector<2x32xf32>, vector<32x32xf32>, vector<2x32xf32> -> vector<2x32xf32>
    %20 = vector.shape_cast %19 : vector<2x32xf32> to vector<2x1x32xf32>
    %21 = vector.broadcast %20 : vector<2x1x32xf32> to vector<2x8x32xf32>
    %22 = arith.addf %21, %1 : vector<2x8x32xf32>
    %23 = math.tanh %22 : vector<2x8x32xf32>
    %24 = vector.shape_cast %3 : vector<1x32xf32> to vector<1x1x32xf32>
    %25 = vector.broadcast %24 : vector<1x1x32xf32> to vector<2x8x32xf32>
    %26 = arith.mulf %23, %25 : vector<2x8x32xf32>
    %cst_25 = arith.constant dense<0.000000e+00> : vector<2x8xf32>
    %27 = vector.multi_reduction <add>, %26, %cst_25 [2] : vector<2x8x32xf32> to vector<2x8xf32>
    %cst_26 = arith.constant dense<0xFF800000> : vector<2xf32>
    %28 = vector.multi_reduction <maximumf>, %27, %cst_26 [1] : vector<2x8xf32> to vector<2xf32>
    %29 = vector.shape_cast %28 : vector<2xf32> to vector<2x1xf32>
    %30 = vector.broadcast %29 : vector<2x1xf32> to vector<2x8xf32>
    %31 = arith.subf %27, %30 : vector<2x8xf32>
    %32 = math.exp %31 : vector<2x8xf32>
    %cst_27 = arith.constant dense<0.000000e+00> : vector<2xf32>
    %33 = vector.multi_reduction <add>, %32, %cst_27 [1] : vector<2x8xf32> to vector<2xf32>
    %34 = vector.shape_cast %33 : vector<2xf32> to vector<2x1xf32>
    %35 = tpu.reciprocal %34 : vector<2x1xf32> -> vector<2x1xf32>
    %36 = vector.broadcast %35 : vector<2x1xf32> to vector<2x8xf32>
    %37 = arith.mulf %32, %36 : vector<2x8xf32>
    %38 = vector.shape_cast %37 : vector<2x8xf32> to vector<2x8x1xf32>
    %39 = vector.broadcast %38 : vector<2x8x1xf32> to vector<2x8x32xf32>
    %40 = arith.mulf %39, %0 : vector<2x8x32xf32>
    %cst_28 = arith.constant dense<0.000000e+00> : vector<2x32xf32>
    %41 = vector.multi_reduction <add>, %40, %cst_28 [1] : vector<2x8x32xf32> to vector<2x32xf32>
    %c0_29 = arith.constant 0 : index
    %c0_30 = arith.constant 0 : index
    %c0_31 = arith.constant 0 : index
    %42 = vector.load %arg6[%c0_29, %c0_30, %c0_31] : memref<3x32x32xf32, #tpu.memory_space<vmem>>, vector<1x32x32xf32>
    %43 = vector.shape_cast %42 : vector<1x32x32xf32> to vector<32x32xf32>
    %cst_32 = arith.constant dense<0.000000e+00> : vector<2x32xf32>
    %44 = tpu.matmul %18, %43, %cst_32 {dimension_numbers = #tpu.dot_dimension_numbers<[1], [0], [0], [1], [0, 0, 1, 1], [], []>} : vector<2x32xf32>, vector<32x32xf32>, vector<2x32xf32> -> vector<2x32xf32>
    %c0_33 = arith.constant 0 : index
    %c0_34 = arith.constant 0 : index
    %c0_35 = arith.constant 0 : index
    %45 = vector.load %arg7[%c0_33, %c0_34, %c0_35] : memref<3x32x32xf32, #tpu.memory_space<vmem>>, vector<1x32x32xf32>
    %46 = vector.shape_cast %45 : vector<1x32x32xf32> to vector<32x32xf32>
    %cst_36 = arith.constant dense<0.000000e+00> : vector<2x32xf32>
    %47 = tpu.matmul %41, %46, %cst_36 {dimension_numbers = #tpu.dot_dimension_numbers<[1], [0], [0], [1], [0, 0, 1, 1], [], []>} : vector<2x32xf32>, vector<32x32xf32>, vector<2x32xf32> -> vector<2x32xf32>
    %48 = arith.addf %44, %47 : vector<2x32xf32>
    %c1 = arith.constant 1 : index
    %c0_37 = arith.constant 0 : index
    %c0_38 = arith.constant 0 : index
    %49 = vector.load %arg6[%c1, %c0_37, %c0_38] : memref<3x32x32xf32, #tpu.memory_space<vmem>>, vector<1x32x32xf32>
    %50 = vector.shape_cast %49 : vector<1x32x32xf32> to vector<32x32xf32>
    %cst_39 = arith.constant dense<0.000000e+00> : vector<2x32xf32>
    %51 = tpu.matmul %18, %50, %cst_39 {dimension_numbers = #tpu.dot_dimension_numbers<[1], [0], [0], [1], [0, 0, 1, 1], [], []>} : vector<2x32xf32>, vector<32x32xf32>, vector<2x32xf32> -> vector<2x32xf32>
    %c1_40 = arith.constant 1 : index
    %c0_41 = arith.constant 0 : index
    %c0_42 = arith.constant 0 : index
    %52 = vector.load %arg7[%c1_40, %c0_41, %c0_42] : memref<3x32x32xf32, #tpu.memory_space<vmem>>, vector<1x32x32xf32>
    %53 = vector.shape_cast %52 : vector<1x32x32xf32> to vector<32x32xf32>
    %cst_43 = arith.constant dense<0.000000e+00> : vector<2x32xf32>
    %54 = tpu.matmul %41, %53, %cst_43 {dimension_numbers = #tpu.dot_dimension_numbers<[1], [0], [0], [1], [0, 0, 1, 1], [], []>} : vector<2x32xf32>, vector<32x32xf32>, vector<2x32xf32> -> vector<2x32xf32>
    %55 = arith.addf %51, %54 : vector<2x32xf32>
    %c2 = arith.constant 2 : index
    %c0_44 = arith.constant 0 : index
    %c0_45 = arith.constant 0 : index
    %56 = vector.load %arg6[%c2, %c0_44, %c0_45] : memref<3x32x32xf32, #tpu.memory_space<vmem>>, vector<1x32x32xf32>
    %57 = vector.shape_cast %56 : vector<1x32x32xf32> to vector<32x32xf32>
    %cst_46 = arith.constant dense<0.000000e+00> : vector<2x32xf32>
    %58 = tpu.matmul %18, %57, %cst_46 {dimension_numbers = #tpu.dot_dimension_numbers<[1], [0], [0], [1], [0, 0, 1, 1], [], []>} : vector<2x32xf32>, vector<32x32xf32>, vector<2x32xf32> -> vector<2x32xf32>
    %c2_47 = arith.constant 2 : index
    %c0_48 = arith.constant 0 : index
    %c0_49 = arith.constant 0 : index
    %59 = vector.load %arg7[%c2_47, %c0_48, %c0_49] : memref<3x32x32xf32, #tpu.memory_space<vmem>>, vector<1x32x32xf32>
    %60 = vector.shape_cast %59 : vector<1x32x32xf32> to vector<32x32xf32>
    %cst_50 = arith.constant dense<0.000000e+00> : vector<2x32xf32>
    %61 = tpu.matmul %41, %60, %cst_50 {dimension_numbers = #tpu.dot_dimension_numbers<[1], [0], [0], [1], [0, 0, 1, 1], [], []>} : vector<2x32xf32>, vector<32x32xf32>, vector<2x32xf32> -> vector<2x32xf32>
    %62 = arith.addf %58, %61 : vector<2x32xf32>
    %c0_51 = arith.constant 0 : index
    %c0_52 = arith.constant 0 : index
    %c0_53 = arith.constant 0 : index
    %63 = vector.load %arg8[%c0_51, %c0_52, %c0_53] : memref<3x32x32xf32, #tpu.memory_space<vmem>>, vector<1x32x32xf32>
    %64 = vector.shape_cast %63 : vector<1x32x32xf32> to vector<32x32xf32>
    %cst_54 = arith.constant dense<0.000000e+00> : vector<2x32xf32>
    %65 = tpu.matmul %11, %64, %cst_54 {dimension_numbers = #tpu.dot_dimension_numbers<[1], [0], [0], [1], [0, 0, 1, 1], [], []>} : vector<2x32xf32>, vector<32x32xf32>, vector<2x32xf32> -> vector<2x32xf32>
    %c1_55 = arith.constant 1 : index
    %c0_56 = arith.constant 0 : index
    %c0_57 = arith.constant 0 : index
    %66 = vector.load %arg8[%c1_55, %c0_56, %c0_57] : memref<3x32x32xf32, #tpu.memory_space<vmem>>, vector<1x32x32xf32>
    %67 = vector.shape_cast %66 : vector<1x32x32xf32> to vector<32x32xf32>
    %cst_58 = arith.constant dense<0.000000e+00> : vector<2x32xf32>
    %68 = tpu.matmul %11, %67, %cst_58 {dimension_numbers = #tpu.dot_dimension_numbers<[1], [0], [0], [1], [0, 0, 1, 1], [], []>} : vector<2x32xf32>, vector<32x32xf32>, vector<2x32xf32> -> vector<2x32xf32>
    %c2_59 = arith.constant 2 : index
    %c0_60 = arith.constant 0 : index
    %c0_61 = arith.constant 0 : index
    %69 = vector.load %arg8[%c2_59, %c0_60, %c0_61] : memref<3x32x32xf32, #tpu.memory_space<vmem>>, vector<1x32x32xf32>
    %70 = vector.shape_cast %69 : vector<1x32x32xf32> to vector<32x32xf32>
    %cst_62 = arith.constant dense<0.000000e+00> : vector<2x32xf32>
    %71 = tpu.matmul %11, %70, %cst_62 {dimension_numbers = #tpu.dot_dimension_numbers<[1], [0], [0], [1], [0, 0, 1, 1], [], []>} : vector<2x32xf32>, vector<32x32xf32>, vector<2x32xf32> -> vector<2x32xf32>
    %72 = arith.addf %48, %65 : vector<2x32xf32>
    %c0_63 = arith.constant 0 : index
    %c0_64 = arith.constant 0 : index
    %c0_65 = arith.constant 0 : index
    %73 = vector.load %arg9[%c0_63, %c0_64, %c0_65] : memref<3x1x32xf32, #tpu.memory_space<vmem>>, vector<1x1x32xf32>
    %74 = vector.shape_cast %73 : vector<1x1x32xf32> to vector<1x32xf32>
    %75 = vector.broadcast %74 : vector<1x32xf32> to vector<2x32xf32>
    %76 = arith.addf %72, %75 : vector<2x32xf32>
    %77 = arith.negf %76 : vector<2x32xf32>
    %78 = math.exp %77 : vector<2x32xf32>
    %cst_66 = arith.constant 1.000000e+00 : f32
    %79 = vector.broadcast %cst_66 : f32 to vector<2x32xf32>
    %80 = arith.addf %79, %78 : vector<2x32xf32>
    %81 = arith.divf %79, %80 : vector<2x32xf32>
    %82 = arith.addf %55, %68 : vector<2x32xf32>
    %c1_67 = arith.constant 1 : index
    %c0_68 = arith.constant 0 : index
    %c0_69 = arith.constant 0 : index
    %83 = vector.load %arg9[%c1_67, %c0_68, %c0_69] : memref<3x1x32xf32, #tpu.memory_space<vmem>>, vector<1x1x32xf32>
    %84 = vector.shape_cast %83 : vector<1x1x32xf32> to vector<1x32xf32>
    %85 = vector.broadcast %84 : vector<1x32xf32> to vector<2x32xf32>
    %86 = arith.addf %82, %85 : vector<2x32xf32>
    %87 = arith.negf %86 : vector<2x32xf32>
    %88 = math.exp %87 : vector<2x32xf32>
    %cst_70 = arith.constant 1.000000e+00 : f32
    %89 = vector.broadcast %cst_70 : f32 to vector<2x32xf32>
    %90 = arith.addf %89, %88 : vector<2x32xf32>
    %91 = arith.divf %89, %90 : vector<2x32xf32>
    %c2_71 = arith.constant 2 : index
    %c0_72 = arith.constant 0 : index
    %c0_73 = arith.constant 0 : index
    %92 = vector.load %arg9[%c2_71, %c0_72, %c0_73] : memref<3x1x32xf32, #tpu.memory_space<vmem>>, vector<1x1x32xf32>
    %93 = vector.shape_cast %92 : vector<1x1x32xf32> to vector<1x32xf32>
    %94 = vector.broadcast %93 : vector<1x32xf32> to vector<2x32xf32>
    %95 = arith.addf %62, %94 : vector<2x32xf32>
    %c0_74 = arith.constant 0 : index
    %c0_75 = arith.constant 0 : index
    %96 = vector.load %arg10[%c0_74, %c0_75] : memref<1x32xf32, #tpu.memory_space<vmem>>, vector<1x32xf32>
    %97 = vector.broadcast %96 : vector<1x32xf32> to vector<2x32xf32>
    %98 = arith.addf %71, %97 : vector<2x32xf32>
    %99 = arith.mulf %81, %98 : vector<2x32xf32>
    %100 = arith.addf %95, %99 : vector<2x32xf32>
    %101 = math.tanh %100 : vector<2x32xf32>
    %cst_76 = arith.constant 1.000000e+00 : f32
    %102 = vector.broadcast %cst_76 : f32 to vector<2x32xf32>
    %103 = arith.subf %102, %91 : vector<2x32xf32>
    %104 = arith.mulf %103, %101 : vector<2x32xf32>
    %105 = arith.mulf %91, %11 : vector<2x32xf32>
    %106 = arith.addf %104, %105 : vector<2x32xf32>
    %cst_77 = arith.constant dense<0.000000e+00> : vector<2x16xf32>
    %107 = tpu.matmul %106, %5, %cst_77 {dimension_numbers = #tpu.dot_dimension_numbers<[1], [0], [0], [1], [0, 0, 1, 1], [], []>} : vector<2x32xf32>, vector<32x16xf32>, vector<2x16xf32> -> vector<2x16xf32>
    %cst_78 = arith.constant dense<0.000000e+00> : vector<2x16xf32>
    %108 = tpu.matmul %41, %6, %cst_78 {dimension_numbers = #tpu.dot_dimension_numbers<[1], [0], [0], [1], [0, 0, 1, 1], [], []>} : vector<2x32xf32>, vector<32x16xf32>, vector<2x16xf32> -> vector<2x16xf32>
    %109 = arith.addf %107, %108 : vector<2x16xf32>
    %cst_79 = arith.constant dense<0.000000e+00> : vector<2x16xf32>
    %110 = tpu.matmul %18, %7, %cst_79 {dimension_numbers = #tpu.dot_dimension_numbers<[1], [0], [0], [1], [0, 0, 1, 1], [], []>} : vector<2x32xf32>, vector<32x16xf32>, vector<2x16xf32> -> vector<2x16xf32>
    %111 = arith.addf %109, %110 : vector<2x16xf32>
    %112 = vector.broadcast %8 : vector<1x16xf32> to vector<2x16xf32>
    %113 = arith.addf %111, %112 : vector<2x16xf32>
    %c0_80 = arith.constant 0 : index
    %c0_81 = arith.constant 0 : index
    %c0_82 = arith.constant 0 : index
    %114 = vector.load %arg17[%c0_80, %c0_81, %c0_82] : memref<5x2x16xf32, #tpu.memory_space<vmem>>, vector<1x2x16xf32>
    %115 = vector.shape_cast %114 : vector<1x2x16xf32> to vector<2x16xf32>
    %116 = vector.shape_cast %113 : vector<2x16xf32> to vector<1x2x16xf32>
    tpu.vector_store %arg17[%c0_80, %c0_81, %c0_82], %116 {strides = array<i32>} : memref<5x2x16xf32, #tpu.memory_space<vmem>>, vector<1x2x16xf32>,
    %c0_83 = arith.constant 0 : index
    %c0_84 = arith.constant 0 : index
    %c0_85 = arith.constant 0 : index
    %117 = vector.load %arg18[%c0_83, %c0_84, %c0_85] : memref<5x2x8xf32, #tpu.memory_space<vmem>>, vector<1x2x8xf32>
    %118 = vector.shape_cast %117 : vector<1x2x8xf32> to vector<2x8xf32>
    %119 = vector.shape_cast %37 : vector<2x8xf32> to vector<1x2x8xf32>
    tpu.vector_store %arg18[%c0_83, %c0_84, %c0_85], %119 {strides = array<i32>} : memref<5x2x8xf32, #tpu.memory_space<vmem>>, vector<1x2x8xf32>,
    %cst_86 = arith.constant dense<0xFF800000> : vector<2xf32>
    %120 = vector.multi_reduction <maximumf>, %113, %cst_86 [1] : vector<2x16xf32> to vector<2xf32>
    %121 = vector.shape_cast %120 : vector<2xf32> to vector<2x1xf32>
    %122 = vector.broadcast %121 : vector<2x1xf32> to vector<2x16xf32>
    %123 = arith.cmpf oeq, %113, %122 : vector<2x16xf32>
    %cst_87 = arith.constant 1.600000e+01 : f32
    %124 = vector.broadcast %cst_87 : f32 to vector<2x16xf32>
    %125 = arith.select %123, %10, %124 : vector<2x16xi1>, vector<2x16xf32>
    %cst_88 = arith.constant dense<0x7F800000> : vector<2xf32>
    %126 = vector.multi_reduction <minimumf>, %125, %cst_88 [1] : vector<2x16xf32> to vector<2xf32>
    %127 = vector.shape_cast %126 : vector<2xf32> to vector<2x1xf32>
    %128 = arith.fptosi %127 : vector<2x1xf32> to vector<2x1xi32>
    %c0_89 = arith.constant 0 : index
    %c0_90 = arith.constant 0 : index
    %c0_91 = arith.constant 0 : index
    %129 = vector.load %arg16[%c0_89, %c0_90, %c0_91] : memref<5x1x1xi32, #tpu.memory_space<vmem>>, vector<1x1x1xi32>
    %130 = vector.shape_cast %129 : vector<1x1x1xi32> to vector<1x1xi32>
    %c0_i32 = arith.constant 0 : i32
    %131 = vector.broadcast %c0_i32 : i32 to vector<1x1xi32>
    %132 = arith.cmpi sgt, %130, %131 : vector<1x1xi32>
    %c1_92 = arith.constant 1 : index
    %c0_93 = arith.constant 0 : index
    %c0_94 = arith.constant 0 : index
    %133 = vector.load %arg15[%c1_92, %c0_93, %c0_94] : memref<6x2x1xi32, #tpu.memory_space<vmem>>, vector<1x2x1xi32>
    %134 = vector.shape_cast %133 : vector<1x2x1xi32> to vector<2x1xi32>
    %135 = vector.shape_cast %132 : vector<1x1xi1> to vector<1x1xi1>
    %136 = vector.broadcast %135 : vector<1x1xi1> to vector<2x1xi1>
    %137 = arith.select %136, %134, %128 : vector<2x1xi1>, vector<2x1xi32>
    %138 = vector.broadcast %137 : vector<2x1xi32> to vector<2x16xi32>
    %139 = arith.cmpi eq, %138, %9 : vector<2x16xi32>
    %140 = arith.extui %139 : vector<2x16xi1> to vector<2x16xi32>
    %141 = arith.sitofp %140 : vector<2x16xi32> to vector<2x16xf32>
    %cst_95 = arith.constant dense<0.000000e+00> : vector<2x32xf32>
    %142 = tpu.matmul %141, %4, %cst_95 {dimension_numbers = #tpu.dot_dimension_numbers<[1], [0], [0], [1], [0, 0, 1, 1], [], []>} : vector<2x16xf32>, vector<16x32xf32>, vector<2x32xf32> -> vector<2x32xf32>
    %cst_96 = arith.constant dense<0.000000e+00> : vector<2x32xf32>
    %143 = tpu.matmul %106, %2, %cst_96 {dimension_numbers = #tpu.dot_dimension_numbers<[1], [0], [0], [1], [0, 0, 1, 1], [], []>} : vector<2x32xf32>, vector<32x32xf32>, vector<2x32xf32> -> vector<2x32xf32>
    %144 = vector.shape_cast %143 : vector<2x32xf32> to vector<2x1x32xf32>
    %145 = vector.broadcast %144 : vector<2x1x32xf32> to vector<2x8x32xf32>
    %146 = arith.addf %145, %1 : vector<2x8x32xf32>
    %147 = math.tanh %146 : vector<2x8x32xf32>
    %148 = vector.shape_cast %3 : vector<1x32xf32> to vector<1x1x32xf32>
    %149 = vector.broadcast %148 : vector<1x1x32xf32> to vector<2x8x32xf32>
    %150 = arith.mulf %147, %149 : vector<2x8x32xf32>
    %cst_97 = arith.constant dense<0.000000e+00> : vector<2x8xf32>
    %151 = vector.multi_reduction <add>, %150, %cst_97 [2] : vector<2x8x32xf32> to vector<2x8xf32>
    %cst_98 = arith.constant dense<0xFF800000> : vector<2xf32>
    %152 = vector.multi_reduction <maximumf>, %151, %cst_98 [1] : vector<2x8xf32> to vector<2xf32>
    %153 = vector.shape_cast %152 : vector<2xf32> to vector<2x1xf32>
    %154 = vector.broadcast %153 : vector<2x1xf32> to vector<2x8xf32>
    %155 = arith.subf %151, %154 : vector<2x8xf32>
    %156 = math.exp %155 : vector<2x8xf32>
    %cst_99 = arith.constant dense<0.000000e+00> : vector<2xf32>
    %157 = vector.multi_reduction <add>, %156, %cst_99 [1] : vector<2x8xf32> to vector<2xf32>
    %158 = vector.shape_cast %157 : vector<2xf32> to vector<2x1xf32>
    %159 = tpu.reciprocal %158 : vector<2x1xf32> -> vector<2x1xf32>
    %160 = vector.broadcast %159 : vector<2x1xf32> to vector<2x8xf32>
    %161 = arith.mulf %156, %160 : vector<2x8xf32>
    %162 = vector.shape_cast %161 : vector<2x8xf32> to vector<2x8x1xf32>
    %163 = vector.broadcast %162 : vector<2x8x1xf32> to vector<2x8x32xf32>
    %164 = arith.mulf %163, %0 : vector<2x8x32xf32>
    %cst_100 = arith.constant dense<0.000000e+00> : vector<2x32xf32>
    %165 = vector.multi_reduction <add>, %164, %cst_100 [1] : vector<2x8x32xf32> to vector<2x32xf32>
    %c0_101 = arith.constant 0 : index
    %c0_102 = arith.constant 0 : index
    %c0_103 = arith.constant 0 : index
    %166 = vector.load %arg6[%c0_101, %c0_102, %c0_103] : memref<3x32x32xf32, #tpu.memory_space<vmem>>, vector<1x32x32xf32>
    %167 = vector.shape_cast %166 : vector<1x32x32xf32> to vector<32x32xf32>
    %cst_104 = arith.constant dense<0.000000e+00> : vector<2x32xf32>
    %168 = tpu.matmul %142, %167, %cst_104 {dimension_numbers = #tpu.dot_dimension_numbers<[1], [0], [0], [1], [0, 0, 1, 1], [], []>} : vector<2x32xf32>, vector<32x32xf32>, vector<2x32xf32> -> vector<2x32xf32>
    %c0_105 = arith.constant 0 : index
    %c0_106 = arith.constant 0 : index
    %c0_107 = arith.constant 0 : index
    %169 = vector.load %arg7[%c0_105, %c0_106, %c0_107] : memref<3x32x32xf32, #tpu.memory_space<vmem>>, vector<1x32x32xf32>
    %170 = vector.shape_cast %169 : vector<1x32x32xf32> to vector<32x32xf32>
    %cst_108 = arith.constant dense<0.000000e+00> : vector<2x32xf32>
    %171 = tpu.matmul %165, %170, %cst_108 {dimension_numbers = #tpu.dot_dimension_numbers<[1], [0], [0], [1], [0, 0, 1, 1], [], []>} : vector<2x32xf32>, vector<32x32xf32>, vector<2x32xf32> -> vector<2x32xf32>
    %172 = arith.addf %168, %171 : vector<2x32xf32>
    %c1_109 = arith.constant 1 : index
    %c0_110 = arith.constant 0 : index
    %c0_111 = arith.constant 0 : index
    %173 = vector.load %arg6[%c1_109, %c0_110, %c0_111] : memref<3x32x32xf32, #tpu.memory_space<vmem>>, vector<1x32x32xf32>
    %174 = vector.shape_cast %173 : vector<1x32x32xf32> to vector<32x32xf32>
    %cst_112 = arith.constant dense<0.000000e+00> : vector<2x32xf32>
    %175 = tpu.matmul %142, %174, %cst_112 {dimension_numbers = #tpu.dot_dimension_numbers<[1], [0], [0], [1], [0, 0, 1, 1], [], []>} : vector<2x32xf32>, vector<32x32xf32>, vector<2x32xf32> -> vector<2x32xf32>
    %c1_113 = arith.constant 1 : index
    %c0_114 = arith.constant 0 : index
    %c0_115 = arith.constant 0 : index
    %176 = vector.load %arg7[%c1_113, %c0_114, %c0_115] : memref<3x32x32xf32, #tpu.memory_space<vmem>>, vector<1x32x32xf32>
    %177 = vector.shape_cast %176 : vector<1x32x32xf32> to vector<32x32xf32>
    %cst_116 = arith.constant dense<0.000000e+00> : vector<2x32xf32>
    %178 = tpu.matmul %165, %177, %cst_116 {dimension_numbers = #tpu.dot_dimension_numbers<[1], [0], [0], [1], [0, 0, 1, 1], [], []>} : vector<2x32xf32>, vector<32x32xf32>, vector<2x32xf32> -> vector<2x32xf32>
    %179 = arith.addf %175, %178 : vector<2x32xf32>
    %c2_117 = arith.constant 2 : index
    %c0_118 = arith.constant 0 : index
    %c0_119 = arith.constant 0 : index
    %180 = vector.load %arg6[%c2_117, %c0_118, %c0_119] : memref<3x32x32xf32, #tpu.memory_space<vmem>>, vector<1x32x32xf32>
    %181 = vector.shape_cast %180 : vector<1x32x32xf32> to vector<32x32xf32>
    %cst_120 = arith.constant dense<0.000000e+00> : vector<2x32xf32>
    %182 = tpu.matmul %142, %181, %cst_120 {dimension_numbers = #tpu.dot_dimension_numbers<[1], [0], [0], [1], [0, 0, 1, 1], [], []>} : vector<2x32xf32>, vector<32x32xf32>, vector<2x32xf32> -> vector<2x32xf32>
    %c2_121 = arith.constant 2 : index
    %c0_122 = arith.constant 0 : index
    %c0_123 = arith.constant 0 : index
    %183 = vector.load %arg7[%c2_121, %c0_122, %c0_123] : memref<3x32x32xf32, #tpu.memory_space<vmem>>, vector<1x32x32xf32>
    %184 = vector.shape_cast %183 : vector<1x32x32xf32> to vector<32x32xf32>
    %cst_124 = arith.constant dense<0.000000e+00> : vector<2x32xf32>
    %185 = tpu.matmul %165, %184, %cst_124 {dimension_numbers = #tpu.dot_dimension_numbers<[1], [0], [0], [1], [0, 0, 1, 1], [], []>} : vector<2x32xf32>, vector<32x32xf32>, vector<2x32xf32> -> vector<2x32xf32>
    %186 = arith.addf %182, %185 : vector<2x32xf32>
    %c0_125 = arith.constant 0 : index
    %c0_126 = arith.constant 0 : index
    %c0_127 = arith.constant 0 : index
    %187 = vector.load %arg8[%c0_125, %c0_126, %c0_127] : memref<3x32x32xf32, #tpu.memory_space<vmem>>, vector<1x32x32xf32>
    %188 = vector.shape_cast %187 : vector<1x32x32xf32> to vector<32x32xf32>
    %cst_128 = arith.constant dense<0.000000e+00> : vector<2x32xf32>
    %189 = tpu.matmul %106, %188, %cst_128 {dimension_numbers = #tpu.dot_dimension_numbers<[1], [0], [0], [1], [0, 0, 1, 1], [], []>} : vector<2x32xf32>, vector<32x32xf32>, vector<2x32xf32> -> vector<2x32xf32>
    %c1_129 = arith.constant 1 : index
    %c0_130 = arith.constant 0 : index
    %c0_131 = arith.constant 0 : index
    %190 = vector.load %arg8[%c1_129, %c0_130, %c0_131] : memref<3x32x32xf32, #tpu.memory_space<vmem>>, vector<1x32x32xf32>
    %191 = vector.shape_cast %190 : vector<1x32x32xf32> to vector<32x32xf32>
    %cst_132 = arith.constant dense<0.000000e+00> : vector<2x32xf32>
    %192 = tpu.matmul %106, %191, %cst_132 {dimension_numbers = #tpu.dot_dimension_numbers<[1], [0], [0], [1], [0, 0, 1, 1], [], []>} : vector<2x32xf32>, vector<32x32xf32>, vector<2x32xf32> -> vector<2x32xf32>
    %c2_133 = arith.constant 2 : index
    %c0_134 = arith.constant 0 : index
    %c0_135 = arith.constant 0 : index
    %193 = vector.load %arg8[%c2_133, %c0_134, %c0_135] : memref<3x32x32xf32, #tpu.memory_space<vmem>>, vector<1x32x32xf32>
    %194 = vector.shape_cast %193 : vector<1x32x32xf32> to vector<32x32xf32>
    %cst_136 = arith.constant dense<0.000000e+00> : vector<2x32xf32>
    %195 = tpu.matmul %106, %194, %cst_136 {dimension_numbers = #tpu.dot_dimension_numbers<[1], [0], [0], [1], [0, 0, 1, 1], [], []>} : vector<2x32xf32>, vector<32x32xf32>, vector<2x32xf32> -> vector<2x32xf32>
    %196 = arith.addf %172, %189 : vector<2x32xf32>
    %c0_137 = arith.constant 0 : index
    %c0_138 = arith.constant 0 : index
    %c0_139 = arith.constant 0 : index
    %197 = vector.load %arg9[%c0_137, %c0_138, %c0_139] : memref<3x1x32xf32, #tpu.memory_space<vmem>>, vector<1x1x32xf32>
    %198 = vector.shape_cast %197 : vector<1x1x32xf32> to vector<1x32xf32>
    %199 = vector.broadcast %198 : vector<1x32xf32> to vector<2x32xf32>
    %200 = arith.addf %196, %199 : vector<2x32xf32>
    %201 = arith.negf %200 : vector<2x32xf32>
    %202 = math.exp %201 : vector<2x32xf32>
    %cst_140 = arith.constant 1.000000e+00 : f32
    %203 = vector.broadcast %cst_140 : f32 to vector<2x32xf32>
    %204 = arith.addf %203, %202 : vector<2x32xf32>
    %205 = arith.divf %203, %204 : vector<2x32xf32>
    %206 = arith.addf %179, %192 : vector<2x32xf32>
    %c1_141 = arith.constant 1 : index
    %c0_142 = arith.constant 0 : index
    %c0_143 = arith.constant 0 : index
    %207 = vector.load %arg9[%c1_141, %c0_142, %c0_143] : memref<3x1x32xf32, #tpu.memory_space<vmem>>, vector<1x1x32xf32>
    %208 = vector.shape_cast %207 : vector<1x1x32xf32> to vector<1x32xf32>
    %209 = vector.broadcast %208 : vector<1x32xf32> to vector<2x32xf32>
    %210 = arith.addf %206, %209 : vector<2x32xf32>
    %211 = arith.negf %210 : vector<2x32xf32>
    %212 = math.exp %211 : vector<2x32xf32>
    %cst_144 = arith.constant 1.000000e+00 : f32
    %213 = vector.broadcast %cst_144 : f32 to vector<2x32xf32>
    %214 = arith.addf %213, %212 : vector<2x32xf32>
    %215 = arith.divf %213, %214 : vector<2x32xf32>
    %c2_145 = arith.constant 2 : index
    %c0_146 = arith.constant 0 : index
    %c0_147 = arith.constant 0 : index
    %216 = vector.load %arg9[%c2_145, %c0_146, %c0_147] : memref<3x1x32xf32, #tpu.memory_space<vmem>>, vector<1x1x32xf32>
    %217 = vector.shape_cast %216 : vector<1x1x32xf32> to vector<1x32xf32>
    %218 = vector.broadcast %217 : vector<1x32xf32> to vector<2x32xf32>
    %219 = arith.addf %186, %218 : vector<2x32xf32>
    %c0_148 = arith.constant 0 : index
    %c0_149 = arith.constant 0 : index
    %220 = vector.load %arg10[%c0_148, %c0_149] : memref<1x32xf32, #tpu.memory_space<vmem>>, vector<1x32xf32>
    %221 = vector.broadcast %220 : vector<1x32xf32> to vector<2x32xf32>
    %222 = arith.addf %195, %221 : vector<2x32xf32>
    %223 = arith.mulf %205, %222 : vector<2x32xf32>
    %224 = arith.addf %219, %223 : vector<2x32xf32>
    %225 = math.tanh %224 : vector<2x32xf32>
    %cst_150 = arith.constant 1.000000e+00 : f32
    %226 = vector.broadcast %cst_150 : f32 to vector<2x32xf32>
    %227 = arith.subf %226, %215 : vector<2x32xf32>
    %228 = arith.mulf %227, %225 : vector<2x32xf32>
    %229 = arith.mulf %215, %106 : vector<2x32xf32>
    %230 = arith.addf %228, %229 : vector<2x32xf32>
    %cst_151 = arith.constant dense<0.000000e+00> : vector<2x16xf32>
    %231 = tpu.matmul %230, %5, %cst_151 {dimension_numbers = #tpu.dot_dimension_numbers<[1], [0], [0], [1], [0, 0, 1, 1], [], []>} : vector<2x32xf32>, vector<32x16xf32>, vector<2x16xf32> -> vector<2x16xf32>
    %cst_152 = arith.constant dense<0.000000e+00> : vector<2x16xf32>
    %232 = tpu.matmul %165, %6, %cst_152 {dimension_numbers = #tpu.dot_dimension_numbers<[1], [0], [0], [1], [0, 0, 1, 1], [], []>} : vector<2x32xf32>, vector<32x16xf32>, vector<2x16xf32> -> vector<2x16xf32>
    %233 = arith.addf %231, %232 : vector<2x16xf32>
    %cst_153 = arith.constant dense<0.000000e+00> : vector<2x16xf32>
    %234 = tpu.matmul %142, %7, %cst_153 {dimension_numbers = #tpu.dot_dimension_numbers<[1], [0], [0], [1], [0, 0, 1, 1], [], []>} : vector<2x32xf32>, vector<32x16xf32>, vector<2x16xf32> -> vector<2x16xf32>
    %235 = arith.addf %233, %234 : vector<2x16xf32>
    %236 = vector.broadcast %8 : vector<1x16xf32> to vector<2x16xf32>
    %237 = arith.addf %235, %236 : vector<2x16xf32>
    %c1_154 = arith.constant 1 : index
    %c0_155 = arith.constant 0 : index
    %c0_156 = arith.constant 0 : index
    %238 = vector.load %arg17[%c1_154, %c0_155, %c0_156] : memref<5x2x16xf32, #tpu.memory_space<vmem>>, vector<1x2x16xf32>
    %239 = vector.shape_cast %238 : vector<1x2x16xf32> to vector<2x16xf32>
    %240 = vector.shape_cast %237 : vector<2x16xf32> to vector<1x2x16xf32>
    tpu.vector_store %arg17[%c1_154, %c0_155, %c0_156], %240 {strides = array<i32>} : memref<5x2x16xf32, #tpu.memory_space<vmem>>, vector<1x2x16xf32>,
    %c1_157 = arith.constant 1 : index
    %c0_158 = arith.constant 0 : index
    %c0_159 = arith.constant 0 : index
    %241 = vector.load %arg18[%c1_157, %c0_158, %c0_159] : memref<5x2x8xf32, #tpu.memory_space<vmem>>, vector<1x2x8xf32>
    %242 = vector.shape_cast %241 : vector<1x2x8xf32> to vector<2x8xf32>
    %243 = vector.shape_cast %161 : vector<2x8xf32> to vector<1x2x8xf32>
    tpu.vector_store %arg18[%c1_157, %c0_158, %c0_159], %243 {strides = array<i32>} : memref<5x2x8xf32, #tpu.memory_space<vmem>>, vector<1x2x8xf32>,
    %cst_160 = arith.constant dense<0xFF800000> : vector<2xf32>
    %244 = vector.multi_reduction <maximumf>, %237, %cst_160 [1] : vector<2x16xf32> to vector<2xf32>
    %245 = vector.shape_cast %244 : vector<2xf32> to vector<2x1xf32>
    %246 = vector.broadcast %245 : vector<2x1xf32> to vector<2x16xf32>
    %247 = arith.cmpf oeq, %237, %246 : vector<2x16xf32>
    %cst_161 = arith.constant 1.600000e+01 : f32
    %248 = vector.broadcast %cst_161 : f32 to vector<2x16xf32>
    %249 = arith.select %247, %10, %248 : vector<2x16xi1>, vector<2x16xf32>
    %cst_162 = arith.constant dense<0x7F800000> : vector<2xf32>
    %250 = vector.multi_reduction <minimumf>, %249, %cst_162 [1] : vector<2x16xf32> to vector<2xf32>
    %251 = vector.shape_cast %250 : vector<2xf32> to vector<2x1xf32>
    %252 = arith.fptosi %251 : vector<2x1xf32> to vector<2x1xi32>
    %c1_163 = arith.constant 1 : index
    %c0_164 = arith.constant 0 : index
    %c0_165 = arith.constant 0 : index
    %253 = vector.load %arg16[%c1_163, %c0_164, %c0_165] : memref<5x1x1xi32, #tpu.memory_space<vmem>>, vector<1x1x1xi32>
    %254 = vector.shape_cast %253 : vector<1x1x1xi32> to vector<1x1xi32>
    %c0_i32_166 = arith.constant 0 : i32
    %255 = vector.broadcast %c0_i32_166 : i32 to vector<1x1xi32>
    %256 = arith.cmpi sgt, %254, %255 : vector<1x1xi32>
    %c2_167 = arith.constant 2 : index
    %c0_168 = arith.constant 0 : index
    %c0_169 = arith.constant 0 : index
    %257 = vector.load %arg15[%c2_167, %c0_168, %c0_169] : memref<6x2x1xi32, #tpu.memory_space<vmem>>, vector<1x2x1xi32>
    %258 = vector.shape_cast %257 : vector<1x2x1xi32> to vector<2x1xi32>
    %259 = vector.shape_cast %256 : vector<1x1xi1> to vector<1x1xi1>
    %260 = vector.broadcast %259 : vector<1x1xi1> to vector<2x1xi1>
    %261 = arith.select %260, %258, %252 : vector<2x1xi1>, vector<2x1xi32>
    %262 = vector.broadcast %261 : vector<2x1xi32> to vector<2x16xi32>
    %263 = arith.cmpi eq, %262, %9 : vector<2x16xi32>
    %264 = arith.extui %263 : vector<2x16xi1> to vector<2x16xi32>
    %265 = arith.sitofp %264 : vector<2x16xi32> to vector<2x16xf32>
    %cst_170 = arith.constant dense<0.000000e+00> : vector<2x32xf32>
    %266 = tpu.matmul %265, %4, %cst_170 {dimension_numbers = #tpu.dot_dimension_numbers<[1], [0], [0], [1], [0, 0, 1, 1], [], []>} : vector<2x16xf32>, vector<16x32xf32>, vector<2x32xf32> -> vector<2x32xf32>
    %cst_171 = arith.constant dense<0.000000e+00> : vector<2x32xf32>
    %267 = tpu.matmul %230, %2, %cst_171 {dimension_numbers = #tpu.dot_dimension_numbers<[1], [0], [0], [1], [0, 0, 1, 1], [], []>} : vector<2x32xf32>, vector<32x32xf32>, vector<2x32xf32> -> vector<2x32xf32>
    %268 = vector.shape_cast %267 : vector<2x32xf32> to vector<2x1x32xf32>
    %269 = vector.broadcast %268 : vector<2x1x32xf32> to vector<2x8x32xf32>
    %270 = arith.addf %269, %1 : vector<2x8x32xf32>
    %271 = math.tanh %270 : vector<2x8x32xf32>
    %272 = vector.shape_cast %3 : vector<1x32xf32> to vector<1x1x32xf32>
    %273 = vector.broadcast %272 : vector<1x1x32xf32> to vector<2x8x32xf32>
    %274 = arith.mulf %271, %273 : vector<2x8x32xf32>
    %cst_172 = arith.constant dense<0.000000e+00> : vector<2x8xf32>
    %275 = vector.multi_reduction <add>, %274, %cst_172 [2] : vector<2x8x32xf32> to vector<2x8xf32>
    %cst_173 = arith.constant dense<0xFF800000> : vector<2xf32>
    %276 = vector.multi_reduction <maximumf>, %275, %cst_173 [1] : vector<2x8xf32> to vector<2xf32>
    %277 = vector.shape_cast %276 : vector<2xf32> to vector<2x1xf32>
    %278 = vector.broadcast %277 : vector<2x1xf32> to vector<2x8xf32>
    %279 = arith.subf %275, %278 : vector<2x8xf32>
    %280 = math.exp %279 : vector<2x8xf32>
    %cst_174 = arith.constant dense<0.000000e+00> : vector<2xf32>
    %281 = vector.multi_reduction <add>, %280, %cst_174 [1] : vector<2x8xf32> to vector<2xf32>
    %282 = vector.shape_cast %281 : vector<2xf32> to vector<2x1xf32>
    %283 = tpu.reciprocal %282 : vector<2x1xf32> -> vector<2x1xf32>
    %284 = vector.broadcast %283 : vector<2x1xf32> to vector<2x8xf32>
    %285 = arith.mulf %280, %284 : vector<2x8xf32>
    %286 = vector.shape_cast %285 : vector<2x8xf32> to vector<2x8x1xf32>
    %287 = vector.broadcast %286 : vector<2x8x1xf32> to vector<2x8x32xf32>
    %288 = arith.mulf %287, %0 : vector<2x8x32xf32>
    %cst_175 = arith.constant dense<0.000000e+00> : vector<2x32xf32>
    %289 = vector.multi_reduction <add>, %288, %cst_175 [1] : vector<2x8x32xf32> to vector<2x32xf32>
    %c0_176 = arith.constant 0 : index
    %c0_177 = arith.constant 0 : index
    %c0_178 = arith.constant 0 : index
    %290 = vector.load %arg6[%c0_176, %c0_177, %c0_178] : memref<3x32x32xf32, #tpu.memory_space<vmem>>, vector<1x32x32xf32>
    %291 = vector.shape_cast %290 : vector<1x32x32xf32> to vector<32x32xf32>
    %cst_179 = arith.constant dense<0.000000e+00> : vector<2x32xf32>
    %292 = tpu.matmul %266, %291, %cst_179 {dimension_numbers = #tpu.dot_dimension_numbers<[1], [0], [0], [1], [0, 0, 1, 1], [], []>} : vector<2x32xf32>, vector<32x32xf32>, vector<2x32xf32> -> vector<2x32xf32>
    %c0_180 = arith.constant 0 : index
    %c0_181 = arith.constant 0 : index
    %c0_182 = arith.constant 0 : index
    %293 = vector.load %arg7[%c0_180, %c0_181, %c0_182] : memref<3x32x32xf32, #tpu.memory_space<vmem>>, vector<1x32x32xf32>
    %294 = vector.shape_cast %293 : vector<1x32x32xf32> to vector<32x32xf32>
    %cst_183 = arith.constant dense<0.000000e+00> : vector<2x32xf32>
    %295 = tpu.matmul %289, %294, %cst_183 {dimension_numbers = #tpu.dot_dimension_numbers<[1], [0], [0], [1], [0, 0, 1, 1], [], []>} : vector<2x32xf32>, vector<32x32xf32>, vector<2x32xf32> -> vector<2x32xf32>
    %296 = arith.addf %292, %295 : vector<2x32xf32>
    %c1_184 = arith.constant 1 : index
    %c0_185 = arith.constant 0 : index
    %c0_186 = arith.constant 0 : index
    %297 = vector.load %arg6[%c1_184, %c0_185, %c0_186] : memref<3x32x32xf32, #tpu.memory_space<vmem>>, vector<1x32x32xf32>
    %298 = vector.shape_cast %297 : vector<1x32x32xf32> to vector<32x32xf32>
    %cst_187 = arith.constant dense<0.000000e+00> : vector<2x32xf32>
    %299 = tpu.matmul %266, %298, %cst_187 {dimension_numbers = #tpu.dot_dimension_numbers<[1], [0], [0], [1], [0, 0, 1, 1], [], []>} : vector<2x32xf32>, vector<32x32xf32>, vector<2x32xf32> -> vector<2x32xf32>
    %c1_188 = arith.constant 1 : index
    %c0_189 = arith.constant 0 : index
    %c0_190 = arith.constant 0 : index
    %300 = vector.load %arg7[%c1_188, %c0_189, %c0_190] : memref<3x32x32xf32, #tpu.memory_space<vmem>>, vector<1x32x32xf32>
    %301 = vector.shape_cast %300 : vector<1x32x32xf32> to vector<32x32xf32>
    %cst_191 = arith.constant dense<0.000000e+00> : vector<2x32xf32>
    %302 = tpu.matmul %289, %301, %cst_191 {dimension_numbers = #tpu.dot_dimension_numbers<[1], [0], [0], [1], [0, 0, 1, 1], [], []>} : vector<2x32xf32>, vector<32x32xf32>, vector<2x32xf32> -> vector<2x32xf32>
    %303 = arith.addf %299, %302 : vector<2x32xf32>
    %c2_192 = arith.constant 2 : index
    %c0_193 = arith.constant 0 : index
    %c0_194 = arith.constant 0 : index
    %304 = vector.load %arg6[%c2_192, %c0_193, %c0_194] : memref<3x32x32xf32, #tpu.memory_space<vmem>>, vector<1x32x32xf32>
    %305 = vector.shape_cast %304 : vector<1x32x32xf32> to vector<32x32xf32>
    %cst_195 = arith.constant dense<0.000000e+00> : vector<2x32xf32>
    %306 = tpu.matmul %266, %305, %cst_195 {dimension_numbers = #tpu.dot_dimension_numbers<[1], [0], [0], [1], [0, 0, 1, 1], [], []>} : vector<2x32xf32>, vector<32x32xf32>, vector<2x32xf32> -> vector<2x32xf32>
    %c2_196 = arith.constant 2 : index
    %c0_197 = arith.constant 0 : index
    %c0_198 = arith.constant 0 : index
    %307 = vector.load %arg7[%c2_196, %c0_197, %c0_198] : memref<3x32x32xf32, #tpu.memory_space<vmem>>, vector<1x32x32xf32>
    %308 = vector.shape_cast %307 : vector<1x32x32xf32> to vector<32x32xf32>
    %cst_199 = arith.constant dense<0.000000e+00> : vector<2x32xf32>
    %309 = tpu.matmul %289, %308, %cst_199 {dimension_numbers = #tpu.dot_dimension_numbers<[1], [0], [0], [1], [0, 0, 1, 1], [], []>} : vector<2x32xf32>, vector<32x32xf32>, vector<2x32xf32> -> vector<2x32xf32>
    %310 = arith.addf %306, %309 : vector<2x32xf32>
    %c0_200 = arith.constant 0 : index
    %c0_201 = arith.constant 0 : index
    %c0_202 = arith.constant 0 : index
    %311 = vector.load %arg8[%c0_200, %c0_201, %c0_202] : memref<3x32x32xf32, #tpu.memory_space<vmem>>, vector<1x32x32xf32>
    %312 = vector.shape_cast %311 : vector<1x32x32xf32> to vector<32x32xf32>
    %cst_203 = arith.constant dense<0.000000e+00> : vector<2x32xf32>
    %313 = tpu.matmul %230, %312, %cst_203 {dimension_numbers = #tpu.dot_dimension_numbers<[1], [0], [0], [1], [0, 0, 1, 1], [], []>} : vector<2x32xf32>, vector<32x32xf32>, vector<2x32xf32> -> vector<2x32xf32>
    %c1_204 = arith.constant 1 : index
    %c0_205 = arith.constant 0 : index
    %c0_206 = arith.constant 0 : index
    %314 = vector.load %arg8[%c1_204, %c0_205, %c0_206] : memref<3x32x32xf32, #tpu.memory_space<vmem>>, vector<1x32x32xf32>
    %315 = vector.shape_cast %314 : vector<1x32x32xf32> to vector<32x32xf32>
    %cst_207 = arith.constant dense<0.000000e+00> : vector<2x32xf32>
    %316 = tpu.matmul %230, %315, %cst_207 {dimension_numbers = #tpu.dot_dimension_numbers<[1], [0], [0], [1], [0, 0, 1, 1], [], []>} : vector<2x32xf32>, vector<32x32xf32>, vector<2x32xf32> -> vector<2x32xf32>
    %c2_208 = arith.constant 2 : index
    %c0_209 = arith.constant 0 : index
    %c0_210 = arith.constant 0 : index
    %317 = vector.load %arg8[%c2_208, %c0_209, %c0_210] : memref<3x32x32xf32, #tpu.memory_space<vmem>>, vector<1x32x32xf32>
    %318 = vector.shape_cast %317 : vector<1x32x32xf32> to vector<32x32xf32>
    %cst_211 = arith.constant dense<0.000000e+00> : vector<2x32xf32>
    %319 = tpu.matmul %230, %318, %cst_211 {dimension_numbers = #tpu.dot_dimension_numbers<[1], [0], [0], [1], [0, 0, 1, 1], [], []>} : vector<2x32xf32>, vector<32x32xf32>, vector<2x32xf32> -> vector<2x32xf32>
    %320 = arith.addf %296, %313 : vector<2x32xf32>
    %c0_212 = arith.constant 0 : index
    %c0_213 = arith.constant 0 : index
    %c0_214 = arith.constant 0 : index
    %321 = vector.load %arg9[%c0_212, %c0_213, %c0_214] : memref<3x1x32xf32, #tpu.memory_space<vmem>>, vector<1x1x32xf32>
    %322 = vector.shape_cast %321 : vector<1x1x32xf32> to vector<1x32xf32>
    %323 = vector.broadcast %322 : vector<1x32xf32> to vector<2x32xf32>
    %324 = arith.addf %320, %323 : vector<2x32xf32>
    %325 = arith.negf %324 : vector<2x32xf32>
    %326 = math.exp %325 : vector<2x32xf32>
    %cst_215 = arith.constant 1.000000e+00 : f32
    %327 = vector.broadcast %cst_215 : f32 to vector<2x32xf32>
    %328 = arith.addf %327, %326 : vector<2x32xf32>
    %329 = arith.divf %327, %328 : vector<2x32xf32>
    %330 = arith.addf %303, %316 : vector<2x32xf32>
    %c1_216 = arith.constant 1 : index
    %c0_217 = arith.constant 0 : index
    %c0_218 = arith.constant 0 : index
    %331 = vector.load %arg9[%c1_216, %c0_217, %c0_218] : memref<3x1x32xf32, #tpu.memory_space<vmem>>, vector<1x1x32xf32>
    %332 = vector.shape_cast %331 : vector<1x1x32xf32> to vector<1x32xf32>
    %333 = vector.broadcast %332 : vector<1x32xf32> to vector<2x32xf32>
    %334 = arith.addf %330, %333 : vector<2x32xf32>
    %335 = arith.negf %334 : vector<2x32xf32>
    %336 = math.exp %335 : vector<2x32xf32>
    %cst_219 = arith.constant 1.000000e+00 : f32
    %337 = vector.broadcast %cst_219 : f32 to vector<2x32xf32>
    %338 = arith.addf %337, %336 : vector<2x32xf32>
    %339 = arith.divf %337, %338 : vector<2x32xf32>
    %c2_220 = arith.constant 2 : index
    %c0_221 = arith.constant 0 : index
    %c0_222 = arith.constant 0 : index
    %340 = vector.load %arg9[%c2_220, %c0_221, %c0_222] : memref<3x1x32xf32, #tpu.memory_space<vmem>>, vector<1x1x32xf32>
    %341 = vector.shape_cast %340 : vector<1x1x32xf32> to vector<1x32xf32>
    %342 = vector.broadcast %341 : vector<1x32xf32> to vector<2x32xf32>
    %343 = arith.addf %310, %342 : vector<2x32xf32>
    %c0_223 = arith.constant 0 : index
    %c0_224 = arith.constant 0 : index
    %344 = vector.load %arg10[%c0_223, %c0_224] : memref<1x32xf32, #tpu.memory_space<vmem>>, vector<1x32xf32>
    %345 = vector.broadcast %344 : vector<1x32xf32> to vector<2x32xf32>
    %346 = arith.addf %319, %345 : vector<2x32xf32>
    %347 = arith.mulf %329, %346 : vector<2x32xf32>
    %348 = arith.addf %343, %347 : vector<2x32xf32>
    %349 = math.tanh %348 : vector<2x32xf32>
    %cst_225 = arith.constant 1.000000e+00 : f32
    %350 = vector.broadcast %cst_225 : f32 to vector<2x32xf32>
    %351 = arith.subf %350, %339 : vector<2x32xf32>
    %352 = arith.mulf %351, %349 : vector<2x32xf32>
    %353 = arith.mulf %339, %230 : vector<2x32xf32>
    %354 = arith.addf %352, %353 : vector<2x32xf32>
    %cst_226 = arith.constant dense<0.000000e+00> : vector<2x16xf32>
    %355 = tpu.matmul %354, %5, %cst_226 {dimension_numbers = #tpu.dot_dimension_numbers<[1], [0], [0], [1], [0, 0, 1, 1], [], []>} : vector<2x32xf32>, vector<32x16xf32>, vector<2x16xf32> -> vector<2x16xf32>
    %cst_227 = arith.constant dense<0.000000e+00> : vector<2x16xf32>
    %356 = tpu.matmul %289, %6, %cst_227 {dimension_numbers = #tpu.dot_dimension_numbers<[1], [0], [0], [1], [0, 0, 1, 1], [], []>} : vector<2x32xf32>, vector<32x16xf32>, vector<2x16xf32> -> vector<2x16xf32>
    %357 = arith.addf %355, %356 : vector<2x16xf32>
    %cst_228 = arith.constant dense<0.000000e+00> : vector<2x16xf32>
    %358 = tpu.matmul %266, %7, %cst_228 {dimension_numbers = #tpu.dot_dimension_numbers<[1], [0], [0], [1], [0, 0, 1, 1], [], []>} : vector<2x32xf32>, vector<32x16xf32>, vector<2x16xf32> -> vector<2x16xf32>
    %359 = arith.addf %357, %358 : vector<2x16xf32>
    %360 = vector.broadcast %8 : vector<1x16xf32> to vector<2x16xf32>
    %361 = arith.addf %359, %360 : vector<2x16xf32>
    %c2_229 = arith.constant 2 : index
    %c0_230 = arith.constant 0 : index
    %c0_231 = arith.constant 0 : index
    %362 = vector.load %arg17[%c2_229, %c0_230, %c0_231] : memref<5x2x16xf32, #tpu.memory_space<vmem>>, vector<1x2x16xf32>
    %363 = vector.shape_cast %362 : vector<1x2x16xf32> to vector<2x16xf32>
    %364 = vector.shape_cast %361 : vector<2x16xf32> to vector<1x2x16xf32>
    tpu.vector_store %arg17[%c2_229, %c0_230, %c0_231], %364 {strides = array<i32>} : memref<5x2x16xf32, #tpu.memory_space<vmem>>, vector<1x2x16xf32>,
    %c2_232 = arith.constant 2 : index
    %c0_233 = arith.constant 0 : index
    %c0_234 = arith.constant 0 : index
    %365 = vector.load %arg18[%c2_232, %c0_233, %c0_234] : memref<5x2x8xf32, #tpu.memory_space<vmem>>, vector<1x2x8xf32>
    %366 = vector.shape_cast %365 : vector<1x2x8xf32> to vector<2x8xf32>
    %367 = vector.shape_cast %285 : vector<2x8xf32> to vector<1x2x8xf32>
    tpu.vector_store %arg18[%c2_232, %c0_233, %c0_234], %367 {strides = array<i32>} : memref<5x2x8xf32, #tpu.memory_space<vmem>>, vector<1x2x8xf32>,
    %cst_235 = arith.constant dense<0xFF800000> : vector<2xf32>
    %368 = vector.multi_reduction <maximumf>, %361, %cst_235 [1] : vector<2x16xf32> to vector<2xf32>
    %369 = vector.shape_cast %368 : vector<2xf32> to vector<2x1xf32>
    %370 = vector.broadcast %369 : vector<2x1xf32> to vector<2x16xf32>
    %371 = arith.cmpf oeq, %361, %370 : vector<2x16xf32>
    %cst_236 = arith.constant 1.600000e+01 : f32
    %372 = vector.broadcast %cst_236 : f32 to vector<2x16xf32>
    %373 = arith.select %371, %10, %372 : vector<2x16xi1>, vector<2x16xf32>
    %cst_237 = arith.constant dense<0x7F800000> : vector<2xf32>
    %374 = vector.multi_reduction <minimumf>, %373, %cst_237 [1] : vector<2x16xf32> to vector<2xf32>
    %375 = vector.shape_cast %374 : vector<2xf32> to vector<2x1xf32>
    %376 = arith.fptosi %375 : vector<2x1xf32> to vector<2x1xi32>
    %c2_238 = arith.constant 2 : index
    %c0_239 = arith.constant 0 : index
    %c0_240 = arith.constant 0 : index
    %377 = vector.load %arg16[%c2_238, %c0_239, %c0_240] : memref<5x1x1xi32, #tpu.memory_space<vmem>>, vector<1x1x1xi32>
    %378 = vector.shape_cast %377 : vector<1x1x1xi32> to vector<1x1xi32>
    %c0_i32_241 = arith.constant 0 : i32
    %379 = vector.broadcast %c0_i32_241 : i32 to vector<1x1xi32>
    %380 = arith.cmpi sgt, %378, %379 : vector<1x1xi32>
    %c3 = arith.constant 3 : index
    %c0_242 = arith.constant 0 : index
    %c0_243 = arith.constant 0 : index
    %381 = vector.load %arg15[%c3, %c0_242, %c0_243] : memref<6x2x1xi32, #tpu.memory_space<vmem>>, vector<1x2x1xi32>
    %382 = vector.shape_cast %381 : vector<1x2x1xi32> to vector<2x1xi32>
    %383 = vector.shape_cast %380 : vector<1x1xi1> to vector<1x1xi1>
    %384 = vector.broadcast %383 : vector<1x1xi1> to vector<2x1xi1>
    %385 = arith.select %384, %382, %376 : vector<2x1xi1>, vector<2x1xi32>
    %386 = vector.broadcast %385 : vector<2x1xi32> to vector<2x16xi32>
    %387 = arith.cmpi eq, %386, %9 : vector<2x16xi32>
    %388 = arith.extui %387 : vector<2x16xi1> to vector<2x16xi32>
    %389 = arith.sitofp %388 : vector<2x16xi32> to vector<2x16xf32>
    %cst_244 = arith.constant dense<0.000000e+00> : vector<2x32xf32>
    %390 = tpu.matmul %389, %4, %cst_244 {dimension_numbers = #tpu.dot_dimension_numbers<[1], [0], [0], [1], [0, 0, 1, 1], [], []>} : vector<2x16xf32>, vector<16x32xf32>, vector<2x32xf32> -> vector<2x32xf32>
    %cst_245 = arith.constant dense<0.000000e+00> : vector<2x32xf32>
    %391 = tpu.matmul %354, %2, %cst_245 {dimension_numbers = #tpu.dot_dimension_numbers<[1], [0], [0], [1], [0, 0, 1, 1], [], []>} : vector<2x32xf32>, vector<32x32xf32>, vector<2x32xf32> -> vector<2x32xf32>
    %392 = vector.shape_cast %391 : vector<2x32xf32> to vector<2x1x32xf32>
    %393 = vector.broadcast %392 : vector<2x1x32xf32> to vector<2x8x32xf32>
    %394 = arith.addf %393, %1 : vector<2x8x32xf32>
    %395 = math.tanh %394 : vector<2x8x32xf32>
    %396 = vector.shape_cast %3 : vector<1x32xf32> to vector<1x1x32xf32>
    %397 = vector.broadcast %396 : vector<1x1x32xf32> to vector<2x8x32xf32>
    %398 = arith.mulf %395, %397 : vector<2x8x32xf32>
    %cst_246 = arith.constant dense<0.000000e+00> : vector<2x8xf32>
    %399 = vector.multi_reduction <add>, %398, %cst_246 [2] : vector<2x8x32xf32> to vector<2x8xf32>
    %cst_247 = arith.constant dense<0xFF800000> : vector<2xf32>
    %400 = vector.multi_reduction <maximumf>, %399, %cst_247 [1] : vector<2x8xf32> to vector<2xf32>
    %401 = vector.shape_cast %400 : vector<2xf32> to vector<2x1xf32>
    %402 = vector.broadcast %401 : vector<2x1xf32> to vector<2x8xf32>
    %403 = arith.subf %399, %402 : vector<2x8xf32>
    %404 = math.exp %403 : vector<2x8xf32>
    %cst_248 = arith.constant dense<0.000000e+00> : vector<2xf32>
    %405 = vector.multi_reduction <add>, %404, %cst_248 [1] : vector<2x8xf32> to vector<2xf32>
    %406 = vector.shape_cast %405 : vector<2xf32> to vector<2x1xf32>
    %407 = tpu.reciprocal %406 : vector<2x1xf32> -> vector<2x1xf32>
    %408 = vector.broadcast %407 : vector<2x1xf32> to vector<2x8xf32>
    %409 = arith.mulf %404, %408 : vector<2x8xf32>
    %410 = vector.shape_cast %409 : vector<2x8xf32> to vector<2x8x1xf32>
    %411 = vector.broadcast %410 : vector<2x8x1xf32> to vector<2x8x32xf32>
    %412 = arith.mulf %411, %0 : vector<2x8x32xf32>
    %cst_249 = arith.constant dense<0.000000e+00> : vector<2x32xf32>
    %413 = vector.multi_reduction <add>, %412, %cst_249 [1] : vector<2x8x32xf32> to vector<2x32xf32>
    %c0_250 = arith.constant 0 : index
    %c0_251 = arith.constant 0 : index
    %c0_252 = arith.constant 0 : index
    %414 = vector.load %arg6[%c0_250, %c0_251, %c0_252] : memref<3x32x32xf32, #tpu.memory_space<vmem>>, vector<1x32x32xf32>
    %415 = vector.shape_cast %414 : vector<1x32x32xf32> to vector<32x32xf32>
    %cst_253 = arith.constant dense<0.000000e+00> : vector<2x32xf32>
    %416 = tpu.matmul %390, %415, %cst_253 {dimension_numbers = #tpu.dot_dimension_numbers<[1], [0], [0], [1], [0, 0, 1, 1], [], []>} : vector<2x32xf32>, vector<32x32xf32>, vector<2x32xf32> -> vector<2x32xf32>
    %c0_254 = arith.constant 0 : index
    %c0_255 = arith.constant 0 : index
    %c0_256 = arith.constant 0 : index
    %417 = vector.load %arg7[%c0_254, %c0_255, %c0_256] : memref<3x32x32xf32, #tpu.memory_space<vmem>>, vector<1x32x32xf32>
    %418 = vector.shape_cast %417 : vector<1x32x32xf32> to vector<32x32xf32>
    %cst_257 = arith.constant dense<0.000000e+00> : vector<2x32xf32>
    %419 = tpu.matmul %413, %418, %cst_257 {dimension_numbers = #tpu.dot_dimension_numbers<[1], [0], [0], [1], [0, 0, 1, 1], [], []>} : vector<2x32xf32>, vector<32x32xf32>, vector<2x32xf32> -> vector<2x32xf32>
    %420 = arith.addf %416, %419 : vector<2x32xf32>
    %c1_258 = arith.constant 1 : index
    %c0_259 = arith.constant 0 : index
    %c0_260 = arith.constant 0 : index
    %421 = vector.load %arg6[%c1_258, %c0_259, %c0_260] : memref<3x32x32xf32, #tpu.memory_space<vmem>>, vector<1x32x32xf32>
    %422 = vector.shape_cast %421 : vector<1x32x32xf32> to vector<32x32xf32>
    %cst_261 = arith.constant dense<0.000000e+00> : vector<2x32xf32>
    %423 = tpu.matmul %390, %422, %cst_261 {dimension_numbers = #tpu.dot_dimension_numbers<[1], [0], [0], [1], [0, 0, 1, 1], [], []>} : vector<2x32xf32>, vector<32x32xf32>, vector<2x32xf32> -> vector<2x32xf32>
    %c1_262 = arith.constant 1 : index
    %c0_263 = arith.constant 0 : index
    %c0_264 = arith.constant 0 : index
    %424 = vector.load %arg7[%c1_262, %c0_263, %c0_264] : memref<3x32x32xf32, #tpu.memory_space<vmem>>, vector<1x32x32xf32>
    %425 = vector.shape_cast %424 : vector<1x32x32xf32> to vector<32x32xf32>
    %cst_265 = arith.constant dense<0.000000e+00> : vector<2x32xf32>
    %426 = tpu.matmul %413, %425, %cst_265 {dimension_numbers = #tpu.dot_dimension_numbers<[1], [0], [0], [1], [0, 0, 1, 1], [], []>} : vector<2x32xf32>, vector<32x32xf32>, vector<2x32xf32> -> vector<2x32xf32>
    %427 = arith.addf %423, %426 : vector<2x32xf32>
    %c2_266 = arith.constant 2 : index
    %c0_267 = arith.constant 0 : index
    %c0_268 = arith.constant 0 : index
    %428 = vector.load %arg6[%c2_266, %c0_267, %c0_268] : memref<3x32x32xf32, #tpu.memory_space<vmem>>, vector<1x32x32xf32>
    %429 = vector.shape_cast %428 : vector<1x32x32xf32> to vector<32x32xf32>
    %cst_269 = arith.constant dense<0.000000e+00> : vector<2x32xf32>
    %430 = tpu.matmul %390, %429, %cst_269 {dimension_numbers = #tpu.dot_dimension_numbers<[1], [0], [0], [1], [0, 0, 1, 1], [], []>} : vector<2x32xf32>, vector<32x32xf32>, vector<2x32xf32> -> vector<2x32xf32>
    %c2_270 = arith.constant 2 : index
    %c0_271 = arith.constant 0 : index
    %c0_272 = arith.constant 0 : index
    %431 = vector.load %arg7[%c2_270, %c0_271, %c0_272] : memref<3x32x32xf32, #tpu.memory_space<vmem>>, vector<1x32x32xf32>
    %432 = vector.shape_cast %431 : vector<1x32x32xf32> to vector<32x32xf32>
    %cst_273 = arith.constant dense<0.000000e+00> : vector<2x32xf32>
    %433 = tpu.matmul %413, %432, %cst_273 {dimension_numbers = #tpu.dot_dimension_numbers<[1], [0], [0], [1], [0, 0, 1, 1], [], []>} : vector<2x32xf32>, vector<32x32xf32>, vector<2x32xf32> -> vector<2x32xf32>
    %434 = arith.addf %430, %433 : vector<2x32xf32>
    %c0_274 = arith.constant 0 : index
    %c0_275 = arith.constant 0 : index
    %c0_276 = arith.constant 0 : index
    %435 = vector.load %arg8[%c0_274, %c0_275, %c0_276] : memref<3x32x32xf32, #tpu.memory_space<vmem>>, vector<1x32x32xf32>
    %436 = vector.shape_cast %435 : vector<1x32x32xf32> to vector<32x32xf32>
    %cst_277 = arith.constant dense<0.000000e+00> : vector<2x32xf32>
    %437 = tpu.matmul %354, %436, %cst_277 {dimension_numbers = #tpu.dot_dimension_numbers<[1], [0], [0], [1], [0, 0, 1, 1], [], []>} : vector<2x32xf32>, vector<32x32xf32>, vector<2x32xf32> -> vector<2x32xf32>
    %c1_278 = arith.constant 1 : index
    %c0_279 = arith.constant 0 : index
    %c0_280 = arith.constant 0 : index
    %438 = vector.load %arg8[%c1_278, %c0_279, %c0_280] : memref<3x32x32xf32, #tpu.memory_space<vmem>>, vector<1x32x32xf32>
    %439 = vector.shape_cast %438 : vector<1x32x32xf32> to vector<32x32xf32>
    %cst_281 = arith.constant dense<0.000000e+00> : vector<2x32xf32>
    %440 = tpu.matmul %354, %439, %cst_281 {dimension_numbers = #tpu.dot_dimension_numbers<[1], [0], [0], [1], [0, 0, 1, 1], [], []>} : vector<2x32xf32>, vector<32x32xf32>, vector<2x32xf32> -> vector<2x32xf32>
    %c2_282 = arith.constant 2 : index
    %c0_283 = arith.constant 0 : index
    %c0_284 = arith.constant 0 : index
    %441 = vector.load %arg8[%c2_282, %c0_283, %c0_284] : memref<3x32x32xf32, #tpu.memory_space<vmem>>, vector<1x32x32xf32>
    %442 = vector.shape_cast %441 : vector<1x32x32xf32> to vector<32x32xf32>
    %cst_285 = arith.constant dense<0.000000e+00> : vector<2x32xf32>
    %443 = tpu.matmul %354, %442, %cst_285 {dimension_numbers = #tpu.dot_dimension_numbers<[1], [0], [0], [1], [0, 0, 1, 1], [], []>} : vector<2x32xf32>, vector<32x32xf32>, vector<2x32xf32> -> vector<2x32xf32>
    %444 = arith.addf %420, %437 : vector<2x32xf32>
    %c0_286 = arith.constant 0 : index
    %c0_287 = arith.constant 0 : index
    %c0_288 = arith.constant 0 : index
    %445 = vector.load %arg9[%c0_286, %c0_287, %c0_288] : memref<3x1x32xf32, #tpu.memory_space<vmem>>, vector<1x1x32xf32>
    %446 = vector.shape_cast %445 : vector<1x1x32xf32> to vector<1x32xf32>
    %447 = vector.broadcast %446 : vector<1x32xf32> to vector<2x32xf32>
    %448 = arith.addf %444, %447 : vector<2x32xf32>
    %449 = arith.negf %448 : vector<2x32xf32>
    %450 = math.exp %449 : vector<2x32xf32>
    %cst_289 = arith.constant 1.000000e+00 : f32
    %451 = vector.broadcast %cst_289 : f32 to vector<2x32xf32>
    %452 = arith.addf %451, %450 : vector<2x32xf32>
    %453 = arith.divf %451, %452 : vector<2x32xf32>
    %454 = arith.addf %427, %440 : vector<2x32xf32>
    %c1_290 = arith.constant 1 : index
    %c0_291 = arith.constant 0 : index
    %c0_292 = arith.constant 0 : index
    %455 = vector.load %arg9[%c1_290, %c0_291, %c0_292] : memref<3x1x32xf32, #tpu.memory_space<vmem>>, vector<1x1x32xf32>
    %456 = vector.shape_cast %455 : vector<1x1x32xf32> to vector<1x32xf32>
    %457 = vector.broadcast %456 : vector<1x32xf32> to vector<2x32xf32>
    %458 = arith.addf %454, %457 : vector<2x32xf32>
    %459 = arith.negf %458 : vector<2x32xf32>
    %460 = math.exp %459 : vector<2x32xf32>
    %cst_293 = arith.constant 1.000000e+00 : f32
    %461 = vector.broadcast %cst_293 : f32 to vector<2x32xf32>
    %462 = arith.addf %461, %460 : vector<2x32xf32>
    %463 = arith.divf %461, %462 : vector<2x32xf32>
    %c2_294 = arith.constant 2 : index
    %c0_295 = arith.constant 0 : index
    %c0_296 = arith.constant 0 : index
    %464 = vector.load %arg9[%c2_294, %c0_295, %c0_296] : memref<3x1x32xf32, #tpu.memory_space<vmem>>, vector<1x1x32xf32>
    %465 = vector.shape_cast %464 : vector<1x1x32xf32> to vector<1x32xf32>
    %466 = vector.broadcast %465 : vector<1x32xf32> to vector<2x32xf32>
    %467 = arith.addf %434, %466 : vector<2x32xf32>
    %c0_297 = arith.constant 0 : index
    %c0_298 = arith.constant 0 : index
    %468 = vector.load %arg10[%c0_297, %c0_298] : memref<1x32xf32, #tpu.memory_space<vmem>>, vector<1x32xf32>
    %469 = vector.broadcast %468 : vector<1x32xf32> to vector<2x32xf32>
    %470 = arith.addf %443, %469 : vector<2x32xf32>
    %471 = arith.mulf %453, %470 : vector<2x32xf32>
    %472 = arith.addf %467, %471 : vector<2x32xf32>
    %473 = math.tanh %472 : vector<2x32xf32>
    %cst_299 = arith.constant 1.000000e+00 : f32
    %474 = vector.broadcast %cst_299 : f32 to vector<2x32xf32>
    %475 = arith.subf %474, %463 : vector<2x32xf32>
    %476 = arith.mulf %475, %473 : vector<2x32xf32>
    %477 = arith.mulf %463, %354 : vector<2x32xf32>
    %478 = arith.addf %476, %477 : vector<2x32xf32>
    %cst_300 = arith.constant dense<0.000000e+00> : vector<2x16xf32>
    %479 = tpu.matmul %478, %5, %cst_300 {dimension_numbers = #tpu.dot_dimension_numbers<[1], [0], [0], [1], [0, 0, 1, 1], [], []>} : vector<2x32xf32>, vector<32x16xf32>, vector<2x16xf32> -> vector<2x16xf32>
    %cst_301 = arith.constant dense<0.000000e+00> : vector<2x16xf32>
    %480 = tpu.matmul %413, %6, %cst_301 {dimension_numbers = #tpu.dot_dimension_numbers<[1], [0], [0], [1], [0, 0, 1, 1], [], []>} : vector<2x32xf32>, vector<32x16xf32>, vector<2x16xf32> -> vector<2x16xf32>
    %481 = arith.addf %479, %480 : vector<2x16xf32>
    %cst_302 = arith.constant dense<0.000000e+00> : vector<2x16xf32>
    %482 = tpu.matmul %390, %7, %cst_302 {dimension_numbers = #tpu.dot_dimension_numbers<[1], [0], [0], [1], [0, 0, 1, 1], [], []>} : vector<2x32xf32>, vector<32x16xf32>, vector<2x16xf32> -> vector<2x16xf32>
    %483 = arith.addf %481, %482 : vector<2x16xf32>
    %484 = vector.broadcast %8 : vector<1x16xf32> to vector<2x16xf32>
    %485 = arith.addf %483, %484 : vector<2x16xf32>
    %c3_303 = arith.constant 3 : index
    %c0_304 = arith.constant 0 : index
    %c0_305 = arith.constant 0 : index
    %486 = vector.load %arg17[%c3_303, %c0_304, %c0_305] : memref<5x2x16xf32, #tpu.memory_space<vmem>>, vector<1x2x16xf32>
    %487 = vector.shape_cast %486 : vector<1x2x16xf32> to vector<2x16xf32>
    %488 = vector.shape_cast %485 : vector<2x16xf32> to vector<1x2x16xf32>
    tpu.vector_store %arg17[%c3_303, %c0_304, %c0_305], %488 {strides = array<i32>} : memref<5x2x16xf32, #tpu.memory_space<vmem>>, vector<1x2x16xf32>,
    %c3_306 = arith.constant 3 : index
    %c0_307 = arith.constant 0 : index
    %c0_308 = arith.constant 0 : index
    %489 = vector.load %arg18[%c3_306, %c0_307, %c0_308] : memref<5x2x8xf32, #tpu.memory_space<vmem>>, vector<1x2x8xf32>
    %490 = vector.shape_cast %489 : vector<1x2x8xf32> to vector<2x8xf32>
    %491 = vector.shape_cast %409 : vector<2x8xf32> to vector<1x2x8xf32>
    tpu.vector_store %arg18[%c3_306, %c0_307, %c0_308], %491 {strides = array<i32>} : memref<5x2x8xf32, #tpu.memory_space<vmem>>, vector<1x2x8xf32>,
    %cst_309 = arith.constant dense<0xFF800000> : vector<2xf32>
    %492 = vector.multi_reduction <maximumf>, %485, %cst_309 [1] : vector<2x16xf32> to vector<2xf32>
    %493 = vector.shape_cast %492 : vector<2xf32> to vector<2x1xf32>
    %494 = vector.broadcast %493 : vector<2x1xf32> to vector<2x16xf32>
    %495 = arith.cmpf oeq, %485, %494 : vector<2x16xf32>
    %cst_310 = arith.constant 1.600000e+01 : f32
    %496 = vector.broadcast %cst_310 : f32 to vector<2x16xf32>
    %497 = arith.select %495, %10, %496 : vector<2x16xi1>, vector<2x16xf32>
    %cst_311 = arith.constant dense<0x7F800000> : vector<2xf32>
    %498 = vector.multi_reduction <minimumf>, %497, %cst_311 [1] : vector<2x16xf32> to vector<2xf32>
    %499 = vector.shape_cast %498 : vector<2xf32> to vector<2x1xf32>
    %500 = arith.fptosi %499 : vector<2x1xf32> to vector<2x1xi32>
    %c3_312 = arith.constant 3 : index
    %c0_313 = arith.constant 0 : index
    %c0_314 = arith.constant 0 : index
    %501 = vector.load %arg16[%c3_312, %c0_313, %c0_314] : memref<5x1x1xi32, #tpu.memory_space<vmem>>, vector<1x1x1xi32>
    %502 = vector.shape_cast %501 : vector<1x1x1xi32> to vector<1x1xi32>
    %c0_i32_315 = arith.constant 0 : i32
    %503 = vector.broadcast %c0_i32_315 : i32 to vector<1x1xi32>
    %504 = arith.cmpi sgt, %502, %503 : vector<1x1xi32>
    %c4 = arith.constant 4 : index
    %c0_316 = arith.constant 0 : index
    %c0_317 = arith.constant 0 : index
    %505 = vector.load %arg15[%c4, %c0_316, %c0_317] : memref<6x2x1xi32, #tpu.memory_space<vmem>>, vector<1x2x1xi32>
    %506 = vector.shape_cast %505 : vector<1x2x1xi32> to vector<2x1xi32>
    %507 = vector.shape_cast %504 : vector<1x1xi1> to vector<1x1xi1>
    %508 = vector.broadcast %507 : vector<1x1xi1> to vector<2x1xi1>
    %509 = arith.select %508, %506, %500 : vector<2x1xi1>, vector<2x1xi32>
    %510 = vector.broadcast %509 : vector<2x1xi32> to vector<2x16xi32>
    %511 = arith.cmpi eq, %510, %9 : vector<2x16xi32>
    %512 = arith.extui %511 : vector<2x16xi1> to vector<2x16xi32>
    %513 = arith.sitofp %512 : vector<2x16xi32> to vector<2x16xf32>
    %cst_318 = arith.constant dense<0.000000e+00> : vector<2x32xf32>
    %514 = tpu.matmul %513, %4, %cst_318 {dimension_numbers = #tpu.dot_dimension_numbers<[1], [0], [0], [1], [0, 0, 1, 1], [], []>} : vector<2x16xf32>, vector<16x32xf32>, vector<2x32xf32> -> vector<2x32xf32>
    %cst_319 = arith.constant dense<0.000000e+00> : vector<2x32xf32>
    %515 = tpu.matmul %478, %2, %cst_319 {dimension_numbers = #tpu.dot_dimension_numbers<[1], [0], [0], [1], [0, 0, 1, 1], [], []>} : vector<2x32xf32>, vector<32x32xf32>, vector<2x32xf32> -> vector<2x32xf32>
    %516 = vector.shape_cast %515 : vector<2x32xf32> to vector<2x1x32xf32>
    %517 = vector.broadcast %516 : vector<2x1x32xf32> to vector<2x8x32xf32>
    %518 = arith.addf %517, %1 : vector<2x8x32xf32>
    %519 = math.tanh %518 : vector<2x8x32xf32>
    %520 = vector.shape_cast %3 : vector<1x32xf32> to vector<1x1x32xf32>
    %521 = vector.broadcast %520 : vector<1x1x32xf32> to vector<2x8x32xf32>
    %522 = arith.mulf %519, %521 : vector<2x8x32xf32>
    %cst_320 = arith.constant dense<0.000000e+00> : vector<2x8xf32>
    %523 = vector.multi_reduction <add>, %522, %cst_320 [2] : vector<2x8x32xf32> to vector<2x8xf32>
    %cst_321 = arith.constant dense<0xFF800000> : vector<2xf32>
    %524 = vector.multi_reduction <maximumf>, %523, %cst_321 [1] : vector<2x8xf32> to vector<2xf32>
    %525 = vector.shape_cast %524 : vector<2xf32> to vector<2x1xf32>
    %526 = vector.broadcast %525 : vector<2x1xf32> to vector<2x8xf32>
    %527 = arith.subf %523, %526 : vector<2x8xf32>
    %528 = math.exp %527 : vector<2x8xf32>
    %cst_322 = arith.constant dense<0.000000e+00> : vector<2xf32>
    %529 = vector.multi_reduction <add>, %528, %cst_322 [1] : vector<2x8xf32> to vector<2xf32>
    %530 = vector.shape_cast %529 : vector<2xf32> to vector<2x1xf32>
    %531 = tpu.reciprocal %530 : vector<2x1xf32> -> vector<2x1xf32>
    %532 = vector.broadcast %531 : vector<2x1xf32> to vector<2x8xf32>
    %533 = arith.mulf %528, %532 : vector<2x8xf32>
    %534 = vector.shape_cast %533 : vector<2x8xf32> to vector<2x8x1xf32>
    %535 = vector.broadcast %534 : vector<2x8x1xf32> to vector<2x8x32xf32>
    %536 = arith.mulf %535, %0 : vector<2x8x32xf32>
    %cst_323 = arith.constant dense<0.000000e+00> : vector<2x32xf32>
    %537 = vector.multi_reduction <add>, %536, %cst_323 [1] : vector<2x8x32xf32> to vector<2x32xf32>
    %c0_324 = arith.constant 0 : index
    %c0_325 = arith.constant 0 : index
    %c0_326 = arith.constant 0 : index
    %538 = vector.load %arg6[%c0_324, %c0_325, %c0_326] : memref<3x32x32xf32, #tpu.memory_space<vmem>>, vector<1x32x32xf32>
    %539 = vector.shape_cast %538 : vector<1x32x32xf32> to vector<32x32xf32>
    %cst_327 = arith.constant dense<0.000000e+00> : vector<2x32xf32>
    %540 = tpu.matmul %514, %539, %cst_327 {dimension_numbers = #tpu.dot_dimension_numbers<[1], [0], [0], [1], [0, 0, 1, 1], [], []>} : vector<2x32xf32>, vector<32x32xf32>, vector<2x32xf32> -> vector<2x32xf32>
    %c0_328 = arith.constant 0 : index
    %c0_329 = arith.constant 0 : index
    %c0_330 = arith.constant 0 : index
    %541 = vector.load %arg7[%c0_328, %c0_329, %c0_330] : memref<3x32x32xf32, #tpu.memory_space<vmem>>, vector<1x32x32xf32>
    %542 = vector.shape_cast %541 : vector<1x32x32xf32> to vector<32x32xf32>
    %cst_331 = arith.constant dense<0.000000e+00> : vector<2x32xf32>
    %543 = tpu.matmul %537, %542, %cst_331 {dimension_numbers = #tpu.dot_dimension_numbers<[1], [0], [0], [1], [0, 0, 1, 1], [], []>} : vector<2x32xf32>, vector<32x32xf32>, vector<2x32xf32> -> vector<2x32xf32>
    %544 = arith.addf %540, %543 : vector<2x32xf32>
    %c1_332 = arith.constant 1 : index
    %c0_333 = arith.constant 0 : index
    %c0_334 = arith.constant 0 : index
    %545 = vector.load %arg6[%c1_332, %c0_333, %c0_334] : memref<3x32x32xf32, #tpu.memory_space<vmem>>, vector<1x32x32xf32>
    %546 = vector.shape_cast %545 : vector<1x32x32xf32> to vector<32x32xf32>
    %cst_335 = arith.constant dense<0.000000e+00> : vector<2x32xf32>
    %547 = tpu.matmul %514, %546, %cst_335 {dimension_numbers = #tpu.dot_dimension_numbers<[1], [0], [0], [1], [0, 0, 1, 1], [], []>} : vector<2x32xf32>, vector<32x32xf32>, vector<2x32xf32> -> vector<2x32xf32>
    %c1_336 = arith.constant 1 : index
    %c0_337 = arith.constant 0 : index
    %c0_338 = arith.constant 0 : index
    %548 = vector.load %arg7[%c1_336, %c0_337, %c0_338] : memref<3x32x32xf32, #tpu.memory_space<vmem>>, vector<1x32x32xf32>
    %549 = vector.shape_cast %548 : vector<1x32x32xf32> to vector<32x32xf32>
    %cst_339 = arith.constant dense<0.000000e+00> : vector<2x32xf32>
    %550 = tpu.matmul %537, %549, %cst_339 {dimension_numbers = #tpu.dot_dimension_numbers<[1], [0], [0], [1], [0, 0, 1, 1], [], []>} : vector<2x32xf32>, vector<32x32xf32>, vector<2x32xf32> -> vector<2x32xf32>
    %551 = arith.addf %547, %550 : vector<2x32xf32>
    %c2_340 = arith.constant 2 : index
    %c0_341 = arith.constant 0 : index
    %c0_342 = arith.constant 0 : index
    %552 = vector.load %arg6[%c2_340, %c0_341, %c0_342] : memref<3x32x32xf32, #tpu.memory_space<vmem>>, vector<1x32x32xf32>
    %553 = vector.shape_cast %552 : vector<1x32x32xf32> to vector<32x32xf32>
    %cst_343 = arith.constant dense<0.000000e+00> : vector<2x32xf32>
    %554 = tpu.matmul %514, %553, %cst_343 {dimension_numbers = #tpu.dot_dimension_numbers<[1], [0], [0], [1], [0, 0, 1, 1], [], []>} : vector<2x32xf32>, vector<32x32xf32>, vector<2x32xf32> -> vector<2x32xf32>
    %c2_344 = arith.constant 2 : index
    %c0_345 = arith.constant 0 : index
    %c0_346 = arith.constant 0 : index
    %555 = vector.load %arg7[%c2_344, %c0_345, %c0_346] : memref<3x32x32xf32, #tpu.memory_space<vmem>>, vector<1x32x32xf32>
    %556 = vector.shape_cast %555 : vector<1x32x32xf32> to vector<32x32xf32>
    %cst_347 = arith.constant dense<0.000000e+00> : vector<2x32xf32>
    %557 = tpu.matmul %537, %556, %cst_347 {dimension_numbers = #tpu.dot_dimension_numbers<[1], [0], [0], [1], [0, 0, 1, 1], [], []>} : vector<2x32xf32>, vector<32x32xf32>, vector<2x32xf32> -> vector<2x32xf32>
    %558 = arith.addf %554, %557 : vector<2x32xf32>
    %c0_348 = arith.constant 0 : index
    %c0_349 = arith.constant 0 : index
    %c0_350 = arith.constant 0 : index
    %559 = vector.load %arg8[%c0_348, %c0_349, %c0_350] : memref<3x32x32xf32, #tpu.memory_space<vmem>>, vector<1x32x32xf32>
    %560 = vector.shape_cast %559 : vector<1x32x32xf32> to vector<32x32xf32>
    %cst_351 = arith.constant dense<0.000000e+00> : vector<2x32xf32>
    %561 = tpu.matmul %478, %560, %cst_351 {dimension_numbers = #tpu.dot_dimension_numbers<[1], [0], [0], [1], [0, 0, 1, 1], [], []>} : vector<2x32xf32>, vector<32x32xf32>, vector<2x32xf32> -> vector<2x32xf32>
    %c1_352 = arith.constant 1 : index
    %c0_353 = arith.constant 0 : index
    %c0_354 = arith.constant 0 : index
    %562 = vector.load %arg8[%c1_352, %c0_353, %c0_354] : memref<3x32x32xf32, #tpu.memory_space<vmem>>, vector<1x32x32xf32>
    %563 = vector.shape_cast %562 : vector<1x32x32xf32> to vector<32x32xf32>
    %cst_355 = arith.constant dense<0.000000e+00> : vector<2x32xf32>
    %564 = tpu.matmul %478, %563, %cst_355 {dimension_numbers = #tpu.dot_dimension_numbers<[1], [0], [0], [1], [0, 0, 1, 1], [], []>} : vector<2x32xf32>, vector<32x32xf32>, vector<2x32xf32> -> vector<2x32xf32>
    %c2_356 = arith.constant 2 : index
    %c0_357 = arith.constant 0 : index
    %c0_358 = arith.constant 0 : index
    %565 = vector.load %arg8[%c2_356, %c0_357, %c0_358] : memref<3x32x32xf32, #tpu.memory_space<vmem>>, vector<1x32x32xf32>
    %566 = vector.shape_cast %565 : vector<1x32x32xf32> to vector<32x32xf32>
    %cst_359 = arith.constant dense<0.000000e+00> : vector<2x32xf32>
    %567 = tpu.matmul %478, %566, %cst_359 {dimension_numbers = #tpu.dot_dimension_numbers<[1], [0], [0], [1], [0, 0, 1, 1], [], []>} : vector<2x32xf32>, vector<32x32xf32>, vector<2x32xf32> -> vector<2x32xf32>
    %568 = arith.addf %544, %561 : vector<2x32xf32>
    %c0_360 = arith.constant 0 : index
    %c0_361 = arith.constant 0 : index
    %c0_362 = arith.constant 0 : index
    %569 = vector.load %arg9[%c0_360, %c0_361, %c0_362] : memref<3x1x32xf32, #tpu.memory_space<vmem>>, vector<1x1x32xf32>
    %570 = vector.shape_cast %569 : vector<1x1x32xf32> to vector<1x32xf32>
    %571 = vector.broadcast %570 : vector<1x32xf32> to vector<2x32xf32>
    %572 = arith.addf %568, %571 : vector<2x32xf32>
    %573 = arith.negf %572 : vector<2x32xf32>
    %574 = math.exp %573 : vector<2x32xf32>
    %cst_363 = arith.constant 1.000000e+00 : f32
    %575 = vector.broadcast %cst_363 : f32 to vector<2x32xf32>
    %576 = arith.addf %575, %574 : vector<2x32xf32>
    %577 = arith.divf %575, %576 : vector<2x32xf32>
    %578 = arith.addf %551, %564 : vector<2x32xf32>
    %c1_364 = arith.constant 1 : index
    %c0_365 = arith.constant 0 : index
    %c0_366 = arith.constant 0 : index
    %579 = vector.load %arg9[%c1_364, %c0_365, %c0_366] : memref<3x1x32xf32, #tpu.memory_space<vmem>>, vector<1x1x32xf32>
    %580 = vector.shape_cast %579 : vector<1x1x32xf32> to vector<1x32xf32>
    %581 = vector.broadcast %580 : vector<1x32xf32> to vector<2x32xf32>
    %582 = arith.addf %578, %581 : vector<2x32xf32>
    %583 = arith.negf %582 : vector<2x32xf32>
    %584 = math.exp %583 : vector<2x32xf32>
    %cst_367 = arith.constant 1.000000e+00 : f32
    %585 = vector.broadcast %cst_367 : f32 to vector<2x32xf32>
    %586 = arith.addf %585, %584 : vector<2x32xf32>
    %587 = arith.divf %585, %586 : vector<2x32xf32>
    %c2_368 = arith.constant 2 : index
    %c0_369 = arith.constant 0 : index
    %c0_370 = arith.constant 0 : index
    %588 = vector.load %arg9[%c2_368, %c0_369, %c0_370] : memref<3x1x32xf32, #tpu.memory_space<vmem>>, vector<1x1x32xf32>
    %589 = vector.shape_cast %588 : vector<1x1x32xf32> to vector<1x32xf32>
    %590 = vector.broadcast %589 : vector<1x32xf32> to vector<2x32xf32>
    %591 = arith.addf %558, %590 : vector<2x32xf32>
    %c0_371 = arith.constant 0 : index
    %c0_372 = arith.constant 0 : index
    %592 = vector.load %arg10[%c0_371, %c0_372] : memref<1x32xf32, #tpu.memory_space<vmem>>, vector<1x32xf32>
    %593 = vector.broadcast %592 : vector<1x32xf32> to vector<2x32xf32>
    %594 = arith.addf %567, %593 : vector<2x32xf32>
    %595 = arith.mulf %577, %594 : vector<2x32xf32>
    %596 = arith.addf %591, %595 : vector<2x32xf32>
    %597 = math.tanh %596 : vector<2x32xf32>
    %cst_373 = arith.constant 1.000000e+00 : f32
    %598 = vector.broadcast %cst_373 : f32 to vector<2x32xf32>
    %599 = arith.subf %598, %587 : vector<2x32xf32>
    %600 = arith.mulf %599, %597 : vector<2x32xf32>
    %601 = arith.mulf %587, %478 : vector<2x32xf32>
    %602 = arith.addf %600, %601 : vector<2x32xf32>
    %cst_374 = arith.constant dense<0.000000e+00> : vector<2x16xf32>
    %603 = tpu.matmul %602, %5, %cst_374 {dimension_numbers = #tpu.dot_dimension_numbers<[1], [0], [0], [1], [0, 0, 1, 1], [], []>} : vector<2x32xf32>, vector<32x16xf32>, vector<2x16xf32> -> vector<2x16xf32>
    %cst_375 = arith.constant dense<0.000000e+00> : vector<2x16xf32>
    %604 = tpu.matmul %537, %6, %cst_375 {dimension_numbers = #tpu.dot_dimension_numbers<[1], [0], [0], [1], [0, 0, 1, 1], [], []>} : vector<2x32xf32>, vector<32x16xf32>, vector<2x16xf32> -> vector<2x16xf32>
    %605 = arith.addf %603, %604 : vector<2x16xf32>
    %cst_376 = arith.constant dense<0.000000e+00> : vector<2x16xf32>
    %606 = tpu.matmul %514, %7, %cst_376 {dimension_numbers = #tpu.dot_dimension_numbers<[1], [0], [0], [1], [0, 0, 1, 1], [], []>} : vector<2x32xf32>, vector<32x16xf32>, vector<2x16xf32> -> vector<2x16xf32>
    %607 = arith.addf %605, %606 : vector<2x16xf32>
    %608 = vector.broadcast %8 : vector<1x16xf32> to vector<2x16xf32>
    %609 = arith.addf %607, %608 : vector<2x16xf32>
    %c4_377 = arith.constant 4 : index
    %c0_378 = arith.constant 0 : index
    %c0_379 = arith.constant 0 : index
    %610 = vector.load %arg17[%c4_377, %c0_378, %c0_379] : memref<5x2x16xf32, #tpu.memory_space<vmem>>, vector<1x2x16xf32>
    %611 = vector.shape_cast %610 : vector<1x2x16xf32> to vector<2x16xf32>
    %612 = vector.shape_cast %609 : vector<2x16xf32> to vector<1x2x16xf32>
    tpu.vector_store %arg17[%c4_377, %c0_378, %c0_379], %612 {strides = array<i32>} : memref<5x2x16xf32, #tpu.memory_space<vmem>>, vector<1x2x16xf32>,
    %c4_380 = arith.constant 4 : index
    %c0_381 = arith.constant 0 : index
    %c0_382 = arith.constant 0 : index
    %613 = vector.load %arg18[%c4_380, %c0_381, %c0_382] : memref<5x2x8xf32, #tpu.memory_space<vmem>>, vector<1x2x8xf32>
    %614 = vector.shape_cast %613 : vector<1x2x8xf32> to vector<2x8xf32>
    %615 = vector.shape_cast %533 : vector<2x8xf32> to vector<1x2x8xf32>
    tpu.vector_store %arg18[%c4_380, %c0_381, %c0_382], %615 {strides = array<i32>} : memref<5x2x8xf32, #tpu.memory_space<vmem>>, vector<1x2x8xf32>,
    return
  }
}

</mosaic_0001>

<llo_original>
// kernel: seq2seq_forward.3
$region0: #{seq2seq_forward.3}
  #allocation0 [shape = 'u32[]', space=smem, size = 0x4, offset = 0x4, fixed_abs, tag = 'smem constant byte address 0x4 - core index']
  #allocation1 [shape = 'u32[72,128]{1,0:T(1,128)}', space=vmem, size = 0x9000, scoped, tag = 'internal scratch']
  %s0 = inlined_call_operand.vmem [shape: f32[2,32], index: 0, kind: input, shape index: {}]
  %s1 = inlined_call_operand.vmem [shape: f32[2,8,32], index: 1, kind: input, shape index: {}]
  %s2 = inlined_call_operand.vmem [shape: f32[2,8,32], index: 2, kind: input, shape index: {}]
  %s3 = inlined_call_operand.vmem [shape: f32[32,32], index: 3, kind: input, shape index: {}]
  %s4 = inlined_call_operand.vmem [shape: f32[1,32], index: 4, kind: input, shape index: {}]
  %s5 = inlined_call_operand.vmem [shape: f32[16,32], index: 5, kind: input, shape index: {}]
  %s6 = inlined_call_operand.vmem [shape: f32[3,32,32], index: 6, kind: input, shape index: {}]
  %s7 = inlined_call_operand.vmem [shape: f32[3,32,32], index: 7, kind: input, shape index: {}]
  %s8 = inlined_call_operand.vmem [shape: f32[3,32,32], index: 8, kind: input, shape index: {}]
  %s9 = inlined_call_operand.vmem [shape: f32[3,1,32], index: 9, kind: input, shape index: {}]
  %s10 = inlined_call_operand.vmem [shape: f32[1,32], index: 10, kind: input, shape index: {}]
  %s11 = inlined_call_operand.vmem [shape: f32[32,16], index: 11, kind: input, shape index: {}]
  %s12 = inlined_call_operand.vmem [shape: f32[32,16], index: 12, kind: input, shape index: {}]
  %s13 = inlined_call_operand.vmem [shape: f32[32,16], index: 13, kind: input, shape index: {}]
  %s14 = inlined_call_operand.vmem [shape: f32[1,16], index: 14, kind: input, shape index: {}]
  %s15 = inlined_call_operand.vmem [shape: s32[6,2,1], index: 15, kind: input, shape index: {}]
  %s16 = inlined_call_operand.vmem [shape: s32[5,1,1], index: 16, kind: input, shape index: {}]
  %s17 = inlined_call_operand.vmem [shape: f32[5,2,16], index: 17, kind: output, shape index: {0}]
  %s18 = inlined_call_operand.hbm [shape: f32[5,2,8], index: 18, kind: output, shape index: {1}]
  %19 = xla_tuple %s17, %s18
  %s20 = sld [smem:[#allocation0]]
  $region86: #{seq2seq_forward.3} parent=0
    _
  %s22 = ssub.s32 1, %s20
  %s23 = scalar_select 0, %s22, %s20
  $region1: #{seq2seq_forward.3} parent=0
    #allocation2 [shape = 'u8[5120]{0}', space=vmem, size = 0x1400, scoped, tag = 'output window, operand 1, single buffered']
    #allocation3 [shape = 's32[1]{0}', space=sflag, size = 0x4, scoped, tag = 'scoped memory for seq2seq_forward.3']
    %24 = vsyncpa [#allocation3], 0
    // Predicated region
    $region2: #{seq2seq_forward.3} parent=1 // pred_check
      _
    $region3: #{seq2seq_forward.3} parent=1 // pred_check_branch
      %26 = sbr.rel (0) target = $region5
    $region4: #{seq2seq_forward.3} parent=1 // pred_region
      _
    $region5: #{seq2seq_forward.3} parent=1 // pred_fallthru
      _
    // Predicated region
    $region6: #{seq2seq_forward.3} parent=1 // pred_check
      _
    $region7: #{seq2seq_forward.3} parent=1 // pred_check_branch
      %28 = sbr.rel (0) target = $region9
    $region8: #{seq2seq_forward.3} parent=1 // pred_region
      _
    $region9: #{seq2seq_forward.3} parent=1 // pred_fallthru
      _
    // Predicated region
    $region10: #{seq2seq_forward.3} parent=1 // pred_check
      _
    $region11: #{seq2seq_forward.3} parent=1 // pred_check_branch
      %30 = sbr.rel (0) target = $region13
    $region12: #{seq2seq_forward.3} parent=1 // pred_region
      _
    $region13: #{seq2seq_forward.3} parent=1 // pred_fallthru
      _
    // Predicated region
    $region14: #{seq2seq_forward.3} parent=1 // pred_check
      _
    $region15: #{seq2seq_forward.3} parent=1 // pred_check_branch
      %32 = sbr.rel (0) target = $region17
    $region16: #{seq2seq_forward.3} parent=1 // pred_region
      _
    $region17: #{seq2seq_forward.3} parent=1 // pred_fallthru
      _
    // Predicated region
    $region18: #{seq2seq_forward.3} parent=1 // pred_check
      _
    $region19: #{seq2seq_forward.3} parent=1 // pred_check_branch
      %34 = sbr.rel (0) target = $region21
    $region20: #{seq2seq_forward.3} parent=1 // pred_region
      _
    $region21: #{seq2seq_forward.3} parent=1 // pred_fallthru
      _
    // Predicated region
    $region22: #{seq2seq_forward.3} parent=1 // pred_check
      _
    $region23: #{seq2seq_forward.3} parent=1 // pred_check_branch
      %36 = sbr.rel (0) target = $region25
    $region24: #{seq2seq_forward.3} parent=1 // pred_region
      _
    $region25: #{seq2seq_forward.3} parent=1 // pred_fallthru
      _
    // Predicated region
    $region26: #{seq2seq_forward.3} parent=1 // pred_check
      _
    $region27: #{seq2seq_forward.3} parent=1 // pred_check_branch
      %38 = sbr.rel (0) target = $region29
    $region28: #{seq2seq_forward.3} parent=1 // pred_region
      _
    $region29: #{seq2seq_forward.3} parent=1 // pred_fallthru
      _
    // Predicated region
    $region30: #{seq2seq_forward.3} parent=1 // pred_check
      _
    $region31: #{seq2seq_forward.3} parent=1 // pred_check_branch
      %40 = sbr.rel (0) target = $region33
    $region32: #{seq2seq_forward.3} parent=1 // pred_region
      _
    $region33: #{seq2seq_forward.3} parent=1 // pred_fallthru
      _
    // Predicated region
    $region34: #{seq2seq_forward.3} parent=1 // pred_check
      _
    $region35: #{seq2seq_forward.3} parent=1 // pred_check_branch
      %42 = sbr.rel (0) target = $region37
    $region36: #{seq2seq_forward.3} parent=1 // pred_region
      _
    $region37: #{seq2seq_forward.3} parent=1 // pred_fallthru
      _
    // Predicated region
    $region38: #{seq2seq_forward.3} parent=1 // pred_check
      _
    $region39: #{seq2seq_forward.3} parent=1 // pred_check_branch
      %44 = sbr.rel (0) target = $region41
    $region40: #{seq2seq_forward.3} parent=1 // pred_region
      _
    $region41: #{seq2seq_forward.3} parent=1 // pred_fallthru
      _
    // Predicated region
    $region42: #{seq2seq_forward.3} parent=1 // pred_check
      _
    $region43: #{seq2seq_forward.3} parent=1 // pred_check_branch
      %46 = sbr.rel (0) target = $region45
    $region44: #{seq2seq_forward.3} parent=1 // pred_region
      _
    $region45: #{seq2seq_forward.3} parent=1 // pred_fallthru
      _
    // Predicated region
    $region46: #{seq2seq_forward.3} parent=1 // pred_check
      _
    $region47: #{seq2seq_forward.3} parent=1 // pred_check_branch
      %48 = sbr.rel (0) target = $region49
    $region48: #{seq2seq_forward.3} parent=1 // pred_region
      _
    $region49: #{seq2seq_forward.3} parent=1 // pred_fallthru
      _
    // Predicated region
    $region50: #{seq2seq_forward.3} parent=1 // pred_check
      _
    $region51: #{seq2seq_forward.3} parent=1 // pred_check_branch
      %50 = sbr.rel (0) target = $region53
    $region52: #{seq2seq_forward.3} parent=1 // pred_region
      _
    $region53: #{seq2seq_forward.3} parent=1 // pred_fallthru
      _
    // Predicated region
    $region54: #{seq2seq_forward.3} parent=1 // pred_check
      _
    $region55: #{seq2seq_forward.3} parent=1 // pred_check_branch
      %52 = sbr.rel (0) target = $region57
    $region56: #{seq2seq_forward.3} parent=1 // pred_region
      _
    $region57: #{seq2seq_forward.3} parent=1 // pred_fallthru
      _
    // Predicated region
    $region58: #{seq2seq_forward.3} parent=1 // pred_check
      _
    $region59: #{seq2seq_forward.3} parent=1 // pred_check_branch
      %54 = sbr.rel (0) target = $region61
    $region60: #{seq2seq_forward.3} parent=1 // pred_region
      _
    $region61: #{seq2seq_forward.3} parent=1 // pred_fallthru
      _
    // Predicated region
    $region62: #{seq2seq_forward.3} parent=1 // pred_check
      _
    $region63: #{seq2seq_forward.3} parent=1 // pred_check_branch
      %56 = sbr.rel (0) target = $region65
    $region64: #{seq2seq_forward.3} parent=1 // pred_region
      _
    $region65: #{seq2seq_forward.3} parent=1 // pred_fallthru
      _
    // Predicated region
    $region66: #{seq2seq_forward.3} parent=1 // pred_check
      _
    $region67: #{seq2seq_forward.3} parent=1 // pred_check_branch
      %58 = sbr.rel (0) target = $region69
    $region68: #{seq2seq_forward.3} parent=1 // pred_region
      _
    $region69: #{seq2seq_forward.3} parent=1 // pred_fallthru
      _
    %v59 = vld [vmem:[%s1] sm:$0xff]
    %v60 = vld [vmem:[%s1 + $0x8] sm:$0xff]
    %v61 = vld [vmem:[%s2] sm:$0xff]
    %v62 = vld [vmem:[%s2 + $0x8] sm:$0xff]
    %v63 = vld [vmem:[%s3] sm:$0xff]
    %v64 = vld [vmem:[%s3 + $0x8] sm:$0xff]
    %v65 = vld [vmem:[%s3 + $0x10] sm:$0xff]
    %v66 = vld [vmem:[%s3 + $0x18] sm:$0xff]
    %v67 = vld [vmem:[%s4] sm:$0x1]
    %v68 = vld [vmem:[%s5] sm:$0xff]
    %v69 = vld [vmem:[%s5 + $0x8] sm:$0xff]
    %v70 = vld [vmem:[%s11] sm:$0xff]
    %v71 = vld [vmem:[%s11 + $0x8] sm:$0xff]
    %v72 = vld [vmem:[%s11 + $0x10] sm:$0xff]
    %v73 = vld [vmem:[%s11 + $0x18] sm:$0xff]
    %v74 = vld [vmem:[%s12] sm:$0xff]
    %v75 = vld [vmem:[%s12 + $0x8] sm:$0xff]
    %v76 = vld [vmem:[%s12 + $0x10] sm:$0xff]
    %v77 = vld [vmem:[%s12 + $0x18] sm:$0xff]
    %v78 = vld [vmem:[%s13] sm:$0xff]
    %v79 = vld [vmem:[%s13 + $0x8] sm:$0xff]
    %v80 = vld [vmem:[%s13 + $0x10] sm:$0xff]
    %v81 = vld [vmem:[%s13 + $0x18] sm:$0xff]
    %v82 = vld [vmem:[%s14] sm:$0x1]
    %v83 = vlaneseq
    %v84 = vand.u32 %v83, 127
    %v85 = vcvt.s32.f32 %v84
    %v86 = vld [vmem:[%s0] sm:$0x3]
    %v87 = vld [vmem:[%s15] sm:$0x3]
    %88 = vset.pattern.permute.xlu0 0
    %89 = vperm.xlu0 %88, %v87
    %v90 = vpop.permute.xlu0 %89
    %vm91 = vcmp.eq.s32.totalorder %v90, %v84
    %v92 = vsel %vm91, 1, 0
    %v93 = vcvt.s32.f32 %v92
    %vm94 = vcmask 130048
    %v96 = vsel %vm94, %v93, 0
    %98 = vmatpush.msra.mxu0 0.0
    %99 = vmatpush.msra.mxu0 0.0
    %100 = vmatpush.msra.mxu0 0.0
    %101 = vmatpush.msra.mxu0 0.0
    %102 = vmatpush.msra.mxu0 0.0
    %103 = vmatpush.msra.mxu0 0.0
    %104 = vmatpush.msra.mxu0 0.0
    %105 = vmatpush.msra.mxu0 0.0
    %106 = vmatpush.msra.mxu0 0.0
    %107 = vmatpush.msra.mxu0 0.0
    %108 = vmatpush.msra.mxu0 0.0
    %109 = vmatpush.msra.mxu0 0.0
    %110 = vmatpush.msra.mxu0 0.0
    %111 = vmatpush.msra.mxu0 0.0
    %112 = vmatpush.msra.mxu0 %v69
    %113 = vmatpush.msra.mxu0 %v68
    %114 = vmatmul.f32.gmra.mxu0 %v96
    %v115 = vpop.f32.mrf.mxu0
    %v116 = vadd.f32 0.0, %v115
    %117 = vdwg.mxu0
    %vm118 = vcmask 261120
    %v120 = vsel %vm118, %v86, 0
    %122 = vmatpush.msra.mxu0 0.0
    %123 = vmatpush.msra.mxu0 0.0
    %124 = vmatpush.msra.mxu0 0.0
    %125 = vmatpush.msra.mxu0 0.0
    %126 = vmatpush.msra.mxu0 0.0
    %127 = vmatpush.msra.mxu0 0.0
    %128 = vmatpush.msra.mxu0 0.0
    %129 = vmatpush.msra.mxu0 0.0
    %130 = vmatpush.msra.mxu0 0.0
    %131 = vmatpush.msra.mxu0 0.0
    %132 = vmatpush.msra.mxu0 0.0
    %133 = vmatpush.msra.mxu0 0.0
    %134 = vmatpush.msra.mxu0 %v66
    %135 = vmatpush.msra.mxu0 %v65
    %136 = vmatpush.msra.mxu0 %v64
    %137 = vmatpush.msra.mxu0 %v63
    %138 = vmatmul.f32.gmra.mxu0 %v120
    %v139 = vpop.f32.mrf.mxu0
    %v140 = vadd.f32 0.0, %v139
    %141 = vdwg.mxu0
    %v143 = vrot.slane %v140, 1
    %v144 = vperm.slane %v140, 0
    %v145 = vperm.slane %v143, 0
    %v148 = vadd.f32 %v144, %v61
    %v149 = vadd.f32 %v145, %v62
    %v150 = vtanh.pop %v148
    %v151 = vtanh.pop %v149
    %v153 = vperm.slane %v67, 0
    %v155 = vmul.f32 %v150, %v153
    %v156 = vmul.f32 %v151, %v153
    %v157 = vsel %vm118, %v155, 0.0
    %158 = vadd.xlane.f32.xlu0 %v157
    %v159 = vpop.xlane.xlu0 %158
    %v160 = vsel %vm118, %v156, 0.0
    %161 = vadd.xlane.f32.xlu0 %v160
    %v162 = vpop.xlane.xlu0 %161
    %v165 = vperm.slane %v159, %v84
    %v166 = vperm.slane %v162, %v84
    %vm167 = vcmask 1041409
    %v168 = vsel %vm167, %v166, %v165
    %vm170 = vcmask 58368
    %v171 = vsel %vm170, %v168, -inf
    %172 = vmax.xlane.f32.xlu0 %v171
    %v173 = vpop.xlane.xlu0 %172
    %v175 = vperm.slane %v173, 0
    %v176 = vperm.slane %v173, 1
    %v179 = vsub.f32 %v159, %v175
    %v180 = vsub.f32 %v162, %v176
    %v181 = vmul.f32 %v179, 1.442695
    %v182 = vpow.pop %v181
    %v183 = vmul.f32 %v180, 1.442695
    %v184 = vpow.pop %v183
    %187 = vset.pattern.permute.xlu0 0
    %188 = vperm.xlu0 %187, %v182
    %v189 = vpop.permute.xlu0 %188
    %190 = vset.pattern.permute.xlu0 0
    %191 = vperm.xlu0 %190, %v184
    %v192 = vpop.permute.xlu0 %191
    %v193 = vperm.slane %v189, %v84
    %v194 = vperm.slane %v192, %v84
    %v195 = vsel %vm167, %v194, %v193
    %v197 = vsel %vm170, %v195, 0.0
    %198 = vadd.xlane.f32.xlu0 %v197
    %v199 = vpop.xlane.xlu0 %198
    %v200 = vrcp.pop %v199
    %v201 = vmul.f32 %v199, %v200
    %v202 = vsub.f32 1.0, %v201
    %v203 = vmul.f32 %v200, %v202
    %v204 = vadd.f32 %v200, %v203
    %vm205 = vweird.f32 %v199
    %vm206 = vweird.f32 %v200
    %vm207 = vmor %vm205, %vm206
    %v208 = vsel %vm207, %v200, %v204
    %v209 = vand.u32 2147483647, %v199
    %vm210 = vcmp.eq.f32.partialorder %v209, 8.507059e+37
    %v211 = vand.u32 %v199, 2147483648
    %v212 = vor.u32 1.1754944e-38, %v211
    %v213 = vsel %vm210, %v212, %v208
    %v215 = vperm.slane %v213, 0
    %v216 = vperm.slane %v213, 1
    %v219 = vmul.f32 %v182, %v215
    %v220 = vmul.f32 %v184, %v216
    %222 = vset.pattern.permute.xlu0 0
    %223 = vperm.xlu0 %222, %v219
    %v224 = vpop.permute.xlu0 %223
    %227 = vset.pattern.permute.xlu0 0
    %228 = vperm.xlu0 %227, %v220
    %v229 = vpop.permute.xlu0 %228
    %v231 = vmul.f32 %v224, %v59
    %v232 = vmul.f32 %v229, %v60
    %v233 = vsel %vm118, %v231, 0.0
    %v234 = vrot.slane %v233, 4
    %v235 = vadd.f32 %v233, %v234
    %v236 = vrot.slane %v235, 2
    %v237 = vadd.f32 %v235, %v236
    %v238 = vrot.slane %v237, 1
    %v239 = vadd.f32 %v237, %v238
    %v240 = vsel %vm118, %v232, 0.0
    %v241 = vrot.slane %v240, 4
    %v242 = vadd.f32 %v240, %v241
    %v243 = vrot.slane %v242, 2
    %v244 = vadd.f32 %v242, %v243
    %v245 = vrot.slane %v244, 1
    %v246 = vadd.f32 %v244, %v245
    %v247 = vld [vmem:[%s6] sm:$0xff]
    %v248 = vld [vmem:[%s6 + $0x8] sm:$0xff]
    %v249 = vld [vmem:[%s6 + $0x10] sm:$0xff]
    %v250 = vld [vmem:[%s6 + $0x18] sm:$0xff]
    %v251 = vld [vmem:[%s7] sm:$0xff]
    %v252 = vld [vmem:[%s7 + $0x8] sm:$0xff]
    %v253 = vld [vmem:[%s7 + $0x10] sm:$0xff]
    %v254 = vld [vmem:[%s7 + $0x18] sm:$0xff]
    %v257 = vsel %vm167, %v246, %v239
    %v258 = vsel %vm118, %v257, 0
    %260 = vmatpush.msra.mxu0 0.0
    %261 = vmatpush.msra.mxu0 0.0
    %262 = vmatpush.msra.mxu0 0.0
    %263 = vmatpush.msra.mxu0 0.0
    %264 = vmatpush.msra.mxu0 0.0
    %265 = vmatpush.msra.mxu0 0.0
    %266 = vmatpush.msra.mxu0 0.0
    %267 = vmatpush.msra.mxu0 0.0
    %268 = vmatpush.msra.mxu0 0.0
    %269 = vmatpush.msra.mxu0 0.0
    %270 = vmatpush.msra.mxu0 0.0
    %271 = vmatpush.msra.mxu0 0.0
    %272 = vmatpush.msra.mxu0 %v254
    %273 = vmatpush.msra.mxu0 %v253
    %274 = vmatpush.msra.mxu0 %v252
    %275 = vmatpush.msra.mxu0 %v251
    %276 = vmatmul.f32.gmra.mxu0 %v258
    %v277 = vpop.f32.mrf.mxu0
    %v278 = vadd.f32 0.0, %v277
    %279 = vdwg.mxu0
    %v281 = vsel %vm118, %v116, 0
    %283 = vmatpush.msra.mxu0 0.0
    %284 = vmatpush.msra.mxu0 0.0
    %285 = vmatpush.msra.mxu0 0.0
    %286 = vmatpush.msra.mxu0 0.0
    %287 = vmatpush.msra.mxu0 0.0
    %288 = vmatpush.msra.mxu0 0.0
    %289 = vmatpush.msra.mxu0 0.0
    %290 = vmatpush.msra.mxu0 0.0
    %291 = vmatpush.msra.mxu0 0.0
    %292 = vmatpush.msra.mxu0 0.0
    %293 = vmatpush.msra.mxu0 0.0
    %294 = vmatpush.msra.mxu0 0.0
    %295 = vmatpush.msra.mxu0 %v250
    %296 = vmatpush.msra.mxu0 %v249
    %297 = vmatpush.msra.mxu0 %v248
    %298 = vmatpush.msra.mxu0 %v247
    %299 = vmatmul.f32.gmra.mxu0 %v281
    %v300 = vpop.f32.mrf.mxu0
    %v301 = vadd.f32 %v278, %v300
    %302 = vdwg.mxu0
    %s303 = scalar_lea.vmem %s6, 32
    %v304 = vld [vmem:[%s303] sm:$0xff]
    %v305 = vld [vmem:[%s303 + $0x8] sm:$0xff]
    %v306 = vld [vmem:[%s303 + $0x10] sm:$0xff]
    %v307 = vld [vmem:[%s303 + $0x18] sm:$0xff]
    %s308 = scalar_lea.vmem %s7, 32
    %v309 = vld [vmem:[%s308] sm:$0xff]
    %v310 = vld [vmem:[%s308 + $0x8] sm:$0xff]
    %v311 = vld [vmem:[%s308 + $0x10] sm:$0xff]
    %v312 = vld [vmem:[%s308 + $0x18] sm:$0xff]
    %313 = vmatpush.msra.mxu0 0.0
    %314 = vmatpush.msra.mxu0 0.0
    %315 = vmatpush.msra.mxu0 0.0
    %316 = vmatpush.msra.mxu0 0.0
    %317 = vmatpush.msra.mxu0 0.0
    %318 = vmatpush.msra.mxu0 0.0
    %319 = vmatpush.msra.mxu0 0.0
    %320 = vmatpush.msra.mxu0 0.0
    %321 = vmatpush.msra.mxu0 0.0
    %322 = vmatpush.msra.mxu0 0.0
    %323 = vmatpush.msra.mxu0 0.0
    %324 = vmatpush.msra.mxu0 0.0
    %325 = vmatpush.msra.mxu0 %v312
    %326 = vmatpush.msra.mxu0 %v311
    %327 = vmatpush.msra.mxu0 %v310
    %328 = vmatpush.msra.mxu0 %v309
    %329 = vmatmul.f32.gmra.mxu0 %v258
    %v330 = vpop.f32.mrf.mxu0
    %v331 = vadd.f32 0.0, %v330
    %332 = vdwg.mxu0
    %333 = vmatpush.msra.mxu0 0.0
    %334 = vmatpush.msra.mxu0 0.0
    %335 = vmatpush.msra.mxu0 0.0
    %336 = vmatpush.msra.mxu0 0.0
    %337 = vmatpush.msra.mxu0 0.0
    %338 = vmatpush.msra.mxu0 0.0
    %339 = vmatpush.msra.mxu0 0.0
    %340 = vmatpush.msra.mxu0 0.0
    %341 = vmatpush.msra.mxu0 0.0
    %342 = vmatpush.msra.mxu0 0.0
    %343 = vmatpush.msra.mxu0 0.0
    %344 = vmatpush.msra.mxu0 0.0
    %345 = vmatpush.msra.mxu0 %v307
    %346 = vmatpush.msra.mxu0 %v306
    %347 = vmatpush.msra.mxu0 %v305
    %348 = vmatpush.msra.mxu0 %v304
    %349 = vmatmul.f32.gmra.mxu0 %v281
    %v350 = vpop.f32.mrf.mxu0
    %v351 = vadd.f32 %v331, %v350
    %352 = vdwg.mxu0
    %s353 = scalar_lea.vmem %s6, 64
    %v354 = vld [vmem:[%s353] sm:$0xff]
    %v355 = vld [vmem:[%s353 + $0x8] sm:$0xff]
    %v356 = vld [vmem:[%s353 + $0x10] sm:$0xff]
    %v357 = vld [vmem:[%s353 + $0x18] sm:$0xff]
    %s358 = scalar_lea.vmem %s7, 64
    %v359 = vld [vmem:[%s358] sm:$0xff]
    %v360 = vld [vmem:[%s358 + $0x8] sm:$0xff]
    %v361 = vld [vmem:[%s358 + $0x10] sm:$0xff]
    %v362 = vld [vmem:[%s358 + $0x18] sm:$0xff]
    %363 = vmatpush.msra.mxu0 0.0
    %364 = vmatpush.msra.mxu0 0.0
    %365 = vmatpush.msra.mxu0 0.0
    %366 = vmatpush.msra.mxu0 0.0
    %367 = vmatpush.msra.mxu0 0.0
    %368 = vmatpush.msra.mxu0 0.0
    %369 = vmatpush.msra.mxu0 0.0
    %370 = vmatpush.msra.mxu0 0.0
    %371 = vmatpush.msra.mxu0 0.0
    %372 = vmatpush.msra.mxu0 0.0
    %373 = vmatpush.msra.mxu0 0.0
    %374 = vmatpush.msra.mxu0 0.0
    %375 = vmatpush.msra.mxu0 %v362
    %376 = vmatpush.msra.mxu0 %v361
    %377 = vmatpush.msra.mxu0 %v360
    %378 = vmatpush.msra.mxu0 %v359
    %379 = vmatmul.f32.gmra.mxu0 %v258
    %v380 = vpop.f32.mrf.mxu0
    %v381 = vadd.f32 0.0, %v380
    %382 = vdwg.mxu0
    %383 = vmatpush.msra.mxu0 0.0
    %384 = vmatpush.msra.mxu0 0.0
    %385 = vmatpush.msra.mxu0 0.0
    %386 = vmatpush.msra.mxu0 0.0
    %387 = vmatpush.msra.mxu0 0.0
    %388 = vmatpush.msra.mxu0 0.0
    %389 = vmatpush.msra.mxu0 0.0
    %390 = vmatpush.msra.mxu0 0.0
    %391 = vmatpush.msra.mxu0 0.0
    %392 = vmatpush.msra.mxu0 0.0
    %393 = vmatpush.msra.mxu0 0.0
    %394 = vmatpush.msra.mxu0 0.0
    %395 = vmatpush.msra.mxu0 %v357
    %396 = vmatpush.msra.mxu0 %v356
    %397 = vmatpush.msra.mxu0 %v355
    %398 = vmatpush.msra.mxu0 %v354
    %399 = vmatmul.f32.gmra.mxu0 %v281
    %v400 = vpop.f32.mrf.mxu0
    %v401 = vadd.f32 %v381, %v400
    %402 = vdwg.mxu0
    %v403 = vld [vmem:[%s8] sm:$0xff]
    %v404 = vld [vmem:[%s8 + $0x8] sm:$0xff]
    %v405 = vld [vmem:[%s8 + $0x10] sm:$0xff]
    %v406 = vld [vmem:[%s8 + $0x18] sm:$0xff]
    %407 = vmatpush.msra.mxu0 0.0
    %408 = vmatpush.msra.mxu0 0.0
    %409 = vmatpush.msra.mxu0 0.0
    %410 = vmatpush.msra.mxu0 0.0
    %411 = vmatpush.msra.mxu0 0.0
    %412 = vmatpush.msra.mxu0 0.0
    %413 = vmatpush.msra.mxu0 0.0
    %414 = vmatpush.msra.mxu0 0.0
    %415 = vmatpush.msra.mxu0 0.0
    %416 = vmatpush.msra.mxu0 0.0
    %417 = vmatpush.msra.mxu0 0.0
    %418 = vmatpush.msra.mxu0 0.0
    %419 = vmatpush.msra.mxu0 %v406
    %420 = vmatpush.msra.mxu0 %v405
    %421 = vmatpush.msra.mxu0 %v404
    %422 = vmatpush.msra.mxu0 %v403
    %423 = vmatmul.f32.gmra.mxu0 %v120
    %v424 = vpop.f32.mrf.mxu0
    %v425 = vadd.f32 0.0, %v424
    %426 = vdwg.mxu0
    %s427 = scalar_lea.vmem %s8, 32
    %v428 = vld [vmem:[%s427] sm:$0xff]
    %v429 = vld [vmem:[%s427 + $0x8] sm:$0xff]
    %v430 = vld [vmem:[%s427 + $0x10] sm:$0xff]
    %v431 = vld [vmem:[%s427 + $0x18] sm:$0xff]
    %432 = vmatpush.msra.mxu0 0.0
    %433 = vmatpush.msra.mxu0 0.0
    %434 = vmatpush.msra.mxu0 0.0
    %435 = vmatpush.msra.mxu0 0.0
    %436 = vmatpush.msra.mxu0 0.0
    %437 = vmatpush.msra.mxu0 0.0
    %438 = vmatpush.msra.mxu0 0.0
    %439 = vmatpush.msra.mxu0 0.0
    %440 = vmatpush.msra.mxu0 0.0
    %441 = vmatpush.msra.mxu0 0.0
    %442 = vmatpush.msra.mxu0 0.0
    %443 = vmatpush.msra.mxu0 0.0
    %444 = vmatpush.msra.mxu0 %v431
    %445 = vmatpush.msra.mxu0 %v430
    %446 = vmatpush.msra.mxu0 %v429
    %447 = vmatpush.msra.mxu0 %v428
    %448 = vmatmul.f32.gmra.mxu0 %v120
    %v449 = vpop.f32.mrf.mxu0
    %v450 = vadd.f32 0.0, %v449
    %451 = vdwg.mxu0
    %s452 = scalar_lea.vmem %s8, 64
    %v453 = vld [vmem:[%s452] sm:$0xff]
    %v454 = vld [vmem:[%s452 + $0x8] sm:$0xff]
    %v455 = vld [vmem:[%s452 + $0x10] sm:$0xff]
    %v456 = vld [vmem:[%s452 + $0x18] sm:$0xff]
    %v457 = vadd.f32 %v301, %v425
    %v458 = vld [vmem:[%s9] sm:$0x1]
    %v460 = vperm.slane %v458, 0
    %v462 = vadd.f32 %v457, %v460
    %v463 = vxor.u32 %v462, 2147483648
    %v464 = vmul.f32 %v463, 1.442695
    %v465 = vpow.pop %v464
    %v466 = vadd.f32 %v465, 1.0
    %v467 = vrcp.pop %v466
    %v468 = vmul.f32 %v466, %v467
    %v469 = vsub.f32 1.0, %v468
    %v470 = vmul.f32 %v467, %v469
    %v471 = vadd.f32 %v467, %v470
    %vm472 = vweird.f32 %v466
    %vm473 = vweird.f32 %v467
    %vm474 = vmor %vm472, %vm473
    %v475 = vsel %vm474, %v467, %v471
    %v476 = vand.u32 2147483647, %v466
    %vm477 = vcmp.eq.f32.partialorder %v476, 8.507059e+37
    %v478 = vand.u32 %v466, 2147483648
    %v479 = vor.u32 1.1754944e-38, %v478
    %v480 = vsel %vm477, %v479, %v475
    %v481 = vmul.f32 1.0, %v480
    %v482 = vadd.f32 %v351, %v450
    %s483 = scalar_lea.vmem %s9, 1
    %v484 = vld [vmem:[%s483] sm:$0x1]
    %v486 = vperm.slane %v484, 0
    %v488 = vadd.f32 %v482, %v486
    %v489 = vxor.u32 %v488, 2147483648
    %v490 = vmul.f32 %v489, 1.442695
    %v491 = vpow.pop %v490
    %v492 = vadd.f32 %v491, 1.0
    %v493 = vrcp.pop %v492
    %v494 = vmul.f32 %v492, %v493
    %v495 = vsub.f32 1.0, %v494
    %v496 = vmul.f32 %v493, %v495
    %v497 = vadd.f32 %v493, %v496
    %vm498 = vweird.f32 %v492
    %vm499 = vweird.f32 %v493
    %vm500 = vmor %vm498, %vm499
    %v501 = vsel %vm500, %v493, %v497
    %v502 = vand.u32 2147483647, %v492
    %vm503 = vcmp.eq.f32.partialorder %v502, 8.507059e+37
    %v504 = vand.u32 %v492, 2147483648
    %v505 = vor.u32 1.1754944e-38, %v504
    %v506 = vsel %vm503, %v505, %v501
    %v507 = vmul.f32 1.0, %v506
    %s508 = scalar_lea.vmem %s9, 2
    %v509 = vld [vmem:[%s508] sm:$0x1]
    %v511 = vperm.slane %v509, 0
    %v513 = vadd.f32 %v401, %v511
    %v514 = vld [vmem:[%s10] sm:$0x1]
    %v516 = vperm.slane %v514, 0
    %518 = vmatpush.msra.mxu0 0.0
    %519 = vmatpush.msra.mxu0 0.0
    %520 = vmatpush.msra.mxu0 0.0
    %521 = vmatpush.msra.mxu0 0.0
    %522 = vmatpush.msra.mxu0 0.0
    %523 = vmatpush.msra.mxu0 0.0
    %524 = vmatpush.msra.mxu0 0.0
    %525 = vmatpush.msra.mxu0 0.0
    %526 = vmatpush.msra.mxu0 0.0
    %527 = vmatpush.msra.mxu0 0.0
    %528 = vmatpush.msra.mxu0 0.0
    %529 = vmatpush.msra.mxu0 0.0
    %530 = vmatpush.msra.mxu0 %v456
    %531 = vmatpush.msra.mxu0 %v455
    %532 = vmatpush.msra.mxu0 %v454
    %533 = vmatpush.msra.mxu0 %v453
    %534 = vmatmul.f32.gmra.mxu0 %v120
    %v535 = vpop.f32.mrf.mxu0
    %v536 = vadd.f32 %v516, %v535
    %537 = vdwg.mxu0
    %v538 = vmul.f32 %v481, %v536
    %v539 = vadd.f32 %v513, %v538
    %v540 = vtanh.pop %v539
    %v541 = vsub.f32 1.0, %v507
    %v542 = vmul.f32 %v541, %v540
    %v543 = vmul.f32 %v507, %v86
    %v544 = vadd.f32 %v542, %v543
    %545 = vmatpush.msra.mxu0 0.0
    %546 = vmatpush.msra.mxu0 0.0
    %547 = vmatpush.msra.mxu0 0.0
    %548 = vmatpush.msra.mxu0 0.0
    %549 = vmatpush.msra.mxu0 0.0
    %550 = vmatpush.msra.mxu0 0.0
    %551 = vmatpush.msra.mxu0 0.0
    %552 = vmatpush.msra.mxu0 0.0
    %553 = vmatpush.msra.mxu0 0.0
    %554 = vmatpush.msra.mxu0 0.0
    %555 = vmatpush.msra.mxu0 0.0
    %556 = vmatpush.msra.mxu0 0.0
    %557 = vmatpush.msra.mxu0 %v77
    %558 = vmatpush.msra.mxu0 %v76
    %559 = vmatpush.msra.mxu0 %v75
    %560 = vmatpush.msra.mxu0 %v74
    %561 = vmatmul.f32.gmra.mxu0 %v258
    %v562 = vpop.f32.mrf.mxu0
    %v563 = vadd.f32 0.0, %v562
    %564 = vdwg.mxu0
    %v566 = vsel %vm118, %v544, 0
    %568 = vmatpush.msra.mxu0 0.0
    %569 = vmatpush.msra.mxu0 0.0
    %570 = vmatpush.msra.mxu0 0.0
    %571 = vmatpush.msra.mxu0 0.0
    %572 = vmatpush.msra.mxu0 0.0
    %573 = vmatpush.msra.mxu0 0.0
    %574 = vmatpush.msra.mxu0 0.0
    %575 = vmatpush.msra.mxu0 0.0
    %576 = vmatpush.msra.mxu0 0.0
    %577 = vmatpush.msra.mxu0 0.0
    %578 = vmatpush.msra.mxu0 0.0
    %579 = vmatpush.msra.mxu0 0.0
    %580 = vmatpush.msra.mxu0 %v73
    %581 = vmatpush.msra.mxu0 %v72
    %582 = vmatpush.msra.mxu0 %v71
    %583 = vmatpush.msra.mxu0 %v70
    %584 = vmatmul.f32.gmra.mxu0 %v566
    %v585 = vpop.f32.mrf.mxu0
    %v586 = vadd.f32 %v563, %v585
    %587 = vdwg.mxu0
    %588 = vmatpush.msra.mxu0 0.0
    %589 = vmatpush.msra.mxu0 0.0
    %590 = vmatpush.msra.mxu0 0.0
    %591 = vmatpush.msra.mxu0 0.0
    %592 = vmatpush.msra.mxu0 0.0
    %593 = vmatpush.msra.mxu0 0.0
    %594 = vmatpush.msra.mxu0 0.0
    %595 = vmatpush.msra.mxu0 0.0
    %596 = vmatpush.msra.mxu0 0.0
    %597 = vmatpush.msra.mxu0 0.0
    %598 = vmatpush.msra.mxu0 0.0
    %599 = vmatpush.msra.mxu0 0.0
    %600 = vmatpush.msra.mxu0 %v81
    %601 = vmatpush.msra.mxu0 %v80
    %602 = vmatpush.msra.mxu0 %v79
    %603 = vmatpush.msra.mxu0 %v78
    %604 = vmatmul.f32.gmra.mxu0 %v281
    %v605 = vpop.f32.mrf.mxu0
    %v606 = vadd.f32 0.0, %v605
    %607 = vdwg.mxu0
    %v608 = vadd.f32 %v586, %v606
    %v610 = vperm.slane %v82, 0
    %v612 = vadd.f32 %v608, %v610
    %vm613 = vcmask 123904
    %614 = vst.msk [vmem:[%s17] sm:$0x3] %vm613, %v612
    %v615 = vperm.slane %v224, %v84
    %v616 = vperm.slane %v229, %v84
    %v617 = vsel %vm167, %v616, %v615
    %619 = vst.msk [vmem:[#allocation2] sm:$0x3] %vm170, %v617
    %v620 = vsel %vm613, %v612, -inf
    %621 = vmax.xlane.f32.xlu0 %v620
    %v622 = vpop.xlane.xlu0 %621
    %vm623 = vcmp.eq.f32.partialorder %v612, %v622
    %v624 = vsel %vm623, %v85, 16.0
    %v625 = vsel %vm613, %v624, inf
    %626 = vmin.xlane.f32.xlu0 %v625
    %v627 = vpop.xlane.xlu0 %626
    %v628 = vcvt.f32.s32.to.zero.pseudo %v627
    %v629 = vld [vmem:[%s16] sm:$0x1]
    %vm630 = vcmp.gt.s32.totalorder %v629, 0
    %s631 = scalar_lea.vmem %s15, 2
    %v632 = vld [vmem:[%s631] sm:$0x3]
    %v633 = vsel %vm630, 1, 0
    %v634 = vperm.slane %v633, 0
    %vm635 = vcmp.eq.s32.totalorder %v634, 1
    %v636 = vsel %vm635, %v632, %v628
    %637 = vset.pattern.permute.xlu0 0
    %638 = vperm.xlu0 %637, %v636
    %v639 = vpop.permute.xlu0 %638
    %vm640 = vcmp.eq.s32.totalorder %v639, %v84
    %v641 = vsel %vm640, 1, 0
    %v642 = vcvt.s32.f32 %v641
    %v644 = vsel %vm94, %v642, 0
    %646 = vmatpush.msra.mxu0 0.0
    %647 = vmatpush.msra.mxu0 0.0
    %648 = vmatpush.msra.mxu0 0.0
    %649 = vmatpush.msra.mxu0 0.0
    %650 = vmatpush.msra.mxu0 0.0
    %651 = vmatpush.msra.mxu0 0.0
    %652 = vmatpush.msra.mxu0 0.0
    %653 = vmatpush.msra.mxu0 0.0
    %654 = vmatpush.msra.mxu0 0.0
    %655 = vmatpush.msra.mxu0 0.0
    %656 = vmatpush.msra.mxu0 0.0
    %657 = vmatpush.msra.mxu0 0.0
    %658 = vmatpush.msra.mxu0 0.0
    %659 = vmatpush.msra.mxu0 0.0
    %660 = vmatpush.msra.mxu0 %v69
    %661 = vmatpush.msra.mxu0 %v68
    %662 = vmatmul.f32.gmra.mxu0 %v644
    %v663 = vpop.f32.mrf.mxu0
    %v664 = vadd.f32 0.0, %v663
    %665 = vdwg.mxu0
    %666 = vmatpush.msra.mxu0 0.0
    %667 = vmatpush.msra.mxu0 0.0
    %668 = vmatpush.msra.mxu0 0.0
    %669 = vmatpush.msra.mxu0 0.0
    %670 = vmatpush.msra.mxu0 0.0
    %671 = vmatpush.msra.mxu0 0.0
    %672 = vmatpush.msra.mxu0 0.0
    %673 = vmatpush.msra.mxu0 0.0
    %674 = vmatpush.msra.mxu0 0.0
    %675 = vmatpush.msra.mxu0 0.0
    %676 = vmatpush.msra.mxu0 0.0
    %677 = vmatpush.msra.mxu0 0.0
    %678 = vmatpush.msra.mxu0 %v66
    %679 = vmatpush.msra.mxu0 %v65
    %680 = vmatpush.msra.mxu0 %v64
    %681 = vmatpush.msra.mxu0 %v63
    %682 = vmatmul.f32.gmra.mxu0 %v566
    %v683 = vpop.f32.mrf.mxu0
    %v684 = vadd.f32 0.0, %v683
    %685 = vdwg.mxu0
    %v687 = vrot.slane %v684, 1
    %v688 = vperm.slane %v684, 0
    %v689 = vperm.slane %v687, 0
    %v692 = vadd.f32 %v688, %v61
    %v693 = vadd.f32 %v689, %v62
    %v694 = vtanh.pop %v692
    %v695 = vtanh.pop %v693
    %v696 = vmul.f32 %v694, %v153
    %v697 = vmul.f32 %v695, %v153
    %v698 = vsel %vm118, %v696, 0.0
    %699 = vadd.xlane.f32.xlu0 %v698
    %v700 = vpop.xlane.xlu0 %699
    %v701 = vsel %vm118, %v697, 0.0
    %702 = vadd.xlane.f32.xlu0 %v701
    %v703 = vpop.xlane.xlu0 %702
    %v706 = vperm.slane %v700, %v84
    %v707 = vperm.slane %v703, %v84
    %v708 = vsel %vm167, %v707, %v706
    %v710 = vsel %vm170, %v708, -inf
    %711 = vmax.xlane.f32.xlu0 %v710
    %v712 = vpop.xlane.xlu0 %711
    %v714 = vperm.slane %v712, 0
    %v715 = vperm.slane %v712, 1
    %v718 = vsub.f32 %v700, %v714
    %v719 = vsub.f32 %v703, %v715
    %v720 = vmul.f32 %v718, 1.442695
    %v721 = vpow.pop %v720
    %v722 = vmul.f32 %v719, 1.442695
    %v723 = vpow.pop %v722
    %726 = vset.pattern.permute.xlu0 0
    %727 = vperm.xlu0 %726, %v721
    %v728 = vpop.permute.xlu0 %727
    %729 = vset.pattern.permute.xlu0 0
    %730 = vperm.xlu0 %729, %v723
    %v731 = vpop.permute.xlu0 %730
    %v732 = vperm.slane %v728, %v84
    %v733 = vperm.slane %v731, %v84
    %v734 = vsel %vm167, %v733, %v732
    %v736 = vsel %vm170, %v734, 0.0
    %737 = vadd.xlane.f32.xlu0 %v736
    %v738 = vpop.xlane.xlu0 %737
    %v739 = vrcp.pop %v738
    %v740 = vmul.f32 %v738, %v739
    %v741 = vsub.f32 1.0, %v740
    %v742 = vmul.f32 %v739, %v741
    %v743 = vadd.f32 %v739, %v742
    %vm744 = vweird.f32 %v738
    %vm745 = vweird.f32 %v739
    %vm746 = vmor %vm744, %vm745
    %v747 = vsel %vm746, %v739, %v743
    %v748 = vand.u32 2147483647, %v738
    %vm749 = vcmp.eq.f32.partialorder %v748, 8.507059e+37
    %v750 = vand.u32 %v738, 2147483648
    %v751 = vor.u32 1.1754944e-38, %v750
    %v752 = vsel %vm749, %v751, %v747
    %v754 = vperm.slane %v752, 0
    %v755 = vperm.slane %v752, 1
    %v758 = vmul.f32 %v721, %v754
    %v759 = vmul.f32 %v723, %v755
    %761 = vset.pattern.permute.xlu0 0
    %762 = vperm.xlu0 %761, %v758
    %v763 = vpop.permute.xlu0 %762
    %766 = vset.pattern.permute.xlu0 0
    %767 = vperm.xlu0 %766, %v759
    %v768 = vpop.permute.xlu0 %767
    %v770 = vmul.f32 %v763, %v59
    %v771 = vmul.f32 %v768, %v60
    %v772 = vsel %vm118, %v770, 0.0
    %v773 = vrot.slane %v772, 4
    %v774 = vadd.f32 %v772, %v773
    %v775 = vrot.slane %v774, 2
    %v776 = vadd.f32 %v774, %v775
    %v777 = vrot.slane %v776, 1
    %v778 = vadd.f32 %v776, %v777
    %v779 = vsel %vm118, %v771, 0.0
    %v780 = vrot.slane %v779, 4
    %v781 = vadd.f32 %v779, %v780
    %v782 = vrot.slane %v781, 2
    %v783 = vadd.f32 %v781, %v782
    %v784 = vrot.slane %v783, 1
    %v785 = vadd.f32 %v783, %v784
    %v786 = vld [vmem:[%s6] sm:$0xff]
    %v787 = vld [vmem:[%s6 + $0x8] sm:$0xff]
    %v788 = vld [vmem:[%s6 + $0x10] sm:$0xff]
    %v789 = vld [vmem:[%s6 + $0x18] sm:$0xff]
    %v790 = vld [vmem:[%s7] sm:$0xff]
    %v791 = vld [vmem:[%s7 + $0x8] sm:$0xff]
    %v792 = vld [vmem:[%s7 + $0x10] sm:$0xff]
    %v793 = vld [vmem:[%s7 + $0x18] sm:$0xff]
    %v796 = vsel %vm167, %v785, %v778
    %v797 = vsel %vm118, %v796, 0
    %799 = vmatpush.msra.mxu0 0.0
    %800 = vmatpush.msra.mxu0 0.0
    %801 = vmatpush.msra.mxu0 0.0
    %802 = vmatpush.msra.mxu0 0.0
    %803 = vmatpush.msra.mxu0 0.0
    %804 = vmatpush.msra.mxu0 0.0
    %805 = vmatpush.msra.mxu0 0.0
    %806 = vmatpush.msra.mxu0 0.0
    %807 = vmatpush.msra.mxu0 0.0
    %808 = vmatpush.msra.mxu0 0.0
    %809 = vmatpush.msra.mxu0 0.0
    %810 = vmatpush.msra.mxu0 0.0
    %811 = vmatpush.msra.mxu0 %v793
    %812 = vmatpush.msra.mxu0 %v792
    %813 = vmatpush.msra.mxu0 %v791
    %814 = vmatpush.msra.mxu0 %v790
    %815 = vmatmul.f32.gmra.mxu0 %v797
    %v816 = vpop.f32.mrf.mxu0
    %v817 = vadd.f32 0.0, %v816
    %818 = vdwg.mxu0
    %v820 = vsel %vm118, %v664, 0
    %822 = vmatpush.msra.mxu0 0.0
    %823 = vmatpush.msra.mxu0 0.0
    %824 = vmatpush.msra.mxu0 0.0
    %825 = vmatpush.msra.mxu0 0.0
    %826 = vmatpush.msra.mxu0 0.0
    %827 = vmatpush.msra.mxu0 0.0
    %828 = vmatpush.msra.mxu0 0.0
    %829 = vmatpush.msra.mxu0 0.0
    %830 = vmatpush.msra.mxu0 0.0
    %831 = vmatpush.msra.mxu0 0.0
    %832 = vmatpush.msra.mxu0 0.0
    %833 = vmatpush.msra.mxu0 0.0
    %834 = vmatpush.msra.mxu0 %v789
    %835 = vmatpush.msra.mxu0 %v788
    %836 = vmatpush.msra.mxu0 %v787
    %837 = vmatpush.msra.mxu0 %v786
    %838 = vmatmul.f32.gmra.mxu0 %v820
    %v839 = vpop.f32.mrf.mxu0
    %v840 = vadd.f32 %v817, %v839
    %841 = vdwg.mxu0
    %v842 = vld [vmem:[%s303] sm:$0xff]
    %v843 = vld [vmem:[%s303 + $0x8] sm:$0xff]
    %v844 = vld [vmem:[%s303 + $0x10] sm:$0xff]
    %v845 = vld [vmem:[%s303 + $0x18] sm:$0xff]
    %v846 = vld [vmem:[%s308] sm:$0xff]
    %v847 = vld [vmem:[%s308 + $0x8] sm:$0xff]
    %v848 = vld [vmem:[%s308 + $0x10] sm:$0xff]
    %v849 = vld [vmem:[%s308 + $0x18] sm:$0xff]
    %850 = vmatpush.msra.mxu0 0.0
    %851 = vmatpush.msra.mxu0 0.0
    %852 = vmatpush.msra.mxu0 0.0
    %853 = vmatpush.msra.mxu0 0.0
    %854 = vmatpush.msra.mxu0 0.0
    %855 = vmatpush.msra.mxu0 0.0
    %856 = vmatpush.msra.mxu0 0.0
    %857 = vmatpush.msra.mxu0 0.0
    %858 = vmatpush.msra.mxu0 0.0
    %859 = vmatpush.msra.mxu0 0.0
    %860 = vmatpush.msra.mxu0 0.0
    %861 = vmatpush.msra.mxu0 0.0
    %862 = vmatpush.msra.mxu0 %v849
    %863 = vmatpush.msra.mxu0 %v848
    %864 = vmatpush.msra.mxu0 %v847
    %865 = vmatpush.msra.mxu0 %v846
    %866 = vmatmul.f32.gmra.mxu0 %v797
    %v867 = vpop.f32.mrf.mxu0
    %v868 = vadd.f32 0.0, %v867
    %869 = vdwg.mxu0
    %870 = vmatpush.msra.mxu0 0.0
    %871 = vmatpush.msra.mxu0 0.0
    %872 = vmatpush.msra.mxu0 0.0
    %873 = vmatpush.msra.mxu0 0.0
    %874 = vmatpush.msra.mxu0 0.0
    %875 = vmatpush.msra.mxu0 0.0
    %876 = vmatpush.msra.mxu0 0.0
    %877 = vmatpush.msra.mxu0 0.0
    %878 = vmatpush.msra.mxu0 0.0
    %879 = vmatpush.msra.mxu0 0.0
    %880 = vmatpush.msra.mxu0 0.0
    %881 = vmatpush.msra.mxu0 0.0
    %882 = vmatpush.msra.mxu0 %v845
    %883 = vmatpush.msra.mxu0 %v844
    %884 = vmatpush.msra.mxu0 %v843
    %885 = vmatpush.msra.mxu0 %v842
    %886 = vmatmul.f32.gmra.mxu0 %v820
    %v887 = vpop.f32.mrf.mxu0
    %v888 = vadd.f32 %v868, %v887
    %889 = vdwg.mxu0
    %v890 = vld [vmem:[%s353] sm:$0xff]
    %v891 = vld [vmem:[%s353 + $0x8] sm:$0xff]
    %v892 = vld [vmem:[%s353 + $0x10] sm:$0xff]
    %v893 = vld [vmem:[%s353 + $0x18] sm:$0xff]
    %v894 = vld [vmem:[%s358] sm:$0xff]
    %v895 = vld [vmem:[%s358 + $0x8] sm:$0xff]
    %v896 = vld [vmem:[%s358 + $0x10] sm:$0xff]
    %v897 = vld [vmem:[%s358 + $0x18] sm:$0xff]
    %898 = vmatpush.msra.mxu0 0.0
    %899 = vmatpush.msra.mxu0 0.0
    %900 = vmatpush.msra.mxu0 0.0
    %901 = vmatpush.msra.mxu0 0.0
    %902 = vmatpush.msra.mxu0 0.0
    %903 = vmatpush.msra.mxu0 0.0
    %904 = vmatpush.msra.mxu0 0.0
    %905 = vmatpush.msra.mxu0 0.0
    %906 = vmatpush.msra.mxu0 0.0
    %907 = vmatpush.msra.mxu0 0.0
    %908 = vmatpush.msra.mxu0 0.0
    %909 = vmatpush.msra.mxu0 0.0
    %910 = vmatpush.msra.mxu0 %v897
    %911 = vmatpush.msra.mxu0 %v896
    %912 = vmatpush.msra.mxu0 %v895
    %913 = vmatpush.msra.mxu0 %v894
    %914 = vmatmul.f32.gmra.mxu0 %v797
    %v915 = vpop.f32.mrf.mxu0
    %v916 = vadd.f32 0.0, %v915
    %917 = vdwg.mxu0
    %918 = vmatpush.msra.mxu0 0.0
    %919 = vmatpush.msra.mxu0 0.0
    %920 = vmatpush.msra.mxu0 0.0
    %921 = vmatpush.msra.mxu0 0.0
    %922 = vmatpush.msra.mxu0 0.0
    %923 = vmatpush.msra.mxu0 0.0
    %924 = vmatpush.msra.mxu0 0.0
    %925 = vmatpush.msra.mxu0 0.0
    %926 = vmatpush.msra.mxu0 0.0
    %927 = vmatpush.msra.mxu0 0.0
    %928 = vmatpush.msra.mxu0 0.0
    %929 = vmatpush.msra.mxu0 0.0
    %930 = vmatpush.msra.mxu0 %v893
    %931 = vmatpush.msra.mxu0 %v892
    %932 = vmatpush.msra.mxu0 %v891
    %933 = vmatpush.msra.mxu0 %v890
    %934 = vmatmul.f32.gmra.mxu0 %v820
    %v935 = vpop.f32.mrf.mxu0
    %v936 = vadd.f32 %v916, %v935
    %937 = vdwg.mxu0
    %v938 = vld [vmem:[%s8] sm:$0xff]
    %v939 = vld [vmem:[%s8 + $0x8] sm:$0xff]
    %v940 = vld [vmem:[%s8 + $0x10] sm:$0xff]
    %v941 = vld [vmem:[%s8 + $0x18] sm:$0xff]
    %942 = vmatpush.msra.mxu0 0.0
    %943 = vmatpush.msra.mxu0 0.0
    %944 = vmatpush.msra.mxu0 0.0
    %945 = vmatpush.msra.mxu0 0.0
    %946 = vmatpush.msra.mxu0 0.0
    %947 = vmatpush.msra.mxu0 0.0
    %948 = vmatpush.msra.mxu0 0.0
    %949 = vmatpush.msra.mxu0 0.0
    %950 = vmatpush.msra.mxu0 0.0
    %951 = vmatpush.msra.mxu0 0.0
    %952 = vmatpush.msra.mxu0 0.0
    %953 = vmatpush.msra.mxu0 0.0
    %954 = vmatpush.msra.mxu0 %v941
    %955 = vmatpush.msra.mxu0 %v940
    %956 = vmatpush.msra.mxu0 %v939
    %957 = vmatpush.msra.mxu0 %v938
    %958 = vmatmul.f32.gmra.mxu0 %v566
    %v959 = vpop.f32.mrf.mxu0
    %v960 = vadd.f32 0.0, %v959
    %961 = vdwg.mxu0
    %v962 = vld [vmem:[%s427] sm:$0xff]
    %v963 = vld [vmem:[%s427 + $0x8] sm:$0xff]
    %v964 = vld [vmem:[%s427 + $0x10] sm:$0xff]
    %v965 = vld [vmem:[%s427 + $0x18] sm:$0xff]
    %966 = vmatpush.msra.mxu0 0.0
    %967 = vmatpush.msra.mxu0 0.0
    %968 = vmatpush.msra.mxu0 0.0
    %969 = vmatpush.msra.mxu0 0.0
    %970 = vmatpush.msra.mxu0 0.0
    %971 = vmatpush.msra.mxu0 0.0
    %972 = vmatpush.msra.mxu0 0.0
    %973 = vmatpush.msra.mxu0 0.0
    %974 = vmatpush.msra.mxu0 0.0
    %975 = vmatpush.msra.mxu0 0.0
    %976 = vmatpush.msra.mxu0 0.0
    %977 = vmatpush.msra.mxu0 0.0
    %978 = vmatpush.msra.mxu0 %v965
    %979 = vmatpush.msra.mxu0 %v964
    %980 = vmatpush.msra.mxu0 %v963
    %981 = vmatpush.msra.mxu0 %v962
    %982 = vmatmul.f32.gmra.mxu0 %v566
    %v983 = vpop.f32.mrf.mxu0
    %v984 = vadd.f32 0.0, %v983
    %985 = vdwg.mxu0
    %v986 = vld [vmem:[%s452] sm:$0xff]
    %v987 = vld [vmem:[%s452 + $0x8] sm:$0xff]
    %v988 = vld [vmem:[%s452 + $0x10] sm:$0xff]
    %v989 = vld [vmem:[%s452 + $0x18] sm:$0xff]
    %v990 = vadd.f32 %v840, %v960
    %v991 = vld [vmem:[%s9] sm:$0x1]
    %v993 = vperm.slane %v991, 0
    %v995 = vadd.f32 %v990, %v993
    %v996 = vxor.u32 %v995, 2147483648
    %v997 = vmul.f32 %v996, 1.442695
    %v998 = vpow.pop %v997
    %v999 = vadd.f32 %v998, 1.0
    %v1000 = vrcp.pop %v999
    %v1001 = vmul.f32 %v999, %v1000
    %v1002 = vsub.f32 1.0, %v1001
    %v1003 = vmul.f32 %v1000, %v1002
    %v1004 = vadd.f32 %v1000, %v1003
    %vm1005 = vweird.f32 %v999
    %vm1006 = vweird.f32 %v1000
    %vm1007 = vmor %vm1005, %vm1006
    %v1008 = vsel %vm1007, %v1000, %v1004
    %v1009 = vand.u32 2147483647, %v999
    %vm1010 = vcmp.eq.f32.partialorder %v1009, 8.507059e+37
    %v1011 = vand.u32 %v999, 2147483648
    %v1012 = vor.u32 1.1754944e-38, %v1011
    %v1013 = vsel %vm1010, %v1012, %v1008
    %v1014 = vmul.f32 1.0, %v1013
    %v1015 = vadd.f32 %v888, %v984
    %v1016 = vld [vmem:[%s483] sm:$0x1]
    %v1018 = vperm.slane %v1016, 0
    %v1020 = vadd.f32 %v1015, %v1018
    %v1021 = vxor.u32 %v1020, 2147483648
    %v1022 = vmul.f32 %v1021, 1.442695
    %v1023 = vpow.pop %v1022
    %v1024 = vadd.f32 %v1023, 1.0
    %v1025 = vrcp.pop %v1024
    %v1026 = vmul.f32 %v1024, %v1025
    %v1027 = vsub.f32 1.0, %v1026
    %v1028 = vmul.f32 %v1025, %v1027
    %v1029 = vadd.f32 %v1025, %v1028
    %vm1030 = vweird.f32 %v1024
    %vm1031 = vweird.f32 %v1025
    %vm1032 = vmor %vm1030, %vm1031
    %v1033 = vsel %vm1032, %v1025, %v1029
    %v1034 = vand.u32 2147483647, %v1024
    %vm1035 = vcmp.eq.f32.partialorder %v1034, 8.507059e+37
    %v1036 = vand.u32 %v1024, 2147483648
    %v1037 = vor.u32 1.1754944e-38, %v1036
    %v1038 = vsel %vm1035, %v1037, %v1033
    %v1039 = vmul.f32 1.0, %v1038
    %v1040 = vld [vmem:[%s508] sm:$0x1]
    %v1042 = vperm.slane %v1040, 0
    %v1044 = vadd.f32 %v936, %v1042
    %v1045 = vld [vmem:[%s10] sm:$0x1]
    %v1047 = vperm.slane %v1045, 0
    %1049 = vmatpush.msra.mxu0 0.0
    %1050 = vmatpush.msra.mxu0 0.0
    %1051 = vmatpush.msra.mxu0 0.0
    %1052 = vmatpush.msra.mxu0 0.0
    %1053 = vmatpush.msra.mxu0 0.0
    %1054 = vmatpush.msra.mxu0 0.0
    %1055 = vmatpush.msra.mxu0 0.0
    %1056 = vmatpush.msra.mxu0 0.0
    %1057 = vmatpush.msra.mxu0 0.0
    %1058 = vmatpush.msra.mxu0 0.0
    %1059 = vmatpush.msra.mxu0 0.0
    %1060 = vmatpush.msra.mxu0 0.0
    %1061 = vmatpush.msra.mxu0 %v989
    %1062 = vmatpush.msra.mxu0 %v988
    %1063 = vmatpush.msra.mxu0 %v987
    %1064 = vmatpush.msra.mxu0 %v986
    %1065 = vmatmul.f32.gmra.mxu0 %v566
    %v1066 = vpop.f32.mrf.mxu0
    %v1067 = vadd.f32 %v1047, %v1066
    %1068 = vdwg.mxu0
    %v1069 = vmul.f32 %v1014, %v1067
    %v1070 = vadd.f32 %v1044, %v1069
    %v1071 = vtanh.pop %v1070
    %v1072 = vsub.f32 1.0, %v1039
    %v1073 = vmul.f32 %v1072, %v1071
    %v1074 = vmul.f32 %v1039, %v544
    %v1075 = vadd.f32 %v1073, %v1074
    %1076 = vmatpush.msra.mxu0 0.0
    %1077 = vmatpush.msra.mxu0 0.0
    %1078 = vmatpush.msra.mxu0 0.0
    %1079 = vmatpush.msra.mxu0 0.0
    %1080 = vmatpush.msra.mxu0 0.0
    %1081 = vmatpush.msra.mxu0 0.0
    %1082 = vmatpush.msra.mxu0 0.0
    %1083 = vmatpush.msra.mxu0 0.0
    %1084 = vmatpush.msra.mxu0 0.0
    %1085 = vmatpush.msra.mxu0 0.0
    %1086 = vmatpush.msra.mxu0 0.0
    %1087 = vmatpush.msra.mxu0 0.0
    %1088 = vmatpush.msra.mxu0 %v77
    %1089 = vmatpush.msra.mxu0 %v76
    %1090 = vmatpush.msra.mxu0 %v75
    %1091 = vmatpush.msra.mxu0 %v74
    %1092 = vmatmul.f32.gmra.mxu0 %v797
    %v1093 = vpop.f32.mrf.mxu0
    %v1094 = vadd.f32 0.0, %v1093
    %1095 = vdwg.mxu0
    %v1097 = vsel %vm118, %v1075, 0
    %1099 = vmatpush.msra.mxu0 0.0
    %1100 = vmatpush.msra.mxu0 0.0
    %1101 = vmatpush.msra.mxu0 0.0
    %1102 = vmatpush.msra.mxu0 0.0
    %1103 = vmatpush.msra.mxu0 0.0
    %1104 = vmatpush.msra.mxu0 0.0
    %1105 = vmatpush.msra.mxu0 0.0
    %1106 = vmatpush.msra.mxu0 0.0
    %1107 = vmatpush.msra.mxu0 0.0
    %1108 = vmatpush.msra.mxu0 0.0
    %1109 = vmatpush.msra.mxu0 0.0
    %1110 = vmatpush.msra.mxu0 0.0
    %1111 = vmatpush.msra.mxu0 %v73
    %1112 = vmatpush.msra.mxu0 %v72
    %1113 = vmatpush.msra.mxu0 %v71
    %1114 = vmatpush.msra.mxu0 %v70
    %1115 = vmatmul.f32.gmra.mxu0 %v1097
    %v1116 = vpop.f32.mrf.mxu0
    %v1117 = vadd.f32 %v1094, %v1116
    %1118 = vdwg.mxu0
    %1119 = vmatpush.msra.mxu0 0.0
    %1120 = vmatpush.msra.mxu0 0.0
    %1121 = vmatpush.msra.mxu0 0.0
    %1122 = vmatpush.msra.mxu0 0.0
    %1123 = vmatpush.msra.mxu0 0.0
    %1124 = vmatpush.msra.mxu0 0.0
    %1125 = vmatpush.msra.mxu0 0.0
    %1126 = vmatpush.msra.mxu0 0.0
    %1127 = vmatpush.msra.mxu0 0.0
    %1128 = vmatpush.msra.mxu0 0.0
    %1129 = vmatpush.msra.mxu0 0.0
    %1130 = vmatpush.msra.mxu0 0.0
    %1131 = vmatpush.msra.mxu0 %v81
    %1132 = vmatpush.msra.mxu0 %v80
    %1133 = vmatpush.msra.mxu0 %v79
    %1134 = vmatpush.msra.mxu0 %v78
    %1135 = vmatmul.f32.gmra.mxu0 %v820
    %v1136 = vpop.f32.mrf.mxu0
    %v1137 = vadd.f32 0.0, %v1136
    %1138 = vdwg.mxu0
    %v1139 = vadd.f32 %v1117, %v1137
    %v1140 = vadd.f32 %v1139, %v610
    %s1141 = scalar_lea.vmem %s17, 2
    %1142 = vst.msk [vmem:[%s1141] sm:$0x3] %vm613, %v1140
    %v1143 = vperm.slane %v763, %v84
    %v1144 = vperm.slane %v768, %v84
    %v1145 = vsel %vm167, %v1144, %v1143
    %s1147 = scalar_lea.vmem [#allocation2], 2
    %1148 = vst.msk [vmem:[%s1147] sm:$0x3] %vm170, %v1145
    %v1149 = vsel %vm613, %v1140, -inf
    %1150 = vmax.xlane.f32.xlu0 %v1149
    %v1151 = vpop.xlane.xlu0 %1150
    %vm1152 = vcmp.eq.f32.partialorder %v1140, %v1151
    %v1153 = vsel %vm1152, %v85, 16.0
    %v1154 = vsel %vm613, %v1153, inf
    %1155 = vmin.xlane.f32.xlu0 %v1154
    %v1156 = vpop.xlane.xlu0 %1155
    %v1157 = vcvt.f32.s32.to.zero.pseudo %v1156
    %s1158 = scalar_lea.vmem %s16, 1
    %v1159 = vld [vmem:[%s1158] sm:$0x1]
    %vm1160 = vcmp.gt.s32.totalorder %v1159, 0
    %s1161 = scalar_lea.vmem %s15, 4
    %v1162 = vld [vmem:[%s1161] sm:$0x3]
    %v1163 = vsel %vm1160, 1, 0
    %v1164 = vperm.slane %v1163, 0
    %vm1165 = vcmp.eq.s32.totalorder %v1164, 1
    %v1166 = vsel %vm1165, %v1162, %v1157
    %1167 = vset.pattern.permute.xlu0 0
    %1168 = vperm.xlu0 %1167, %v1166
    %v1169 = vpop.permute.xlu0 %1168
    %vm1170 = vcmp.eq.s32.totalorder %v1169, %v84
    %v1171 = vsel %vm1170, 1, 0
    %v1172 = vcvt.s32.f32 %v1171
    %v1174 = vsel %vm94, %v1172, 0
    %1176 = vmatpush.msra.mxu0 0.0
    %1177 = vmatpush.msra.mxu0 0.0
    %1178 = vmatpush.msra.mxu0 0.0
    %1179 = vmatpush.msra.mxu0 0.0
    %1180 = vmatpush.msra.mxu0 0.0
    %1181 = vmatpush.msra.mxu0 0.0
    %1182 = vmatpush.msra.mxu0 0.0
    %1183 = vmatpush.msra.mxu0 0.0
    %1184 = vmatpush.msra.mxu0 0.0
    %1185 = vmatpush.msra.mxu0 0.0
    %1186 = vmatpush.msra.mxu0 0.0
    %1187 = vmatpush.msra.mxu0 0.0
    %1188 = vmatpush.msra.mxu0 0.0
    %1189 = vmatpush.msra.mxu0 0.0
    %1190 = vmatpush.msra.mxu0 %v69
    %1191 = vmatpush.msra.mxu0 %v68
    %1192 = vmatmul.f32.gmra.mxu0 %v1174
    %v1193 = vpop.f32.mrf.mxu0
    %v1194 = vadd.f32 0.0, %v1193
    %1195 = vdwg.mxu0
    %1196 = vmatpush.msra.mxu0 0.0
    %1197 = vmatpush.msra.mxu0 0.0
    %1198 = vmatpush.msra.mxu0 0.0
    %1199 = vmatpush.msra.mxu0 0.0
    %1200 = vmatpush.msra.mxu0 0.0
    %1201 = vmatpush.msra.mxu0 0.0
    %1202 = vmatpush.msra.mxu0 0.0
    %1203 = vmatpush.msra.mxu0 0.0
    %1204 = vmatpush.msra.mxu0 0.0
    %1205 = vmatpush.msra.mxu0 0.0
    %1206 = vmatpush.msra.mxu0 0.0
    %1207 = vmatpush.msra.mxu0 0.0
    %1208 = vmatpush.msra.mxu0 %v66
    %1209 = vmatpush.msra.mxu0 %v65
    %1210 = vmatpush.msra.mxu0 %v64
    %1211 = vmatpush.msra.mxu0 %v63
    %1212 = vmatmul.f32.gmra.mxu0 %v1097
    %v1213 = vpop.f32.mrf.mxu0
    %v1214 = vadd.f32 0.0, %v1213
    %1215 = vdwg.mxu0
    %v1217 = vrot.slane %v1214, 1
    %v1218 = vperm.slane %v1214, 0
    %v1219 = vperm.slane %v1217, 0
    %v1222 = vadd.f32 %v1218, %v61
    %v1223 = vadd.f32 %v1219, %v62
    %v1224 = vtanh.pop %v1222
    %v1225 = vtanh.pop %v1223
    %v1226 = vmul.f32 %v1224, %v153
    %v1227 = vmul.f32 %v1225, %v153
    %v1228 = vsel %vm118, %v1226, 0.0
    %1229 = vadd.xlane.f32.xlu0 %v1228
    %v1230 = vpop.xlane.xlu0 %1229
    %v1231 = vsel %vm118, %v1227, 0.0
    %1232 = vadd.xlane.f32.xlu0 %v1231
    %v1233 = vpop.xlane.xlu0 %1232
    %v1236 = vperm.slane %v1230, %v84
    %v1237 = vperm.slane %v1233, %v84
    %v1238 = vsel %vm167, %v1237, %v1236
    %v1240 = vsel %vm170, %v1238, -inf
    %1241 = vmax.xlane.f32.xlu0 %v1240
    %v1242 = vpop.xlane.xlu0 %1241
    %v1244 = vperm.slane %v1242, 0
    %v1245 = vperm.slane %v1242, 1
    %v1248 = vsub.f32 %v1230, %v1244
    %v1249 = vsub.f32 %v1233, %v1245
    %v1250 = vmul.f32 %v1248, 1.442695
    %v1251 = vpow.pop %v1250
    %v1252 = vmul.f32 %v1249, 1.442695
    %v1253 = vpow.pop %v1252
    %1256 = vset.pattern.permute.xlu0 0
    %1257 = vperm.xlu0 %1256, %v1251
    %v1258 = vpop.permute.xlu0 %1257
    %1259 = vset.pattern.permute.xlu0 0
    %1260 = vperm.xlu0 %1259, %v1253
    %v1261 = vpop.permute.xlu0 %1260
    %v1262 = vperm.slane %v1258, %v84
    %v1263 = vperm.slane %v1261, %v84
    %v1264 = vsel %vm167, %v1263, %v1262
    %v1266 = vsel %vm170, %v1264, 0.0
    %1267 = vadd.xlane.f32.xlu0 %v1266
    %v1268 = vpop.xlane.xlu0 %1267
    %v1269 = vrcp.pop %v1268
    %v1270 = vmul.f32 %v1268, %v1269
    %v1271 = vsub.f32 1.0, %v1270
    %v1272 = vmul.f32 %v1269, %v1271
    %v1273 = vadd.f32 %v1269, %v1272
    %vm1274 = vweird.f32 %v1268
    %vm1275 = vweird.f32 %v1269
    %vm1276 = vmor %vm1274, %vm1275
    %v1277 = vsel %vm1276, %v1269, %v1273
    %v1278 = vand.u32 2147483647, %v1268
    %vm1279 = vcmp.eq.f32.partialorder %v1278, 8.507059e+37
    %v1280 = vand.u32 %v1268, 2147483648
    %v1281 = vor.u32 1.1754944e-38, %v1280
    %v1282 = vsel %vm1279, %v1281, %v1277
    %v1284 = vperm.slane %v1282, 0
    %v1285 = vperm.slane %v1282, 1
    %v1288 = vmul.f32 %v1251, %v1284
    %v1289 = vmul.f32 %v1253, %v1285
    %1291 = vset.pattern.permute.xlu0 0
    %1292 = vperm.xlu0 %1291, %v1288
    %v1293 = vpop.permute.xlu0 %1292
    %1296 = vset.pattern.permute.xlu0 0
    %1297 = vperm.xlu0 %1296, %v1289
    %v1298 = vpop.permute.xlu0 %1297
    %v1300 = vmul.f32 %v1293, %v59
    %v1301 = vmul.f32 %v1298, %v60
    %v1302 = vsel %vm118, %v1300, 0.0
    %v1303 = vrot.slane %v1302, 4
    %v1304 = vadd.f32 %v1302, %v1303
    %v1305 = vrot.slane %v1304, 2
    %v1306 = vadd.f32 %v1304, %v1305
    %v1307 = vrot.slane %v1306, 1
    %v1308 = vadd.f32 %v1306, %v1307
    %v1309 = vsel %vm118, %v1301, 0.0
    %v1310 = vrot.slane %v1309, 4
    %v1311 = vadd.f32 %v1309, %v1310
    %v1312 = vrot.slane %v1311, 2
    %v1313 = vadd.f32 %v1311, %v1312
    %v1314 = vrot.slane %v1313, 1
    %v1315 = vadd.f32 %v1313, %v1314
    %v1316 = vld [vmem:[%s6] sm:$0xff]
    %v1317 = vld [vmem:[%s6 + $0x8] sm:$0xff]
    %v1318 = vld [vmem:[%s6 + $0x10] sm:$0xff]
    %v1319 = vld [vmem:[%s6 + $0x18] sm:$0xff]
    %v1320 = vld [vmem:[%s7] sm:$0xff]
    %v1321 = vld [vmem:[%s7 + $0x8] sm:$0xff]
    %v1322 = vld [vmem:[%s7 + $0x10] sm:$0xff]
    %v1323 = vld [vmem:[%s7 + $0x18] sm:$0xff]
    %v1326 = vsel %vm167, %v1315, %v1308
    %v1327 = vsel %vm118, %v1326, 0
    %1329 = vmatpush.msra.mxu0 0.0
    %1330 = vmatpush.msra.mxu0 0.0
    %1331 = vmatpush.msra.mxu0 0.0
    %1332 = vmatpush.msra.mxu0 0.0
    %1333 = vmatpush.msra.mxu0 0.0
    %1334 = vmatpush.msra.mxu0 0.0
    %1335 = vmatpush.msra.mxu0 0.0
    %1336 = vmatpush.msra.mxu0 0.0
    %1337 = vmatpush.msra.mxu0 0.0
    %1338 = vmatpush.msra.mxu0 0.0
    %1339 = vmatpush.msra.mxu0 0.0
    %1340 = vmatpush.msra.mxu0 0.0
    %1341 = vmatpush.msra.mxu0 %v1323
    %1342 = vmatpush.msra.mxu0 %v1322
    %1343 = vmatpush.msra.mxu0 %v1321
    %1344 = vmatpush.msra.mxu0 %v1320
    %1345 = vmatmul.f32.gmra.mxu0 %v1327
    %v1346 = vpop.f32.mrf.mxu0
    %v1347 = vadd.f32 0.0, %v1346
    %1348 = vdwg.mxu0
    %v1350 = vsel %vm118, %v1194, 0
    %1352 = vmatpush.msra.mxu0 0.0
    %1353 = vmatpush.msra.mxu0 0.0
    %1354 = vmatpush.msra.mxu0 0.0
    %1355 = vmatpush.msra.mxu0 0.0
    %1356 = vmatpush.msra.mxu0 0.0
    %1357 = vmatpush.msra.mxu0 0.0
    %1358 = vmatpush.msra.mxu0 0.0
    %1359 = vmatpush.msra.mxu0 0.0
    %1360 = vmatpush.msra.mxu0 0.0
    %1361 = vmatpush.msra.mxu0 0.0
    %1362 = vmatpush.msra.mxu0 0.0
    %1363 = vmatpush.msra.mxu0 0.0
    %1364 = vmatpush.msra.mxu0 %v1319
    %1365 = vmatpush.msra.mxu0 %v1318
    %1366 = vmatpush.msra.mxu0 %v1317
    %1367 = vmatpush.msra.mxu0 %v1316
    %1368 = vmatmul.f32.gmra.mxu0 %v1350
    %v1369 = vpop.f32.mrf.mxu0
    %v1370 = vadd.f32 %v1347, %v1369
    %1371 = vdwg.mxu0
    %v1372 = vld [vmem:[%s303] sm:$0xff]
    %v1373 = vld [vmem:[%s303 + $0x8] sm:$0xff]
    %v1374 = vld [vmem:[%s303 + $0x10] sm:$0xff]
    %v1375 = vld [vmem:[%s303 + $0x18] sm:$0xff]
    %v1376 = vld [vmem:[%s308] sm:$0xff]
    %v1377 = vld [vmem:[%s308 + $0x8] sm:$0xff]
    %v1378 = vld [vmem:[%s308 + $0x10] sm:$0xff]
    %v1379 = vld [vmem:[%s308 + $0x18] sm:$0xff]
    %1380 = vmatpush.msra.mxu0 0.0
    %1381 = vmatpush.msra.mxu0 0.0
    %1382 = vmatpush.msra.mxu0 0.0
    %1383 = vmatpush.msra.mxu0 0.0
    %1384 = vmatpush.msra.mxu0 0.0
    %1385 = vmatpush.msra.mxu0 0.0
    %1386 = vmatpush.msra.mxu0 0.0
    %1387 = vmatpush.msra.mxu0 0.0
    %1388 = vmatpush.msra.mxu0 0.0
    %1389 = vmatpush.msra.mxu0 0.0
    %1390 = vmatpush.msra.mxu0 0.0
    %1391 = vmatpush.msra.mxu0 0.0
    %1392 = vmatpush.msra.mxu0 %v1379
    %1393 = vmatpush.msra.mxu0 %v1378
    %1394 = vmatpush.msra.mxu0 %v1377
    %1395 = vmatpush.msra.mxu0 %v1376
    %1396 = vmatmul.f32.gmra.mxu0 %v1327
    %v1397 = vpop.f32.mrf.mxu0
    %v1398 = vadd.f32 0.0, %v1397
    %1399 = vdwg.mxu0
    %1400 = vmatpush.msra.mxu0 0.0
    %1401 = vmatpush.msra.mxu0 0.0
    %1402 = vmatpush.msra.mxu0 0.0
    %1403 = vmatpush.msra.mxu0 0.0
    %1404 = vmatpush.msra.mxu0 0.0
    %1405 = vmatpush.msra.mxu0 0.0
    %1406 = vmatpush.msra.mxu0 0.0
    %1407 = vmatpush.msra.mxu0 0.0
    %1408 = vmatpush.msra.mxu0 0.0
    %1409 = vmatpush.msra.mxu0 0.0
    %1410 = vmatpush.msra.mxu0 0.0
    %1411 = vmatpush.msra.mxu0 0.0
    %1412 = vmatpush.msra.mxu0 %v1375
    %1413 = vmatpush.msra.mxu0 %v1374
    %1414 = vmatpush.msra.mxu0 %v1373
    %1415 = vmatpush.msra.mxu0 %v1372
    %1416 = vmatmul.f32.gmra.mxu0 %v1350
    %v1417 = vpop.f32.mrf.mxu0
    %v1418 = vadd.f32 %v1398, %v1417
    %1419 = vdwg.mxu0
    %v1420 = vld [vmem:[%s353] sm:$0xff]
    %v1421 = vld [vmem:[%s353 + $0x8] sm:$0xff]
    %v1422 = vld [vmem:[%s353 + $0x10] sm:$0xff]
    %v1423 = vld [vmem:[%s353 + $0x18] sm:$0xff]
    %v1424 = vld [vmem:[%s358] sm:$0xff]
    %v1425 = vld [vmem:[%s358 + $0x8] sm:$0xff]
    %v1426 = vld [vmem:[%s358 + $0x10] sm:$0xff]
    %v1427 = vld [vmem:[%s358 + $0x18] sm:$0xff]
    %1428 = vmatpush.msra.mxu0 0.0
    %1429 = vmatpush.msra.mxu0 0.0
    %1430 = vmatpush.msra.mxu0 0.0
    %1431 = vmatpush.msra.mxu0 0.0
    %1432 = vmatpush.msra.mxu0 0.0
    %1433 = vmatpush.msra.mxu0 0.0
    %1434 = vmatpush.msra.mxu0 0.0
    %1435 = vmatpush.msra.mxu0 0.0
    %1436 = vmatpush.msra.mxu0 0.0
    %1437 = vmatpush.msra.mxu0 0.0
    %1438 = vmatpush.msra.mxu0 0.0
    %1439 = vmatpush.msra.mxu0 0.0
    %1440 = vmatpush.msra.mxu0 %v1427
    %1441 = vmatpush.msra.mxu0 %v1426
    %1442 = vmatpush.msra.mxu0 %v1425
    %1443 = vmatpush.msra.mxu0 %v1424
    %1444 = vmatmul.f32.gmra.mxu0 %v1327
    %v1445 = vpop.f32.mrf.mxu0
    %v1446 = vadd.f32 0.0, %v1445
    %1447 = vdwg.mxu0
    %1448 = vmatpush.msra.mxu0 0.0
    %1449 = vmatpush.msra.mxu0 0.0
    %1450 = vmatpush.msra.mxu0 0.0
    %1451 = vmatpush.msra.mxu0 0.0
    %1452 = vmatpush.msra.mxu0 0.0
    %1453 = vmatpush.msra.mxu0 0.0
    %1454 = vmatpush.msra.mxu0 0.0
    %1455 = vmatpush.msra.mxu0 0.0
    %1456 = vmatpush.msra.mxu0 0.0
    %1457 = vmatpush.msra.mxu0 0.0
    %1458 = vmatpush.msra.mxu0 0.0
    %1459 = vmatpush.msra.mxu0 0.0
    %1460 = vmatpush.msra.mxu0 %v1423
    %1461 = vmatpush.msra.mxu0 %v1422
    %1462 = vmatpush.msra.mxu0 %v1421
    %1463 = vmatpush.msra.mxu0 %v1420
    %1464 = vmatmul.f32.gmra.mxu0 %v1350
    %v1465 = vpop.f32.mrf.mxu0
    %v1466 = vadd.f32 %v1446, %v1465
    %1467 = vdwg.mxu0
    %v1468 = vld [vmem:[%s8] sm:$0xff]
    %v1469 = vld [vmem:[%s8 + $0x8] sm:$0xff]
    %v1470 = vld [vmem:[%s8 + $0x10] sm:$0xff]
    %v1471 = vld [vmem:[%s8 + $0x18] sm:$0xff]
    %1472 = vmatpush.msra.mxu0 0.0
    %1473 = vmatpush.msra.mxu0 0.0
    %1474 = vmatpush.msra.mxu0 0.0
    %1475 = vmatpush.msra.mxu0 0.0
    %1476 = vmatpush.msra.mxu0 0.0
    %1477 = vmatpush.msra.mxu0 0.0
    %1478 = vmatpush.msra.mxu0 0.0
    %1479 = vmatpush.msra.mxu0 0.0
    %1480 = vmatpush.msra.mxu0 0.0
    %1481 = vmatpush.msra.mxu0 0.0
    %1482 = vmatpush.msra.mxu0 0.0
    %1483 = vmatpush.msra.mxu0 0.0
    %1484 = vmatpush.msra.mxu0 %v1471
    %1485 = vmatpush.msra.mxu0 %v1470
    %1486 = vmatpush.msra.mxu0 %v1469
    %1487 = vmatpush.msra.mxu0 %v1468
    %1488 = vmatmul.f32.gmra.mxu0 %v1097
    %v1489 = vpop.f32.mrf.mxu0
    %v1490 = vadd.f32 0.0, %v1489
    %1491 = vdwg.mxu0
    %v1492 = vld [vmem:[%s427] sm:$0xff]
    %v1493 = vld [vmem:[%s427 + $0x8] sm:$0xff]
    %v1494 = vld [vmem:[%s427 + $0x10] sm:$0xff]
    %v1495 = vld [vmem:[%s427 + $0x18] sm:$0xff]
    %1496 = vmatpush.msra.mxu0 0.0
    %1497 = vmatpush.msra.mxu0 0.0
    %1498 = vmatpush.msra.mxu0 0.0
    %1499 = vmatpush.msra.mxu0 0.0
    %1500 = vmatpush.msra.mxu0 0.0
    %1501 = vmatpush.msra.mxu0 0.0
    %1502 = vmatpush.msra.mxu0 0.0
    %1503 = vmatpush.msra.mxu0 0.0
    %1504 = vmatpush.msra.mxu0 0.0
    %1505 = vmatpush.msra.mxu0 0.0
    %1506 = vmatpush.msra.mxu0 0.0
    %1507 = vmatpush.msra.mxu0 0.0
    %1508 = vmatpush.msra.mxu0 %v1495
    %1509 = vmatpush.msra.mxu0 %v1494
    %1510 = vmatpush.msra.mxu0 %v1493
    %1511 = vmatpush.msra.mxu0 %v1492
    %1512 = vmatmul.f32.gmra.mxu0 %v1097
    %v1513 = vpop.f32.mrf.mxu0
    %v1514 = vadd.f32 0.0, %v1513
    %1515 = vdwg.mxu0
    %v1516 = vld [vmem:[%s452] sm:$0xff]
    %v1517 = vld [vmem:[%s452 + $0x8] sm:$0xff]
    %v1518 = vld [vmem:[%s452 + $0x10] sm:$0xff]
    %v1519 = vld [vmem:[%s452 + $0x18] sm:$0xff]
    %v1520 = vadd.f32 %v1370, %v1490
    %v1521 = vld [vmem:[%s9] sm:$0x1]
    %v1523 = vperm.slane %v1521, 0
    %v1525 = vadd.f32 %v1520, %v1523
    %v1526 = vxor.u32 %v1525, 2147483648
    %v1527 = vmul.f32 %v1526, 1.442695
    %v1528 = vpow.pop %v1527
    %v1529 = vadd.f32 %v1528, 1.0
    %v1530 = vrcp.pop %v1529
    %v1531 = vmul.f32 %v1529, %v1530
    %v1532 = vsub.f32 1.0, %v1531
    %v1533 = vmul.f32 %v1530, %v1532
    %v1534 = vadd.f32 %v1530, %v1533
    %vm1535 = vweird.f32 %v1529
    %vm1536 = vweird.f32 %v1530
    %vm1537 = vmor %vm1535, %vm1536
    %v1538 = vsel %vm1537, %v1530, %v1534
    %v1539 = vand.u32 2147483647, %v1529
    %vm1540 = vcmp.eq.f32.partialorder %v1539, 8.507059e+37
    %v1541 = vand.u32 %v1529, 2147483648
    %v1542 = vor.u32 1.1754944e-38, %v1541
    %v1543 = vsel %vm1540, %v1542, %v1538
    %v1544 = vmul.f32 1.0, %v1543
    %v1545 = vadd.f32 %v1418, %v1514
    %v1546 = vld [vmem:[%s483] sm:$0x1]
    %v1548 = vperm.slane %v1546, 0
    %v1550 = vadd.f32 %v1545, %v1548
    %v1551 = vxor.u32 %v1550, 2147483648
    %v1552 = vmul.f32 %v1551, 1.442695
    %v1553 = vpow.pop %v1552
    %v1554 = vadd.f32 %v1553, 1.0
    %v1555 = vrcp.pop %v1554
    %v1556 = vmul.f32 %v1554, %v1555
    %v1557 = vsub.f32 1.0, %v1556
    %v1558 = vmul.f32 %v1555, %v1557
    %v1559 = vadd.f32 %v1555, %v1558
    %vm1560 = vweird.f32 %v1554
    %vm1561 = vweird.f32 %v1555
    %vm1562 = vmor %vm1560, %vm1561
    %v1563 = vsel %vm1562, %v1555, %v1559
    %v1564 = vand.u32 2147483647, %v1554
    %vm1565 = vcmp.eq.f32.partialorder %v1564, 8.507059e+37
    %v1566 = vand.u32 %v1554, 2147483648
    %v1567 = vor.u32 1.1754944e-38, %v1566
    %v1568 = vsel %vm1565, %v1567, %v1563
    %v1569 = vmul.f32 1.0, %v1568
    %v1570 = vld [vmem:[%s508] sm:$0x1]
    %v1572 = vperm.slane %v1570, 0
    %v1574 = vadd.f32 %v1466, %v1572
    %v1575 = vld [vmem:[%s10] sm:$0x1]
    %v1577 = vperm.slane %v1575, 0
    %1579 = vmatpush.msra.mxu0 0.0
    %1580 = vmatpush.msra.mxu0 0.0
    %1581 = vmatpush.msra.mxu0 0.0
    %1582 = vmatpush.msra.mxu0 0.0
    %1583 = vmatpush.msra.mxu0 0.0
    %1584 = vmatpush.msra.mxu0 0.0
    %1585 = vmatpush.msra.mxu0 0.0
    %1586 = vmatpush.msra.mxu0 0.0
    %1587 = vmatpush.msra.mxu0 0.0
    %1588 = vmatpush.msra.mxu0 0.0
    %1589 = vmatpush.msra.mxu0 0.0
    %1590 = vmatpush.msra.mxu0 0.0
    %1591 = vmatpush.msra.mxu0 %v1519
    %1592 = vmatpush.msra.mxu0 %v1518
    %1593 = vmatpush.msra.mxu0 %v1517
    %1594 = vmatpush.msra.mxu0 %v1516
    %1595 = vmatmul.f32.gmra.mxu0 %v1097
    %v1596 = vpop.f32.mrf.mxu0
    %v1597 = vadd.f32 %v1577, %v1596
    %1598 = vdwg.mxu0
    %v1599 = vmul.f32 %v1544, %v1597
    %v1600 = vadd.f32 %v1574, %v1599
    %v1601 = vtanh.pop %v1600
    %v1602 = vsub.f32 1.0, %v1569
    %v1603 = vmul.f32 %v1602, %v1601
    %v1604 = vmul.f32 %v1569, %v1075
    %v1605 = vadd.f32 %v1603, %v1604
    %1606 = vmatpush.msra.mxu0 0.0
    %1607 = vmatpush.msra.mxu0 0.0
    %1608 = vmatpush.msra.mxu0 0.0
    %1609 = vmatpush.msra.mxu0 0.0
    %1610 = vmatpush.msra.mxu0 0.0
    %1611 = vmatpush.msra.mxu0 0.0
    %1612 = vmatpush.msra.mxu0 0.0
    %1613 = vmatpush.msra.mxu0 0.0
    %1614 = vmatpush.msra.mxu0 0.0
    %1615 = vmatpush.msra.mxu0 0.0
    %1616 = vmatpush.msra.mxu0 0.0
    %1617 = vmatpush.msra.mxu0 0.0
    %1618 = vmatpush.msra.mxu0 %v77
    %1619 = vmatpush.msra.mxu0 %v76
    %1620 = vmatpush.msra.mxu0 %v75
    %1621 = vmatpush.msra.mxu0 %v74
    %1622 = vmatmul.f32.gmra.mxu0 %v1327
    %v1623 = vpop.f32.mrf.mxu0
    %v1624 = vadd.f32 0.0, %v1623
    %1625 = vdwg.mxu0
    %v1627 = vsel %vm118, %v1605, 0
    %1629 = vmatpush.msra.mxu0 0.0
    %1630 = vmatpush.msra.mxu0 0.0
    %1631 = vmatpush.msra.mxu0 0.0
    %1632 = vmatpush.msra.mxu0 0.0
    %1633 = vmatpush.msra.mxu0 0.0
    %1634 = vmatpush.msra.mxu0 0.0
    %1635 = vmatpush.msra.mxu0 0.0
    %1636 = vmatpush.msra.mxu0 0.0
    %1637 = vmatpush.msra.mxu0 0.0
    %1638 = vmatpush.msra.mxu0 0.0
    %1639 = vmatpush.msra.mxu0 0.0
    %1640 = vmatpush.msra.mxu0 0.0
    %1641 = vmatpush.msra.mxu0 %v73
    %1642 = vmatpush.msra.mxu0 %v72
    %1643 = vmatpush.msra.mxu0 %v71
    %1644 = vmatpush.msra.mxu0 %v70
    %1645 = vmatmul.f32.gmra.mxu0 %v1627
    %v1646 = vpop.f32.mrf.mxu0
    %v1647 = vadd.f32 %v1624, %v1646
    %1648 = vdwg.mxu0
    %1649 = vmatpush.msra.mxu0 0.0
    %1650 = vmatpush.msra.mxu0 0.0
    %1651 = vmatpush.msra.mxu0 0.0
    %1652 = vmatpush.msra.mxu0 0.0
    %1653 = vmatpush.msra.mxu0 0.0
    %1654 = vmatpush.msra.mxu0 0.0
    %1655 = vmatpush.msra.mxu0 0.0
    %1656 = vmatpush.msra.mxu0 0.0
    %1657 = vmatpush.msra.mxu0 0.0
    %1658 = vmatpush.msra.mxu0 0.0
    %1659 = vmatpush.msra.mxu0 0.0
    %1660 = vmatpush.msra.mxu0 0.0
    %1661 = vmatpush.msra.mxu0 %v81
    %1662 = vmatpush.msra.mxu0 %v80
    %1663 = vmatpush.msra.mxu0 %v79
    %1664 = vmatpush.msra.mxu0 %v78
    %1665 = vmatmul.f32.gmra.mxu0 %v1350
    %v1666 = vpop.f32.mrf.mxu0
    %v1667 = vadd.f32 0.0, %v1666
    %1668 = vdwg.mxu0
    %v1669 = vadd.f32 %v1647, %v1667
    %v1670 = vadd.f32 %v1669, %v610
    %s1671 = scalar_lea.vmem %s17, 4
    %1672 = vst.msk [vmem:[%s1671] sm:$0x3] %vm613, %v1670
    %v1673 = vperm.slane %v1293, %v84
    %v1674 = vperm.slane %v1298, %v84
    %v1675 = vsel %vm167, %v1674, %v1673
    %s1677 = scalar_lea.vmem [#allocation2], 4
    %1678 = vst.msk [vmem:[%s1677] sm:$0x3] %vm170, %v1675
    %v1679 = vsel %vm613, %v1670, -inf
    %1680 = vmax.xlane.f32.xlu0 %v1679
    %v1681 = vpop.xlane.xlu0 %1680
    %vm1682 = vcmp.eq.f32.partialorder %v1670, %v1681
    %v1683 = vsel %vm1682, %v85, 16.0
    %v1684 = vsel %vm613, %v1683, inf
    %1685 = vmin.xlane.f32.xlu0 %v1684
    %v1686 = vpop.xlane.xlu0 %1685
    %v1687 = vcvt.f32.s32.to.zero.pseudo %v1686
    %s1688 = scalar_lea.vmem %s16, 2
    %v1689 = vld [vmem:[%s1688] sm:$0x1]
    %vm1690 = vcmp.gt.s32.totalorder %v1689, 0
    %s1691 = scalar_lea.vmem %s15, 6
    %v1692 = vld [vmem:[%s1691] sm:$0x3]
    %v1693 = vsel %vm1690, 1, 0
    %v1694 = vperm.slane %v1693, 0
    %vm1695 = vcmp.eq.s32.totalorder %v1694, 1
    %v1696 = vsel %vm1695, %v1692, %v1687
    %1697 = vset.pattern.permute.xlu0 0
    %1698 = vperm.xlu0 %1697, %v1696
    %v1699 = vpop.permute.xlu0 %1698
    %vm1700 = vcmp.eq.s32.totalorder %v1699, %v84
    %v1701 = vsel %vm1700, 1, 0
    %v1702 = vcvt.s32.f32 %v1701
    %v1704 = vsel %vm94, %v1702, 0
    %1706 = vmatpush.msra.mxu0 0.0
    %1707 = vmatpush.msra.mxu0 0.0
    %1708 = vmatpush.msra.mxu0 0.0
    %1709 = vmatpush.msra.mxu0 0.0
    %1710 = vmatpush.msra.mxu0 0.0
    %1711 = vmatpush.msra.mxu0 0.0
    %1712 = vmatpush.msra.mxu0 0.0
    %1713 = vmatpush.msra.mxu0 0.0
    %1714 = vmatpush.msra.mxu0 0.0
    %1715 = vmatpush.msra.mxu0 0.0
    %1716 = vmatpush.msra.mxu0 0.0
    %1717 = vmatpush.msra.mxu0 0.0
    %1718 = vmatpush.msra.mxu0 0.0
    %1719 = vmatpush.msra.mxu0 0.0
    %1720 = vmatpush.msra.mxu0 %v69
    %1721 = vmatpush.msra.mxu0 %v68
    %1722 = vmatmul.f32.gmra.mxu0 %v1704
    %v1723 = vpop.f32.mrf.mxu0
    %v1724 = vadd.f32 0.0, %v1723
    %1725 = vdwg.mxu0
    %1726 = vmatpush.msra.mxu0 0.0
    %1727 = vmatpush.msra.mxu0 0.0
    %1728 = vmatpush.msra.mxu0 0.0
    %1729 = vmatpush.msra.mxu0 0.0
    %1730 = vmatpush.msra.mxu0 0.0
    %1731 = vmatpush.msra.mxu0 0.0
    %1732 = vmatpush.msra.mxu0 0.0
    %1733 = vmatpush.msra.mxu0 0.0
    %1734 = vmatpush.msra.mxu0 0.0
    %1735 = vmatpush.msra.mxu0 0.0
    %1736 = vmatpush.msra.mxu0 0.0
    %1737 = vmatpush.msra.mxu0 0.0
    %1738 = vmatpush.msra.mxu0 %v66
    %1739 = vmatpush.msra.mxu0 %v65
    %1740 = vmatpush.msra.mxu0 %v64
    %1741 = vmatpush.msra.mxu0 %v63
    %1742 = vmatmul.f32.gmra.mxu0 %v1627
    %v1743 = vpop.f32.mrf.mxu0
    %v1744 = vadd.f32 0.0, %v1743
    %1745 = vdwg.mxu0
    %v1747 = vrot.slane %v1744, 1
    %v1748 = vperm.slane %v1744, 0
    %v1749 = vperm.slane %v1747, 0
    %v1752 = vadd.f32 %v1748, %v61
    %v1753 = vadd.f32 %v1749, %v62
    %v1754 = vtanh.pop %v1752
    %v1755 = vtanh.pop %v1753
    %v1756 = vmul.f32 %v1754, %v153
    %v1757 = vmul.f32 %v1755, %v153
    %v1758 = vsel %vm118, %v1756, 0.0
    %1759 = vadd.xlane.f32.xlu0 %v1758
    %v1760 = vpop.xlane.xlu0 %1759
    %v1761 = vsel %vm118, %v1757, 0.0
    %1762 = vadd.xlane.f32.xlu0 %v1761
    %v1763 = vpop.xlane.xlu0 %1762
    %v1766 = vperm.slane %v1760, %v84
    %v1767 = vperm.slane %v1763, %v84
    %v1768 = vsel %vm167, %v1767, %v1766
    %v1770 = vsel %vm170, %v1768, -inf
    %1771 = vmax.xlane.f32.xlu0 %v1770
    %v1772 = vpop.xlane.xlu0 %1771
    %v1774 = vperm.slane %v1772, 0
    %v1775 = vperm.slane %v1772, 1
    %v1778 = vsub.f32 %v1760, %v1774
    %v1779 = vsub.f32 %v1763, %v1775
    %v1780 = vmul.f32 %v1778, 1.442695
    %v1781 = vpow.pop %v1780
    %v1782 = vmul.f32 %v1779, 1.442695
    %v1783 = vpow.pop %v1782
    %1786 = vset.pattern.permute.xlu0 0
    %1787 = vperm.xlu0 %1786, %v1781
    %v1788 = vpop.permute.xlu0 %1787
    %1789 = vset.pattern.permute.xlu0 0
    %1790 = vperm.xlu0 %1789, %v1783
    %v1791 = vpop.permute.xlu0 %1790
    %v1792 = vperm.slane %v1788, %v84
    %v1793 = vperm.slane %v1791, %v84
    %v1794 = vsel %vm167, %v1793, %v1792
    %v1796 = vsel %vm170, %v1794, 0.0
    %1797 = vadd.xlane.f32.xlu0 %v1796
    %v1798 = vpop.xlane.xlu0 %1797
    %v1799 = vrcp.pop %v1798
    %v1800 = vmul.f32 %v1798, %v1799
    %v1801 = vsub.f32 1.0, %v1800
    %v1802 = vmul.f32 %v1799, %v1801
    %v1803 = vadd.f32 %v1799, %v1802
    %vm1804 = vweird.f32 %v1798
    %vm1805 = vweird.f32 %v1799
    %vm1806 = vmor %vm1804, %vm1805
    %v1807 = vsel %vm1806, %v1799, %v1803
    %v1808 = vand.u32 2147483647, %v1798
    %vm1809 = vcmp.eq.f32.partialorder %v1808, 8.507059e+37
    %v1810 = vand.u32 %v1798, 2147483648
    %v1811 = vor.u32 1.1754944e-38, %v1810
    %v1812 = vsel %vm1809, %v1811, %v1807
    %v1814 = vperm.slane %v1812, 0
    %v1815 = vperm.slane %v1812, 1
    %v1818 = vmul.f32 %v1781, %v1814
    %v1819 = vmul.f32 %v1783, %v1815
    %1821 = vset.pattern.permute.xlu0 0
    %1822 = vperm.xlu0 %1821, %v1818
    %v1823 = vpop.permute.xlu0 %1822
    %1826 = vset.pattern.permute.xlu0 0
    %1827 = vperm.xlu0 %1826, %v1819
    %v1828 = vpop.permute.xlu0 %1827
    %v1830 = vmul.f32 %v1823, %v59
    %v1831 = vmul.f32 %v1828, %v60
    %v1832 = vsel %vm118, %v1830, 0.0
    %v1833 = vrot.slane %v1832, 4
    %v1834 = vadd.f32 %v1832, %v1833
    %v1835 = vrot.slane %v1834, 2
    %v1836 = vadd.f32 %v1834, %v1835
    %v1837 = vrot.slane %v1836, 1
    %v1838 = vadd.f32 %v1836, %v1837
    %v1839 = vsel %vm118, %v1831, 0.0
    %v1840 = vrot.slane %v1839, 4
    %v1841 = vadd.f32 %v1839, %v1840
    %v1842 = vrot.slane %v1841, 2
    %v1843 = vadd.f32 %v1841, %v1842
    %v1844 = vrot.slane %v1843, 1
    %v1845 = vadd.f32 %v1843, %v1844
    %v1846 = vld [vmem:[%s6] sm:$0xff]
    %v1847 = vld [vmem:[%s6 + $0x8] sm:$0xff]
    %v1848 = vld [vmem:[%s6 + $0x10] sm:$0xff]
    %v1849 = vld [vmem:[%s6 + $0x18] sm:$0xff]
    %v1850 = vld [vmem:[%s7] sm:$0xff]
    %v1851 = vld [vmem:[%s7 + $0x8] sm:$0xff]
    %v1852 = vld [vmem:[%s7 + $0x10] sm:$0xff]
    %v1853 = vld [vmem:[%s7 + $0x18] sm:$0xff]
    %v1856 = vsel %vm167, %v1845, %v1838
    %v1857 = vsel %vm118, %v1856, 0
    %1859 = vmatpush.msra.mxu0 0.0
    %1860 = vmatpush.msra.mxu0 0.0
    %1861 = vmatpush.msra.mxu0 0.0
    %1862 = vmatpush.msra.mxu0 0.0
    %1863 = vmatpush.msra.mxu0 0.0
    %1864 = vmatpush.msra.mxu0 0.0
    %1865 = vmatpush.msra.mxu0 0.0
    %1866 = vmatpush.msra.mxu0 0.0
    %1867 = vmatpush.msra.mxu0 0.0
    %1868 = vmatpush.msra.mxu0 0.0
    %1869 = vmatpush.msra.mxu0 0.0
    %1870 = vmatpush.msra.mxu0 0.0
    %1871 = vmatpush.msra.mxu0 %v1853
    %1872 = vmatpush.msra.mxu0 %v1852
    %1873 = vmatpush.msra.mxu0 %v1851
    %1874 = vmatpush.msra.mxu0 %v1850
    %1875 = vmatmul.f32.gmra.mxu0 %v1857
    %v1876 = vpop.f32.mrf.mxu0
    %v1877 = vadd.f32 0.0, %v1876
    %1878 = vdwg.mxu0
    %v1880 = vsel %vm118, %v1724, 0
    %1882 = vmatpush.msra.mxu0 0.0
    %1883 = vmatpush.msra.mxu0 0.0
    %1884 = vmatpush.msra.mxu0 0.0
    %1885 = vmatpush.msra.mxu0 0.0
    %1886 = vmatpush.msra.mxu0 0.0
    %1887 = vmatpush.msra.mxu0 0.0
    %1888 = vmatpush.msra.mxu0 0.0
    %1889 = vmatpush.msra.mxu0 0.0
    %1890 = vmatpush.msra.mxu0 0.0
    %1891 = vmatpush.msra.mxu0 0.0
    %1892 = vmatpush.msra.mxu0 0.0
    %1893 = vmatpush.msra.mxu0 0.0
    %1894 = vmatpush.msra.mxu0 %v1849
    %1895 = vmatpush.msra.mxu0 %v1848
    %1896 = vmatpush.msra.mxu0 %v1847
    %1897 = vmatpush.msra.mxu0 %v1846
    %1898 = vmatmul.f32.gmra.mxu0 %v1880
    %v1899 = vpop.f32.mrf.mxu0
    %v1900 = vadd.f32 %v1877, %v1899
    %1901 = vdwg.mxu0
    %v1902 = vld [vmem:[%s303] sm:$0xff]
    %v1903 = vld [vmem:[%s303 + $0x8] sm:$0xff]
    %v1904 = vld [vmem:[%s303 + $0x10] sm:$0xff]
    %v1905 = vld [vmem:[%s303 + $0x18] sm:$0xff]
    %v1906 = vld [vmem:[%s308] sm:$0xff]
    %v1907 = vld [vmem:[%s308 + $0x8] sm:$0xff]
    %v1908 = vld [vmem:[%s308 + $0x10] sm:$0xff]
    %v1909 = vld [vmem:[%s308 + $0x18] sm:$0xff]
    %1910 = vmatpush.msra.mxu0 0.0
    %1911 = vmatpush.msra.mxu0 0.0
    %1912 = vmatpush.msra.mxu0 0.0
    %1913 = vmatpush.msra.mxu0 0.0
    %1914 = vmatpush.msra.mxu0 0.0
    %1915 = vmatpush.msra.mxu0 0.0
    %1916 = vmatpush.msra.mxu0 0.0
    %1917 = vmatpush.msra.mxu0 0.0
    %1918 = vmatpush.msra.mxu0 0.0
    %1919 = vmatpush.msra.mxu0 0.0
    %1920 = vmatpush.msra.mxu0 0.0
    %1921 = vmatpush.msra.mxu0 0.0
    %1922 = vmatpush.msra.mxu0 %v1909
    %1923 = vmatpush.msra.mxu0 %v1908
    %1924 = vmatpush.msra.mxu0 %v1907
    %1925 = vmatpush.msra.mxu0 %v1906
    %1926 = vmatmul.f32.gmra.mxu0 %v1857
    %v1927 = vpop.f32.mrf.mxu0
    %v1928 = vadd.f32 0.0, %v1927
    %1929 = vdwg.mxu0
    %1930 = vmatpush.msra.mxu0 0.0
    %1931 = vmatpush.msra.mxu0 0.0
    %1932 = vmatpush.msra.mxu0 0.0
    %1933 = vmatpush.msra.mxu0 0.0
    %1934 = vmatpush.msra.mxu0 0.0
    %1935 = vmatpush.msra.mxu0 0.0
    %1936 = vmatpush.msra.mxu0 0.0
    %1937 = vmatpush.msra.mxu0 0.0
    %1938 = vmatpush.msra.mxu0 0.0
    %1939 = vmatpush.msra.mxu0 0.0
    %1940 = vmatpush.msra.mxu0 0.0
    %1941 = vmatpush.msra.mxu0 0.0
    %1942 = vmatpush.msra.mxu0 %v1905
    %1943 = vmatpush.msra.mxu0 %v1904
    %1944 = vmatpush.msra.mxu0 %v1903
    %1945 = vmatpush.msra.mxu0 %v1902
    %1946 = vmatmul.f32.gmra.mxu0 %v1880
    %v1947 = vpop.f32.mrf.mxu0
    %v1948 = vadd.f32 %v1928, %v1947
    %1949 = vdwg.mxu0
    %v1950 = vld [vmem:[%s353] sm:$0xff]
    %v1951 = vld [vmem:[%s353 + $0x8] sm:$0xff]
    %v1952 = vld [vmem:[%s353 + $0x10] sm:$0xff]
    %v1953 = vld [vmem:[%s353 + $0x18] sm:$0xff]
    %v1954 = vld [vmem:[%s358] sm:$0xff]
    %v1955 = vld [vmem:[%s358 + $0x8] sm:$0xff]
    %v1956 = vld [vmem:[%s358 + $0x10] sm:$0xff]
    %v1957 = vld [vmem:[%s358 + $0x18] sm:$0xff]
    %1958 = vmatpush.msra.mxu0 0.0
    %1959 = vmatpush.msra.mxu0 0.0
    %1960 = vmatpush.msra.mxu0 0.0
    %1961 = vmatpush.msra.mxu0 0.0
    %1962 = vmatpush.msra.mxu0 0.0
    %1963 = vmatpush.msra.mxu0 0.0
    %1964 = vmatpush.msra.mxu0 0.0
    %1965 = vmatpush.msra.mxu0 0.0
    %1966 = vmatpush.msra.mxu0 0.0
    %1967 = vmatpush.msra.mxu0 0.0
    %1968 = vmatpush.msra.mxu0 0.0
    %1969 = vmatpush.msra.mxu0 0.0
    %1970 = vmatpush.msra.mxu0 %v1957
    %1971 = vmatpush.msra.mxu0 %v1956
    %1972 = vmatpush.msra.mxu0 %v1955
    %1973 = vmatpush.msra.mxu0 %v1954
    %1974 = vmatmul.f32.gmra.mxu0 %v1857
    %v1975 = vpop.f32.mrf.mxu0
    %v1976 = vadd.f32 0.0, %v1975
    %1977 = vdwg.mxu0
    %1978 = vmatpush.msra.mxu0 0.0
    %1979 = vmatpush.msra.mxu0 0.0
    %1980 = vmatpush.msra.mxu0 0.0
    %1981 = vmatpush.msra.mxu0 0.0
    %1982 = vmatpush.msra.mxu0 0.0
    %1983 = vmatpush.msra.mxu0 0.0
    %1984 = vmatpush.msra.mxu0 0.0
    %1985 = vmatpush.msra.mxu0 0.0
    %1986 = vmatpush.msra.mxu0 0.0
    %1987 = vmatpush.msra.mxu0 0.0
    %1988 = vmatpush.msra.mxu0 0.0
    %1989 = vmatpush.msra.mxu0 0.0
    %1990 = vmatpush.msra.mxu0 %v1953
    %1991 = vmatpush.msra.mxu0 %v1952
    %1992 = vmatpush.msra.mxu0 %v1951
    %1993 = vmatpush.msra.mxu0 %v1950
    %1994 = vmatmul.f32.gmra.mxu0 %v1880
    %v1995 = vpop.f32.mrf.mxu0
    %v1996 = vadd.f32 %v1976, %v1995
    %1997 = vdwg.mxu0
    %v1998 = vld [vmem:[%s8] sm:$0xff]
    %v1999 = vld [vmem:[%s8 + $0x8] sm:$0xff]
    %v2000 = vld [vmem:[%s8 + $0x10] sm:$0xff]
    %v2001 = vld [vmem:[%s8 + $0x18] sm:$0xff]
    %2002 = vmatpush.msra.mxu0 0.0
    %2003 = vmatpush.msra.mxu0 0.0
    %2004 = vmatpush.msra.mxu0 0.0
    %2005 = vmatpush.msra.mxu0 0.0
    %2006 = vmatpush.msra.mxu0 0.0
    %2007 = vmatpush.msra.mxu0 0.0
    %2008 = vmatpush.msra.mxu0 0.0
    %2009 = vmatpush.msra.mxu0 0.0
    %2010 = vmatpush.msra.mxu0 0.0
    %2011 = vmatpush.msra.mxu0 0.0
    %2012 = vmatpush.msra.mxu0 0.0
    %2013 = vmatpush.msra.mxu0 0.0
    %2014 = vmatpush.msra.mxu0 %v2001
    %2015 = vmatpush.msra.mxu0 %v2000
    %2016 = vmatpush.msra.mxu0 %v1999
    %2017 = vmatpush.msra.mxu0 %v1998
    %2018 = vmatmul.f32.gmra.mxu0 %v1627
    %v2019 = vpop.f32.mrf.mxu0
    %v2020 = vadd.f32 0.0, %v2019
    %2021 = vdwg.mxu0
    %v2022 = vld [vmem:[%s427] sm:$0xff]
    %v2023 = vld [vmem:[%s427 + $0x8] sm:$0xff]
    %v2024 = vld [vmem:[%s427 + $0x10] sm:$0xff]
    %v2025 = vld [vmem:[%s427 + $0x18] sm:$0xff]
    %2026 = vmatpush.msra.mxu0 0.0
    %2027 = vmatpush.msra.mxu0 0.0
    %2028 = vmatpush.msra.mxu0 0.0
    %2029 = vmatpush.msra.mxu0 0.0
    %2030 = vmatpush.msra.mxu0 0.0
    %2031 = vmatpush.msra.mxu0 0.0
    %2032 = vmatpush.msra.mxu0 0.0
    %2033 = vmatpush.msra.mxu0 0.0
    %2034 = vmatpush.msra.mxu0 0.0
    %2035 = vmatpush.msra.mxu0 0.0
    %2036 = vmatpush.msra.mxu0 0.0
    %2037 = vmatpush.msra.mxu0 0.0
    %2038 = vmatpush.msra.mxu0 %v2025
    %2039 = vmatpush.msra.mxu0 %v2024
    %2040 = vmatpush.msra.mxu0 %v2023
    %2041 = vmatpush.msra.mxu0 %v2022
    %2042 = vmatmul.f32.gmra.mxu0 %v1627
    %v2043 = vpop.f32.mrf.mxu0
    %v2044 = vadd.f32 0.0, %v2043
    %2045 = vdwg.mxu0
    %v2046 = vld [vmem:[%s452] sm:$0xff]
    %v2047 = vld [vmem:[%s452 + $0x8] sm:$0xff]
    %v2048 = vld [vmem:[%s452 + $0x10] sm:$0xff]
    %v2049 = vld [vmem:[%s452 + $0x18] sm:$0xff]
    %v2050 = vadd.f32 %v1900, %v2020
    %v2051 = vld [vmem:[%s9] sm:$0x1]
    %v2053 = vperm.slane %v2051, 0
    %v2055 = vadd.f32 %v2050, %v2053
    %v2056 = vxor.u32 %v2055, 2147483648
    %v2057 = vmul.f32 %v2056, 1.442695
    %v2058 = vpow.pop %v2057
    %v2059 = vadd.f32 %v2058, 1.0
    %v2060 = vrcp.pop %v2059
    %v2061 = vmul.f32 %v2059, %v2060
    %v2062 = vsub.f32 1.0, %v2061
    %v2063 = vmul.f32 %v2060, %v2062
    %v2064 = vadd.f32 %v2060, %v2063
    %vm2065 = vweird.f32 %v2059
    %vm2066 = vweird.f32 %v2060
    %vm2067 = vmor %vm2065, %vm2066
    %v2068 = vsel %vm2067, %v2060, %v2064
    %v2069 = vand.u32 2147483647, %v2059
    %vm2070 = vcmp.eq.f32.partialorder %v2069, 8.507059e+37
    %v2071 = vand.u32 %v2059, 2147483648
    %v2072 = vor.u32 1.1754944e-38, %v2071
    %v2073 = vsel %vm2070, %v2072, %v2068
    %v2074 = vmul.f32 1.0, %v2073
    %v2075 = vadd.f32 %v1948, %v2044
    %v2076 = vld [vmem:[%s483] sm:$0x1]
    %v2078 = vperm.slane %v2076, 0
    %v2080 = vadd.f32 %v2075, %v2078
    %v2081 = vxor.u32 %v2080, 2147483648
    %v2082 = vmul.f32 %v2081, 1.442695
    %v2083 = vpow.pop %v2082
    %v2084 = vadd.f32 %v2083, 1.0
    %v2085 = vrcp.pop %v2084
    %v2086 = vmul.f32 %v2084, %v2085
    %v2087 = vsub.f32 1.0, %v2086
    %v2088 = vmul.f32 %v2085, %v2087
    %v2089 = vadd.f32 %v2085, %v2088
    %vm2090 = vweird.f32 %v2084
    %vm2091 = vweird.f32 %v2085
    %vm2092 = vmor %vm2090, %vm2091
    %v2093 = vsel %vm2092, %v2085, %v2089
    %v2094 = vand.u32 2147483647, %v2084
    %vm2095 = vcmp.eq.f32.partialorder %v2094, 8.507059e+37
    %v2096 = vand.u32 %v2084, 2147483648
    %v2097 = vor.u32 1.1754944e-38, %v2096
    %v2098 = vsel %vm2095, %v2097, %v2093
    %v2099 = vmul.f32 1.0, %v2098
    %v2100 = vld [vmem:[%s508] sm:$0x1]
    %v2102 = vperm.slane %v2100, 0
    %v2104 = vadd.f32 %v1996, %v2102
    %v2105 = vld [vmem:[%s10] sm:$0x1]
    %v2107 = vperm.slane %v2105, 0
    %2109 = vmatpush.msra.mxu0 0.0
    %2110 = vmatpush.msra.mxu0 0.0
    %2111 = vmatpush.msra.mxu0 0.0
    %2112 = vmatpush.msra.mxu0 0.0
    %2113 = vmatpush.msra.mxu0 0.0
    %2114 = vmatpush.msra.mxu0 0.0
    %2115 = vmatpush.msra.mxu0 0.0
    %2116 = vmatpush.msra.mxu0 0.0
    %2117 = vmatpush.msra.mxu0 0.0
    %2118 = vmatpush.msra.mxu0 0.0
    %2119 = vmatpush.msra.mxu0 0.0
    %2120 = vmatpush.msra.mxu0 0.0
    %2121 = vmatpush.msra.mxu0 %v2049
    %2122 = vmatpush.msra.mxu0 %v2048
    %2123 = vmatpush.msra.mxu0 %v2047
    %2124 = vmatpush.msra.mxu0 %v2046
    %2125 = vmatmul.f32.gmra.mxu0 %v1627
    %v2126 = vpop.f32.mrf.mxu0
    %v2127 = vadd.f32 %v2107, %v2126
    %2128 = vdwg.mxu0
    %v2129 = vmul.f32 %v2074, %v2127
    %v2130 = vadd.f32 %v2104, %v2129
    %v2131 = vtanh.pop %v2130
    %v2132 = vsub.f32 1.0, %v2099
    %v2133 = vmul.f32 %v2132, %v2131
    %v2134 = vmul.f32 %v2099, %v1605
    %v2135 = vadd.f32 %v2133, %v2134
    %2136 = vmatpush.msra.mxu0 0.0
    %2137 = vmatpush.msra.mxu0 0.0
    %2138 = vmatpush.msra.mxu0 0.0
    %2139 = vmatpush.msra.mxu0 0.0
    %2140 = vmatpush.msra.mxu0 0.0
    %2141 = vmatpush.msra.mxu0 0.0
    %2142 = vmatpush.msra.mxu0 0.0
    %2143 = vmatpush.msra.mxu0 0.0
    %2144 = vmatpush.msra.mxu0 0.0
    %2145 = vmatpush.msra.mxu0 0.0
    %2146 = vmatpush.msra.mxu0 0.0
    %2147 = vmatpush.msra.mxu0 0.0
    %2148 = vmatpush.msra.mxu0 %v77
    %2149 = vmatpush.msra.mxu0 %v76
    %2150 = vmatpush.msra.mxu0 %v75
    %2151 = vmatpush.msra.mxu0 %v74
    %2152 = vmatmul.f32.gmra.mxu0 %v1857
    %v2153 = vpop.f32.mrf.mxu0
    %v2154 = vadd.f32 0.0, %v2153
    %2155 = vdwg.mxu0
    %v2157 = vsel %vm118, %v2135, 0
    %2159 = vmatpush.msra.mxu0 0.0
    %2160 = vmatpush.msra.mxu0 0.0
    %2161 = vmatpush.msra.mxu0 0.0
    %2162 = vmatpush.msra.mxu0 0.0
    %2163 = vmatpush.msra.mxu0 0.0
    %2164 = vmatpush.msra.mxu0 0.0
    %2165 = vmatpush.msra.mxu0 0.0
    %2166 = vmatpush.msra.mxu0 0.0
    %2167 = vmatpush.msra.mxu0 0.0
    %2168 = vmatpush.msra.mxu0 0.0
    %2169 = vmatpush.msra.mxu0 0.0
    %2170 = vmatpush.msra.mxu0 0.0
    %2171 = vmatpush.msra.mxu0 %v73
    %2172 = vmatpush.msra.mxu0 %v72
    %2173 = vmatpush.msra.mxu0 %v71
    %2174 = vmatpush.msra.mxu0 %v70
    %2175 = vmatmul.f32.gmra.mxu0 %v2157
    %v2176 = vpop.f32.mrf.mxu0
    %v2177 = vadd.f32 %v2154, %v2176
    %2178 = vdwg.mxu0
    %2179 = vmatpush.msra.mxu0 0.0
    %2180 = vmatpush.msra.mxu0 0.0
    %2181 = vmatpush.msra.mxu0 0.0
    %2182 = vmatpush.msra.mxu0 0.0
    %2183 = vmatpush.msra.mxu0 0.0
    %2184 = vmatpush.msra.mxu0 0.0
    %2185 = vmatpush.msra.mxu0 0.0
    %2186 = vmatpush.msra.mxu0 0.0
    %2187 = vmatpush.msra.mxu0 0.0
    %2188 = vmatpush.msra.mxu0 0.0
    %2189 = vmatpush.msra.mxu0 0.0
    %2190 = vmatpush.msra.mxu0 0.0
    %2191 = vmatpush.msra.mxu0 %v81
    %2192 = vmatpush.msra.mxu0 %v80
    %2193 = vmatpush.msra.mxu0 %v79
    %2194 = vmatpush.msra.mxu0 %v78
    %2195 = vmatmul.f32.gmra.mxu0 %v1880
    %v2196 = vpop.f32.mrf.mxu0
    %v2197 = vadd.f32 0.0, %v2196
    %2198 = vdwg.mxu0
    %v2199 = vadd.f32 %v2177, %v2197
    %v2200 = vadd.f32 %v2199, %v610
    %s2201 = scalar_lea.vmem %s17, 6
    %2202 = vst.msk [vmem:[%s2201] sm:$0x3] %vm613, %v2200
    %v2203 = vperm.slane %v1823, %v84
    %v2204 = vperm.slane %v1828, %v84
    %v2205 = vsel %vm167, %v2204, %v2203
    %s2207 = scalar_lea.vmem [#allocation2], 6
    %2208 = vst.msk [vmem:[%s2207] sm:$0x3] %vm170, %v2205
    %v2209 = vsel %vm613, %v2200, -inf
    %2210 = vmax.xlane.f32.xlu0 %v2209
    %v2211 = vpop.xlane.xlu0 %2210
    %vm2212 = vcmp.eq.f32.partialorder %v2200, %v2211
    %v2213 = vsel %vm2212, %v85, 16.0
    %v2214 = vsel %vm613, %v2213, inf
    %2215 = vmin.xlane.f32.xlu0 %v2214
    %v2216 = vpop.xlane.xlu0 %2215
    %v2217 = vcvt.f32.s32.to.zero.pseudo %v2216
    %s2218 = scalar_lea.vmem %s16, 3
    %v2219 = vld [vmem:[%s2218] sm:$0x1]
    %vm2220 = vcmp.gt.s32.totalorder %v2219, 0
    %s2221 = scalar_lea.vmem %s15, 8
    %v2222 = vld [vmem:[%s2221] sm:$0x3]
    %v2223 = vsel %vm2220, 1, 0
    %v2224 = vperm.slane %v2223, 0
    %vm2225 = vcmp.eq.s32.totalorder %v2224, 1
    %v2226 = vsel %vm2225, %v2222, %v2217
    %2227 = vset.pattern.permute.xlu0 0
    %2228 = vperm.xlu0 %2227, %v2226
    %v2229 = vpop.permute.xlu0 %2228
    %vm2230 = vcmp.eq.s32.totalorder %v2229, %v84
    %v2231 = vsel %vm2230, 1, 0
    %v2232 = vcvt.s32.f32 %v2231
    %v2234 = vsel %vm94, %v2232, 0
    %2236 = vmatpush.msra.mxu0 0.0
    %2237 = vmatpush.msra.mxu0 0.0
    %2238 = vmatpush.msra.mxu0 0.0
    %2239 = vmatpush.msra.mxu0 0.0
    %2240 = vmatpush.msra.mxu0 0.0
    %2241 = vmatpush.msra.mxu0 0.0
    %2242 = vmatpush.msra.mxu0 0.0
    %2243 = vmatpush.msra.mxu0 0.0
    %2244 = vmatpush.msra.mxu0 0.0
    %2245 = vmatpush.msra.mxu0 0.0
    %2246 = vmatpush.msra.mxu0 0.0
    %2247 = vmatpush.msra.mxu0 0.0
    %2248 = vmatpush.msra.mxu0 0.0
    %2249 = vmatpush.msra.mxu0 0.0
    %2250 = vmatpush.msra.mxu0 %v69
    %2251 = vmatpush.msra.mxu0 %v68
    %2252 = vmatmul.f32.gmra.mxu0 %v2234
    %v2253 = vpop.f32.mrf.mxu0
    %v2254 = vadd.f32 0.0, %v2253
    %2255 = vdwg.mxu0
    %2256 = vmatpush.msra.mxu0 0.0
    %2257 = vmatpush.msra.mxu0 0.0
    %2258 = vmatpush.msra.mxu0 0.0
    %2259 = vmatpush.msra.mxu0 0.0
    %2260 = vmatpush.msra.mxu0 0.0
    %2261 = vmatpush.msra.mxu0 0.0
    %2262 = vmatpush.msra.mxu0 0.0
    %2263 = vmatpush.msra.mxu0 0.0
    %2264 = vmatpush.msra.mxu0 0.0
    %2265 = vmatpush.msra.mxu0 0.0
    %2266 = vmatpush.msra.mxu0 0.0
    %2267 = vmatpush.msra.mxu0 0.0
    %2268 = vmatpush.msra.mxu0 %v66
    %2269 = vmatpush.msra.mxu0 %v65
    %2270 = vmatpush.msra.mxu0 %v64
    %2271 = vmatpush.msra.mxu0 %v63
    %2272 = vmatmul.f32.gmra.mxu0 %v2157
    %v2273 = vpop.f32.mrf.mxu0
    %v2274 = vadd.f32 0.0, %v2273
    %2275 = vdwg.mxu0
    %v2277 = vrot.slane %v2274, 1
    %v2278 = vperm.slane %v2274, 0
    %v2279 = vperm.slane %v2277, 0
    %v2282 = vadd.f32 %v2278, %v61
    %v2283 = vadd.f32 %v2279, %v62
    %v2284 = vtanh.pop %v2282
    %v2285 = vtanh.pop %v2283
    %v2286 = vmul.f32 %v2284, %v153
    %v2287 = vmul.f32 %v2285, %v153
    %v2288 = vsel %vm118, %v2286, 0.0
    %2289 = vadd.xlane.f32.xlu0 %v2288
    %v2290 = vpop.xlane.xlu0 %2289
    %v2291 = vsel %vm118, %v2287, 0.0
    %2292 = vadd.xlane.f32.xlu0 %v2291
    %v2293 = vpop.xlane.xlu0 %2292
    %v2296 = vperm.slane %v2290, %v84
    %v2297 = vperm.slane %v2293, %v84
    %v2298 = vsel %vm167, %v2297, %v2296
    %v2300 = vsel %vm170, %v2298, -inf
    %2301 = vmax.xlane.f32.xlu0 %v2300
    %v2302 = vpop.xlane.xlu0 %2301
    %v2304 = vperm.slane %v2302, 0
    %v2305 = vperm.slane %v2302, 1
    %v2308 = vsub.f32 %v2290, %v2304
    %v2309 = vsub.f32 %v2293, %v2305
    %v2310 = vmul.f32 %v2308, 1.442695
    %v2311 = vpow.pop %v2310
    %v2312 = vmul.f32 %v2309, 1.442695
    %v2313 = vpow.pop %v2312
    %2316 = vset.pattern.permute.xlu0 0
    %2317 = vperm.xlu0 %2316, %v2311
    %v2318 = vpop.permute.xlu0 %2317
    %2319 = vset.pattern.permute.xlu0 0
    %2320 = vperm.xlu0 %2319, %v2313
    %v2321 = vpop.permute.xlu0 %2320
    %v2322 = vperm.slane %v2318, %v84
    %v2323 = vperm.slane %v2321, %v84
    %v2324 = vsel %vm167, %v2323, %v2322
    %v2326 = vsel %vm170, %v2324, 0.0
    %2327 = vadd.xlane.f32.xlu0 %v2326
    %v2328 = vpop.xlane.xlu0 %2327
    %v2329 = vrcp.pop %v2328
    %v2330 = vmul.f32 %v2328, %v2329
    %v2331 = vsub.f32 1.0, %v2330
    %v2332 = vmul.f32 %v2329, %v2331
    %v2333 = vadd.f32 %v2329, %v2332
    %vm2334 = vweird.f32 %v2328
    %vm2335 = vweird.f32 %v2329
    %vm2336 = vmor %vm2334, %vm2335
    %v2337 = vsel %vm2336, %v2329, %v2333
    %v2338 = vand.u32 2147483647, %v2328
    %vm2339 = vcmp.eq.f32.partialorder %v2338, 8.507059e+37
    %v2340 = vand.u32 %v2328, 2147483648
    %v2341 = vor.u32 1.1754944e-38, %v2340
    %v2342 = vsel %vm2339, %v2341, %v2337
    %v2344 = vperm.slane %v2342, 0
    %v2345 = vperm.slane %v2342, 1
    %v2348 = vmul.f32 %v2311, %v2344
    %v2349 = vmul.f32 %v2313, %v2345
    %2351 = vset.pattern.permute.xlu0 0
    %2352 = vperm.xlu0 %2351, %v2348
    %v2353 = vpop.permute.xlu0 %2352
    %2356 = vset.pattern.permute.xlu0 0
    %2357 = vperm.xlu0 %2356, %v2349
    %v2358 = vpop.permute.xlu0 %2357
    %v2360 = vmul.f32 %v2353, %v59
    %v2361 = vmul.f32 %v2358, %v60
    %v2362 = vsel %vm118, %v2360, 0.0
    %v2363 = vrot.slane %v2362, 4
    %v2364 = vadd.f32 %v2362, %v2363
    %v2365 = vrot.slane %v2364, 2
    %v2366 = vadd.f32 %v2364, %v2365
    %v2367 = vrot.slane %v2366, 1
    %v2368 = vadd.f32 %v2366, %v2367
    %v2369 = vsel %vm118, %v2361, 0.0
    %v2370 = vrot.slane %v2369, 4
    %v2371 = vadd.f32 %v2369, %v2370
    %v2372 = vrot.slane %v2371, 2
    %v2373 = vadd.f32 %v2371, %v2372
    %v2374 = vrot.slane %v2373, 1
    %v2375 = vadd.f32 %v2373, %v2374
    %v2376 = vld [vmem:[%s6] sm:$0xff]
    %v2377 = vld [vmem:[%s6 + $0x8] sm:$0xff]
    %v2378 = vld [vmem:[%s6 + $0x10] sm:$0xff]
    %v2379 = vld [vmem:[%s6 + $0x18] sm:$0xff]
    %v2380 = vld [vmem:[%s7] sm:$0xff]
    %v2381 = vld [vmem:[%s7 + $0x8] sm:$0xff]
    %v2382 = vld [vmem:[%s7 + $0x10] sm:$0xff]
    %v2383 = vld [vmem:[%s7 + $0x18] sm:$0xff]
    %v2386 = vsel %vm167, %v2375, %v2368
    %v2387 = vsel %vm118, %v2386, 0
    %2389 = vmatpush.msra.mxu0 0.0
    %2390 = vmatpush.msra.mxu0 0.0
    %2391 = vmatpush.msra.mxu0 0.0
    %2392 = vmatpush.msra.mxu0 0.0
    %2393 = vmatpush.msra.mxu0 0.0
    %2394 = vmatpush.msra.mxu0 0.0
    %2395 = vmatpush.msra.mxu0 0.0
    %2396 = vmatpush.msra.mxu0 0.0
    %2397 = vmatpush.msra.mxu0 0.0
    %2398 = vmatpush.msra.mxu0 0.0
    %2399 = vmatpush.msra.mxu0 0.0
    %2400 = vmatpush.msra.mxu0 0.0
    %2401 = vmatpush.msra.mxu0 %v2383
    %2402 = vmatpush.msra.mxu0 %v2382
    %2403 = vmatpush.msra.mxu0 %v2381
    %2404 = vmatpush.msra.mxu0 %v2380
    %2405 = vmatmul.f32.gmra.mxu0 %v2387
    %v2406 = vpop.f32.mrf.mxu0
    %v2407 = vadd.f32 0.0, %v2406
    %2408 = vdwg.mxu0
    %v2410 = vsel %vm118, %v2254, 0
    %2412 = vmatpush.msra.mxu0 0.0
    %2413 = vmatpush.msra.mxu0 0.0
    %2414 = vmatpush.msra.mxu0 0.0
    %2415 = vmatpush.msra.mxu0 0.0
    %2416 = vmatpush.msra.mxu0 0.0
    %2417 = vmatpush.msra.mxu0 0.0
    %2418 = vmatpush.msra.mxu0 0.0
    %2419 = vmatpush.msra.mxu0 0.0
    %2420 = vmatpush.msra.mxu0 0.0
    %2421 = vmatpush.msra.mxu0 0.0
    %2422 = vmatpush.msra.mxu0 0.0
    %2423 = vmatpush.msra.mxu0 0.0
    %2424 = vmatpush.msra.mxu0 %v2379
    %2425 = vmatpush.msra.mxu0 %v2378
    %2426 = vmatpush.msra.mxu0 %v2377
    %2427 = vmatpush.msra.mxu0 %v2376
    %2428 = vmatmul.f32.gmra.mxu0 %v2410
    %v2429 = vpop.f32.mrf.mxu0
    %v2430 = vadd.f32 %v2407, %v2429
    %2431 = vdwg.mxu0
    %v2432 = vld [vmem:[%s303] sm:$0xff]
    %v2433 = vld [vmem:[%s303 + $0x8] sm:$0xff]
    %v2434 = vld [vmem:[%s303 + $0x10] sm:$0xff]
    %v2435 = vld [vmem:[%s303 + $0x18] sm:$0xff]
    %v2436 = vld [vmem:[%s308] sm:$0xff]
    %v2437 = vld [vmem:[%s308 + $0x8] sm:$0xff]
    %v2438 = vld [vmem:[%s308 + $0x10] sm:$0xff]
    %v2439 = vld [vmem:[%s308 + $0x18] sm:$0xff]
    %2440 = vmatpush.msra.mxu0 0.0
    %2441 = vmatpush.msra.mxu0 0.0
    %2442 = vmatpush.msra.mxu0 0.0
    %2443 = vmatpush.msra.mxu0 0.0
    %2444 = vmatpush.msra.mxu0 0.0
    %2445 = vmatpush.msra.mxu0 0.0
    %2446 = vmatpush.msra.mxu0 0.0
    %2447 = vmatpush.msra.mxu0 0.0
    %2448 = vmatpush.msra.mxu0 0.0
    %2449 = vmatpush.msra.mxu0 0.0
    %2450 = vmatpush.msra.mxu0 0.0
    %2451 = vmatpush.msra.mxu0 0.0
    %2452 = vmatpush.msra.mxu0 %v2439
    %2453 = vmatpush.msra.mxu0 %v2438
    %2454 = vmatpush.msra.mxu0 %v2437
    %2455 = vmatpush.msra.mxu0 %v2436
    %2456 = vmatmul.f32.gmra.mxu0 %v2387
    %v2457 = vpop.f32.mrf.mxu0
    %v2458 = vadd.f32 0.0, %v2457
    %2459 = vdwg.mxu0
    %2460 = vmatpush.msra.mxu0 0.0
    %2461 = vmatpush.msra.mxu0 0.0
    %2462 = vmatpush.msra.mxu0 0.0
    %2463 = vmatpush.msra.mxu0 0.0
    %2464 = vmatpush.msra.mxu0 0.0
    %2465 = vmatpush.msra.mxu0 0.0
    %2466 = vmatpush.msra.mxu0 0.0
    %2467 = vmatpush.msra.mxu0 0.0
    %2468 = vmatpush.msra.mxu0 0.0
    %2469 = vmatpush.msra.mxu0 0.0
    %2470 = vmatpush.msra.mxu0 0.0
    %2471 = vmatpush.msra.mxu0 0.0
    %2472 = vmatpush.msra.mxu0 %v2435
    %2473 = vmatpush.msra.mxu0 %v2434
    %2474 = vmatpush.msra.mxu0 %v2433
    %2475 = vmatpush.msra.mxu0 %v2432
    %2476 = vmatmul.f32.gmra.mxu0 %v2410
    %v2477 = vpop.f32.mrf.mxu0
    %v2478 = vadd.f32 %v2458, %v2477
    %2479 = vdwg.mxu0
    %v2480 = vld [vmem:[%s353] sm:$0xff]
    %v2481 = vld [vmem:[%s353 + $0x8] sm:$0xff]
    %v2482 = vld [vmem:[%s353 + $0x10] sm:$0xff]
    %v2483 = vld [vmem:[%s353 + $0x18] sm:$0xff]
    %v2484 = vld [vmem:[%s358] sm:$0xff]
    %v2485 = vld [vmem:[%s358 + $0x8] sm:$0xff]
    %v2486 = vld [vmem:[%s358 + $0x10] sm:$0xff]
    %v2487 = vld [vmem:[%s358 + $0x18] sm:$0xff]
    %2488 = vmatpush.msra.mxu0 0.0
    %2489 = vmatpush.msra.mxu0 0.0
    %2490 = vmatpush.msra.mxu0 0.0
    %2491 = vmatpush.msra.mxu0 0.0
    %2492 = vmatpush.msra.mxu0 0.0
    %2493 = vmatpush.msra.mxu0 0.0
    %2494 = vmatpush.msra.mxu0 0.0
    %2495 = vmatpush.msra.mxu0 0.0
    %2496 = vmatpush.msra.mxu0 0.0
    %2497 = vmatpush.msra.mxu0 0.0
    %2498 = vmatpush.msra.mxu0 0.0
    %2499 = vmatpush.msra.mxu0 0.0
    %2500 = vmatpush.msra.mxu0 %v2487
    %2501 = vmatpush.msra.mxu0 %v2486
    %2502 = vmatpush.msra.mxu0 %v2485
    %2503 = vmatpush.msra.mxu0 %v2484
    %2504 = vmatmul.f32.gmra.mxu0 %v2387
    %v2505 = vpop.f32.mrf.mxu0
    %v2506 = vadd.f32 0.0, %v2505
    %2507 = vdwg.mxu0
    %2508 = vmatpush.msra.mxu0 0.0
    %2509 = vmatpush.msra.mxu0 0.0
    %2510 = vmatpush.msra.mxu0 0.0
    %2511 = vmatpush.msra.mxu0 0.0
    %2512 = vmatpush.msra.mxu0 0.0
    %2513 = vmatpush.msra.mxu0 0.0
    %2514 = vmatpush.msra.mxu0 0.0
    %2515 = vmatpush.msra.mxu0 0.0
    %2516 = vmatpush.msra.mxu0 0.0
    %2517 = vmatpush.msra.mxu0 0.0
    %2518 = vmatpush.msra.mxu0 0.0
    %2519 = vmatpush.msra.mxu0 0.0
    %2520 = vmatpush.msra.mxu0 %v2483
    %2521 = vmatpush.msra.mxu0 %v2482
    %2522 = vmatpush.msra.mxu0 %v2481
    %2523 = vmatpush.msra.mxu0 %v2480
    %2524 = vmatmul.f32.gmra.mxu0 %v2410
    %v2525 = vpop.f32.mrf.mxu0
    %v2526 = vadd.f32 %v2506, %v2525
    %2527 = vdwg.mxu0
    %v2528 = vld [vmem:[%s8] sm:$0xff]
    %v2529 = vld [vmem:[%s8 + $0x8] sm:$0xff]
    %v2530 = vld [vmem:[%s8 + $0x10] sm:$0xff]
    %v2531 = vld [vmem:[%s8 + $0x18] sm:$0xff]
    %2532 = vmatpush.msra.mxu0 0.0
    %2533 = vmatpush.msra.mxu0 0.0
    %2534 = vmatpush.msra.mxu0 0.0
    %2535 = vmatpush.msra.mxu0 0.0
    %2536 = vmatpush.msra.mxu0 0.0
    %2537 = vmatpush.msra.mxu0 0.0
    %2538 = vmatpush.msra.mxu0 0.0
    %2539 = vmatpush.msra.mxu0 0.0
    %2540 = vmatpush.msra.mxu0 0.0
    %2541 = vmatpush.msra.mxu0 0.0
    %2542 = vmatpush.msra.mxu0 0.0
    %2543 = vmatpush.msra.mxu0 0.0
    %2544 = vmatpush.msra.mxu0 %v2531
    %2545 = vmatpush.msra.mxu0 %v2530
    %2546 = vmatpush.msra.mxu0 %v2529
    %2547 = vmatpush.msra.mxu0 %v2528
    %2548 = vmatmul.f32.gmra.mxu0 %v2157
    %v2549 = vpop.f32.mrf.mxu0
    %v2550 = vadd.f32 0.0, %v2549
    %2551 = vdwg.mxu0
    %v2552 = vld [vmem:[%s427] sm:$0xff]
    %v2553 = vld [vmem:[%s427 + $0x8] sm:$0xff]
    %v2554 = vld [vmem:[%s427 + $0x10] sm:$0xff]
    %v2555 = vld [vmem:[%s427 + $0x18] sm:$0xff]
    %2556 = vmatpush.msra.mxu0 0.0
    %2557 = vmatpush.msra.mxu0 0.0
    %2558 = vmatpush.msra.mxu0 0.0
    %2559 = vmatpush.msra.mxu0 0.0
    %2560 = vmatpush.msra.mxu0 0.0
    %2561 = vmatpush.msra.mxu0 0.0
    %2562 = vmatpush.msra.mxu0 0.0
    %2563 = vmatpush.msra.mxu0 0.0
    %2564 = vmatpush.msra.mxu0 0.0
    %2565 = vmatpush.msra.mxu0 0.0
    %2566 = vmatpush.msra.mxu0 0.0
    %2567 = vmatpush.msra.mxu0 0.0
    %2568 = vmatpush.msra.mxu0 %v2555
    %2569 = vmatpush.msra.mxu0 %v2554
    %2570 = vmatpush.msra.mxu0 %v2553
    %2571 = vmatpush.msra.mxu0 %v2552
    %2572 = vmatmul.f32.gmra.mxu0 %v2157
    %v2573 = vpop.f32.mrf.mxu0
    %v2574 = vadd.f32 0.0, %v2573
    %2575 = vdwg.mxu0
    %v2576 = vld [vmem:[%s452] sm:$0xff]
    %v2577 = vld [vmem:[%s452 + $0x8] sm:$0xff]
    %v2578 = vld [vmem:[%s452 + $0x10] sm:$0xff]
    %v2579 = vld [vmem:[%s452 + $0x18] sm:$0xff]
    %v2580 = vadd.f32 %v2430, %v2550
    %v2581 = vld [vmem:[%s9] sm:$0x1]
    %v2583 = vperm.slane %v2581, 0
    %v2585 = vadd.f32 %v2580, %v2583
    %v2586 = vxor.u32 %v2585, 2147483648
    %v2587 = vmul.f32 %v2586, 1.442695
    %v2588 = vpow.pop %v2587
    %v2589 = vadd.f32 %v2588, 1.0
    %v2590 = vrcp.pop %v2589
    %v2591 = vmul.f32 %v2589, %v2590
    %v2592 = vsub.f32 1.0, %v2591
    %v2593 = vmul.f32 %v2590, %v2592
    %v2594 = vadd.f32 %v2590, %v2593
    %vm2595 = vweird.f32 %v2589
    %vm2596 = vweird.f32 %v2590
    %vm2597 = vmor %vm2595, %vm2596
    %v2598 = vsel %vm2597, %v2590, %v2594
    %v2599 = vand.u32 2147483647, %v2589
    %vm2600 = vcmp.eq.f32.partialorder %v2599, 8.507059e+37
    %v2601 = vand.u32 %v2589, 2147483648
    %v2602 = vor.u32 1.1754944e-38, %v2601
    %v2603 = vsel %vm2600, %v2602, %v2598
    %v2604 = vmul.f32 1.0, %v2603
    %v2605 = vadd.f32 %v2478, %v2574
    %v2606 = vld [vmem:[%s483] sm:$0x1]
    %v2608 = vperm.slane %v2606, 0
    %v2610 = vadd.f32 %v2605, %v2608
    %v2611 = vxor.u32 %v2610, 2147483648
    %v2612 = vmul.f32 %v2611, 1.442695
    %v2613 = vpow.pop %v2612
    %v2614 = vadd.f32 %v2613, 1.0
    %v2615 = vrcp.pop %v2614
    %v2616 = vmul.f32 %v2614, %v2615
    %v2617 = vsub.f32 1.0, %v2616
    %v2618 = vmul.f32 %v2615, %v2617
    %v2619 = vadd.f32 %v2615, %v2618
    %vm2620 = vweird.f32 %v2614
    %vm2621 = vweird.f32 %v2615
    %vm2622 = vmor %vm2620, %vm2621
    %v2623 = vsel %vm2622, %v2615, %v2619
    %v2624 = vand.u32 2147483647, %v2614
    %vm2625 = vcmp.eq.f32.partialorder %v2624, 8.507059e+37
    %v2626 = vand.u32 %v2614, 2147483648
    %v2627 = vor.u32 1.1754944e-38, %v2626
    %v2628 = vsel %vm2625, %v2627, %v2623
    %v2629 = vmul.f32 1.0, %v2628
    %v2630 = vld [vmem:[%s508] sm:$0x1]
    %v2632 = vperm.slane %v2630, 0
    %v2634 = vadd.f32 %v2526, %v2632
    %v2635 = vld [vmem:[%s10] sm:$0x1]
    %v2637 = vperm.slane %v2635, 0
    %2639 = vmatpush.msra.mxu0 0.0
    %2640 = vmatpush.msra.mxu0 0.0
    %2641 = vmatpush.msra.mxu0 0.0
    %2642 = vmatpush.msra.mxu0 0.0
    %2643 = vmatpush.msra.mxu0 0.0
    %2644 = vmatpush.msra.mxu0 0.0
    %2645 = vmatpush.msra.mxu0 0.0
    %2646 = vmatpush.msra.mxu0 0.0
    %2647 = vmatpush.msra.mxu0 0.0
    %2648 = vmatpush.msra.mxu0 0.0
    %2649 = vmatpush.msra.mxu0 0.0
    %2650 = vmatpush.msra.mxu0 0.0
    %2651 = vmatpush.msra.mxu0 %v2579
    %2652 = vmatpush.msra.mxu0 %v2578
    %2653 = vmatpush.msra.mxu0 %v2577
    %2654 = vmatpush.msra.mxu0 %v2576
    %2655 = vmatmul.f32.gmra.mxu0 %v2157
    %v2656 = vpop.f32.mrf.mxu0
    %v2657 = vadd.f32 %v2637, %v2656
    %2658 = vdwg.mxu0
    %v2659 = vmul.f32 %v2604, %v2657
    %v2660 = vadd.f32 %v2634, %v2659
    %v2661 = vtanh.pop %v2660
    %v2662 = vsub.f32 1.0, %v2629
    %v2663 = vmul.f32 %v2662, %v2661
    %v2664 = vmul.f32 %v2629, %v2135
    %v2665 = vadd.f32 %v2663, %v2664
    %2666 = vmatpush.msra.mxu0 0.0
    %2667 = vmatpush.msra.mxu0 0.0
    %2668 = vmatpush.msra.mxu0 0.0
    %2669 = vmatpush.msra.mxu0 0.0
    %2670 = vmatpush.msra.mxu0 0.0
    %2671 = vmatpush.msra.mxu0 0.0
    %2672 = vmatpush.msra.mxu0 0.0
    %2673 = vmatpush.msra.mxu0 0.0
    %2674 = vmatpush.msra.mxu0 0.0
    %2675 = vmatpush.msra.mxu0 0.0
    %2676 = vmatpush.msra.mxu0 0.0
    %2677 = vmatpush.msra.mxu0 0.0
    %2678 = vmatpush.msra.mxu0 %v77
    %2679 = vmatpush.msra.mxu0 %v76
    %2680 = vmatpush.msra.mxu0 %v75
    %2681 = vmatpush.msra.mxu0 %v74
    %2682 = vmatmul.f32.gmra.mxu0 %v2387
    %v2683 = vpop.f32.mrf.mxu0
    %v2684 = vadd.f32 0.0, %v2683
    %2685 = vdwg.mxu0
    %v2687 = vsel %vm118, %v2665, 0
    %2689 = vmatpush.msra.mxu0 0.0
    %2690 = vmatpush.msra.mxu0 0.0
    %2691 = vmatpush.msra.mxu0 0.0
    %2692 = vmatpush.msra.mxu0 0.0
    %2693 = vmatpush.msra.mxu0 0.0
    %2694 = vmatpush.msra.mxu0 0.0
    %2695 = vmatpush.msra.mxu0 0.0
    %2696 = vmatpush.msra.mxu0 0.0
    %2697 = vmatpush.msra.mxu0 0.0
    %2698 = vmatpush.msra.mxu0 0.0
    %2699 = vmatpush.msra.mxu0 0.0
    %2700 = vmatpush.msra.mxu0 0.0
    %2701 = vmatpush.msra.mxu0 %v73
    %2702 = vmatpush.msra.mxu0 %v72
    %2703 = vmatpush.msra.mxu0 %v71
    %2704 = vmatpush.msra.mxu0 %v70
    %2705 = vmatmul.f32.gmra.mxu0 %v2687
    %v2706 = vpop.f32.mrf.mxu0
    %v2707 = vadd.f32 %v2684, %v2706
    %2708 = vdwg.mxu0
    %2709 = vmatpush.msra.mxu0 0.0
    %2710 = vmatpush.msra.mxu0 0.0
    %2711 = vmatpush.msra.mxu0 0.0
    %2712 = vmatpush.msra.mxu0 0.0
    %2713 = vmatpush.msra.mxu0 0.0
    %2714 = vmatpush.msra.mxu0 0.0
    %2715 = vmatpush.msra.mxu0 0.0
    %2716 = vmatpush.msra.mxu0 0.0
    %2717 = vmatpush.msra.mxu0 0.0
    %2718 = vmatpush.msra.mxu0 0.0
    %2719 = vmatpush.msra.mxu0 0.0
    %2720 = vmatpush.msra.mxu0 0.0
    %2721 = vmatpush.msra.mxu0 %v81
    %2722 = vmatpush.msra.mxu0 %v80
    %2723 = vmatpush.msra.mxu0 %v79
    %2724 = vmatpush.msra.mxu0 %v78
    %2725 = vmatmul.f32.gmra.mxu0 %v2410
    %v2726 = vpop.f32.mrf.mxu0
    %v2727 = vadd.f32 0.0, %v2726
    %2728 = vdwg.mxu0
    %v2729 = vadd.f32 %v2707, %v2727
    %v2730 = vadd.f32 %v2729, %v610
    %s2731 = scalar_lea.vmem %s17, 8
    %2732 = vst.msk [vmem:[%s2731] sm:$0x3] %vm613, %v2730
    %v2733 = vperm.slane %v2353, %v84
    %v2734 = vperm.slane %v2358, %v84
    %v2735 = vsel %vm167, %v2734, %v2733
    %s2737 = scalar_lea.vmem [#allocation2], 8
    %2738 = vst.msk [vmem:[%s2737] sm:$0x3] %vm170, %v2735
    // Predicated region
    $region70: #{seq2seq_forward.3} parent=1 // pred_check
      _
    $region71: #{seq2seq_forward.3} parent=1 // pred_check_branch
      %2740 = sbr.rel (0) target = $region73
    $region72: #{seq2seq_forward.3} parent=1 // pred_region
      _
    $region73: #{seq2seq_forward.3} parent=1 // pred_fallthru
      _
    // Predicated region
    $region74: #{seq2seq_forward.3} parent=1 // pred_check
      _
    $region75: #{seq2seq_forward.3} parent=1 // pred_check_branch
      %2742 = sbr.rel (0) target = $region77
    $region76: #{seq2seq_forward.3} parent=1 // pred_region
      %2744 = vsyncadd [#allocation3], 0
      %s2745 = sshll.u32 [#allocation2], 4
      %s2746 = int_to_ptr.vmem [resolvable:$true] %s2745
      %s2747 = sshll.u32 %s18, 4
      %s2748 = int_to_ptr.hbm [resolvable:$true] %s2747
      %2753 = dma.vmem_to_hbm [thread:$0]  %s2746, 160, %s2748, [#allocation3], 32, 32, 2
    $region77: #{seq2seq_forward.3} parent=1 // pred_fallthru
      _
    // Predicated region
    $region78: #{seq2seq_forward.3} parent=1 // pred_check
      _
    $region79: #{seq2seq_forward.3} parent=1 // pred_check_branch
      %2755 = sbr.rel (0) target = $region81
    $region80: #{seq2seq_forward.3} parent=1 // pred_region
      _
    $region81: #{seq2seq_forward.3} parent=1 // pred_fallthru
      _
    // Predicated region
    $region82: #{seq2seq_forward.3} parent=1 // pred_check
      _
    $region83: #{seq2seq_forward.3} parent=1 // pred_check_branch
      %2757 = sbr.rel (0) target = $region85
    $region84: #{seq2seq_forward.3} parent=1 // pred_region
      %2759 = dma.done [#allocation3], 160
    $region85: #{seq2seq_forward.3} parent=1 // pred_fallthru
      _
    %2760 = vsyncpa [#allocation3], 1

// kernel: seq2seq_forward.2
$region0: #{seq2seq_forward.2}
  #allocation0 [shape = 'u32[]', space=smem, size = 0x4, offset = 0x4, fixed_abs, tag = 'smem constant byte address 0x4 - core index']
  #allocation1 [shape = 'u32[72,128]{1,0:T(1,128)}', space=vmem, size = 0x9000, scoped, tag = 'internal scratch']
  %s0 = inlined_call_operand.vmem [shape: f32[8,2,32], index: 0, kind: input, shape index: {}]
  %s1 = inlined_call_operand.vmem [shape: f32[3,32,32], index: 1, kind: input, shape index: {}]
  %s2 = inlined_call_operand.vmem [shape: f32[3,32,32], index: 2, kind: input, shape index: {}]
  %s3 = inlined_call_operand.vmem [shape: f32[3,1,32], index: 3, kind: input, shape index: {}]
  %s4 = inlined_call_operand.vmem [shape: f32[1,32], index: 4, kind: input, shape index: {}]
  %s5 = inlined_call_operand.hbm [shape: f32[32,32], index: 5, kind: input, shape index: {}]
  %s6 = inlined_call_operand.vmem [shape: f32[1,32], index: 6, kind: input, shape index: {}]
  %s7 = inlined_call_operand.vmem [shape: f32[8,2,32], index: 7, kind: output, shape index: {0}]
  %s8 = inlined_call_operand.vmem [shape: f32[8,2,32], index: 8, kind: output, shape index: {1}]
  %s9 = inlined_call_operand.vmem [shape: f32[2,32], index: 9, kind: output, shape index: {2}]
  %10 = xla_tuple %s7, %s8, %s9
  %s11 = sld [smem:[#allocation0]]
  $region58: #{seq2seq_forward.2} parent=0
    _
  %s13 = ssub.s32 1, %s11
  %s14 = scalar_select 0, %s13, %s11
  $region1: #{seq2seq_forward.2} parent=0
    #allocation2 [shape = 'u8[16384]{0}', space=vmem, size = 0x4000, scoped, tag = 'input window, operand 5, single buffered']
    #allocation3 [shape = 's32[1]{0}', space=sflag, size = 0x4, scoped, tag = 'scoped memory for seq2seq_forward.2']
    %15 = vsyncpa [#allocation3], 0
    // Predicated region
    $region2: #{seq2seq_forward.2} parent=1 // pred_check
      _
    $region3: #{seq2seq_forward.2} parent=1 // pred_check_branch
      %17 = sbr.rel (0) target = $region5
    $region4: #{seq2seq_forward.2} parent=1 // pred_region
      _
    $region5: #{seq2seq_forward.2} parent=1 // pred_fallthru
      _
    // Predicated region
    $region6: #{seq2seq_forward.2} parent=1 // pred_check
      _
    $region7: #{seq2seq_forward.2} parent=1 // pred_check_branch
      %19 = sbr.rel (0) target = $region9
    $region8: #{seq2seq_forward.2} parent=1 // pred_region
      _
    $region9: #{seq2seq_forward.2} parent=1 // pred_fallthru
      _
    // Predicated region
    $region10: #{seq2seq_forward.2} parent=1 // pred_check
      _
    $region11: #{seq2seq_forward.2} parent=1 // pred_check_branch
      %21 = sbr.rel (0) target = $region13
    $region12: #{seq2seq_forward.2} parent=1 // pred_region
      _
    $region13: #{seq2seq_forward.2} parent=1 // pred_fallthru
      _
    // Predicated region
    $region14: #{seq2seq_forward.2} parent=1 // pred_check
      _
    $region15: #{seq2seq_forward.2} parent=1 // pred_check_branch
      %23 = sbr.rel (0) target = $region17
    $region16: #{seq2seq_forward.2} parent=1 // pred_region
      _
    $region17: #{seq2seq_forward.2} parent=1 // pred_fallthru
      _
    // Predicated region
    $region18: #{seq2seq_forward.2} parent=1 // pred_check
      _
    $region19: #{seq2seq_forward.2} parent=1 // pred_check_branch
      %25 = sbr.rel (0) target = $region21
    $region20: #{seq2seq_forward.2} parent=1 // pred_region
      _
    $region21: #{seq2seq_forward.2} parent=1 // pred_fallthru
      _
    // Predicated region
    $region22: #{seq2seq_forward.2} parent=1 // pred_check
      _
    $region23: #{seq2seq_forward.2} parent=1 // pred_check_branch
      %27 = sbr.rel (0) target = $region25
    $region24: #{seq2seq_forward.2} parent=1 // pred_region
      %29 = vsyncadd [#allocation3], 0
      %s30 = sshll.u32 %s5, 4
      %s31 = int_to_ptr.hbm [resolvable:$true] %s30
      %s32 = sshll.u32 [#allocation2], 4
      %s33 = int_to_ptr.vmem [resolvable:$true] %s32
      %38 = dma.hbm_to_vmem [thread:$0]  %s31, 512, %s33, [#allocation3], 128, 128, 8
    $region25: #{seq2seq_forward.2} parent=1 // pred_fallthru
      _
    // Predicated region
    $region26: #{seq2seq_forward.2} parent=1 // pred_check
      _
    $region27: #{seq2seq_forward.2} parent=1 // pred_check_branch
      %40 = sbr.rel (0) target = $region29
    $region28: #{seq2seq_forward.2} parent=1 // pred_region
      _
    $region29: #{seq2seq_forward.2} parent=1 // pred_fallthru
      _
    // Predicated region
    $region30: #{seq2seq_forward.2} parent=1 // pred_check
      _
    $region31: #{seq2seq_forward.2} parent=1 // pred_check_branch
      %42 = sbr.rel (0) target = $region33
    $region32: #{seq2seq_forward.2} parent=1 // pred_region
      %44 = dma.done [#allocation3], 512
    $region33: #{seq2seq_forward.2} parent=1 // pred_fallthru
      _
    %v45 = vld [vmem:[#allocation2] sm:$0xff]
    %v46 = vld [vmem:[#allocation2 + $0x8] sm:$0xff]
    %v47 = vld [vmem:[#allocation2 + $0x10] sm:$0xff]
    %v48 = vld [vmem:[#allocation2 + $0x18] sm:$0xff]
    %v49 = vld [vmem:[%s6] sm:$0x1]
    %v50 = vld [vmem:[%s0] sm:$0x3]
    %v51 = vld [vmem:[%s1] sm:$0xff]
    %v52 = vld [vmem:[%s1 + $0x8] sm:$0xff]
    %v53 = vld [vmem:[%s1 + $0x10] sm:$0xff]
    %v54 = vld [vmem:[%s1 + $0x18] sm:$0xff]
    %s55 = scalar_lea.vmem %s1, 32
    %v56 = vld [vmem:[%s55] sm:$0xff]
    %v57 = vld [vmem:[%s55 + $0x8] sm:$0xff]
    %v58 = vld [vmem:[%s55 + $0x10] sm:$0xff]
    %v59 = vld [vmem:[%s55 + $0x18] sm:$0xff]
    %s60 = scalar_lea.vmem %s1, 64
    %v61 = vld [vmem:[%s60] sm:$0xff]
    %v62 = vld [vmem:[%s60 + $0x8] sm:$0xff]
    %v63 = vld [vmem:[%s60 + $0x10] sm:$0xff]
    %v64 = vld [vmem:[%s60 + $0x18] sm:$0xff]
    %v65 = vld [vmem:[%s2] sm:$0xff]
    %v66 = vld [vmem:[%s2 + $0x8] sm:$0xff]
    %v67 = vld [vmem:[%s2 + $0x10] sm:$0xff]
    %v68 = vld [vmem:[%s2 + $0x18] sm:$0xff]
    %vm69 = vcmask 261120
    %v71 = vsel %vm69, 0.0, 0
    %73 = vmatpush.msra.mxu0 0.0
    %74 = vmatpush.msra.mxu0 0.0
    %75 = vmatpush.msra.mxu0 0.0
    %76 = vmatpush.msra.mxu0 0.0
    %77 = vmatpush.msra.mxu0 0.0
    %78 = vmatpush.msra.mxu0 0.0
    %79 = vmatpush.msra.mxu0 0.0
    %80 = vmatpush.msra.mxu0 0.0
    %81 = vmatpush.msra.mxu0 0.0
    %82 = vmatpush.msra.mxu0 0.0
    %83 = vmatpush.msra.mxu0 0.0
    %84 = vmatpush.msra.mxu0 0.0
    %85 = vmatpush.msra.mxu0 %v68
    %86 = vmatpush.msra.mxu0 %v67
    %87 = vmatpush.msra.mxu0 %v66
    %88 = vmatpush.msra.mxu0 %v65
    %89 = vmatmul.f32.gmra.mxu0 %v71
    %v90 = vpop.f32.mrf.mxu0
    %v91 = vadd.f32 0.0, %v90
    %92 = vdwg.mxu0
    %s93 = scalar_lea.vmem %s2, 32
    %v94 = vld [vmem:[%s93] sm:$0xff]
    %v95 = vld [vmem:[%s93 + $0x8] sm:$0xff]
    %v96 = vld [vmem:[%s93 + $0x10] sm:$0xff]
    %v97 = vld [vmem:[%s93 + $0x18] sm:$0xff]
    %98 = vmatpush.msra.mxu0 0.0
    %99 = vmatpush.msra.mxu0 0.0
    %100 = vmatpush.msra.mxu0 0.0
    %101 = vmatpush.msra.mxu0 0.0
    %102 = vmatpush.msra.mxu0 0.0
    %103 = vmatpush.msra.mxu0 0.0
    %104 = vmatpush.msra.mxu0 0.0
    %105 = vmatpush.msra.mxu0 0.0
    %106 = vmatpush.msra.mxu0 0.0
    %107 = vmatpush.msra.mxu0 0.0
    %108 = vmatpush.msra.mxu0 0.0
    %109 = vmatpush.msra.mxu0 0.0
    %110 = vmatpush.msra.mxu0 %v97
    %111 = vmatpush.msra.mxu0 %v96
    %112 = vmatpush.msra.mxu0 %v95
    %113 = vmatpush.msra.mxu0 %v94
    %114 = vmatmul.f32.gmra.mxu0 %v71
    %v115 = vpop.f32.mrf.mxu0
    %v116 = vadd.f32 0.0, %v115
    %117 = vdwg.mxu0
    %s118 = scalar_lea.vmem %s2, 64
    %v119 = vld [vmem:[%s118] sm:$0xff]
    %v120 = vld [vmem:[%s118 + $0x8] sm:$0xff]
    %v121 = vld [vmem:[%s118 + $0x10] sm:$0xff]
    %v122 = vld [vmem:[%s118 + $0x18] sm:$0xff]
    %v124 = vsel %vm69, %v50, 0
    %126 = vmatpush.msra.mxu0 0.0
    %127 = vmatpush.msra.mxu0 0.0
    %128 = vmatpush.msra.mxu0 0.0
    %129 = vmatpush.msra.mxu0 0.0
    %130 = vmatpush.msra.mxu0 0.0
    %131 = vmatpush.msra.mxu0 0.0
    %132 = vmatpush.msra.mxu0 0.0
    %133 = vmatpush.msra.mxu0 0.0
    %134 = vmatpush.msra.mxu0 0.0
    %135 = vmatpush.msra.mxu0 0.0
    %136 = vmatpush.msra.mxu0 0.0
    %137 = vmatpush.msra.mxu0 0.0
    %138 = vmatpush.msra.mxu0 %v54
    %139 = vmatpush.msra.mxu0 %v53
    %140 = vmatpush.msra.mxu0 %v52
    %141 = vmatpush.msra.mxu0 %v51
    %142 = vmatmul.f32.gmra.mxu0 %v124
    %v143 = vpop.f32.mrf.mxu0
    %v144 = vadd.f32 %v91, %v143
    %145 = vdwg.mxu0
    %v146 = vld [vmem:[%s3] sm:$0x1]
    %v148 = vperm.slane %v146, 0
    %v150 = vadd.f32 %v144, %v148
    %v151 = vxor.u32 %v150, 2147483648
    %v152 = vmul.f32 %v151, 1.442695
    %v153 = vpow.pop %v152
    %v154 = vadd.f32 %v153, 1.0
    %v155 = vrcp.pop %v154
    %v156 = vmul.f32 %v154, %v155
    %v157 = vsub.f32 1.0, %v156
    %v158 = vmul.f32 %v155, %v157
    %v159 = vadd.f32 %v155, %v158
    %vm160 = vweird.f32 %v154
    %vm161 = vweird.f32 %v155
    %vm162 = vmor %vm160, %vm161
    %v163 = vsel %vm162, %v155, %v159
    %v164 = vand.u32 2147483647, %v154
    %vm165 = vcmp.eq.f32.partialorder %v164, 8.507059e+37
    %v166 = vand.u32 %v154, 2147483648
    %v167 = vor.u32 1.1754944e-38, %v166
    %v168 = vsel %vm165, %v167, %v163
    %v169 = vmul.f32 1.0, %v168
    %170 = vmatpush.msra.mxu0 0.0
    %171 = vmatpush.msra.mxu0 0.0
    %172 = vmatpush.msra.mxu0 0.0
    %173 = vmatpush.msra.mxu0 0.0
    %174 = vmatpush.msra.mxu0 0.0
    %175 = vmatpush.msra.mxu0 0.0
    %176 = vmatpush.msra.mxu0 0.0
    %177 = vmatpush.msra.mxu0 0.0
    %178 = vmatpush.msra.mxu0 0.0
    %179 = vmatpush.msra.mxu0 0.0
    %180 = vmatpush.msra.mxu0 0.0
    %181 = vmatpush.msra.mxu0 0.0
    %182 = vmatpush.msra.mxu0 %v59
    %183 = vmatpush.msra.mxu0 %v58
    %184 = vmatpush.msra.mxu0 %v57
    %185 = vmatpush.msra.mxu0 %v56
    %186 = vmatmul.f32.gmra.mxu0 %v124
    %v187 = vpop.f32.mrf.mxu0
    %v188 = vadd.f32 %v116, %v187
    %189 = vdwg.mxu0
    %s190 = scalar_lea.vmem %s3, 1
    %v191 = vld [vmem:[%s190] sm:$0x1]
    %v193 = vperm.slane %v191, 0
    %v195 = vadd.f32 %v188, %v193
    %v196 = vxor.u32 %v195, 2147483648
    %v197 = vmul.f32 %v196, 1.442695
    %v198 = vpow.pop %v197
    %v199 = vadd.f32 %v198, 1.0
    %v200 = vrcp.pop %v199
    %v201 = vmul.f32 %v199, %v200
    %v202 = vsub.f32 1.0, %v201
    %v203 = vmul.f32 %v200, %v202
    %v204 = vadd.f32 %v200, %v203
    %vm205 = vweird.f32 %v199
    %vm206 = vweird.f32 %v200
    %vm207 = vmor %vm205, %vm206
    %v208 = vsel %vm207, %v200, %v204
    %v209 = vand.u32 2147483647, %v199
    %vm210 = vcmp.eq.f32.partialorder %v209, 8.507059e+37
    %v211 = vand.u32 %v199, 2147483648
    %v212 = vor.u32 1.1754944e-38, %v211
    %v213 = vsel %vm210, %v212, %v208
    %v214 = vmul.f32 1.0, %v213
    %s215 = scalar_lea.vmem %s3, 2
    %v216 = vld [vmem:[%s215] sm:$0x1]
    %v218 = vperm.slane %v216, 0
    %220 = vmatpush.msra.mxu0 0.0
    %221 = vmatpush.msra.mxu0 0.0
    %222 = vmatpush.msra.mxu0 0.0
    %223 = vmatpush.msra.mxu0 0.0
    %224 = vmatpush.msra.mxu0 0.0
    %225 = vmatpush.msra.mxu0 0.0
    %226 = vmatpush.msra.mxu0 0.0
    %227 = vmatpush.msra.mxu0 0.0
    %228 = vmatpush.msra.mxu0 0.0
    %229 = vmatpush.msra.mxu0 0.0
    %230 = vmatpush.msra.mxu0 0.0
    %231 = vmatpush.msra.mxu0 0.0
    %232 = vmatpush.msra.mxu0 %v64
    %233 = vmatpush.msra.mxu0 %v63
    %234 = vmatpush.msra.mxu0 %v62
    %235 = vmatpush.msra.mxu0 %v61
    %236 = vmatmul.f32.gmra.mxu0 %v124
    %v237 = vpop.f32.mrf.mxu0
    %v238 = vadd.f32 %v218, %v237
    %239 = vdwg.mxu0
    %v240 = vld [vmem:[%s4] sm:$0x1]
    %v242 = vperm.slane %v240, 0
    %244 = vmatpush.msra.mxu0 0.0
    %245 = vmatpush.msra.mxu0 0.0
    %246 = vmatpush.msra.mxu0 0.0
    %247 = vmatpush.msra.mxu0 0.0
    %248 = vmatpush.msra.mxu0 0.0
    %249 = vmatpush.msra.mxu0 0.0
    %250 = vmatpush.msra.mxu0 0.0
    %251 = vmatpush.msra.mxu0 0.0
    %252 = vmatpush.msra.mxu0 0.0
    %253 = vmatpush.msra.mxu0 0.0
    %254 = vmatpush.msra.mxu0 0.0
    %255 = vmatpush.msra.mxu0 0.0
    %256 = vmatpush.msra.mxu0 %v122
    %257 = vmatpush.msra.mxu0 %v121
    %258 = vmatpush.msra.mxu0 %v120
    %259 = vmatpush.msra.mxu0 %v119
    %260 = vmatmul.f32.gmra.mxu0 %v71
    %v261 = vpop.f32.mrf.mxu0
    %v262 = vadd.f32 %v242, %v261
    %263 = vdwg.mxu0
    %v264 = vmul.f32 %v169, %v262
    %v265 = vadd.f32 %v238, %v264
    %v266 = vtanh.pop %v265
    %v267 = vsub.f32 1.0, %v214
    %v268 = vmul.f32 %v267, %v266
    %v269 = vmul.f32 %v214, 0.0
    %v270 = vadd.f32 %v268, %v269
    %vm271 = vcmask 254976
    %272 = vst.msk [vmem:[%s7] sm:$0x3] %vm271, %v270
    %v274 = vperm.slane %v49, 0
    %v277 = vsel %vm69, %v270, 0
    %279 = vmatpush.msra.mxu0 0.0
    %280 = vmatpush.msra.mxu0 0.0
    %281 = vmatpush.msra.mxu0 0.0
    %282 = vmatpush.msra.mxu0 0.0
    %283 = vmatpush.msra.mxu0 0.0
    %284 = vmatpush.msra.mxu0 0.0
    %285 = vmatpush.msra.mxu0 0.0
    %286 = vmatpush.msra.mxu0 0.0
    %287 = vmatpush.msra.mxu0 0.0
    %288 = vmatpush.msra.mxu0 0.0
    %289 = vmatpush.msra.mxu0 0.0
    %290 = vmatpush.msra.mxu0 0.0
    %291 = vmatpush.msra.mxu0 %v48
    %292 = vmatpush.msra.mxu0 %v47
    %293 = vmatpush.msra.mxu0 %v46
    %294 = vmatpush.msra.mxu0 %v45
    %295 = vmatmul.f32.gmra.mxu0 %v277
    %v296 = vpop.f32.mrf.mxu0
    %v297 = vadd.f32 %v274, %v296
    %298 = vdwg.mxu0
    %299 = vst.msk [vmem:[%s8] sm:$0x3] %vm271, %v297
    %s300 = scalar_lea.vmem %s0, 2
    %v301 = vld [vmem:[%s300] sm:$0x3]
    %v302 = vld [vmem:[%s1] sm:$0xff]
    %v303 = vld [vmem:[%s1 + $0x8] sm:$0xff]
    %v304 = vld [vmem:[%s1 + $0x10] sm:$0xff]
    %v305 = vld [vmem:[%s1 + $0x18] sm:$0xff]
    %v306 = vld [vmem:[%s55] sm:$0xff]
    %v307 = vld [vmem:[%s55 + $0x8] sm:$0xff]
    %v308 = vld [vmem:[%s55 + $0x10] sm:$0xff]
    %v309 = vld [vmem:[%s55 + $0x18] sm:$0xff]
    %v310 = vld [vmem:[%s60] sm:$0xff]
    %v311 = vld [vmem:[%s60 + $0x8] sm:$0xff]
    %v312 = vld [vmem:[%s60 + $0x10] sm:$0xff]
    %v313 = vld [vmem:[%s60 + $0x18] sm:$0xff]
    %v314 = vld [vmem:[%s2] sm:$0xff]
    %v315 = vld [vmem:[%s2 + $0x8] sm:$0xff]
    %v316 = vld [vmem:[%s2 + $0x10] sm:$0xff]
    %v317 = vld [vmem:[%s2 + $0x18] sm:$0xff]
    %318 = vmatpush.msra.mxu0 0.0
    %319 = vmatpush.msra.mxu0 0.0
    %320 = vmatpush.msra.mxu0 0.0
    %321 = vmatpush.msra.mxu0 0.0
    %322 = vmatpush.msra.mxu0 0.0
    %323 = vmatpush.msra.mxu0 0.0
    %324 = vmatpush.msra.mxu0 0.0
    %325 = vmatpush.msra.mxu0 0.0
    %326 = vmatpush.msra.mxu0 0.0
    %327 = vmatpush.msra.mxu0 0.0
    %328 = vmatpush.msra.mxu0 0.0
    %329 = vmatpush.msra.mxu0 0.0
    %330 = vmatpush.msra.mxu0 %v317
    %331 = vmatpush.msra.mxu0 %v316
    %332 = vmatpush.msra.mxu0 %v315
    %333 = vmatpush.msra.mxu0 %v314
    %334 = vmatmul.f32.gmra.mxu0 %v277
    %v335 = vpop.f32.mrf.mxu0
    %v336 = vadd.f32 0.0, %v335
    %337 = vdwg.mxu0
    %v338 = vld [vmem:[%s93] sm:$0xff]
    %v339 = vld [vmem:[%s93 + $0x8] sm:$0xff]
    %v340 = vld [vmem:[%s93 + $0x10] sm:$0xff]
    %v341 = vld [vmem:[%s93 + $0x18] sm:$0xff]
    %342 = vmatpush.msra.mxu0 0.0
    %343 = vmatpush.msra.mxu0 0.0
    %344 = vmatpush.msra.mxu0 0.0
    %345 = vmatpush.msra.mxu0 0.0
    %346 = vmatpush.msra.mxu0 0.0
    %347 = vmatpush.msra.mxu0 0.0
    %348 = vmatpush.msra.mxu0 0.0
    %349 = vmatpush.msra.mxu0 0.0
    %350 = vmatpush.msra.mxu0 0.0
    %351 = vmatpush.msra.mxu0 0.0
    %352 = vmatpush.msra.mxu0 0.0
    %353 = vmatpush.msra.mxu0 0.0
    %354 = vmatpush.msra.mxu0 %v341
    %355 = vmatpush.msra.mxu0 %v340
    %356 = vmatpush.msra.mxu0 %v339
    %357 = vmatpush.msra.mxu0 %v338
    %358 = vmatmul.f32.gmra.mxu0 %v277
    %v359 = vpop.f32.mrf.mxu0
    %v360 = vadd.f32 0.0, %v359
    %361 = vdwg.mxu0
    %v362 = vld [vmem:[%s118] sm:$0xff]
    %v363 = vld [vmem:[%s118 + $0x8] sm:$0xff]
    %v364 = vld [vmem:[%s118 + $0x10] sm:$0xff]
    %v365 = vld [vmem:[%s118 + $0x18] sm:$0xff]
    %v367 = vsel %vm69, %v301, 0
    %369 = vmatpush.msra.mxu0 0.0
    %370 = vmatpush.msra.mxu0 0.0
    %371 = vmatpush.msra.mxu0 0.0
    %372 = vmatpush.msra.mxu0 0.0
    %373 = vmatpush.msra.mxu0 0.0
    %374 = vmatpush.msra.mxu0 0.0
    %375 = vmatpush.msra.mxu0 0.0
    %376 = vmatpush.msra.mxu0 0.0
    %377 = vmatpush.msra.mxu0 0.0
    %378 = vmatpush.msra.mxu0 0.0
    %379 = vmatpush.msra.mxu0 0.0
    %380 = vmatpush.msra.mxu0 0.0
    %381 = vmatpush.msra.mxu0 %v305
    %382 = vmatpush.msra.mxu0 %v304
    %383 = vmatpush.msra.mxu0 %v303
    %384 = vmatpush.msra.mxu0 %v302
    %385 = vmatmul.f32.gmra.mxu0 %v367
    %v386 = vpop.f32.mrf.mxu0
    %v387 = vadd.f32 %v336, %v386
    %388 = vdwg.mxu0
    %v389 = vld [vmem:[%s3] sm:$0x1]
    %v391 = vperm.slane %v389, 0
    %v393 = vadd.f32 %v387, %v391
    %v394 = vxor.u32 %v393, 2147483648
    %v395 = vmul.f32 %v394, 1.442695
    %v396 = vpow.pop %v395
    %v397 = vadd.f32 %v396, 1.0
    %v398 = vrcp.pop %v397
    %v399 = vmul.f32 %v397, %v398
    %v400 = vsub.f32 1.0, %v399
    %v401 = vmul.f32 %v398, %v400
    %v402 = vadd.f32 %v398, %v401
    %vm403 = vweird.f32 %v397
    %vm404 = vweird.f32 %v398
    %vm405 = vmor %vm403, %vm404
    %v406 = vsel %vm405, %v398, %v402
    %v407 = vand.u32 2147483647, %v397
    %vm408 = vcmp.eq.f32.partialorder %v407, 8.507059e+37
    %v409 = vand.u32 %v397, 2147483648
    %v410 = vor.u32 1.1754944e-38, %v409
    %v411 = vsel %vm408, %v410, %v406
    %v412 = vmul.f32 1.0, %v411
    %413 = vmatpush.msra.mxu0 0.0
    %414 = vmatpush.msra.mxu0 0.0
    %415 = vmatpush.msra.mxu0 0.0
    %416 = vmatpush.msra.mxu0 0.0
    %417 = vmatpush.msra.mxu0 0.0
    %418 = vmatpush.msra.mxu0 0.0
    %419 = vmatpush.msra.mxu0 0.0
    %420 = vmatpush.msra.mxu0 0.0
    %421 = vmatpush.msra.mxu0 0.0
    %422 = vmatpush.msra.mxu0 0.0
    %423 = vmatpush.msra.mxu0 0.0
    %424 = vmatpush.msra.mxu0 0.0
    %425 = vmatpush.msra.mxu0 %v309
    %426 = vmatpush.msra.mxu0 %v308
    %427 = vmatpush.msra.mxu0 %v307
    %428 = vmatpush.msra.mxu0 %v306
    %429 = vmatmul.f32.gmra.mxu0 %v367
    %v430 = vpop.f32.mrf.mxu0
    %v431 = vadd.f32 %v360, %v430
    %432 = vdwg.mxu0
    %v433 = vld [vmem:[%s190] sm:$0x1]
    %v435 = vperm.slane %v433, 0
    %v437 = vadd.f32 %v431, %v435
    %v438 = vxor.u32 %v437, 2147483648
    %v439 = vmul.f32 %v438, 1.442695
    %v440 = vpow.pop %v439
    %v441 = vadd.f32 %v440, 1.0
    %v442 = vrcp.pop %v441
    %v443 = vmul.f32 %v441, %v442
    %v444 = vsub.f32 1.0, %v443
    %v445 = vmul.f32 %v442, %v444
    %v446 = vadd.f32 %v442, %v445
    %vm447 = vweird.f32 %v441
    %vm448 = vweird.f32 %v442
    %vm449 = vmor %vm447, %vm448
    %v450 = vsel %vm449, %v442, %v446
    %v451 = vand.u32 2147483647, %v441
    %vm452 = vcmp.eq.f32.partialorder %v451, 8.507059e+37
    %v453 = vand.u32 %v441, 2147483648
    %v454 = vor.u32 1.1754944e-38, %v453
    %v455 = vsel %vm452, %v454, %v450
    %v456 = vmul.f32 1.0, %v455
    %v457 = vld [vmem:[%s215] sm:$0x1]
    %v459 = vperm.slane %v457, 0
    %461 = vmatpush.msra.mxu0 0.0
    %462 = vmatpush.msra.mxu0 0.0
    %463 = vmatpush.msra.mxu0 0.0
    %464 = vmatpush.msra.mxu0 0.0
    %465 = vmatpush.msra.mxu0 0.0
    %466 = vmatpush.msra.mxu0 0.0
    %467 = vmatpush.msra.mxu0 0.0
    %468 = vmatpush.msra.mxu0 0.0
    %469 = vmatpush.msra.mxu0 0.0
    %470 = vmatpush.msra.mxu0 0.0
    %471 = vmatpush.msra.mxu0 0.0
    %472 = vmatpush.msra.mxu0 0.0
    %473 = vmatpush.msra.mxu0 %v313
    %474 = vmatpush.msra.mxu0 %v312
    %475 = vmatpush.msra.mxu0 %v311
    %476 = vmatpush.msra.mxu0 %v310
    %477 = vmatmul.f32.gmra.mxu0 %v367
    %v478 = vpop.f32.mrf.mxu0
    %v479 = vadd.f32 %v459, %v478
    %480 = vdwg.mxu0
    %v481 = vld [vmem:[%s4] sm:$0x1]
    %v483 = vperm.slane %v481, 0
    %485 = vmatpush.msra.mxu0 0.0
    %486 = vmatpush.msra.mxu0 0.0
    %487 = vmatpush.msra.mxu0 0.0
    %488 = vmatpush.msra.mxu0 0.0
    %489 = vmatpush.msra.mxu0 0.0
    %490 = vmatpush.msra.mxu0 0.0
    %491 = vmatpush.msra.mxu0 0.0
    %492 = vmatpush.msra.mxu0 0.0
    %493 = vmatpush.msra.mxu0 0.0
    %494 = vmatpush.msra.mxu0 0.0
    %495 = vmatpush.msra.mxu0 0.0
    %496 = vmatpush.msra.mxu0 0.0
    %497 = vmatpush.msra.mxu0 %v365
    %498 = vmatpush.msra.mxu0 %v364
    %499 = vmatpush.msra.mxu0 %v363
    %500 = vmatpush.msra.mxu0 %v362
    %501 = vmatmul.f32.gmra.mxu0 %v277
    %v502 = vpop.f32.mrf.mxu0
    %v503 = vadd.f32 %v483, %v502
    %504 = vdwg.mxu0
    %v505 = vmul.f32 %v412, %v503
    %v506 = vadd.f32 %v479, %v505
    %v507 = vtanh.pop %v506
    %v508 = vsub.f32 1.0, %v456
    %v509 = vmul.f32 %v508, %v507
    %v510 = vmul.f32 %v456, %v270
    %v511 = vadd.f32 %v509, %v510
    %s512 = scalar_lea.vmem %s7, 2
    %513 = vst.msk [vmem:[%s512] sm:$0x3] %vm271, %v511
    %v515 = vsel %vm69, %v511, 0
    %517 = vmatpush.msra.mxu0 0.0
    %518 = vmatpush.msra.mxu0 0.0
    %519 = vmatpush.msra.mxu0 0.0
    %520 = vmatpush.msra.mxu0 0.0
    %521 = vmatpush.msra.mxu0 0.0
    %522 = vmatpush.msra.mxu0 0.0
    %523 = vmatpush.msra.mxu0 0.0
    %524 = vmatpush.msra.mxu0 0.0
    %525 = vmatpush.msra.mxu0 0.0
    %526 = vmatpush.msra.mxu0 0.0
    %527 = vmatpush.msra.mxu0 0.0
    %528 = vmatpush.msra.mxu0 0.0
    %529 = vmatpush.msra.mxu0 %v48
    %530 = vmatpush.msra.mxu0 %v47
    %531 = vmatpush.msra.mxu0 %v46
    %532 = vmatpush.msra.mxu0 %v45
    %533 = vmatmul.f32.gmra.mxu0 %v515
    %v534 = vpop.f32.mrf.mxu0
    %v535 = vadd.f32 %v274, %v534
    %536 = vdwg.mxu0
    %s537 = scalar_lea.vmem %s8, 2
    %538 = vst.msk [vmem:[%s537] sm:$0x3] %vm271, %v535
    %s539 = scalar_lea.vmem %s0, 4
    %v540 = vld [vmem:[%s539] sm:$0x3]
    %v541 = vld [vmem:[%s1] sm:$0xff]
    %v542 = vld [vmem:[%s1 + $0x8] sm:$0xff]
    %v543 = vld [vmem:[%s1 + $0x10] sm:$0xff]
    %v544 = vld [vmem:[%s1 + $0x18] sm:$0xff]
    %v545 = vld [vmem:[%s55] sm:$0xff]
    %v546 = vld [vmem:[%s55 + $0x8] sm:$0xff]
    %v547 = vld [vmem:[%s55 + $0x10] sm:$0xff]
    %v548 = vld [vmem:[%s55 + $0x18] sm:$0xff]
    %v549 = vld [vmem:[%s60] sm:$0xff]
    %v550 = vld [vmem:[%s60 + $0x8] sm:$0xff]
    %v551 = vld [vmem:[%s60 + $0x10] sm:$0xff]
    %v552 = vld [vmem:[%s60 + $0x18] sm:$0xff]
    %v553 = vld [vmem:[%s2] sm:$0xff]
    %v554 = vld [vmem:[%s2 + $0x8] sm:$0xff]
    %v555 = vld [vmem:[%s2 + $0x10] sm:$0xff]
    %v556 = vld [vmem:[%s2 + $0x18] sm:$0xff]
    %557 = vmatpush.msra.mxu0 0.0
    %558 = vmatpush.msra.mxu0 0.0
    %559 = vmatpush.msra.mxu0 0.0
    %560 = vmatpush.msra.mxu0 0.0
    %561 = vmatpush.msra.mxu0 0.0
    %562 = vmatpush.msra.mxu0 0.0
    %563 = vmatpush.msra.mxu0 0.0
    %564 = vmatpush.msra.mxu0 0.0
    %565 = vmatpush.msra.mxu0 0.0
    %566 = vmatpush.msra.mxu0 0.0
    %567 = vmatpush.msra.mxu0 0.0
    %568 = vmatpush.msra.mxu0 0.0
    %569 = vmatpush.msra.mxu0 %v556
    %570 = vmatpush.msra.mxu0 %v555
    %571 = vmatpush.msra.mxu0 %v554
    %572 = vmatpush.msra.mxu0 %v553
    %573 = vmatmul.f32.gmra.mxu0 %v515
    %v574 = vpop.f32.mrf.mxu0
    %v575 = vadd.f32 0.0, %v574
    %576 = vdwg.mxu0
    %v577 = vld [vmem:[%s93] sm:$0xff]
    %v578 = vld [vmem:[%s93 + $0x8] sm:$0xff]
    %v579 = vld [vmem:[%s93 + $0x10] sm:$0xff]
    %v580 = vld [vmem:[%s93 + $0x18] sm:$0xff]
    %581 = vmatpush.msra.mxu0 0.0
    %582 = vmatpush.msra.mxu0 0.0
    %583 = vmatpush.msra.mxu0 0.0
    %584 = vmatpush.msra.mxu0 0.0
    %585 = vmatpush.msra.mxu0 0.0
    %586 = vmatpush.msra.mxu0 0.0
    %587 = vmatpush.msra.mxu0 0.0
    %588 = vmatpush.msra.mxu0 0.0
    %589 = vmatpush.msra.mxu0 0.0
    %590 = vmatpush.msra.mxu0 0.0
    %591 = vmatpush.msra.mxu0 0.0
    %592 = vmatpush.msra.mxu0 0.0
    %593 = vmatpush.msra.mxu0 %v580
    %594 = vmatpush.msra.mxu0 %v579
    %595 = vmatpush.msra.mxu0 %v578
    %596 = vmatpush.msra.mxu0 %v577
    %597 = vmatmul.f32.gmra.mxu0 %v515
    %v598 = vpop.f32.mrf.mxu0
    %v599 = vadd.f32 0.0, %v598
    %600 = vdwg.mxu0
    %v601 = vld [vmem:[%s118] sm:$0xff]
    %v602 = vld [vmem:[%s118 + $0x8] sm:$0xff]
    %v603 = vld [vmem:[%s118 + $0x10] sm:$0xff]
    %v604 = vld [vmem:[%s118 + $0x18] sm:$0xff]
    %v606 = vsel %vm69, %v540, 0
    %608 = vmatpush.msra.mxu0 0.0
    %609 = vmatpush.msra.mxu0 0.0
    %610 = vmatpush.msra.mxu0 0.0
    %611 = vmatpush.msra.mxu0 0.0
    %612 = vmatpush.msra.mxu0 0.0
    %613 = vmatpush.msra.mxu0 0.0
    %614 = vmatpush.msra.mxu0 0.0
    %615 = vmatpush.msra.mxu0 0.0
    %616 = vmatpush.msra.mxu0 0.0
    %617 = vmatpush.msra.mxu0 0.0
    %618 = vmatpush.msra.mxu0 0.0
    %619 = vmatpush.msra.mxu0 0.0
    %620 = vmatpush.msra.mxu0 %v544
    %621 = vmatpush.msra.mxu0 %v543
    %622 = vmatpush.msra.mxu0 %v542
    %623 = vmatpush.msra.mxu0 %v541
    %624 = vmatmul.f32.gmra.mxu0 %v606
    %v625 = vpop.f32.mrf.mxu0
    %v626 = vadd.f32 %v575, %v625
    %627 = vdwg.mxu0
    %v628 = vld [vmem:[%s3] sm:$0x1]
    %v630 = vperm.slane %v628, 0
    %v632 = vadd.f32 %v626, %v630
    %v633 = vxor.u32 %v632, 2147483648
    %v634 = vmul.f32 %v633, 1.442695
    %v635 = vpow.pop %v634
    %v636 = vadd.f32 %v635, 1.0
    %v637 = vrcp.pop %v636
    %v638 = vmul.f32 %v636, %v637
    %v639 = vsub.f32 1.0, %v638
    %v640 = vmul.f32 %v637, %v639
    %v641 = vadd.f32 %v637, %v640
    %vm642 = vweird.f32 %v636
    %vm643 = vweird.f32 %v637
    %vm644 = vmor %vm642, %vm643
    %v645 = vsel %vm644, %v637, %v641
    %v646 = vand.u32 2147483647, %v636
    %vm647 = vcmp.eq.f32.partialorder %v646, 8.507059e+37
    %v648 = vand.u32 %v636, 2147483648
    %v649 = vor.u32 1.1754944e-38, %v648
    %v650 = vsel %vm647, %v649, %v645
    %v651 = vmul.f32 1.0, %v650
    %652 = vmatpush.msra.mxu0 0.0
    %653 = vmatpush.msra.mxu0 0.0
    %654 = vmatpush.msra.mxu0 0.0
    %655 = vmatpush.msra.mxu0 0.0
    %656 = vmatpush.msra.mxu0 0.0
    %657 = vmatpush.msra.mxu0 0.0
    %658 = vmatpush.msra.mxu0 0.0
    %659 = vmatpush.msra.mxu0 0.0
    %660 = vmatpush.msra.mxu0 0.0
    %661 = vmatpush.msra.mxu0 0.0
    %662 = vmatpush.msra.mxu0 0.0
    %663 = vmatpush.msra.mxu0 0.0
    %664 = vmatpush.msra.mxu0 %v548
    %665 = vmatpush.msra.mxu0 %v547
    %666 = vmatpush.msra.mxu0 %v546
    %667 = vmatpush.msra.mxu0 %v545
    %668 = vmatmul.f32.gmra.mxu0 %v606
    %v669 = vpop.f32.mrf.mxu0
    %v670 = vadd.f32 %v599, %v669
    %671 = vdwg.mxu0
    %v672 = vld [vmem:[%s190] sm:$0x1]
    %v674 = vperm.slane %v672, 0
    %v676 = vadd.f32 %v670, %v674
    %v677 = vxor.u32 %v676, 2147483648
    %v678 = vmul.f32 %v677, 1.442695
    %v679 = vpow.pop %v678
    %v680 = vadd.f32 %v679, 1.0
    %v681 = vrcp.pop %v680
    %v682 = vmul.f32 %v680, %v681
    %v683 = vsub.f32 1.0, %v682
    %v684 = vmul.f32 %v681, %v683
    %v685 = vadd.f32 %v681, %v684
    %vm686 = vweird.f32 %v680
    %vm687 = vweird.f32 %v681
    %vm688 = vmor %vm686, %vm687
    %v689 = vsel %vm688, %v681, %v685
    %v690 = vand.u32 2147483647, %v680
    %vm691 = vcmp.eq.f32.partialorder %v690, 8.507059e+37
    %v692 = vand.u32 %v680, 2147483648
    %v693 = vor.u32 1.1754944e-38, %v692
    %v694 = vsel %vm691, %v693, %v689
    %v695 = vmul.f32 1.0, %v694
    %v696 = vld [vmem:[%s215] sm:$0x1]
    %v698 = vperm.slane %v696, 0
    %700 = vmatpush.msra.mxu0 0.0
    %701 = vmatpush.msra.mxu0 0.0
    %702 = vmatpush.msra.mxu0 0.0
    %703 = vmatpush.msra.mxu0 0.0
    %704 = vmatpush.msra.mxu0 0.0
    %705 = vmatpush.msra.mxu0 0.0
    %706 = vmatpush.msra.mxu0 0.0
    %707 = vmatpush.msra.mxu0 0.0
    %708 = vmatpush.msra.mxu0 0.0
    %709 = vmatpush.msra.mxu0 0.0
    %710 = vmatpush.msra.mxu0 0.0
    %711 = vmatpush.msra.mxu0 0.0
    %712 = vmatpush.msra.mxu0 %v552
    %713 = vmatpush.msra.mxu0 %v551
    %714 = vmatpush.msra.mxu0 %v550
    %715 = vmatpush.msra.mxu0 %v549
    %716 = vmatmul.f32.gmra.mxu0 %v606
    %v717 = vpop.f32.mrf.mxu0
    %v718 = vadd.f32 %v698, %v717
    %719 = vdwg.mxu0
    %v720 = vld [vmem:[%s4] sm:$0x1]
    %v722 = vperm.slane %v720, 0
    %724 = vmatpush.msra.mxu0 0.0
    %725 = vmatpush.msra.mxu0 0.0
    %726 = vmatpush.msra.mxu0 0.0
    %727 = vmatpush.msra.mxu0 0.0
    %728 = vmatpush.msra.mxu0 0.0
    %729 = vmatpush.msra.mxu0 0.0
    %730 = vmatpush.msra.mxu0 0.0
    %731 = vmatpush.msra.mxu0 0.0
    %732 = vmatpush.msra.mxu0 0.0
    %733 = vmatpush.msra.mxu0 0.0
    %734 = vmatpush.msra.mxu0 0.0
    %735 = vmatpush.msra.mxu0 0.0
    %736 = vmatpush.msra.mxu0 %v604
    %737 = vmatpush.msra.mxu0 %v603
    %738 = vmatpush.msra.mxu0 %v602
    %739 = vmatpush.msra.mxu0 %v601
    %740 = vmatmul.f32.gmra.mxu0 %v515
    %v741 = vpop.f32.mrf.mxu0
    %v742 = vadd.f32 %v722, %v741
    %743 = vdwg.mxu0
    %v744 = vmul.f32 %v651, %v742
    %v745 = vadd.f32 %v718, %v744
    %v746 = vtanh.pop %v745
    %v747 = vsub.f32 1.0, %v695
    %v748 = vmul.f32 %v747, %v746
    %v749 = vmul.f32 %v695, %v511
    %v750 = vadd.f32 %v748, %v749
    %s751 = scalar_lea.vmem %s7, 4
    %752 = vst.msk [vmem:[%s751] sm:$0x3] %vm271, %v750
    %v754 = vsel %vm69, %v750, 0
    %756 = vmatpush.msra.mxu0 0.0
    %757 = vmatpush.msra.mxu0 0.0
    %758 = vmatpush.msra.mxu0 0.0
    %759 = vmatpush.msra.mxu0 0.0
    %760 = vmatpush.msra.mxu0 0.0
    %761 = vmatpush.msra.mxu0 0.0
    %762 = vmatpush.msra.mxu0 0.0
    %763 = vmatpush.msra.mxu0 0.0
    %764 = vmatpush.msra.mxu0 0.0
    %765 = vmatpush.msra.mxu0 0.0
    %766 = vmatpush.msra.mxu0 0.0
    %767 = vmatpush.msra.mxu0 0.0
    %768 = vmatpush.msra.mxu0 %v48
    %769 = vmatpush.msra.mxu0 %v47
    %770 = vmatpush.msra.mxu0 %v46
    %771 = vmatpush.msra.mxu0 %v45
    %772 = vmatmul.f32.gmra.mxu0 %v754
    %v773 = vpop.f32.mrf.mxu0
    %v774 = vadd.f32 %v274, %v773
    %775 = vdwg.mxu0
    %s776 = scalar_lea.vmem %s8, 4
    %777 = vst.msk [vmem:[%s776] sm:$0x3] %vm271, %v774
    %s778 = scalar_lea.vmem %s0, 6
    %v779 = vld [vmem:[%s778] sm:$0x3]
    %v780 = vld [vmem:[%s1] sm:$0xff]
    %v781 = vld [vmem:[%s1 + $0x8] sm:$0xff]
    %v782 = vld [vmem:[%s1 + $0x10] sm:$0xff]
    %v783 = vld [vmem:[%s1 + $0x18] sm:$0xff]
    %v784 = vld [vmem:[%s55] sm:$0xff]
    %v785 = vld [vmem:[%s55 + $0x8] sm:$0xff]
    %v786 = vld [vmem:[%s55 + $0x10] sm:$0xff]
    %v787 = vld [vmem:[%s55 + $0x18] sm:$0xff]
    %v788 = vld [vmem:[%s60] sm:$0xff]
    %v789 = vld [vmem:[%s60 + $0x8] sm:$0xff]
    %v790 = vld [vmem:[%s60 + $0x10] sm:$0xff]
    %v791 = vld [vmem:[%s60 + $0x18] sm:$0xff]
    %v792 = vld [vmem:[%s2] sm:$0xff]
    %v793 = vld [vmem:[%s2 + $0x8] sm:$0xff]
    %v794 = vld [vmem:[%s2 + $0x10] sm:$0xff]
    %v795 = vld [vmem:[%s2 + $0x18] sm:$0xff]
    %796 = vmatpush.msra.mxu0 0.0
    %797 = vmatpush.msra.mxu0 0.0
    %798 = vmatpush.msra.mxu0 0.0
    %799 = vmatpush.msra.mxu0 0.0
    %800 = vmatpush.msra.mxu0 0.0
    %801 = vmatpush.msra.mxu0 0.0
    %802 = vmatpush.msra.mxu0 0.0
    %803 = vmatpush.msra.mxu0 0.0
    %804 = vmatpush.msra.mxu0 0.0
    %805 = vmatpush.msra.mxu0 0.0
    %806 = vmatpush.msra.mxu0 0.0
    %807 = vmatpush.msra.mxu0 0.0
    %808 = vmatpush.msra.mxu0 %v795
    %809 = vmatpush.msra.mxu0 %v794
    %810 = vmatpush.msra.mxu0 %v793
    %811 = vmatpush.msra.mxu0 %v792
    %812 = vmatmul.f32.gmra.mxu0 %v754
    %v813 = vpop.f32.mrf.mxu0
    %v814 = vadd.f32 0.0, %v813
    %815 = vdwg.mxu0
    %v816 = vld [vmem:[%s93] sm:$0xff]
    %v817 = vld [vmem:[%s93 + $0x8] sm:$0xff]
    %v818 = vld [vmem:[%s93 + $0x10] sm:$0xff]
    %v819 = vld [vmem:[%s93 + $0x18] sm:$0xff]
    %820 = vmatpush.msra.mxu0 0.0
    %821 = vmatpush.msra.mxu0 0.0
    %822 = vmatpush.msra.mxu0 0.0
    %823 = vmatpush.msra.mxu0 0.0
    %824 = vmatpush.msra.mxu0 0.0
    %825 = vmatpush.msra.mxu0 0.0
    %826 = vmatpush.msra.mxu0 0.0
    %827 = vmatpush.msra.mxu0 0.0
    %828 = vmatpush.msra.mxu0 0.0
    %829 = vmatpush.msra.mxu0 0.0
    %830 = vmatpush.msra.mxu0 0.0
    %831 = vmatpush.msra.mxu0 0.0
    %832 = vmatpush.msra.mxu0 %v819
    %833 = vmatpush.msra.mxu0 %v818
    %834 = vmatpush.msra.mxu0 %v817
    %835 = vmatpush.msra.mxu0 %v816
    %836 = vmatmul.f32.gmra.mxu0 %v754
    %v837 = vpop.f32.mrf.mxu0
    %v838 = vadd.f32 0.0, %v837
    %839 = vdwg.mxu0
    %v840 = vld [vmem:[%s118] sm:$0xff]
    %v841 = vld [vmem:[%s118 + $0x8] sm:$0xff]
    %v842 = vld [vmem:[%s118 + $0x10] sm:$0xff]
    %v843 = vld [vmem:[%s118 + $0x18] sm:$0xff]
    %v845 = vsel %vm69, %v779, 0
    %847 = vmatpush.msra.mxu0 0.0
    %848 = vmatpush.msra.mxu0 0.0
    %849 = vmatpush.msra.mxu0 0.0
    %850 = vmatpush.msra.mxu0 0.0
    %851 = vmatpush.msra.mxu0 0.0
    %852 = vmatpush.msra.mxu0 0.0
    %853 = vmatpush.msra.mxu0 0.0
    %854 = vmatpush.msra.mxu0 0.0
    %855 = vmatpush.msra.mxu0 0.0
    %856 = vmatpush.msra.mxu0 0.0
    %857 = vmatpush.msra.mxu0 0.0
    %858 = vmatpush.msra.mxu0 0.0
    %859 = vmatpush.msra.mxu0 %v783
    %860 = vmatpush.msra.mxu0 %v782
    %861 = vmatpush.msra.mxu0 %v781
    %862 = vmatpush.msra.mxu0 %v780
    %863 = vmatmul.f32.gmra.mxu0 %v845
    %v864 = vpop.f32.mrf.mxu0
    %v865 = vadd.f32 %v814, %v864
    %866 = vdwg.mxu0
    %v867 = vld [vmem:[%s3] sm:$0x1]
    %v869 = vperm.slane %v867, 0
    %v871 = vadd.f32 %v865, %v869
    %v872 = vxor.u32 %v871, 2147483648
    %v873 = vmul.f32 %v872, 1.442695
    %v874 = vpow.pop %v873
    %v875 = vadd.f32 %v874, 1.0
    %v876 = vrcp.pop %v875
    %v877 = vmul.f32 %v875, %v876
    %v878 = vsub.f32 1.0, %v877
    %v879 = vmul.f32 %v876, %v878
    %v880 = vadd.f32 %v876, %v879
    %vm881 = vweird.f32 %v875
    %vm882 = vweird.f32 %v876
    %vm883 = vmor %vm881, %vm882
    %v884 = vsel %vm883, %v876, %v880
    %v885 = vand.u32 2147483647, %v875
    %vm886 = vcmp.eq.f32.partialorder %v885, 8.507059e+37
    %v887 = vand.u32 %v875, 2147483648
    %v888 = vor.u32 1.1754944e-38, %v887
    %v889 = vsel %vm886, %v888, %v884
    %v890 = vmul.f32 1.0, %v889
    %891 = vmatpush.msra.mxu0 0.0
    %892 = vmatpush.msra.mxu0 0.0
    %893 = vmatpush.msra.mxu0 0.0
    %894 = vmatpush.msra.mxu0 0.0
    %895 = vmatpush.msra.mxu0 0.0
    %896 = vmatpush.msra.mxu0 0.0
    %897 = vmatpush.msra.mxu0 0.0
    %898 = vmatpush.msra.mxu0 0.0
    %899 = vmatpush.msra.mxu0 0.0
    %900 = vmatpush.msra.mxu0 0.0
    %901 = vmatpush.msra.mxu0 0.0
    %902 = vmatpush.msra.mxu0 0.0
    %903 = vmatpush.msra.mxu0 %v787
    %904 = vmatpush.msra.mxu0 %v786
    %905 = vmatpush.msra.mxu0 %v785
    %906 = vmatpush.msra.mxu0 %v784
    %907 = vmatmul.f32.gmra.mxu0 %v845
    %v908 = vpop.f32.mrf.mxu0
    %v909 = vadd.f32 %v838, %v908
    %910 = vdwg.mxu0
    %v911 = vld [vmem:[%s190] sm:$0x1]
    %v913 = vperm.slane %v911, 0
    %v915 = vadd.f32 %v909, %v913
    %v916 = vxor.u32 %v915, 2147483648
    %v917 = vmul.f32 %v916, 1.442695
    %v918 = vpow.pop %v917
    %v919 = vadd.f32 %v918, 1.0
    %v920 = vrcp.pop %v919
    %v921 = vmul.f32 %v919, %v920
    %v922 = vsub.f32 1.0, %v921
    %v923 = vmul.f32 %v920, %v922
    %v924 = vadd.f32 %v920, %v923
    %vm925 = vweird.f32 %v919
    %vm926 = vweird.f32 %v920
    %vm927 = vmor %vm925, %vm926
    %v928 = vsel %vm927, %v920, %v924
    %v929 = vand.u32 2147483647, %v919
    %vm930 = vcmp.eq.f32.partialorder %v929, 8.507059e+37
    %v931 = vand.u32 %v919, 2147483648
    %v932 = vor.u32 1.1754944e-38, %v931
    %v933 = vsel %vm930, %v932, %v928
    %v934 = vmul.f32 1.0, %v933
    %v935 = vld [vmem:[%s215] sm:$0x1]
    %v937 = vperm.slane %v935, 0
    %939 = vmatpush.msra.mxu0 0.0
    %940 = vmatpush.msra.mxu0 0.0
    %941 = vmatpush.msra.mxu0 0.0
    %942 = vmatpush.msra.mxu0 0.0
    %943 = vmatpush.msra.mxu0 0.0
    %944 = vmatpush.msra.mxu0 0.0
    %945 = vmatpush.msra.mxu0 0.0
    %946 = vmatpush.msra.mxu0 0.0
    %947 = vmatpush.msra.mxu0 0.0
    %948 = vmatpush.msra.mxu0 0.0
    %949 = vmatpush.msra.mxu0 0.0
    %950 = vmatpush.msra.mxu0 0.0
    %951 = vmatpush.msra.mxu0 %v791
    %952 = vmatpush.msra.mxu0 %v790
    %953 = vmatpush.msra.mxu0 %v789
    %954 = vmatpush.msra.mxu0 %v788
    %955 = vmatmul.f32.gmra.mxu0 %v845
    %v956 = vpop.f32.mrf.mxu0
    %v957 = vadd.f32 %v937, %v956
    %958 = vdwg.mxu0
    %v959 = vld [vmem:[%s4] sm:$0x1]
    %v961 = vperm.slane %v959, 0
    %963 = vmatpush.msra.mxu0 0.0
    %964 = vmatpush.msra.mxu0 0.0
    %965 = vmatpush.msra.mxu0 0.0
    %966 = vmatpush.msra.mxu0 0.0
    %967 = vmatpush.msra.mxu0 0.0
    %968 = vmatpush.msra.mxu0 0.0
    %969 = vmatpush.msra.mxu0 0.0
    %970 = vmatpush.msra.mxu0 0.0
    %971 = vmatpush.msra.mxu0 0.0
    %972 = vmatpush.msra.mxu0 0.0
    %973 = vmatpush.msra.mxu0 0.0
    %974 = vmatpush.msra.mxu0 0.0
    %975 = vmatpush.msra.mxu0 %v843
    %976 = vmatpush.msra.mxu0 %v842
    %977 = vmatpush.msra.mxu0 %v841
    %978 = vmatpush.msra.mxu0 %v840
    %979 = vmatmul.f32.gmra.mxu0 %v754
    %v980 = vpop.f32.mrf.mxu0
    %v981 = vadd.f32 %v961, %v980
    %982 = vdwg.mxu0
    %v983 = vmul.f32 %v890, %v981
    %v984 = vadd.f32 %v957, %v983
    %v985 = vtanh.pop %v984
    %v986 = vsub.f32 1.0, %v934
    %v987 = vmul.f32 %v986, %v985
    %v988 = vmul.f32 %v934, %v750
    %v989 = vadd.f32 %v987, %v988
    %s990 = scalar_lea.vmem %s7, 6
    %991 = vst.msk [vmem:[%s990] sm:$0x3] %vm271, %v989
    %v993 = vsel %vm69, %v989, 0
    %995 = vmatpush.msra.mxu0 0.0
    %996 = vmatpush.msra.mxu0 0.0
    %997 = vmatpush.msra.mxu0 0.0
    %998 = vmatpush.msra.mxu0 0.0
    %999 = vmatpush.msra.mxu0 0.0
    %1000 = vmatpush.msra.mxu0 0.0
    %1001 = vmatpush.msra.mxu0 0.0
    %1002 = vmatpush.msra.mxu0 0.0
    %1003 = vmatpush.msra.mxu0 0.0
    %1004 = vmatpush.msra.mxu0 0.0
    %1005 = vmatpush.msra.mxu0 0.0
    %1006 = vmatpush.msra.mxu0 0.0
    %1007 = vmatpush.msra.mxu0 %v48
    %1008 = vmatpush.msra.mxu0 %v47
    %1009 = vmatpush.msra.mxu0 %v46
    %1010 = vmatpush.msra.mxu0 %v45
    %1011 = vmatmul.f32.gmra.mxu0 %v993
    %v1012 = vpop.f32.mrf.mxu0
    %v1013 = vadd.f32 %v274, %v1012
    %1014 = vdwg.mxu0
    %s1015 = scalar_lea.vmem %s8, 6
    %1016 = vst.msk [vmem:[%s1015] sm:$0x3] %vm271, %v1013
    %s1017 = scalar_lea.vmem %s0, 8
    %v1018 = vld [vmem:[%s1017] sm:$0x3]
    %v1019 = vld [vmem:[%s1] sm:$0xff]
    %v1020 = vld [vmem:[%s1 + $0x8] sm:$0xff]
    %v1021 = vld [vmem:[%s1 + $0x10] sm:$0xff]
    %v1022 = vld [vmem:[%s1 + $0x18] sm:$0xff]
    %v1023 = vld [vmem:[%s55] sm:$0xff]
    %v1024 = vld [vmem:[%s55 + $0x8] sm:$0xff]
    %v1025 = vld [vmem:[%s55 + $0x10] sm:$0xff]
    %v1026 = vld [vmem:[%s55 + $0x18] sm:$0xff]
    %v1027 = vld [vmem:[%s60] sm:$0xff]
    %v1028 = vld [vmem:[%s60 + $0x8] sm:$0xff]
    %v1029 = vld [vmem:[%s60 + $0x10] sm:$0xff]
    %v1030 = vld [vmem:[%s60 + $0x18] sm:$0xff]
    %v1031 = vld [vmem:[%s2] sm:$0xff]
    %v1032 = vld [vmem:[%s2 + $0x8] sm:$0xff]
    %v1033 = vld [vmem:[%s2 + $0x10] sm:$0xff]
    %v1034 = vld [vmem:[%s2 + $0x18] sm:$0xff]
    %1035 = vmatpush.msra.mxu0 0.0
    %1036 = vmatpush.msra.mxu0 0.0
    %1037 = vmatpush.msra.mxu0 0.0
    %1038 = vmatpush.msra.mxu0 0.0
    %1039 = vmatpush.msra.mxu0 0.0
    %1040 = vmatpush.msra.mxu0 0.0
    %1041 = vmatpush.msra.mxu0 0.0
    %1042 = vmatpush.msra.mxu0 0.0
    %1043 = vmatpush.msra.mxu0 0.0
    %1044 = vmatpush.msra.mxu0 0.0
    %1045 = vmatpush.msra.mxu0 0.0
    %1046 = vmatpush.msra.mxu0 0.0
    %1047 = vmatpush.msra.mxu0 %v1034
    %1048 = vmatpush.msra.mxu0 %v1033
    %1049 = vmatpush.msra.mxu0 %v1032
    %1050 = vmatpush.msra.mxu0 %v1031
    %1051 = vmatmul.f32.gmra.mxu0 %v993
    %v1052 = vpop.f32.mrf.mxu0
    %v1053 = vadd.f32 0.0, %v1052
    %1054 = vdwg.mxu0
    %v1055 = vld [vmem:[%s93] sm:$0xff]
    %v1056 = vld [vmem:[%s93 + $0x8] sm:$0xff]
    %v1057 = vld [vmem:[%s93 + $0x10] sm:$0xff]
    %v1058 = vld [vmem:[%s93 + $0x18] sm:$0xff]
    %1059 = vmatpush.msra.mxu0 0.0
    %1060 = vmatpush.msra.mxu0 0.0
    %1061 = vmatpush.msra.mxu0 0.0
    %1062 = vmatpush.msra.mxu0 0.0
    %1063 = vmatpush.msra.mxu0 0.0
    %1064 = vmatpush.msra.mxu0 0.0
    %1065 = vmatpush.msra.mxu0 0.0
    %1066 = vmatpush.msra.mxu0 0.0
    %1067 = vmatpush.msra.mxu0 0.0
    %1068 = vmatpush.msra.mxu0 0.0
    %1069 = vmatpush.msra.mxu0 0.0
    %1070 = vmatpush.msra.mxu0 0.0
    %1071 = vmatpush.msra.mxu0 %v1058
    %1072 = vmatpush.msra.mxu0 %v1057
    %1073 = vmatpush.msra.mxu0 %v1056
    %1074 = vmatpush.msra.mxu0 %v1055
    %1075 = vmatmul.f32.gmra.mxu0 %v993
    %v1076 = vpop.f32.mrf.mxu0
    %v1077 = vadd.f32 0.0, %v1076
    %1078 = vdwg.mxu0
    %v1079 = vld [vmem:[%s118] sm:$0xff]
    %v1080 = vld [vmem:[%s118 + $0x8] sm:$0xff]
    %v1081 = vld [vmem:[%s118 + $0x10] sm:$0xff]
    %v1082 = vld [vmem:[%s118 + $0x18] sm:$0xff]
    %v1084 = vsel %vm69, %v1018, 0
    %1086 = vmatpush.msra.mxu0 0.0
    %1087 = vmatpush.msra.mxu0 0.0
    %1088 = vmatpush.msra.mxu0 0.0
    %1089 = vmatpush.msra.mxu0 0.0
    %1090 = vmatpush.msra.mxu0 0.0
    %1091 = vmatpush.msra.mxu0 0.0
    %1092 = vmatpush.msra.mxu0 0.0
    %1093 = vmatpush.msra.mxu0 0.0
    %1094 = vmatpush.msra.mxu0 0.0
    %1095 = vmatpush.msra.mxu0 0.0
    %1096 = vmatpush.msra.mxu0 0.0
    %1097 = vmatpush.msra.mxu0 0.0
    %1098 = vmatpush.msra.mxu0 %v1022
    %1099 = vmatpush.msra.mxu0 %v1021
    %1100 = vmatpush.msra.mxu0 %v1020
    %1101 = vmatpush.msra.mxu0 %v1019
    %1102 = vmatmul.f32.gmra.mxu0 %v1084
    %v1103 = vpop.f32.mrf.mxu0
    %v1104 = vadd.f32 %v1053, %v1103
    %1105 = vdwg.mxu0
    %v1106 = vld [vmem:[%s3] sm:$0x1]
    %v1108 = vperm.slane %v1106, 0
    %v1110 = vadd.f32 %v1104, %v1108
    %v1111 = vxor.u32 %v1110, 2147483648
    %v1112 = vmul.f32 %v1111, 1.442695
    %v1113 = vpow.pop %v1112
    %v1114 = vadd.f32 %v1113, 1.0
    %v1115 = vrcp.pop %v1114
    %v1116 = vmul.f32 %v1114, %v1115
    %v1117 = vsub.f32 1.0, %v1116
    %v1118 = vmul.f32 %v1115, %v1117
    %v1119 = vadd.f32 %v1115, %v1118
    %vm1120 = vweird.f32 %v1114
    %vm1121 = vweird.f32 %v1115
    %vm1122 = vmor %vm1120, %vm1121
    %v1123 = vsel %vm1122, %v1115, %v1119
    %v1124 = vand.u32 2147483647, %v1114
    %vm1125 = vcmp.eq.f32.partialorder %v1124, 8.507059e+37
    %v1126 = vand.u32 %v1114, 2147483648
    %v1127 = vor.u32 1.1754944e-38, %v1126
    %v1128 = vsel %vm1125, %v1127, %v1123
    %v1129 = vmul.f32 1.0, %v1128
    %1130 = vmatpush.msra.mxu0 0.0
    %1131 = vmatpush.msra.mxu0 0.0
    %1132 = vmatpush.msra.mxu0 0.0
    %1133 = vmatpush.msra.mxu0 0.0
    %1134 = vmatpush.msra.mxu0 0.0
    %1135 = vmatpush.msra.mxu0 0.0
    %1136 = vmatpush.msra.mxu0 0.0
    %1137 = vmatpush.msra.mxu0 0.0
    %1138 = vmatpush.msra.mxu0 0.0
    %1139 = vmatpush.msra.mxu0 0.0
    %1140 = vmatpush.msra.mxu0 0.0
    %1141 = vmatpush.msra.mxu0 0.0
    %1142 = vmatpush.msra.mxu0 %v1026
    %1143 = vmatpush.msra.mxu0 %v1025
    %1144 = vmatpush.msra.mxu0 %v1024
    %1145 = vmatpush.msra.mxu0 %v1023
    %1146 = vmatmul.f32.gmra.mxu0 %v1084
    %v1147 = vpop.f32.mrf.mxu0
    %v1148 = vadd.f32 %v1077, %v1147
    %1149 = vdwg.mxu0
    %v1150 = vld [vmem:[%s190] sm:$0x1]
    %v1152 = vperm.slane %v1150, 0
    %v1154 = vadd.f32 %v1148, %v1152
    %v1155 = vxor.u32 %v1154, 2147483648
    %v1156 = vmul.f32 %v1155, 1.442695
    %v1157 = vpow.pop %v1156
    %v1158 = vadd.f32 %v1157, 1.0
    %v1159 = vrcp.pop %v1158
    %v1160 = vmul.f32 %v1158, %v1159
    %v1161 = vsub.f32 1.0, %v1160
    %v1162 = vmul.f32 %v1159, %v1161
    %v1163 = vadd.f32 %v1159, %v1162
    %vm1164 = vweird.f32 %v1158
    %vm1165 = vweird.f32 %v1159
    %vm1166 = vmor %vm1164, %vm1165
    %v1167 = vsel %vm1166, %v1159, %v1163
    %v1168 = vand.u32 2147483647, %v1158
    %vm1169 = vcmp.eq.f32.partialorder %v1168, 8.507059e+37
    %v1170 = vand.u32 %v1158, 2147483648
    %v1171 = vor.u32 1.1754944e-38, %v1170
    %v1172 = vsel %vm1169, %v1171, %v1167
    %v1173 = vmul.f32 1.0, %v1172
    %v1174 = vld [vmem:[%s215] sm:$0x1]
    %v1176 = vperm.slane %v1174, 0
    %1178 = vmatpush.msra.mxu0 0.0
    %1179 = vmatpush.msra.mxu0 0.0
    %1180 = vmatpush.msra.mxu0 0.0
    %1181 = vmatpush.msra.mxu0 0.0
    %1182 = vmatpush.msra.mxu0 0.0
    %1183 = vmatpush.msra.mxu0 0.0
    %1184 = vmatpush.msra.mxu0 0.0
    %1185 = vmatpush.msra.mxu0 0.0
    %1186 = vmatpush.msra.mxu0 0.0
    %1187 = vmatpush.msra.mxu0 0.0
    %1188 = vmatpush.msra.mxu0 0.0
    %1189 = vmatpush.msra.mxu0 0.0
    %1190 = vmatpush.msra.mxu0 %v1030
    %1191 = vmatpush.msra.mxu0 %v1029
    %1192 = vmatpush.msra.mxu0 %v1028
    %1193 = vmatpush.msra.mxu0 %v1027
    %1194 = vmatmul.f32.gmra.mxu0 %v1084
    %v1195 = vpop.f32.mrf.mxu0
    %v1196 = vadd.f32 %v1176, %v1195
    %1197 = vdwg.mxu0
    %v1198 = vld [vmem:[%s4] sm:$0x1]
    %v1200 = vperm.slane %v1198, 0
    %1202 = vmatpush.msra.mxu0 0.0
    %1203 = vmatpush.msra.mxu0 0.0
    %1204 = vmatpush.msra.mxu0 0.0
    %1205 = vmatpush.msra.mxu0 0.0
    %1206 = vmatpush.msra.mxu0 0.0
    %1207 = vmatpush.msra.mxu0 0.0
    %1208 = vmatpush.msra.mxu0 0.0
    %1209 = vmatpush.msra.mxu0 0.0
    %1210 = vmatpush.msra.mxu0 0.0
    %1211 = vmatpush.msra.mxu0 0.0
    %1212 = vmatpush.msra.mxu0 0.0
    %1213 = vmatpush.msra.mxu0 0.0
    %1214 = vmatpush.msra.mxu0 %v1082
    %1215 = vmatpush.msra.mxu0 %v1081
    %1216 = vmatpush.msra.mxu0 %v1080
    %1217 = vmatpush.msra.mxu0 %v1079
    %1218 = vmatmul.f32.gmra.mxu0 %v993
    %v1219 = vpop.f32.mrf.mxu0
    %v1220 = vadd.f32 %v1200, %v1219
    %1221 = vdwg.mxu0
    %v1222 = vmul.f32 %v1129, %v1220
    %v1223 = vadd.f32 %v1196, %v1222
    %v1224 = vtanh.pop %v1223
    %v1225 = vsub.f32 1.0, %v1173
    %v1226 = vmul.f32 %v1225, %v1224
    %v1227 = vmul.f32 %v1173, %v989
    %v1228 = vadd.f32 %v1226, %v1227
    %s1229 = scalar_lea.vmem %s7, 8
    %1230 = vst.msk [vmem:[%s1229] sm:$0x3] %vm271, %v1228
    %v1232 = vsel %vm69, %v1228, 0
    %1234 = vmatpush.msra.mxu0 0.0
    %1235 = vmatpush.msra.mxu0 0.0
    %1236 = vmatpush.msra.mxu0 0.0
    %1237 = vmatpush.msra.mxu0 0.0
    %1238 = vmatpush.msra.mxu0 0.0
    %1239 = vmatpush.msra.mxu0 0.0
    %1240 = vmatpush.msra.mxu0 0.0
    %1241 = vmatpush.msra.mxu0 0.0
    %1242 = vmatpush.msra.mxu0 0.0
    %1243 = vmatpush.msra.mxu0 0.0
    %1244 = vmatpush.msra.mxu0 0.0
    %1245 = vmatpush.msra.mxu0 0.0
    %1246 = vmatpush.msra.mxu0 %v48
    %1247 = vmatpush.msra.mxu0 %v47
    %1248 = vmatpush.msra.mxu0 %v46
    %1249 = vmatpush.msra.mxu0 %v45
    %1250 = vmatmul.f32.gmra.mxu0 %v1232
    %v1251 = vpop.f32.mrf.mxu0
    %v1252 = vadd.f32 %v274, %v1251
    %1253 = vdwg.mxu0
    %s1254 = scalar_lea.vmem %s8, 8
    %1255 = vst.msk [vmem:[%s1254] sm:$0x3] %vm271, %v1252
    %s1256 = scalar_lea.vmem %s0, 10
    %v1257 = vld [vmem:[%s1256] sm:$0x3]
    %v1258 = vld [vmem:[%s1] sm:$0xff]
    %v1259 = vld [vmem:[%s1 + $0x8] sm:$0xff]
    %v1260 = vld [vmem:[%s1 + $0x10] sm:$0xff]
    %v1261 = vld [vmem:[%s1 + $0x18] sm:$0xff]
    %v1262 = vld [vmem:[%s55] sm:$0xff]
    %v1263 = vld [vmem:[%s55 + $0x8] sm:$0xff]
    %v1264 = vld [vmem:[%s55 + $0x10] sm:$0xff]
    %v1265 = vld [vmem:[%s55 + $0x18] sm:$0xff]
    %v1266 = vld [vmem:[%s60] sm:$0xff]
    %v1267 = vld [vmem:[%s60 + $0x8] sm:$0xff]
    %v1268 = vld [vmem:[%s60 + $0x10] sm:$0xff]
    %v1269 = vld [vmem:[%s60 + $0x18] sm:$0xff]
    %v1270 = vld [vmem:[%s2] sm:$0xff]
    %v1271 = vld [vmem:[%s2 + $0x8] sm:$0xff]
    %v1272 = vld [vmem:[%s2 + $0x10] sm:$0xff]
    %v1273 = vld [vmem:[%s2 + $0x18] sm:$0xff]
    %1274 = vmatpush.msra.mxu0 0.0
    %1275 = vmatpush.msra.mxu0 0.0
    %1276 = vmatpush.msra.mxu0 0.0
    %1277 = vmatpush.msra.mxu0 0.0
    %1278 = vmatpush.msra.mxu0 0.0
    %1279 = vmatpush.msra.mxu0 0.0
    %1280 = vmatpush.msra.mxu0 0.0
    %1281 = vmatpush.msra.mxu0 0.0
    %1282 = vmatpush.msra.mxu0 0.0
    %1283 = vmatpush.msra.mxu0 0.0
    %1284 = vmatpush.msra.mxu0 0.0
    %1285 = vmatpush.msra.mxu0 0.0
    %1286 = vmatpush.msra.mxu0 %v1273
    %1287 = vmatpush.msra.mxu0 %v1272
    %1288 = vmatpush.msra.mxu0 %v1271
    %1289 = vmatpush.msra.mxu0 %v1270
    %1290 = vmatmul.f32.gmra.mxu0 %v1232
    %v1291 = vpop.f32.mrf.mxu0
    %v1292 = vadd.f32 0.0, %v1291
    %1293 = vdwg.mxu0
    %v1294 = vld [vmem:[%s93] sm:$0xff]
    %v1295 = vld [vmem:[%s93 + $0x8] sm:$0xff]
    %v1296 = vld [vmem:[%s93 + $0x10] sm:$0xff]
    %v1297 = vld [vmem:[%s93 + $0x18] sm:$0xff]
    %1298 = vmatpush.msra.mxu0 0.0
    %1299 = vmatpush.msra.mxu0 0.0
    %1300 = vmatpush.msra.mxu0 0.0
    %1301 = vmatpush.msra.mxu0 0.0
    %1302 = vmatpush.msra.mxu0 0.0
    %1303 = vmatpush.msra.mxu0 0.0
    %1304 = vmatpush.msra.mxu0 0.0
    %1305 = vmatpush.msra.mxu0 0.0
    %1306 = vmatpush.msra.mxu0 0.0
    %1307 = vmatpush.msra.mxu0 0.0
    %1308 = vmatpush.msra.mxu0 0.0
    %1309 = vmatpush.msra.mxu0 0.0
    %1310 = vmatpush.msra.mxu0 %v1297
    %1311 = vmatpush.msra.mxu0 %v1296
    %1312 = vmatpush.msra.mxu0 %v1295
    %1313 = vmatpush.msra.mxu0 %v1294
    %1314 = vmatmul.f32.gmra.mxu0 %v1232
    %v1315 = vpop.f32.mrf.mxu0
    %v1316 = vadd.f32 0.0, %v1315
    %1317 = vdwg.mxu0
    %v1318 = vld [vmem:[%s118] sm:$0xff]
    %v1319 = vld [vmem:[%s118 + $0x8] sm:$0xff]
    %v1320 = vld [vmem:[%s118 + $0x10] sm:$0xff]
    %v1321 = vld [vmem:[%s118 + $0x18] sm:$0xff]
    %v1323 = vsel %vm69, %v1257, 0
    %1325 = vmatpush.msra.mxu0 0.0
    %1326 = vmatpush.msra.mxu0 0.0
    %1327 = vmatpush.msra.mxu0 0.0
    %1328 = vmatpush.msra.mxu0 0.0
    %1329 = vmatpush.msra.mxu0 0.0
    %1330 = vmatpush.msra.mxu0 0.0
    %1331 = vmatpush.msra.mxu0 0.0
    %1332 = vmatpush.msra.mxu0 0.0
    %1333 = vmatpush.msra.mxu0 0.0
    %1334 = vmatpush.msra.mxu0 0.0
    %1335 = vmatpush.msra.mxu0 0.0
    %1336 = vmatpush.msra.mxu0 0.0
    %1337 = vmatpush.msra.mxu0 %v1261
    %1338 = vmatpush.msra.mxu0 %v1260
    %1339 = vmatpush.msra.mxu0 %v1259
    %1340 = vmatpush.msra.mxu0 %v1258
    %1341 = vmatmul.f32.gmra.mxu0 %v1323
    %v1342 = vpop.f32.mrf.mxu0
    %v1343 = vadd.f32 %v1292, %v1342
    %1344 = vdwg.mxu0
    %v1345 = vld [vmem:[%s3] sm:$0x1]
    %v1347 = vperm.slane %v1345, 0
    %v1349 = vadd.f32 %v1343, %v1347
    %v1350 = vxor.u32 %v1349, 2147483648
    %v1351 = vmul.f32 %v1350, 1.442695
    %v1352 = vpow.pop %v1351
    %v1353 = vadd.f32 %v1352, 1.0
    %v1354 = vrcp.pop %v1353
    %v1355 = vmul.f32 %v1353, %v1354
    %v1356 = vsub.f32 1.0, %v1355
    %v1357 = vmul.f32 %v1354, %v1356
    %v1358 = vadd.f32 %v1354, %v1357
    %vm1359 = vweird.f32 %v1353
    %vm1360 = vweird.f32 %v1354
    %vm1361 = vmor %vm1359, %vm1360
    %v1362 = vsel %vm1361, %v1354, %v1358
    %v1363 = vand.u32 2147483647, %v1353
    %vm1364 = vcmp.eq.f32.partialorder %v1363, 8.507059e+37
    %v1365 = vand.u32 %v1353, 2147483648
    %v1366 = vor.u32 1.1754944e-38, %v1365
    %v1367 = vsel %vm1364, %v1366, %v1362
    %v1368 = vmul.f32 1.0, %v1367
    %1369 = vmatpush.msra.mxu0 0.0
    %1370 = vmatpush.msra.mxu0 0.0
    %1371 = vmatpush.msra.mxu0 0.0
    %1372 = vmatpush.msra.mxu0 0.0
    %1373 = vmatpush.msra.mxu0 0.0
    %1374 = vmatpush.msra.mxu0 0.0
    %1375 = vmatpush.msra.mxu0 0.0
    %1376 = vmatpush.msra.mxu0 0.0
    %1377 = vmatpush.msra.mxu0 0.0
    %1378 = vmatpush.msra.mxu0 0.0
    %1379 = vmatpush.msra.mxu0 0.0
    %1380 = vmatpush.msra.mxu0 0.0
    %1381 = vmatpush.msra.mxu0 %v1265
    %1382 = vmatpush.msra.mxu0 %v1264
    %1383 = vmatpush.msra.mxu0 %v1263
    %1384 = vmatpush.msra.mxu0 %v1262
    %1385 = vmatmul.f32.gmra.mxu0 %v1323
    %v1386 = vpop.f32.mrf.mxu0
    %v1387 = vadd.f32 %v1316, %v1386
    %1388 = vdwg.mxu0
    %v1389 = vld [vmem:[%s190] sm:$0x1]
    %v1391 = vperm.slane %v1389, 0
    %v1393 = vadd.f32 %v1387, %v1391
    %v1394 = vxor.u32 %v1393, 2147483648
    %v1395 = vmul.f32 %v1394, 1.442695
    %v1396 = vpow.pop %v1395
    %v1397 = vadd.f32 %v1396, 1.0
    %v1398 = vrcp.pop %v1397
    %v1399 = vmul.f32 %v1397, %v1398
    %v1400 = vsub.f32 1.0, %v1399
    %v1401 = vmul.f32 %v1398, %v1400
    %v1402 = vadd.f32 %v1398, %v1401
    %vm1403 = vweird.f32 %v1397
    %vm1404 = vweird.f32 %v1398
    %vm1405 = vmor %vm1403, %vm1404
    %v1406 = vsel %vm1405, %v1398, %v1402
    %v1407 = vand.u32 2147483647, %v1397
    %vm1408 = vcmp.eq.f32.partialorder %v1407, 8.507059e+37
    %v1409 = vand.u32 %v1397, 2147483648
    %v1410 = vor.u32 1.1754944e-38, %v1409
    %v1411 = vsel %vm1408, %v1410, %v1406
    %v1412 = vmul.f32 1.0, %v1411
    %v1413 = vld [vmem:[%s215] sm:$0x1]
    %v1415 = vperm.slane %v1413, 0
    %1417 = vmatpush.msra.mxu0 0.0
    %1418 = vmatpush.msra.mxu0 0.0
    %1419 = vmatpush.msra.mxu0 0.0
    %1420 = vmatpush.msra.mxu0 0.0
    %1421 = vmatpush.msra.mxu0 0.0
    %1422 = vmatpush.msra.mxu0 0.0
    %1423 = vmatpush.msra.mxu0 0.0
    %1424 = vmatpush.msra.mxu0 0.0
    %1425 = vmatpush.msra.mxu0 0.0
    %1426 = vmatpush.msra.mxu0 0.0
    %1427 = vmatpush.msra.mxu0 0.0
    %1428 = vmatpush.msra.mxu0 0.0
    %1429 = vmatpush.msra.mxu0 %v1269
    %1430 = vmatpush.msra.mxu0 %v1268
    %1431 = vmatpush.msra.mxu0 %v1267
    %1432 = vmatpush.msra.mxu0 %v1266
    %1433 = vmatmul.f32.gmra.mxu0 %v1323
    %v1434 = vpop.f32.mrf.mxu0
    %v1435 = vadd.f32 %v1415, %v1434
    %1436 = vdwg.mxu0
    %v1437 = vld [vmem:[%s4] sm:$0x1]
    %v1439 = vperm.slane %v1437, 0
    %1441 = vmatpush.msra.mxu0 0.0
    %1442 = vmatpush.msra.mxu0 0.0
    %1443 = vmatpush.msra.mxu0 0.0
    %1444 = vmatpush.msra.mxu0 0.0
    %1445 = vmatpush.msra.mxu0 0.0
    %1446 = vmatpush.msra.mxu0 0.0
    %1447 = vmatpush.msra.mxu0 0.0
    %1448 = vmatpush.msra.mxu0 0.0
    %1449 = vmatpush.msra.mxu0 0.0
    %1450 = vmatpush.msra.mxu0 0.0
    %1451 = vmatpush.msra.mxu0 0.0
    %1452 = vmatpush.msra.mxu0 0.0
    %1453 = vmatpush.msra.mxu0 %v1321
    %1454 = vmatpush.msra.mxu0 %v1320
    %1455 = vmatpush.msra.mxu0 %v1319
    %1456 = vmatpush.msra.mxu0 %v1318
    %1457 = vmatmul.f32.gmra.mxu0 %v1232
    %v1458 = vpop.f32.mrf.mxu0
    %v1459 = vadd.f32 %v1439, %v1458
    %1460 = vdwg.mxu0
    %v1461 = vmul.f32 %v1368, %v1459
    %v1462 = vadd.f32 %v1435, %v1461
    %v1463 = vtanh.pop %v1462
    %v1464 = vsub.f32 1.0, %v1412
    %v1465 = vmul.f32 %v1464, %v1463
    %v1466 = vmul.f32 %v1412, %v1228
    %v1467 = vadd.f32 %v1465, %v1466
    %s1468 = scalar_lea.vmem %s7, 10
    %1469 = vst.msk [vmem:[%s1468] sm:$0x3] %vm271, %v1467
    %v1471 = vsel %vm69, %v1467, 0
    %1473 = vmatpush.msra.mxu0 0.0
    %1474 = vmatpush.msra.mxu0 0.0
    %1475 = vmatpush.msra.mxu0 0.0
    %1476 = vmatpush.msra.mxu0 0.0
    %1477 = vmatpush.msra.mxu0 0.0
    %1478 = vmatpush.msra.mxu0 0.0
    %1479 = vmatpush.msra.mxu0 0.0
    %1480 = vmatpush.msra.mxu0 0.0
    %1481 = vmatpush.msra.mxu0 0.0
    %1482 = vmatpush.msra.mxu0 0.0
    %1483 = vmatpush.msra.mxu0 0.0
    %1484 = vmatpush.msra.mxu0 0.0
    %1485 = vmatpush.msra.mxu0 %v48
    %1486 = vmatpush.msra.mxu0 %v47
    %1487 = vmatpush.msra.mxu0 %v46
    %1488 = vmatpush.msra.mxu0 %v45
    %1489 = vmatmul.f32.gmra.mxu0 %v1471
    %v1490 = vpop.f32.mrf.mxu0
    %v1491 = vadd.f32 %v274, %v1490
    %1492 = vdwg.mxu0
    %s1493 = scalar_lea.vmem %s8, 10
    %1494 = vst.msk [vmem:[%s1493] sm:$0x3] %vm271, %v1491
    %s1495 = scalar_lea.vmem %s0, 12
    %v1496 = vld [vmem:[%s1495] sm:$0x3]
    %v1497 = vld [vmem:[%s1] sm:$0xff]
    %v1498 = vld [vmem:[%s1 + $0x8] sm:$0xff]
    %v1499 = vld [vmem:[%s1 + $0x10] sm:$0xff]
    %v1500 = vld [vmem:[%s1 + $0x18] sm:$0xff]
    %v1501 = vld [vmem:[%s55] sm:$0xff]
    %v1502 = vld [vmem:[%s55 + $0x8] sm:$0xff]
    %v1503 = vld [vmem:[%s55 + $0x10] sm:$0xff]
    %v1504 = vld [vmem:[%s55 + $0x18] sm:$0xff]
    %v1505 = vld [vmem:[%s60] sm:$0xff]
    %v1506 = vld [vmem:[%s60 + $0x8] sm:$0xff]
    %v1507 = vld [vmem:[%s60 + $0x10] sm:$0xff]
    %v1508 = vld [vmem:[%s60 + $0x18] sm:$0xff]
    %v1509 = vld [vmem:[%s2] sm:$0xff]
    %v1510 = vld [vmem:[%s2 + $0x8] sm:$0xff]
    %v1511 = vld [vmem:[%s2 + $0x10] sm:$0xff]
    %v1512 = vld [vmem:[%s2 + $0x18] sm:$0xff]
    %1513 = vmatpush.msra.mxu0 0.0
    %1514 = vmatpush.msra.mxu0 0.0
    %1515 = vmatpush.msra.mxu0 0.0
    %1516 = vmatpush.msra.mxu0 0.0
    %1517 = vmatpush.msra.mxu0 0.0
    %1518 = vmatpush.msra.mxu0 0.0
    %1519 = vmatpush.msra.mxu0 0.0
    %1520 = vmatpush.msra.mxu0 0.0
    %1521 = vmatpush.msra.mxu0 0.0
    %1522 = vmatpush.msra.mxu0 0.0
    %1523 = vmatpush.msra.mxu0 0.0
    %1524 = vmatpush.msra.mxu0 0.0
    %1525 = vmatpush.msra.mxu0 %v1512
    %1526 = vmatpush.msra.mxu0 %v1511
    %1527 = vmatpush.msra.mxu0 %v1510
    %1528 = vmatpush.msra.mxu0 %v1509
    %1529 = vmatmul.f32.gmra.mxu0 %v1471
    %v1530 = vpop.f32.mrf.mxu0
    %v1531 = vadd.f32 0.0, %v1530
    %1532 = vdwg.mxu0
    %v1533 = vld [vmem:[%s93] sm:$0xff]
    %v1534 = vld [vmem:[%s93 + $0x8] sm:$0xff]
    %v1535 = vld [vmem:[%s93 + $0x10] sm:$0xff]
    %v1536 = vld [vmem:[%s93 + $0x18] sm:$0xff]
    %1537 = vmatpush.msra.mxu0 0.0
    %1538 = vmatpush.msra.mxu0 0.0
    %1539 = vmatpush.msra.mxu0 0.0
    %1540 = vmatpush.msra.mxu0 0.0
    %1541 = vmatpush.msra.mxu0 0.0
    %1542 = vmatpush.msra.mxu0 0.0
    %1543 = vmatpush.msra.mxu0 0.0
    %1544 = vmatpush.msra.mxu0 0.0
    %1545 = vmatpush.msra.mxu0 0.0
    %1546 = vmatpush.msra.mxu0 0.0
    %1547 = vmatpush.msra.mxu0 0.0
    %1548 = vmatpush.msra.mxu0 0.0
    %1549 = vmatpush.msra.mxu0 %v1536
    %1550 = vmatpush.msra.mxu0 %v1535
    %1551 = vmatpush.msra.mxu0 %v1534
    %1552 = vmatpush.msra.mxu0 %v1533
    %1553 = vmatmul.f32.gmra.mxu0 %v1471
    %v1554 = vpop.f32.mrf.mxu0
    %v1555 = vadd.f32 0.0, %v1554
    %1556 = vdwg.mxu0
    %v1557 = vld [vmem:[%s118] sm:$0xff]
    %v1558 = vld [vmem:[%s118 + $0x8] sm:$0xff]
    %v1559 = vld [vmem:[%s118 + $0x10] sm:$0xff]
    %v1560 = vld [vmem:[%s118 + $0x18] sm:$0xff]
    %v1562 = vsel %vm69, %v1496, 0
    %1564 = vmatpush.msra.mxu0 0.0
    %1565 = vmatpush.msra.mxu0 0.0
    %1566 = vmatpush.msra.mxu0 0.0
    %1567 = vmatpush.msra.mxu0 0.0
    %1568 = vmatpush.msra.mxu0 0.0
    %1569 = vmatpush.msra.mxu0 0.0
    %1570 = vmatpush.msra.mxu0 0.0
    %1571 = vmatpush.msra.mxu0 0.0
    %1572 = vmatpush.msra.mxu0 0.0
    %1573 = vmatpush.msra.mxu0 0.0
    %1574 = vmatpush.msra.mxu0 0.0
    %1575 = vmatpush.msra.mxu0 0.0
    %1576 = vmatpush.msra.mxu0 %v1500
    %1577 = vmatpush.msra.mxu0 %v1499
    %1578 = vmatpush.msra.mxu0 %v1498
    %1579 = vmatpush.msra.mxu0 %v1497
    %1580 = vmatmul.f32.gmra.mxu0 %v1562
    %v1581 = vpop.f32.mrf.mxu0
    %v1582 = vadd.f32 %v1531, %v1581
    %1583 = vdwg.mxu0
    %v1584 = vld [vmem:[%s3] sm:$0x1]
    %v1586 = vperm.slane %v1584, 0
    %v1588 = vadd.f32 %v1582, %v1586
    %v1589 = vxor.u32 %v1588, 2147483648
    %v1590 = vmul.f32 %v1589, 1.442695
    %v1591 = vpow.pop %v1590
    %v1592 = vadd.f32 %v1591, 1.0
    %v1593 = vrcp.pop %v1592
    %v1594 = vmul.f32 %v1592, %v1593
    %v1595 = vsub.f32 1.0, %v1594
    %v1596 = vmul.f32 %v1593, %v1595
    %v1597 = vadd.f32 %v1593, %v1596
    %vm1598 = vweird.f32 %v1592
    %vm1599 = vweird.f32 %v1593
    %vm1600 = vmor %vm1598, %vm1599
    %v1601 = vsel %vm1600, %v1593, %v1597
    %v1602 = vand.u32 2147483647, %v1592
    %vm1603 = vcmp.eq.f32.partialorder %v1602, 8.507059e+37
    %v1604 = vand.u32 %v1592, 2147483648
    %v1605 = vor.u32 1.1754944e-38, %v1604
    %v1606 = vsel %vm1603, %v1605, %v1601
    %v1607 = vmul.f32 1.0, %v1606
    %1608 = vmatpush.msra.mxu0 0.0
    %1609 = vmatpush.msra.mxu0 0.0
    %1610 = vmatpush.msra.mxu0 0.0
    %1611 = vmatpush.msra.mxu0 0.0
    %1612 = vmatpush.msra.mxu0 0.0
    %1613 = vmatpush.msra.mxu0 0.0
    %1614 = vmatpush.msra.mxu0 0.0
    %1615 = vmatpush.msra.mxu0 0.0
    %1616 = vmatpush.msra.mxu0 0.0
    %1617 = vmatpush.msra.mxu0 0.0
    %1618 = vmatpush.msra.mxu0 0.0
    %1619 = vmatpush.msra.mxu0 0.0
    %1620 = vmatpush.msra.mxu0 %v1504
    %1621 = vmatpush.msra.mxu0 %v1503
    %1622 = vmatpush.msra.mxu0 %v1502
    %1623 = vmatpush.msra.mxu0 %v1501
    %1624 = vmatmul.f32.gmra.mxu0 %v1562
    %v1625 = vpop.f32.mrf.mxu0
    %v1626 = vadd.f32 %v1555, %v1625
    %1627 = vdwg.mxu0
    %v1628 = vld [vmem:[%s190] sm:$0x1]
    %v1630 = vperm.slane %v1628, 0
    %v1632 = vadd.f32 %v1626, %v1630
    %v1633 = vxor.u32 %v1632, 2147483648
    %v1634 = vmul.f32 %v1633, 1.442695
    %v1635 = vpow.pop %v1634
    %v1636 = vadd.f32 %v1635, 1.0
    %v1637 = vrcp.pop %v1636
    %v1638 = vmul.f32 %v1636, %v1637
    %v1639 = vsub.f32 1.0, %v1638
    %v1640 = vmul.f32 %v1637, %v1639
    %v1641 = vadd.f32 %v1637, %v1640
    %vm1642 = vweird.f32 %v1636
    %vm1643 = vweird.f32 %v1637
    %vm1644 = vmor %vm1642, %vm1643
    %v1645 = vsel %vm1644, %v1637, %v1641
    %v1646 = vand.u32 2147483647, %v1636
    %vm1647 = vcmp.eq.f32.partialorder %v1646, 8.507059e+37
    %v1648 = vand.u32 %v1636, 2147483648
    %v1649 = vor.u32 1.1754944e-38, %v1648
    %v1650 = vsel %vm1647, %v1649, %v1645
    %v1651 = vmul.f32 1.0, %v1650
    %v1652 = vld [vmem:[%s215] sm:$0x1]
    %v1654 = vperm.slane %v1652, 0
    %1656 = vmatpush.msra.mxu0 0.0
    %1657 = vmatpush.msra.mxu0 0.0
    %1658 = vmatpush.msra.mxu0 0.0
    %1659 = vmatpush.msra.mxu0 0.0
    %1660 = vmatpush.msra.mxu0 0.0
    %1661 = vmatpush.msra.mxu0 0.0
    %1662 = vmatpush.msra.mxu0 0.0
    %1663 = vmatpush.msra.mxu0 0.0
    %1664 = vmatpush.msra.mxu0 0.0
    %1665 = vmatpush.msra.mxu0 0.0
    %1666 = vmatpush.msra.mxu0 0.0
    %1667 = vmatpush.msra.mxu0 0.0
    %1668 = vmatpush.msra.mxu0 %v1508
    %1669 = vmatpush.msra.mxu0 %v1507
    %1670 = vmatpush.msra.mxu0 %v1506
    %1671 = vmatpush.msra.mxu0 %v1505
    %1672 = vmatmul.f32.gmra.mxu0 %v1562
    %v1673 = vpop.f32.mrf.mxu0
    %v1674 = vadd.f32 %v1654, %v1673
    %1675 = vdwg.mxu0
    %v1676 = vld [vmem:[%s4] sm:$0x1]
    %v1678 = vperm.slane %v1676, 0
    %1680 = vmatpush.msra.mxu0 0.0
    %1681 = vmatpush.msra.mxu0 0.0
    %1682 = vmatpush.msra.mxu0 0.0
    %1683 = vmatpush.msra.mxu0 0.0
    %1684 = vmatpush.msra.mxu0 0.0
    %1685 = vmatpush.msra.mxu0 0.0
    %1686 = vmatpush.msra.mxu0 0.0
    %1687 = vmatpush.msra.mxu0 0.0
    %1688 = vmatpush.msra.mxu0 0.0
    %1689 = vmatpush.msra.mxu0 0.0
    %1690 = vmatpush.msra.mxu0 0.0
    %1691 = vmatpush.msra.mxu0 0.0
    %1692 = vmatpush.msra.mxu0 %v1560
    %1693 = vmatpush.msra.mxu0 %v1559
    %1694 = vmatpush.msra.mxu0 %v1558
    %1695 = vmatpush.msra.mxu0 %v1557
    %1696 = vmatmul.f32.gmra.mxu0 %v1471
    %v1697 = vpop.f32.mrf.mxu0
    %v1698 = vadd.f32 %v1678, %v1697
    %1699 = vdwg.mxu0
    %v1700 = vmul.f32 %v1607, %v1698
    %v1701 = vadd.f32 %v1674, %v1700
    %v1702 = vtanh.pop %v1701
    %v1703 = vsub.f32 1.0, %v1651
    %v1704 = vmul.f32 %v1703, %v1702
    %v1705 = vmul.f32 %v1651, %v1467
    %v1706 = vadd.f32 %v1704, %v1705
    %s1707 = scalar_lea.vmem %s7, 12
    %1708 = vst.msk [vmem:[%s1707] sm:$0x3] %vm271, %v1706
    %v1710 = vsel %vm69, %v1706, 0
    %1712 = vmatpush.msra.mxu0 0.0
    %1713 = vmatpush.msra.mxu0 0.0
    %1714 = vmatpush.msra.mxu0 0.0
    %1715 = vmatpush.msra.mxu0 0.0
    %1716 = vmatpush.msra.mxu0 0.0
    %1717 = vmatpush.msra.mxu0 0.0
    %1718 = vmatpush.msra.mxu0 0.0
    %1719 = vmatpush.msra.mxu0 0.0
    %1720 = vmatpush.msra.mxu0 0.0
    %1721 = vmatpush.msra.mxu0 0.0
    %1722 = vmatpush.msra.mxu0 0.0
    %1723 = vmatpush.msra.mxu0 0.0
    %1724 = vmatpush.msra.mxu0 %v48
    %1725 = vmatpush.msra.mxu0 %v47
    %1726 = vmatpush.msra.mxu0 %v46
    %1727 = vmatpush.msra.mxu0 %v45
    %1728 = vmatmul.f32.gmra.mxu0 %v1710
    %v1729 = vpop.f32.mrf.mxu0
    %v1730 = vadd.f32 %v274, %v1729
    %1731 = vdwg.mxu0
    %s1732 = scalar_lea.vmem %s8, 12
    %1733 = vst.msk [vmem:[%s1732] sm:$0x3] %vm271, %v1730
    %s1734 = scalar_lea.vmem %s0, 14
    %v1735 = vld [vmem:[%s1734] sm:$0x3]
    %v1736 = vld [vmem:[%s1] sm:$0xff]
    %v1737 = vld [vmem:[%s1 + $0x8] sm:$0xff]
    %v1738 = vld [vmem:[%s1 + $0x10] sm:$0xff]
    %v1739 = vld [vmem:[%s1 + $0x18] sm:$0xff]
    %v1740 = vld [vmem:[%s55] sm:$0xff]
    %v1741 = vld [vmem:[%s55 + $0x8] sm:$0xff]
    %v1742 = vld [vmem:[%s55 + $0x10] sm:$0xff]
    %v1743 = vld [vmem:[%s55 + $0x18] sm:$0xff]
    %v1744 = vld [vmem:[%s60] sm:$0xff]
    %v1745 = vld [vmem:[%s60 + $0x8] sm:$0xff]
    %v1746 = vld [vmem:[%s60 + $0x10] sm:$0xff]
    %v1747 = vld [vmem:[%s60 + $0x18] sm:$0xff]
    %v1748 = vld [vmem:[%s2] sm:$0xff]
    %v1749 = vld [vmem:[%s2 + $0x8] sm:$0xff]
    %v1750 = vld [vmem:[%s2 + $0x10] sm:$0xff]
    %v1751 = vld [vmem:[%s2 + $0x18] sm:$0xff]
    %1752 = vmatpush.msra.mxu0 0.0
    %1753 = vmatpush.msra.mxu0 0.0
    %1754 = vmatpush.msra.mxu0 0.0
    %1755 = vmatpush.msra.mxu0 0.0
    %1756 = vmatpush.msra.mxu0 0.0
    %1757 = vmatpush.msra.mxu0 0.0
    %1758 = vmatpush.msra.mxu0 0.0
    %1759 = vmatpush.msra.mxu0 0.0
    %1760 = vmatpush.msra.mxu0 0.0
    %1761 = vmatpush.msra.mxu0 0.0
    %1762 = vmatpush.msra.mxu0 0.0
    %1763 = vmatpush.msra.mxu0 0.0
    %1764 = vmatpush.msra.mxu0 %v1751
    %1765 = vmatpush.msra.mxu0 %v1750
    %1766 = vmatpush.msra.mxu0 %v1749
    %1767 = vmatpush.msra.mxu0 %v1748
    %1768 = vmatmul.f32.gmra.mxu0 %v1710
    %v1769 = vpop.f32.mrf.mxu0
    %v1770 = vadd.f32 0.0, %v1769
    %1771 = vdwg.mxu0
    %v1772 = vld [vmem:[%s93] sm:$0xff]
    %v1773 = vld [vmem:[%s93 + $0x8] sm:$0xff]
    %v1774 = vld [vmem:[%s93 + $0x10] sm:$0xff]
    %v1775 = vld [vmem:[%s93 + $0x18] sm:$0xff]
    %1776 = vmatpush.msra.mxu0 0.0
    %1777 = vmatpush.msra.mxu0 0.0
    %1778 = vmatpush.msra.mxu0 0.0
    %1779 = vmatpush.msra.mxu0 0.0
    %1780 = vmatpush.msra.mxu0 0.0
    %1781 = vmatpush.msra.mxu0 0.0
    %1782 = vmatpush.msra.mxu0 0.0
    %1783 = vmatpush.msra.mxu0 0.0
    %1784 = vmatpush.msra.mxu0 0.0
    %1785 = vmatpush.msra.mxu0 0.0
    %1786 = vmatpush.msra.mxu0 0.0
    %1787 = vmatpush.msra.mxu0 0.0
    %1788 = vmatpush.msra.mxu0 %v1775
    %1789 = vmatpush.msra.mxu0 %v1774
    %1790 = vmatpush.msra.mxu0 %v1773
    %1791 = vmatpush.msra.mxu0 %v1772
    %1792 = vmatmul.f32.gmra.mxu0 %v1710
    %v1793 = vpop.f32.mrf.mxu0
    %v1794 = vadd.f32 0.0, %v1793
    %1795 = vdwg.mxu0
    %v1796 = vld [vmem:[%s118] sm:$0xff]
    %v1797 = vld [vmem:[%s118 + $0x8] sm:$0xff]
    %v1798 = vld [vmem:[%s118 + $0x10] sm:$0xff]
    %v1799 = vld [vmem:[%s118 + $0x18] sm:$0xff]
    %v1801 = vsel %vm69, %v1735, 0
    %1803 = vmatpush.msra.mxu0 0.0
    %1804 = vmatpush.msra.mxu0 0.0
    %1805 = vmatpush.msra.mxu0 0.0
    %1806 = vmatpush.msra.mxu0 0.0
    %1807 = vmatpush.msra.mxu0 0.0
    %1808 = vmatpush.msra.mxu0 0.0
    %1809 = vmatpush.msra.mxu0 0.0
    %1810 = vmatpush.msra.mxu0 0.0
    %1811 = vmatpush.msra.mxu0 0.0
    %1812 = vmatpush.msra.mxu0 0.0
    %1813 = vmatpush.msra.mxu0 0.0
    %1814 = vmatpush.msra.mxu0 0.0
    %1815 = vmatpush.msra.mxu0 %v1739
    %1816 = vmatpush.msra.mxu0 %v1738
    %1817 = vmatpush.msra.mxu0 %v1737
    %1818 = vmatpush.msra.mxu0 %v1736
    %1819 = vmatmul.f32.gmra.mxu0 %v1801
    %v1820 = vpop.f32.mrf.mxu0
    %v1821 = vadd.f32 %v1770, %v1820
    %1822 = vdwg.mxu0
    %v1823 = vld [vmem:[%s3] sm:$0x1]
    %v1825 = vperm.slane %v1823, 0
    %v1827 = vadd.f32 %v1821, %v1825
    %v1828 = vxor.u32 %v1827, 2147483648
    %v1829 = vmul.f32 %v1828, 1.442695
    %v1830 = vpow.pop %v1829
    %v1831 = vadd.f32 %v1830, 1.0
    %v1832 = vrcp.pop %v1831
    %v1833 = vmul.f32 %v1831, %v1832
    %v1834 = vsub.f32 1.0, %v1833
    %v1835 = vmul.f32 %v1832, %v1834
    %v1836 = vadd.f32 %v1832, %v1835
    %vm1837 = vweird.f32 %v1831
    %vm1838 = vweird.f32 %v1832
    %vm1839 = vmor %vm1837, %vm1838
    %v1840 = vsel %vm1839, %v1832, %v1836
    %v1841 = vand.u32 2147483647, %v1831
    %vm1842 = vcmp.eq.f32.partialorder %v1841, 8.507059e+37
    %v1843 = vand.u32 %v1831, 2147483648
    %v1844 = vor.u32 1.1754944e-38, %v1843
    %v1845 = vsel %vm1842, %v1844, %v1840
    %v1846 = vmul.f32 1.0, %v1845
    %1847 = vmatpush.msra.mxu0 0.0
    %1848 = vmatpush.msra.mxu0 0.0
    %1849 = vmatpush.msra.mxu0 0.0
    %1850 = vmatpush.msra.mxu0 0.0
    %1851 = vmatpush.msra.mxu0 0.0
    %1852 = vmatpush.msra.mxu0 0.0
    %1853 = vmatpush.msra.mxu0 0.0
    %1854 = vmatpush.msra.mxu0 0.0
    %1855 = vmatpush.msra.mxu0 0.0
    %1856 = vmatpush.msra.mxu0 0.0
    %1857 = vmatpush.msra.mxu0 0.0
    %1858 = vmatpush.msra.mxu0 0.0
    %1859 = vmatpush.msra.mxu0 %v1743
    %1860 = vmatpush.msra.mxu0 %v1742
    %1861 = vmatpush.msra.mxu0 %v1741
    %1862 = vmatpush.msra.mxu0 %v1740
    %1863 = vmatmul.f32.gmra.mxu0 %v1801
    %v1864 = vpop.f32.mrf.mxu0
    %v1865 = vadd.f32 %v1794, %v1864
    %1866 = vdwg.mxu0
    %v1867 = vld [vmem:[%s190] sm:$0x1]
    %v1869 = vperm.slane %v1867, 0
    %v1871 = vadd.f32 %v1865, %v1869
    %v1872 = vxor.u32 %v1871, 2147483648
    %v1873 = vmul.f32 %v1872, 1.442695
    %v1874 = vpow.pop %v1873
    %v1875 = vadd.f32 %v1874, 1.0
    %v1876 = vrcp.pop %v1875
    %v1877 = vmul.f32 %v1875, %v1876
    %v1878 = vsub.f32 1.0, %v1877
    %v1879 = vmul.f32 %v1876, %v1878
    %v1880 = vadd.f32 %v1876, %v1879
    %vm1881 = vweird.f32 %v1875
    %vm1882 = vweird.f32 %v1876
    %vm1883 = vmor %vm1881, %vm1882
    %v1884 = vsel %vm1883, %v1876, %v1880
    %v1885 = vand.u32 2147483647, %v1875
    %vm1886 = vcmp.eq.f32.partialorder %v1885, 8.507059e+37
    %v1887 = vand.u32 %v1875, 2147483648
    %v1888 = vor.u32 1.1754944e-38, %v1887
    %v1889 = vsel %vm1886, %v1888, %v1884
    %v1890 = vmul.f32 1.0, %v1889
    %v1891 = vld [vmem:[%s215] sm:$0x1]
    %v1893 = vperm.slane %v1891, 0
    %1895 = vmatpush.msra.mxu0 0.0
    %1896 = vmatpush.msra.mxu0 0.0
    %1897 = vmatpush.msra.mxu0 0.0
    %1898 = vmatpush.msra.mxu0 0.0
    %1899 = vmatpush.msra.mxu0 0.0
    %1900 = vmatpush.msra.mxu0 0.0
    %1901 = vmatpush.msra.mxu0 0.0
    %1902 = vmatpush.msra.mxu0 0.0
    %1903 = vmatpush.msra.mxu0 0.0
    %1904 = vmatpush.msra.mxu0 0.0
    %1905 = vmatpush.msra.mxu0 0.0
    %1906 = vmatpush.msra.mxu0 0.0
    %1907 = vmatpush.msra.mxu0 %v1747
    %1908 = vmatpush.msra.mxu0 %v1746
    %1909 = vmatpush.msra.mxu0 %v1745
    %1910 = vmatpush.msra.mxu0 %v1744
    %1911 = vmatmul.f32.gmra.mxu0 %v1801
    %v1912 = vpop.f32.mrf.mxu0
    %v1913 = vadd.f32 %v1893, %v1912
    %1914 = vdwg.mxu0
    %v1915 = vld [vmem:[%s4] sm:$0x1]
    %v1917 = vperm.slane %v1915, 0
    %1919 = vmatpush.msra.mxu0 0.0
    %1920 = vmatpush.msra.mxu0 0.0
    %1921 = vmatpush.msra.mxu0 0.0
    %1922 = vmatpush.msra.mxu0 0.0
    %1923 = vmatpush.msra.mxu0 0.0
    %1924 = vmatpush.msra.mxu0 0.0
    %1925 = vmatpush.msra.mxu0 0.0
    %1926 = vmatpush.msra.mxu0 0.0
    %1927 = vmatpush.msra.mxu0 0.0
    %1928 = vmatpush.msra.mxu0 0.0
    %1929 = vmatpush.msra.mxu0 0.0
    %1930 = vmatpush.msra.mxu0 0.0
    %1931 = vmatpush.msra.mxu0 %v1799
    %1932 = vmatpush.msra.mxu0 %v1798
    %1933 = vmatpush.msra.mxu0 %v1797
    %1934 = vmatpush.msra.mxu0 %v1796
    %1935 = vmatmul.f32.gmra.mxu0 %v1710
    %v1936 = vpop.f32.mrf.mxu0
    %v1937 = vadd.f32 %v1917, %v1936
    %1938 = vdwg.mxu0
    %v1939 = vmul.f32 %v1846, %v1937
    %v1940 = vadd.f32 %v1913, %v1939
    %v1941 = vtanh.pop %v1940
    %v1942 = vsub.f32 1.0, %v1890
    %v1943 = vmul.f32 %v1942, %v1941
    %v1944 = vmul.f32 %v1890, %v1706
    %v1945 = vadd.f32 %v1943, %v1944
    %s1946 = scalar_lea.vmem %s7, 14
    %1947 = vst.msk [vmem:[%s1946] sm:$0x3] %vm271, %v1945
    %v1949 = vsel %vm69, %v1945, 0
    %1951 = vmatpush.msra.mxu0 0.0
    %1952 = vmatpush.msra.mxu0 0.0
    %1953 = vmatpush.msra.mxu0 0.0
    %1954 = vmatpush.msra.mxu0 0.0
    %1955 = vmatpush.msra.mxu0 0.0
    %1956 = vmatpush.msra.mxu0 0.0
    %1957 = vmatpush.msra.mxu0 0.0
    %1958 = vmatpush.msra.mxu0 0.0
    %1959 = vmatpush.msra.mxu0 0.0
    %1960 = vmatpush.msra.mxu0 0.0
    %1961 = vmatpush.msra.mxu0 0.0
    %1962 = vmatpush.msra.mxu0 0.0
    %1963 = vmatpush.msra.mxu0 %v48
    %1964 = vmatpush.msra.mxu0 %v47
    %1965 = vmatpush.msra.mxu0 %v46
    %1966 = vmatpush.msra.mxu0 %v45
    %1967 = vmatmul.f32.gmra.mxu0 %v1949
    %v1968 = vpop.f32.mrf.mxu0
    %v1969 = vadd.f32 %v274, %v1968
    %1970 = vdwg.mxu0
    %s1971 = scalar_lea.vmem %s8, 14
    %1972 = vst.msk [vmem:[%s1971] sm:$0x3] %vm271, %v1969
    %1973 = vst.msk [vmem:[%s9] sm:$0x3] %vm271, %v1945
    // Predicated region
    $region34: #{seq2seq_forward.2} parent=1 // pred_check
      _
    $region35: #{seq2seq_forward.2} parent=1 // pred_check_branch
      %1975 = sbr.rel (0) target = $region37
    $region36: #{seq2seq_forward.2} parent=1 // pred_region
      _
    $region37: #{seq2seq_forward.2} parent=1 // pred_fallthru
      _
    // Predicated region
    $region38: #{seq2seq_forward.2} parent=1 // pred_check
      _
    $region39: #{seq2seq_forward.2} parent=1 // pred_check_branch
      %1977 = sbr.rel (0) target = $region41
    $region40: #{seq2seq_forward.2} parent=1 // pred_region
      _
    $region41: #{seq2seq_forward.2} parent=1 // pred_fallthru
      _
    // Predicated region
    $region42: #{seq2seq_forward.2} parent=1 // pred_check
      _
    $region43: #{seq2seq_forward.2} parent=1 // pred_check_branch
      %1979 = sbr.rel (0) target = $region45
    $region44: #{seq2seq_forward.2} parent=1 // pred_region
      _
    $region45: #{seq2seq_forward.2} parent=1 // pred_fallthru
      _
    // Predicated region
    $region46: #{seq2seq_forward.2} parent=1 // pred_check
      _
    $region47: #{seq2seq_forward.2} parent=1 // pred_check_branch
      %1981 = sbr.rel (0) target = $region49
    $region48: #{seq2seq_forward.2} parent=1 // pred_region
      _
    $region49: #{seq2seq_forward.2} parent=1 // pred_fallthru
      _
    // Predicated region
    $region50: #{seq2seq_forward.2} parent=1 // pred_check
      _
    $region51: #{seq2seq_forward.2} parent=1 // pred_check_branch
      %1983 = sbr.rel (0) target = $region53
    $region52: #{seq2seq_forward.2} parent=1 // pred_region
      _
    $region53: #{seq2seq_forward.2} parent=1 // pred_fallthru
      _
    // Predicated region
    $region54: #{seq2seq_forward.2} parent=1 // pred_check
      _
    $region55: #{seq2seq_forward.2} parent=1 // pred_check_branch
      %1985 = sbr.rel (0) target = $region57
    $region56: #{seq2seq_forward.2} parent=1 // pred_region
      _
    $region57: #{seq2seq_forward.2} parent=1 // pred_fallthru
      _
    %1986 = vsyncpa [#allocation3], 1

</llo_original>
